<compile_context>
chip_gen: v6e
topology: v6e:2x2x1
jax: 0.10.0
libtpu: 0.0.40
codegen_flags: <defaults>
</compile_context>

<pallas_src>
import functools
import math

import jax
import jax.numpy as jnp
from jax.experimental import pallas as pl
from jax.experimental.pallas import tpu as pltpu


# ----------------------------------------------------------------------------
# Fused BasicBlock kernel
# ----------------------------------------------------------------------------
def _basic_block_kernel(*refs, stride, TR, Ho, Wo, Cin, P, has_sc_conv):
    """One (image, output-row-tile) step of the fused BasicBlock.

    refs (in order):
      x refs      : stride==1 -> [1, H+2, W+2, Cin] padded NHWC slab
                    stride==2 -> 4 parity planes [1, H/2+1, W/2+1, Cin]
      w1 [9*Cin,P], b1 [1,P], w2 [9*P,P], b2 [1,P]
      (ws [Cin,P], bs [1,P])  if the block has a 1x1-conv shortcut
      o_ref  [1, TR*Wo*P/128, 128]   lane-dense output tile (bf16)
      mid_ref [TR+2, Wo+2, P]        VMEM scratch: padded conv1 activation tile
    """
    n_x = 1 if stride == 1 else 4
    x_refs = refs[:n_x]
    w1_ref, b1_ref, w2_ref, b2_ref = refs[n_x:n_x + 4]
    i = n_x + 4
    if has_sc_conv:
        ws_ref, bs_ref = refs[i], refs[i + 1]
        i += 2
    o_ref, mid_ref = refs[i], refs[i + 1]

    r = pl.program_id(1)                       # output-row tile index

    # Padded conv1-activation tile lives in VMEM for the whole block.
    mid_ref[...] = jnp.zeros_like(mid_ref)

    def conv1_rows(mr0, nrows):
        """conv1 (+folded BN bias, +ReLU) for `nrows` consecutive conv1-output
        rows starting at (valid) global row `mr0`.  Single K=9*Cin GEMM."""
        taps = []
        for ky in range(3):
            for kx in range(3):
                if stride == 1:
                    xr = x_refs[0][0, pl.ds(mr0 + ky, nrows), :, :]
                    taps.append(xr[:, kx:kx + Wo, :])
                else:  # stride 2: parity planes -> all tap reads contiguous
                    plane = x_refs[2 * (ky % 2) + (kx % 2)]
                    xr = plane[0, pl.ds(mr0 + ky // 2, nrows), :, :]
                    taps.append(xr[:, kx // 2:kx // 2 + Wo, :])
        patches = jnp.concatenate(taps, axis=-1).reshape(nrows * Wo, 9 * Cin)
        acc = jnp.dot(patches, w1_ref[...], preferred_element_type=jnp.float32)
        acc = jnp.maximum(acc + b1_ref[...], 0.0)
        return acc.reshape(nrows, Wo, P).astype(mid_ref.dtype)

    # conv1 for the TR rows owned by this tile — one GEMM ...
    mid_ref[1:1 + TR, 1:1 + Wo, :] = conv1_rows(r * TR, TR)

    # ... plus the 2 halo rows conv2 needs (stay zero at the image border).
    for j, mr in ((0, r * TR - 1), (TR + 1, r * TR + TR)):
        @pl.when(jnp.logical_and(mr >= 0, mr < Ho))
        def _(j=j, mr=mr):
            mid_ref[j, 1:1 + Wo, :] = conv1_rows(mr, 1)[0]

    # conv2 (+folded BN bias): one K=9*P GEMM over the padded mid tile.
    m = mid_ref[...]
    taps2 = [m[ky:ky + TR, kx:kx + Wo, :]
             for ky in range(3) for kx in range(3)]
    patches2 = jnp.concatenate(taps2, axis=-1).reshape(TR * Wo, 9 * P)
    acc = jnp.dot(patches2, w2_ref[...], preferred_element_type=jnp.float32)
    acc = acc + b2_ref[...]

    # Shortcut branch (identity, or 1x1 conv + folded BN), accumulated in f32.
    if has_sc_conv:
        if stride == 1:
            xs = x_refs[0][0, pl.ds(r * TR + 1, TR), :, :][:, 1:1 + Wo, :]
        else:
            xs = x_refs[3][0, pl.ds(r * TR, TR), :, :][:, :Wo, :]
        sc = jnp.dot(xs.reshape(TR * Wo, Cin), ws_ref[...],
                     preferred_element_type=jnp.float32) + bs_ref[...]
    else:
        xs = x_refs[0][0, pl.ds(r * TR + 1, TR), :, :][:, 1:1 + Wo, :]
        sc = xs.reshape(TR * Wo, P).astype(jnp.float32)

    out = jnp.maximum(acc + sc, 0.0).astype(o_ref.dtype)
    # Lane-dense store: last dim is a multiple of 128 regardless of P.
    o_ref[0] = out.reshape((TR * Wo * P) // 128, 128)


# ----------------------------------------------------------------------------
# Wrapper
# ----------------------------------------------------------------------------
def _choose_row_tile(ho, wo, p):
    """Largest divisor of `ho` giving >=2 row tiles (keeps both v7x TCs busy
    even at batch 1) while keeping the GEMM M = tr*wo <= 256 rows."""
    for tr in range(ho, 0, -1):
        if (ho % tr == 0 and (tr * wo * p) % 128 == 0 and tr * wo <= 256
                and ho // tr >= 2):
            return tr
    return ho


def basic_block(x, params, stride):
    """Fused BasicBlock forward.  x: [N,H,W,Cin] bf16 NHWC -> [N,Ho,Wo,P]."""
    N, H, W, Cin = x.shape
    P = params["w1"].shape[1]
    has_sc_conv = "ws" in params
    assert stride in (1, 2)
    assert params["w1"].shape[0] == 9 * Cin
    if not has_sc_conv:
        assert stride == 1 and Cin == P
    if stride == 2:
        assert H % 2 == 0 and W % 2 == 0
    Ho, Wo = H // stride, W // stride
    assert (Ho * Wo * P) % 128 == 0
    TR = _choose_row_tile(Ho, Wo, P)
    n_tiles = Ho // TR

    xpad = jnp.pad(x, ((0, 0), (1, 1), (1, 1), (0, 0)))
    if stride == 1:
        x_args = [xpad]
    else:
        # Space-to-depth parity split (same total bytes as x): keeps every
        # stride-2 tap read inside the kernel contiguous.
        x_args = [xpad[:, pr::2, pc::2, :] for pr in (0, 1) for pc in (0, 1)]

    x_specs = [pl.BlockSpec((1,) + a.shape[1:], lambda n, r: (n, 0, 0, 0))
               for a in x_args]
    full2d = lambda a: pl.BlockSpec(a.shape, lambda n, r: (0, 0))

    args = list(x_args) + [params["w1"], params["b1"],
                           params["w2"], params["b2"]]
    in_specs = x_specs + [full2d(params["w1"]), full2d(params["b1"]),
                          full2d(params["w2"]), full2d(params["b2"])]
    if has_sc_conv:
        args += [params["ws"], params["bs"]]
        in_specs += [full2d(params["ws"]), full2d(params["bs"])]

    kernel = functools.partial(
        _basic_block_kernel, stride=stride, TR=TR, Ho=Ho, Wo=Wo, Cin=Cin, P=P,
        has_sc_conv=has_sc_conv)

    out = pl.pallas_call(
        kernel,
        out_shape=jax.ShapeDtypeStruct((N, (Ho * Wo * P) // 128, 128),
                                       jnp.bfloat16),
        grid=(N, n_tiles),
        in_specs=in_specs,
        out_specs=pl.BlockSpec((1, (TR * Wo * P) // 128, 128),
                               lambda n, r: (n, r, 0)),
        scratch_shapes=[pltpu.VMEM((TR + 2, Wo + 2, P), jnp.bfloat16)],
        compiler_params=pltpu.CompilerParams(
            dimension_semantics=("parallel", "parallel"),
            vmem_limit_bytes=32 * 1024 * 1024,   # actual use <2 MiB; v7x-safe
        ),
    )(*args)
    return out.reshape(N, Ho, Wo, P)


# ----------------------------------------------------------------------------
# Parameters: synthetic conv + inference-mode BN, BN folded into the weights.
# ----------------------------------------------------------------------------
def _fold_conv_bn(wkey, bnkey, k, cin, cout, eps=1e-5):
    fan_in = k * k * cin
    w = jax.random.normal(wkey, (k, k, cin, cout), jnp.float32) / math.sqrt(fan_in)
    k1, k2, k3 = jax.random.split(bnkey, 3)
    gamma = 1.0 + 0.1 * jax.random.normal(k1, (cout,), jnp.float32)
    beta = 0.1 * jax.random.normal(k2, (cout,), jnp.float32)
    mean = 0.1 * jax.random.normal(k3, (cout,), jnp.float32)
    var = jnp.ones((cout,), jnp.float32)
    scale = gamma * jax.lax.rsqrt(var + eps)
    bias = beta - mean * scale
    w_folded = (w * scale).astype(jnp.bfloat16).reshape(k * k * cin, cout)
    return w_folded, bias.reshape(1, cout).astype(jnp.float32)


def init_basic_block_params(key, in_planes, planes, stride):
    ks = jax.random.split(key, 6)
    p = {}
    p["w1"], p["b1"] = _fold_conv_bn(ks[0], ks[1], 3, in_planes, planes)
    p["w2"], p["b2"] = _fold_conv_bn(ks[2], ks[3], 3, planes, planes)
    if stride != 1 or in_planes != planes:
        p["ws"], p["bs"] = _fold_conv_bn(ks[4], ks[5], 1, in_planes, planes)
    return p


# ----------------------------------------------------------------------------
# Pure-JAX f32 reference (same folded, bf16-rounded weights) for verification.
# ----------------------------------------------------------------------------
def _reference_basic_block(x_f32, p, stride):
    def conv(h, wmat, bias, k, s):
        w = wmat.astype(jnp.float32).reshape(k, k, -1, wmat.shape[1])
        pad = (k - 1) // 2
        y = jax.lax.conv_general_dilated(
            h, w, window_strides=(s, s), padding=((pad, pad), (pad, pad)),
            dimension_numbers=("NHWC", "HWIO", "NHWC"))
        return y + bias.reshape(1, 1, 1, -1)

    h = jax.nn.relu(conv(x_f32, p["w1"], p["b1"], 3, stride))
    y = conv(h, p["w2"], p["b2"], 3, 1)
    sc = conv(x_f32, p["ws"], p["bs"], 1, stride) if "ws" in p else x_f32
    return jax.nn.relu(y + sc)


# ----------------------------------------------------------------------------
if __name__ == "__main__":
    key = jax.random.PRNGKey(0)
    kx, kp1, kp2 = jax.random.split(key, 3)

    N, CIN, H, W = 2, 64, 16, 16
    x_nchw = jax.random.normal(kx, (N, CIN, H, W), jnp.float32)   # NCHW

    # Two BasicBlock configurations, covering both shortcut variants:
    p1 = init_basic_block_params(kp1, in_planes=CIN, planes=128, stride=2)
    p2 = init_basic_block_params(kp2, in_planes=128, planes=128, stride=1)

    @jax.jit
    def fwd(x, p1, p2):
        h = jnp.transpose(x, (0, 2, 3, 1)).astype(jnp.bfloat16)   # NCHW->NHWC
        h = basic_block(h, p1, stride=2)      # 64->128, 1x1-conv shortcut
        h = basic_block(h, p2, stride=1)      # 128->128, identity shortcut
        return jnp.transpose(h, (0, 3, 1, 2))                      # ->NCHW

    out = jax.block_until_ready(fwd(x_nchw, p1, p2))
    assert out.shape == (N, 128, H // 2, W // 2), out.shape

    got = out.astype(jnp.float32)
    assert bool(jnp.all(jnp.isfinite(got)))

    # Compare against the f32 reference (identical bf16-rounded weights/input).
    x_nhwc = jnp.transpose(x_nchw, (0, 2, 3, 1)).astype(jnp.bfloat16)
    ref = _reference_basic_block(x_nhwc.astype(jnp.float32), p1, 2)
    ref = _reference_basic_block(ref, p2, 1)
    ref = jnp.transpose(ref, (0, 3, 1, 2))
    assert bool(jnp.allclose(got, ref, atol=1e-1, rtol=1e-1)), \
        float(jnp.max(jnp.abs(got - ref)))

    print("KERNEL_OK")
</pallas_src>

<mosaic_0001>
module attributes {stable_mosaic.version = 11 : i64} {
  func.func @_basic_block_kernel(%arg0: i32, %arg1: i32, %arg2: memref<1x10x10x128xbf16, #tpu.memory_space<vmem>>, %arg3: memref<1152x128xbf16, #tpu.memory_space<vmem>>, %arg4: memref<1x128xf32, #tpu.memory_space<vmem>>, %arg5: memref<1152x128xbf16, #tpu.memory_space<vmem>>, %arg6: memref<1x128xf32, #tpu.memory_space<vmem>>, %arg7: memref<1x32x128xbf16, #tpu.memory_space<vmem>>, %arg8: memref<6x10x128xbf16, #tpu.memory_space<vmem>>) attributes {dimension_semantics = [#tpu.dimension_semantics<parallel>, #tpu.dimension_semantics<parallel>], iteration_bounds = array<i64: 2, 2>, scalar_prefetch = 0 : i64, scratch_operands = 1 : i64, tpu.core_type = #tpu.core_type<tc>, window_params = [{transform_indices = @transform_0, window_bounds = array<i64: 1, 10, 10, 128>}, {pipeline_mode = #tpu.pipeline_mode<synchronous>, transform_indices = @transform_1, window_bounds = array<i64: 1152, 128>}, {pipeline_mode = #tpu.pipeline_mode<synchronous>, transform_indices = @transform_2, window_bounds = array<i64: 1, 128>}, {pipeline_mode = #tpu.pipeline_mode<synchronous>, transform_indices = @transform_3, window_bounds = array<i64: 1152, 128>}, {pipeline_mode = #tpu.pipeline_mode<synchronous>, transform_indices = @transform_4, window_bounds = array<i64: 1, 128>}, {transform_indices = @transform_5, window_bounds = array<i64: 1, 32, 128>}]} {
    %cst = arith.constant 0.000000e+00 : bf16
    %0 = vector.broadcast %cst : bf16 to vector<6x10x128xbf16>
    %c0 = arith.constant 0 : index
    %c0_0 = arith.constant 0 : index
    %c0_1 = arith.constant 0 : index
    %1 = vector.load %arg8[%c0, %c0_0, %c0_1] : memref<6x10x128xbf16, #tpu.memory_space<vmem>>, vector<6x10x128xbf16>
    tpu.vector_store %arg8[%c0, %c0_0, %c0_1], %0 {strides = array<i32>} : memref<6x10x128xbf16, #tpu.memory_space<vmem>>, vector<6x10x128xbf16>,
    %c4_i32 = arith.constant 4 : i32
    %2 = arith.muli %arg1, %c4_i32 : i32
    %c0_i32 = arith.constant 0 : i32
    %3 = arith.addi %2, %c0_i32 : i32
    %c0_2 = arith.constant 0 : index
    %4 = arith.index_cast %3 : i32 to index
    %c0_3 = arith.constant 0 : index
    %c0_4 = arith.constant 0 : index
    %5 = vector.load %arg2[%c0_2, %4, %c0_3, %c0_4] : memref<1x10x10x128xbf16, #tpu.memory_space<vmem>>, vector<1x4x10x128xbf16>
    %6 = vector.shape_cast %5 : vector<1x4x10x128xbf16> to vector<4x10x128xbf16>
    %7 = vector.extract_strided_slice %6 {offsets = [0, 0, 0], sizes = [4, 8, 128], strides = [1, 1, 1]} : vector<4x10x128xbf16> to vector<4x8x128xbf16>
    %c0_i32_5 = arith.constant 0 : i32
    %8 = arith.addi %2, %c0_i32_5 : i32
    %c0_6 = arith.constant 0 : index
    %9 = arith.index_cast %8 : i32 to index
    %c0_7 = arith.constant 0 : index
    %c0_8 = arith.constant 0 : index
    %10 = vector.load %arg2[%c0_6, %9, %c0_7, %c0_8] : memref<1x10x10x128xbf16, #tpu.memory_space<vmem>>, vector<1x4x10x128xbf16>
    %11 = vector.shape_cast %10 : vector<1x4x10x128xbf16> to vector<4x10x128xbf16>
    %12 = vector.extract_strided_slice %11 {offsets = [0, 1, 0], sizes = [4, 8, 128], strides = [1, 1, 1]} : vector<4x10x128xbf16> to vector<4x8x128xbf16>
    %c0_i32_9 = arith.constant 0 : i32
    %13 = arith.addi %2, %c0_i32_9 : i32
    %c0_10 = arith.constant 0 : index
    %14 = arith.index_cast %13 : i32 to index
    %c0_11 = arith.constant 0 : index
    %c0_12 = arith.constant 0 : index
    %15 = vector.load %arg2[%c0_10, %14, %c0_11, %c0_12] : memref<1x10x10x128xbf16, #tpu.memory_space<vmem>>, vector<1x4x10x128xbf16>
    %16 = vector.shape_cast %15 : vector<1x4x10x128xbf16> to vector<4x10x128xbf16>
    %17 = vector.extract_strided_slice %16 {offsets = [0, 2, 0], sizes = [4, 8, 128], strides = [1, 1, 1]} : vector<4x10x128xbf16> to vector<4x8x128xbf16>
    %c1_i32 = arith.constant 1 : i32
    %18 = arith.addi %2, %c1_i32 : i32
    %c0_13 = arith.constant 0 : index
    %19 = arith.index_cast %18 : i32 to index
    %c0_14 = arith.constant 0 : index
    %c0_15 = arith.constant 0 : index
    %20 = vector.load %arg2[%c0_13, %19, %c0_14, %c0_15] : memref<1x10x10x128xbf16, #tpu.memory_space<vmem>>, vector<1x4x10x128xbf16>
    %21 = vector.shape_cast %20 : vector<1x4x10x128xbf16> to vector<4x10x128xbf16>
    %22 = vector.extract_strided_slice %21 {offsets = [0, 0, 0], sizes = [4, 8, 128], strides = [1, 1, 1]} : vector<4x10x128xbf16> to vector<4x8x128xbf16>
    %c1_i32_16 = arith.constant 1 : i32
    %23 = arith.addi %2, %c1_i32_16 : i32
    %c0_17 = arith.constant 0 : index
    %24 = arith.index_cast %23 : i32 to index
    %c0_18 = arith.constant 0 : index
    %c0_19 = arith.constant 0 : index
    %25 = vector.load %arg2[%c0_17, %24, %c0_18, %c0_19] : memref<1x10x10x128xbf16, #tpu.memory_space<vmem>>, vector<1x4x10x128xbf16>
    %26 = vector.shape_cast %25 : vector<1x4x10x128xbf16> to vector<4x10x128xbf16>
    %27 = vector.extract_strided_slice %26 {offsets = [0, 1, 0], sizes = [4, 8, 128], strides = [1, 1, 1]} : vector<4x10x128xbf16> to vector<4x8x128xbf16>
    %c1_i32_20 = arith.constant 1 : i32
    %28 = arith.addi %2, %c1_i32_20 : i32
    %c0_21 = arith.constant 0 : index
    %29 = arith.index_cast %28 : i32 to index
    %c0_22 = arith.constant 0 : index
    %c0_23 = arith.constant 0 : index
    %30 = vector.load %arg2[%c0_21, %29, %c0_22, %c0_23] : memref<1x10x10x128xbf16, #tpu.memory_space<vmem>>, vector<1x4x10x128xbf16>
    %31 = vector.shape_cast %30 : vector<1x4x10x128xbf16> to vector<4x10x128xbf16>
    %32 = vector.extract_strided_slice %31 {offsets = [0, 2, 0], sizes = [4, 8, 128], strides = [1, 1, 1]} : vector<4x10x128xbf16> to vector<4x8x128xbf16>
    %c2_i32 = arith.constant 2 : i32
    %33 = arith.addi %2, %c2_i32 : i32
    %c0_24 = arith.constant 0 : index
    %34 = arith.index_cast %33 : i32 to index
    %c0_25 = arith.constant 0 : index
    %c0_26 = arith.constant 0 : index
    %35 = vector.load %arg2[%c0_24, %34, %c0_25, %c0_26] : memref<1x10x10x128xbf16, #tpu.memory_space<vmem>>, vector<1x4x10x128xbf16>
    %36 = vector.shape_cast %35 : vector<1x4x10x128xbf16> to vector<4x10x128xbf16>
    %37 = vector.extract_strided_slice %36 {offsets = [0, 0, 0], sizes = [4, 8, 128], strides = [1, 1, 1]} : vector<4x10x128xbf16> to vector<4x8x128xbf16>
    %c2_i32_27 = arith.constant 2 : i32
    %38 = arith.addi %2, %c2_i32_27 : i32
    %c0_28 = arith.constant 0 : index
    %39 = arith.index_cast %38 : i32 to index
    %c0_29 = arith.constant 0 : index
    %c0_30 = arith.constant 0 : index
    %40 = vector.load %arg2[%c0_28, %39, %c0_29, %c0_30] : memref<1x10x10x128xbf16, #tpu.memory_space<vmem>>, vector<1x4x10x128xbf16>
    %41 = vector.shape_cast %40 : vector<1x4x10x128xbf16> to vector<4x10x128xbf16>
    %42 = vector.extract_strided_slice %41 {offsets = [0, 1, 0], sizes = [4, 8, 128], strides = [1, 1, 1]} : vector<4x10x128xbf16> to vector<4x8x128xbf16>
    %c2_i32_31 = arith.constant 2 : i32
    %43 = arith.addi %2, %c2_i32_31 : i32
    %c0_32 = arith.constant 0 : index
    %44 = arith.index_cast %43 : i32 to index
    %c0_33 = arith.constant 0 : index
    %c0_34 = arith.constant 0 : index
    %45 = vector.load %arg2[%c0_32, %44, %c0_33, %c0_34] : memref<1x10x10x128xbf16, #tpu.memory_space<vmem>>, vector<1x4x10x128xbf16>
    %46 = vector.shape_cast %45 : vector<1x4x10x128xbf16> to vector<4x10x128xbf16>
    %47 = vector.extract_strided_slice %46 {offsets = [0, 2, 0], sizes = [4, 8, 128], strides = [1, 1, 1]} : vector<4x10x128xbf16> to vector<4x8x128xbf16>
    %48 = tpu.concatenate %7, %12, %17, %22, %27, %32, %37, %42, %47 in 2 : vector<4x8x128xbf16>, vector<4x8x128xbf16>, vector<4x8x128xbf16>, vector<4x8x128xbf16>, vector<4x8x128xbf16>, vector<4x8x128xbf16>, vector<4x8x128xbf16>, vector<4x8x128xbf16>, vector<4x8x128xbf16> -> vector<4x8x1152xbf16>
    %49 = vector.shape_cast %48 : vector<4x8x1152xbf16> to vector<32x1152xbf16>
    %c0_35 = arith.constant 0 : index
    %c0_36 = arith.constant 0 : index
    %50 = vector.load %arg3[%c0_35, %c0_36] : memref<1152x128xbf16, #tpu.memory_space<vmem>>, vector<1152x128xbf16>
    %cst_37 = arith.constant dense<0.000000e+00> : vector<32x128xf32>
    %51 = tpu.matmul %49, %50, %cst_37 {dimension_numbers = #tpu.dot_dimension_numbers<[1], [0], [0], [1], [0, 0, 1, 1], [], []>} : vector<32x1152xbf16>, vector<1152x128xbf16>, vector<32x128xf32> -> vector<32x128xf32>
    %c0_38 = arith.constant 0 : index
    %c0_39 = arith.constant 0 : index
    %52 = vector.load %arg4[%c0_38, %c0_39] : memref<1x128xf32, #tpu.memory_space<vmem>>, vector<1x128xf32>
    %53 = vector.broadcast %52 : vector<1x128xf32> to vector<32x128xf32>
    %54 = arith.addf %51, %53 : vector<32x128xf32>
    %cst_40 = arith.constant 0.000000e+00 : f32
    %55 = vector.broadcast %cst_40 : f32 to vector<32x128xf32>
    %56 = arith.maximumf %54, %55 : vector<32x128xf32>
    %57 = vector.shape_cast %56 : vector<32x128xf32> to vector<4x8x128xf32>
    %58 = arith.truncf %57 : vector<4x8x128xf32> to vector<4x8x128xbf16>
    %c1 = arith.constant 1 : index
    %c1_41 = arith.constant 1 : index
    %c0_42 = arith.constant 0 : index
    %59 = vector.load %arg8[%c1, %c1_41, %c0_42] : memref<6x10x128xbf16, #tpu.memory_space<vmem>>, vector<4x8x128xbf16>
    tpu.vector_store %arg8[%c1, %c1_41, %c0_42], %58 {strides = array<i32>} : memref<6x10x128xbf16, #tpu.memory_space<vmem>>, vector<4x8x128xbf16>,
    %c4_i32_43 = arith.constant 4 : i32
    %60 = arith.muli %arg1, %c4_i32_43 : i32
    %c1_i32_44 = arith.constant 1 : i32
    %61 = arith.subi %60, %c1_i32_44 : i32
    %c4_i32_45 = arith.constant 4 : i32
    %62 = arith.muli %arg1, %c4_i32_45 : i32
    %c4_i32_46 = arith.constant 4 : i32
    %63 = arith.addi %62, %c4_i32_46 : i32
    %c0_i32_47 = arith.constant 0 : i32
    %64 = arith.cmpi sge, %61, %c0_i32_47 : i32
    %c8_i32 = arith.constant 8 : i32
    %65 = arith.cmpi slt, %61, %c8_i32 : i32
    %66 = arith.andi %64, %65 : i1
    %67 = arith.extui %66 : i1 to i32
    %c0_i32_48 = arith.constant 0 : i32
    %68 = arith.cmpi ne, %67, %c0_i32_48 : i32
    scf.if %68 {
      %c0_i32_69 = arith.constant 0 : i32
      %106 = arith.addi %61, %c0_i32_69 : i32
      %c0_70 = arith.constant 0 : index
      %107 = arith.index_cast %106 : i32 to index
      %c0_71 = arith.constant 0 : index
      %c0_72 = arith.constant 0 : index
      %108 = vector.load %arg2[%c0_70, %107, %c0_71, %c0_72] : memref<1x10x10x128xbf16, #tpu.memory_space<vmem>>, vector<1x1x10x128xbf16>
      %109 = vector.shape_cast %108 : vector<1x1x10x128xbf16> to vector<1x10x128xbf16>
      %110 = vector.extract_strided_slice %109 {offsets = [0, 0, 0], sizes = [1, 8, 128], strides = [1, 1, 1]} : vector<1x10x128xbf16> to vector<1x8x128xbf16>
      %c0_i32_73 = arith.constant 0 : i32
      %111 = arith.addi %61, %c0_i32_73 : i32
      %c0_74 = arith.constant 0 : index
      %112 = arith.index_cast %111 : i32 to index
      %c0_75 = arith.constant 0 : index
      %c0_76 = arith.constant 0 : index
      %113 = vector.load %arg2[%c0_74, %112, %c0_75, %c0_76] : memref<1x10x10x128xbf16, #tpu.memory_space<vmem>>, vector<1x1x10x128xbf16>
      %114 = vector.shape_cast %113 : vector<1x1x10x128xbf16> to vector<1x10x128xbf16>
      %115 = vector.extract_strided_slice %114 {offsets = [0, 1, 0], sizes = [1, 8, 128], strides = [1, 1, 1]} : vector<1x10x128xbf16> to vector<1x8x128xbf16>
      %c0_i32_77 = arith.constant 0 : i32
      %116 = arith.addi %61, %c0_i32_77 : i32
      %c0_78 = arith.constant 0 : index
      %117 = arith.index_cast %116 : i32 to index
      %c0_79 = arith.constant 0 : index
      %c0_80 = arith.constant 0 : index
      %118 = vector.load %arg2[%c0_78, %117, %c0_79, %c0_80] : memref<1x10x10x128xbf16, #tpu.memory_space<vmem>>, vector<1x1x10x128xbf16>
      %119 = vector.shape_cast %118 : vector<1x1x10x128xbf16> to vector<1x10x128xbf16>
      %120 = vector.extract_strided_slice %119 {offsets = [0, 2, 0], sizes = [1, 8, 128], strides = [1, 1, 1]} : vector<1x10x128xbf16> to vector<1x8x128xbf16>
      %c1_i32_81 = arith.constant 1 : i32
      %121 = arith.addi %61, %c1_i32_81 : i32
      %c0_82 = arith.constant 0 : index
      %122 = arith.index_cast %121 : i32 to index
      %c0_83 = arith.constant 0 : index
      %c0_84 = arith.constant 0 : index
      %123 = vector.load %arg2[%c0_82, %122, %c0_83, %c0_84] : memref<1x10x10x128xbf16, #tpu.memory_space<vmem>>, vector<1x1x10x128xbf16>
      %124 = vector.shape_cast %123 : vector<1x1x10x128xbf16> to vector<1x10x128xbf16>
      %125 = vector.extract_strided_slice %124 {offsets = [0, 0, 0], sizes = [1, 8, 128], strides = [1, 1, 1]} : vector<1x10x128xbf16> to vector<1x8x128xbf16>
      %c1_i32_85 = arith.constant 1 : i32
      %126 = arith.addi %61, %c1_i32_85 : i32
      %c0_86 = arith.constant 0 : index
      %127 = arith.index_cast %126 : i32 to index
      %c0_87 = arith.constant 0 : index
      %c0_88 = arith.constant 0 : index
      %128 = vector.load %arg2[%c0_86, %127, %c0_87, %c0_88] : memref<1x10x10x128xbf16, #tpu.memory_space<vmem>>, vector<1x1x10x128xbf16>
      %129 = vector.shape_cast %128 : vector<1x1x10x128xbf16> to vector<1x10x128xbf16>
      %130 = vector.extract_strided_slice %129 {offsets = [0, 1, 0], sizes = [1, 8, 128], strides = [1, 1, 1]} : vector<1x10x128xbf16> to vector<1x8x128xbf16>
      %c1_i32_89 = arith.constant 1 : i32
      %131 = arith.addi %61, %c1_i32_89 : i32
      %c0_90 = arith.constant 0 : index
      %132 = arith.index_cast %131 : i32 to index
      %c0_91 = arith.constant 0 : index
      %c0_92 = arith.constant 0 : index
      %133 = vector.load %arg2[%c0_90, %132, %c0_91, %c0_92] : memref<1x10x10x128xbf16, #tpu.memory_space<vmem>>, vector<1x1x10x128xbf16>
      %134 = vector.shape_cast %133 : vector<1x1x10x128xbf16> to vector<1x10x128xbf16>
      %135 = vector.extract_strided_slice %134 {offsets = [0, 2, 0], sizes = [1, 8, 128], strides = [1, 1, 1]} : vector<1x10x128xbf16> to vector<1x8x128xbf16>
      %c2_i32_93 = arith.constant 2 : i32
      %136 = arith.addi %61, %c2_i32_93 : i32
      %c0_94 = arith.constant 0 : index
      %137 = arith.index_cast %136 : i32 to index
      %c0_95 = arith.constant 0 : index
      %c0_96 = arith.constant 0 : index
      %138 = vector.load %arg2[%c0_94, %137, %c0_95, %c0_96] : memref<1x10x10x128xbf16, #tpu.memory_space<vmem>>, vector<1x1x10x128xbf16>
      %139 = vector.shape_cast %138 : vector<1x1x10x128xbf16> to vector<1x10x128xbf16>
      %140 = vector.extract_strided_slice %139 {offsets = [0, 0, 0], sizes = [1, 8, 128], strides = [1, 1, 1]} : vector<1x10x128xbf16> to vector<1x8x128xbf16>
      %c2_i32_97 = arith.constant 2 : i32
      %141 = arith.addi %61, %c2_i32_97 : i32
      %c0_98 = arith.constant 0 : index
      %142 = arith.index_cast %141 : i32 to index
      %c0_99 = arith.constant 0 : index
      %c0_100 = arith.constant 0 : index
      %143 = vector.load %arg2[%c0_98, %142, %c0_99, %c0_100] : memref<1x10x10x128xbf16, #tpu.memory_space<vmem>>, vector<1x1x10x128xbf16>
      %144 = vector.shape_cast %143 : vector<1x1x10x128xbf16> to vector<1x10x128xbf16>
      %145 = vector.extract_strided_slice %144 {offsets = [0, 1, 0], sizes = [1, 8, 128], strides = [1, 1, 1]} : vector<1x10x128xbf16> to vector<1x8x128xbf16>
      %c2_i32_101 = arith.constant 2 : i32
      %146 = arith.addi %61, %c2_i32_101 : i32
      %c0_102 = arith.constant 0 : index
      %147 = arith.index_cast %146 : i32 to index
      %c0_103 = arith.constant 0 : index
      %c0_104 = arith.constant 0 : index
      %148 = vector.load %arg2[%c0_102, %147, %c0_103, %c0_104] : memref<1x10x10x128xbf16, #tpu.memory_space<vmem>>, vector<1x1x10x128xbf16>
      %149 = vector.shape_cast %148 : vector<1x1x10x128xbf16> to vector<1x10x128xbf16>
      %150 = vector.extract_strided_slice %149 {offsets = [0, 2, 0], sizes = [1, 8, 128], strides = [1, 1, 1]} : vector<1x10x128xbf16> to vector<1x8x128xbf16>
      %151 = tpu.concatenate %110, %115, %120, %125, %130, %135, %140, %145, %150 in 2 : vector<1x8x128xbf16>, vector<1x8x128xbf16>, vector<1x8x128xbf16>, vector<1x8x128xbf16>, vector<1x8x128xbf16>, vector<1x8x128xbf16>, vector<1x8x128xbf16>, vector<1x8x128xbf16>, vector<1x8x128xbf16> -> vector<1x8x1152xbf16>
      %152 = vector.shape_cast %151 : vector<1x8x1152xbf16> to vector<8x1152xbf16>
      %c0_105 = arith.constant 0 : index
      %c0_106 = arith.constant 0 : index
      %153 = vector.load %arg3[%c0_105, %c0_106] : memref<1152x128xbf16, #tpu.memory_space<vmem>>, vector<1152x128xbf16>
      %cst_107 = arith.constant dense<0.000000e+00> : vector<8x128xf32>
      %154 = tpu.matmul %152, %153, %cst_107 {dimension_numbers = #tpu.dot_dimension_numbers<[1], [0], [0], [1], [0, 0, 1, 1], [], []>} : vector<8x1152xbf16>, vector<1152x128xbf16>, vector<8x128xf32> -> vector<8x128xf32>
      %c0_108 = arith.constant 0 : index
      %c0_109 = arith.constant 0 : index
      %155 = vector.load %arg4[%c0_108, %c0_109] : memref<1x128xf32, #tpu.memory_space<vmem>>, vector<1x128xf32>
      %156 = vector.broadcast %155 : vector<1x128xf32> to vector<8x128xf32>
      %157 = arith.addf %154, %156 : vector<8x128xf32>
      %cst_110 = arith.constant 0.000000e+00 : f32
      %158 = vector.broadcast %cst_110 : f32 to vector<8x128xf32>
      %159 = arith.maximumf %157, %158 : vector<8x128xf32>
      %160 = vector.shape_cast %159 : vector<8x128xf32> to vector<1x8x128xf32>
      %161 = arith.truncf %160 : vector<1x8x128xf32> to vector<1x8x128xbf16>
      %162 = vector.shape_cast %161 : vector<1x8x128xbf16> to vector<8x128xbf16>
      %c0_111 = arith.constant 0 : index
      %c1_112 = arith.constant 1 : index
      %c0_113 = arith.constant 0 : index
      %163 = vector.load %arg8[%c0_111, %c1_112, %c0_113] : memref<6x10x128xbf16, #tpu.memory_space<vmem>>, vector<1x8x128xbf16>
      %164 = vector.shape_cast %163 : vector<1x8x128xbf16> to vector<8x128xbf16>
      %165 = vector.shape_cast %162 : vector<8x128xbf16> to vector<1x8x128xbf16>
      tpu.vector_store %arg8[%c0_111, %c1_112, %c0_113], %165 {strides = array<i32>} : memref<6x10x128xbf16, #tpu.memory_space<vmem>>, vector<1x8x128xbf16>,
    } else {
    }
    %c0_i32_49 = arith.constant 0 : i32
    %69 = arith.cmpi sge, %63, %c0_i32_49 : i32
    %c8_i32_50 = arith.constant 8 : i32
    %70 = arith.cmpi slt, %63, %c8_i32_50 : i32
    %71 = arith.andi %69, %70 : i1
    %72 = arith.extui %71 : i1 to i32
    %c0_i32_51 = arith.constant 0 : i32
    %73 = arith.cmpi ne, %72, %c0_i32_51 : i32
    scf.if %73 {
      %c0_i32_69 = arith.constant 0 : i32
      %106 = arith.addi %63, %c0_i32_69 : i32
      %c0_70 = arith.constant 0 : index
      %107 = arith.index_cast %106 : i32 to index
      %c0_71 = arith.constant 0 : index
      %c0_72 = arith.constant 0 : index
      %108 = vector.load %arg2[%c0_70, %107, %c0_71, %c0_72] : memref<1x10x10x128xbf16, #tpu.memory_space<vmem>>, vector<1x1x10x128xbf16>
      %109 = vector.shape_cast %108 : vector<1x1x10x128xbf16> to vector<1x10x128xbf16>
      %110 = vector.extract_strided_slice %109 {offsets = [0, 0, 0], sizes = [1, 8, 128], strides = [1, 1, 1]} : vector<1x10x128xbf16> to vector<1x8x128xbf16>
      %c0_i32_73 = arith.constant 0 : i32
      %111 = arith.addi %63, %c0_i32_73 : i32
      %c0_74 = arith.constant 0 : index
      %112 = arith.index_cast %111 : i32 to index
      %c0_75 = arith.constant 0 : index
      %c0_76 = arith.constant 0 : index
      %113 = vector.load %arg2[%c0_74, %112, %c0_75, %c0_76] : memref<1x10x10x128xbf16, #tpu.memory_space<vmem>>, vector<1x1x10x128xbf16>
      %114 = vector.shape_cast %113 : vector<1x1x10x128xbf16> to vector<1x10x128xbf16>
      %115 = vector.extract_strided_slice %114 {offsets = [0, 1, 0], sizes = [1, 8, 128], strides = [1, 1, 1]} : vector<1x10x128xbf16> to vector<1x8x128xbf16>
      %c0_i32_77 = arith.constant 0 : i32
      %116 = arith.addi %63, %c0_i32_77 : i32
      %c0_78 = arith.constant 0 : index
      %117 = arith.index_cast %116 : i32 to index
      %c0_79 = arith.constant 0 : index
      %c0_80 = arith.constant 0 : index
      %118 = vector.load %arg2[%c0_78, %117, %c0_79, %c0_80] : memref<1x10x10x128xbf16, #tpu.memory_space<vmem>>, vector<1x1x10x128xbf16>
      %119 = vector.shape_cast %118 : vector<1x1x10x128xbf16> to vector<1x10x128xbf16>
      %120 = vector.extract_strided_slice %119 {offsets = [0, 2, 0], sizes = [1, 8, 128], strides = [1, 1, 1]} : vector<1x10x128xbf16> to vector<1x8x128xbf16>
      %c1_i32_81 = arith.constant 1 : i32
      %121 = arith.addi %63, %c1_i32_81 : i32
      %c0_82 = arith.constant 0 : index
      %122 = arith.index_cast %121 : i32 to index
      %c0_83 = arith.constant 0 : index
      %c0_84 = arith.constant 0 : index
      %123 = vector.load %arg2[%c0_82, %122, %c0_83, %c0_84] : memref<1x10x10x128xbf16, #tpu.memory_space<vmem>>, vector<1x1x10x128xbf16>
      %124 = vector.shape_cast %123 : vector<1x1x10x128xbf16> to vector<1x10x128xbf16>
      %125 = vector.extract_strided_slice %124 {offsets = [0, 0, 0], sizes = [1, 8, 128], strides = [1, 1, 1]} : vector<1x10x128xbf16> to vector<1x8x128xbf16>
      %c1_i32_85 = arith.constant 1 : i32
      %126 = arith.addi %63, %c1_i32_85 : i32
      %c0_86 = arith.constant 0 : index
      %127 = arith.index_cast %126 : i32 to index
      %c0_87 = arith.constant 0 : index
      %c0_88 = arith.constant 0 : index
      %128 = vector.load %arg2[%c0_86, %127, %c0_87, %c0_88] : memref<1x10x10x128xbf16, #tpu.memory_space<vmem>>, vector<1x1x10x128xbf16>
      %129 = vector.shape_cast %128 : vector<1x1x10x128xbf16> to vector<1x10x128xbf16>
      %130 = vector.extract_strided_slice %129 {offsets = [0, 1, 0], sizes = [1, 8, 128], strides = [1, 1, 1]} : vector<1x10x128xbf16> to vector<1x8x128xbf16>
      %c1_i32_89 = arith.constant 1 : i32
      %131 = arith.addi %63, %c1_i32_89 : i32
      %c0_90 = arith.constant 0 : index
      %132 = arith.index_cast %131 : i32 to index
      %c0_91 = arith.constant 0 : index
      %c0_92 = arith.constant 0 : index
      %133 = vector.load %arg2[%c0_90, %132, %c0_91, %c0_92] : memref<1x10x10x128xbf16, #tpu.memory_space<vmem>>, vector<1x1x10x128xbf16>
      %134 = vector.shape_cast %133 : vector<1x1x10x128xbf16> to vector<1x10x128xbf16>
      %135 = vector.extract_strided_slice %134 {offsets = [0, 2, 0], sizes = [1, 8, 128], strides = [1, 1, 1]} : vector<1x10x128xbf16> to vector<1x8x128xbf16>
      %c2_i32_93 = arith.constant 2 : i32
      %136 = arith.addi %63, %c2_i32_93 : i32
      %c0_94 = arith.constant 0 : index
      %137 = arith.index_cast %136 : i32 to index
      %c0_95 = arith.constant 0 : index
      %c0_96 = arith.constant 0 : index
      %138 = vector.load %arg2[%c0_94, %137, %c0_95, %c0_96] : memref<1x10x10x128xbf16, #tpu.memory_space<vmem>>, vector<1x1x10x128xbf16>
      %139 = vector.shape_cast %138 : vector<1x1x10x128xbf16> to vector<1x10x128xbf16>
      %140 = vector.extract_strided_slice %139 {offsets = [0, 0, 0], sizes = [1, 8, 128], strides = [1, 1, 1]} : vector<1x10x128xbf16> to vector<1x8x128xbf16>
      %c2_i32_97 = arith.constant 2 : i32
      %141 = arith.addi %63, %c2_i32_97 : i32
      %c0_98 = arith.constant 0 : index
      %142 = arith.index_cast %141 : i32 to index
      %c0_99 = arith.constant 0 : index
      %c0_100 = arith.constant 0 : index
      %143 = vector.load %arg2[%c0_98, %142, %c0_99, %c0_100] : memref<1x10x10x128xbf16, #tpu.memory_space<vmem>>, vector<1x1x10x128xbf16>
      %144 = vector.shape_cast %143 : vector<1x1x10x128xbf16> to vector<1x10x128xbf16>
      %145 = vector.extract_strided_slice %144 {offsets = [0, 1, 0], sizes = [1, 8, 128], strides = [1, 1, 1]} : vector<1x10x128xbf16> to vector<1x8x128xbf16>
      %c2_i32_101 = arith.constant 2 : i32
      %146 = arith.addi %63, %c2_i32_101 : i32
      %c0_102 = arith.constant 0 : index
      %147 = arith.index_cast %146 : i32 to index
      %c0_103 = arith.constant 0 : index
      %c0_104 = arith.constant 0 : index
      %148 = vector.load %arg2[%c0_102, %147, %c0_103, %c0_104] : memref<1x10x10x128xbf16, #tpu.memory_space<vmem>>, vector<1x1x10x128xbf16>
      %149 = vector.shape_cast %148 : vector<1x1x10x128xbf16> to vector<1x10x128xbf16>
      %150 = vector.extract_strided_slice %149 {offsets = [0, 2, 0], sizes = [1, 8, 128], strides = [1, 1, 1]} : vector<1x10x128xbf16> to vector<1x8x128xbf16>
      %151 = tpu.concatenate %110, %115, %120, %125, %130, %135, %140, %145, %150 in 2 : vector<1x8x128xbf16>, vector<1x8x128xbf16>, vector<1x8x128xbf16>, vector<1x8x128xbf16>, vector<1x8x128xbf16>, vector<1x8x128xbf16>, vector<1x8x128xbf16>, vector<1x8x128xbf16>, vector<1x8x128xbf16> -> vector<1x8x1152xbf16>
      %152 = vector.shape_cast %151 : vector<1x8x1152xbf16> to vector<8x1152xbf16>
      %c0_105 = arith.constant 0 : index
      %c0_106 = arith.constant 0 : index
      %153 = vector.load %arg3[%c0_105, %c0_106] : memref<1152x128xbf16, #tpu.memory_space<vmem>>, vector<1152x128xbf16>
      %cst_107 = arith.constant dense<0.000000e+00> : vector<8x128xf32>
      %154 = tpu.matmul %152, %153, %cst_107 {dimension_numbers = #tpu.dot_dimension_numbers<[1], [0], [0], [1], [0, 0, 1, 1], [], []>} : vector<8x1152xbf16>, vector<1152x128xbf16>, vector<8x128xf32> -> vector<8x128xf32>
      %c0_108 = arith.constant 0 : index
      %c0_109 = arith.constant 0 : index
      %155 = vector.load %arg4[%c0_108, %c0_109] : memref<1x128xf32, #tpu.memory_space<vmem>>, vector<1x128xf32>
      %156 = vector.broadcast %155 : vector<1x128xf32> to vector<8x128xf32>
      %157 = arith.addf %154, %156 : vector<8x128xf32>
      %cst_110 = arith.constant 0.000000e+00 : f32
      %158 = vector.broadcast %cst_110 : f32 to vector<8x128xf32>
      %159 = arith.maximumf %157, %158 : vector<8x128xf32>
      %160 = vector.shape_cast %159 : vector<8x128xf32> to vector<1x8x128xf32>
      %161 = arith.truncf %160 : vector<1x8x128xf32> to vector<1x8x128xbf16>
      %162 = vector.shape_cast %161 : vector<1x8x128xbf16> to vector<8x128xbf16>
      %c5 = arith.constant 5 : index
      %c1_111 = arith.constant 1 : index
      %c0_112 = arith.constant 0 : index
      %163 = vector.load %arg8[%c5, %c1_111, %c0_112] : memref<6x10x128xbf16, #tpu.memory_space<vmem>>, vector<1x8x128xbf16>
      %164 = vector.shape_cast %163 : vector<1x8x128xbf16> to vector<8x128xbf16>
      %165 = vector.shape_cast %162 : vector<8x128xbf16> to vector<1x8x128xbf16>
      tpu.vector_store %arg8[%c5, %c1_111, %c0_112], %165 {strides = array<i32>} : memref<6x10x128xbf16, #tpu.memory_space<vmem>>, vector<1x8x128xbf16>,
    } else {
    }
    %c0_52 = arith.constant 0 : index
    %c0_53 = arith.constant 0 : index
    %c0_54 = arith.constant 0 : index
    %74 = vector.load %arg8[%c0_52, %c0_53, %c0_54] : memref<6x10x128xbf16, #tpu.memory_space<vmem>>, vector<6x10x128xbf16>
    %75 = vector.extract_strided_slice %74 {offsets = [0, 0, 0], sizes = [4, 8, 128], strides = [1, 1, 1]} : vector<6x10x128xbf16> to vector<4x8x128xbf16>
    %76 = vector.extract_strided_slice %74 {offsets = [0, 1, 0], sizes = [4, 8, 128], strides = [1, 1, 1]} : vector<6x10x128xbf16> to vector<4x8x128xbf16>
    %77 = vector.extract_strided_slice %74 {offsets = [0, 2, 0], sizes = [4, 8, 128], strides = [1, 1, 1]} : vector<6x10x128xbf16> to vector<4x8x128xbf16>
    %78 = vector.extract_strided_slice %74 {offsets = [1, 0, 0], sizes = [4, 8, 128], strides = [1, 1, 1]} : vector<6x10x128xbf16> to vector<4x8x128xbf16>
    %79 = vector.extract_strided_slice %74 {offsets = [1, 1, 0], sizes = [4, 8, 128], strides = [1, 1, 1]} : vector<6x10x128xbf16> to vector<4x8x128xbf16>
    %80 = vector.extract_strided_slice %74 {offsets = [1, 2, 0], sizes = [4, 8, 128], strides = [1, 1, 1]} : vector<6x10x128xbf16> to vector<4x8x128xbf16>
    %81 = vector.extract_strided_slice %74 {offsets = [2, 0, 0], sizes = [4, 8, 128], strides = [1, 1, 1]} : vector<6x10x128xbf16> to vector<4x8x128xbf16>
    %82 = vector.extract_strided_slice %74 {offsets = [2, 1, 0], sizes = [4, 8, 128], strides = [1, 1, 1]} : vector<6x10x128xbf16> to vector<4x8x128xbf16>
    %83 = vector.extract_strided_slice %74 {offsets = [2, 2, 0], sizes = [4, 8, 128], strides = [1, 1, 1]} : vector<6x10x128xbf16> to vector<4x8x128xbf16>
    %84 = tpu.concatenate %75, %76, %77, %78, %79, %80, %81, %82, %83 in 2 : vector<4x8x128xbf16>, vector<4x8x128xbf16>, vector<4x8x128xbf16>, vector<4x8x128xbf16>, vector<4x8x128xbf16>, vector<4x8x128xbf16>, vector<4x8x128xbf16>, vector<4x8x128xbf16>, vector<4x8x128xbf16> -> vector<4x8x1152xbf16>
    %85 = vector.shape_cast %84 : vector<4x8x1152xbf16> to vector<32x1152xbf16>
    %c0_55 = arith.constant 0 : index
    %c0_56 = arith.constant 0 : index
    %86 = vector.load %arg5[%c0_55, %c0_56] : memref<1152x128xbf16, #tpu.memory_space<vmem>>, vector<1152x128xbf16>
    %cst_57 = arith.constant dense<0.000000e+00> : vector<32x128xf32>
    %87 = tpu.matmul %85, %86, %cst_57 {dimension_numbers = #tpu.dot_dimension_numbers<[1], [0], [0], [1], [0, 0, 1, 1], [], []>} : vector<32x1152xbf16>, vector<1152x128xbf16>, vector<32x128xf32> -> vector<32x128xf32>
    %c0_58 = arith.constant 0 : index
    %c0_59 = arith.constant 0 : index
    %88 = vector.load %arg6[%c0_58, %c0_59] : memref<1x128xf32, #tpu.memory_space<vmem>>, vector<1x128xf32>
    %89 = vector.broadcast %88 : vector<1x128xf32> to vector<32x128xf32>
    %90 = arith.addf %87, %89 : vector<32x128xf32>
    %c4_i32_60 = arith.constant 4 : i32
    %91 = arith.muli %arg1, %c4_i32_60 : i32
    %c1_i32_61 = arith.constant 1 : i32
    %92 = arith.addi %91, %c1_i32_61 : i32
    %c0_62 = arith.constant 0 : index
    %93 = arith.index_cast %92 : i32 to index
    %c0_63 = arith.constant 0 : index
    %c0_64 = arith.constant 0 : index
    %94 = vector.load %arg2[%c0_62, %93, %c0_63, %c0_64] : memref<1x10x10x128xbf16, #tpu.memory_space<vmem>>, vector<1x4x10x128xbf16>
    %95 = vector.shape_cast %94 : vector<1x4x10x128xbf16> to vector<4x10x128xbf16>
    %96 = vector.extract_strided_slice %95 {offsets = [0, 1, 0], sizes = [4, 8, 128], strides = [1, 1, 1]} : vector<4x10x128xbf16> to vector<4x8x128xbf16>
    %97 = vector.shape_cast %96 : vector<4x8x128xbf16> to vector<32x128xbf16>
    %98 = arith.extf %97 : vector<32x128xbf16> to vector<32x128xf32>
    %99 = arith.addf %90, %98 : vector<32x128xf32>
    %cst_65 = arith.constant 0.000000e+00 : f32
    %100 = vector.broadcast %cst_65 : f32 to vector<32x128xf32>
    %101 = arith.maximumf %99, %100 : vector<32x128xf32>
    %102 = arith.truncf %101 : vector<32x128xf32> to vector<32x128xbf16>
    %c0_66 = arith.constant 0 : index
    %c0_67 = arith.constant 0 : index
    %c0_68 = arith.constant 0 : index
    %103 = vector.load %arg7[%c0_66, %c0_67, %c0_68] : memref<1x32x128xbf16, #tpu.memory_space<vmem>>, vector<1x32x128xbf16>
    %104 = vector.shape_cast %103 : vector<1x32x128xbf16> to vector<32x128xbf16>
    %105 = vector.shape_cast %102 : vector<32x128xbf16> to vector<1x32x128xbf16>
    tpu.vector_store %arg7[%c0_66, %c0_67, %c0_68], %105 {strides = array<i32>} : memref<1x32x128xbf16, #tpu.memory_space<vmem>>, vector<1x32x128xbf16>,
    return
  }
  func.func @transform_0(%arg0: i32, %arg1: i32) -> (i32, i32, i32, i32) {
    %c0_i32 = arith.constant 0 : i32
    %c0_i32_0 = arith.constant 0 : i32
    %c0_i32_1 = arith.constant 0 : i32
    %c0_i32_2 = arith.constant 0 : i32
    return %arg0, %c0_i32, %c0_i32_0, %c0_i32_1 : i32, i32, i32, i32
  }
  func.func @transform_1(%arg0: i32, %arg1: i32) -> (i32, i32) {
    %c0_i32 = arith.constant 0 : i32
    %c0_i32_0 = arith.constant 0 : i32
    %c0_i32_1 = arith.constant 0 : i32
    return %c0_i32, %c0_i32_0 : i32, i32
  }
  func.func @transform_2(%arg0: i32, %arg1: i32) -> (i32, i32) {
    %c0_i32 = arith.constant 0 : i32
    %c0_i32_0 = arith.constant 0 : i32
    %c0_i32_1 = arith.constant 0 : i32
    return %c0_i32, %c0_i32_0 : i32, i32
  }
  func.func @transform_3(%arg0: i32, %arg1: i32) -> (i32, i32) {
    %c0_i32 = arith.constant 0 : i32
    %c0_i32_0 = arith.constant 0 : i32
    %c0_i32_1 = arith.constant 0 : i32
    return %c0_i32, %c0_i32_0 : i32, i32
  }
  func.func @transform_4(%arg0: i32, %arg1: i32) -> (i32, i32) {
    %c0_i32 = arith.constant 0 : i32
    %c0_i32_0 = arith.constant 0 : i32
    %c0_i32_1 = arith.constant 0 : i32
    return %c0_i32, %c0_i32_0 : i32, i32
  }
  func.func @transform_5(%arg0: i32, %arg1: i32) -> (i32, i32, i32) {
    %c0_i32 = arith.constant 0 : i32
    %c0_i32_0 = arith.constant 0 : i32
    return %arg0, %arg1, %c0_i32 : i32, i32, i32
  }
}

module attributes {stable_mosaic.version = 11 : i64} {
  func.func @_basic_block_kernel(%arg0: i32, %arg1: i32, %arg2: memref<1x9x9x64xbf16, #tpu.memory_space<vmem>>, %arg3: memref<1x9x9x64xbf16, #tpu.memory_space<vmem>>, %arg4: memref<1x9x9x64xbf16, #tpu.memory_space<vmem>>, %arg5: memref<1x9x9x64xbf16, #tpu.memory_space<vmem>>, %arg6: memref<576x128xbf16, #tpu.memory_space<vmem>>, %arg7: memref<1x128xf32, #tpu.memory_space<vmem>>, %arg8: memref<1152x128xbf16, #tpu.memory_space<vmem>>, %arg9: memref<1x128xf32, #tpu.memory_space<vmem>>, %arg10: memref<64x128xbf16, #tpu.memory_space<vmem>>, %arg11: memref<1x128xf32, #tpu.memory_space<vmem>>, %arg12: memref<1x32x128xbf16, #tpu.memory_space<vmem>>, %arg13: memref<6x10x128xbf16, #tpu.memory_space<vmem>>) attributes {dimension_semantics = [#tpu.dimension_semantics<parallel>, #tpu.dimension_semantics<parallel>], iteration_bounds = array<i64: 2, 2>, scalar_prefetch = 0 : i64, scratch_operands = 1 : i64, tpu.core_type = #tpu.core_type<tc>, window_params = [{transform_indices = @transform_0, window_bounds = array<i64: 1, 9, 9, 64>}, {transform_indices = @transform_1, window_bounds = array<i64: 1, 9, 9, 64>}, {transform_indices = @transform_2, window_bounds = array<i64: 1, 9, 9, 64>}, {transform_indices = @transform_3, window_bounds = array<i64: 1, 9, 9, 64>}, {pipeline_mode = #tpu.pipeline_mode<synchronous>, transform_indices = @transform_4, window_bounds = array<i64: 576, 128>}, {pipeline_mode = #tpu.pipeline_mode<synchronous>, transform_indices = @transform_5, window_bounds = array<i64: 1, 128>}, {pipeline_mode = #tpu.pipeline_mode<synchronous>, transform_indices = @transform_6, window_bounds = array<i64: 1152, 128>}, {pipeline_mode = #tpu.pipeline_mode<synchronous>, transform_indices = @transform_7, window_bounds = array<i64: 1, 128>}, {pipeline_mode = #tpu.pipeline_mode<synchronous>, transform_indices = @transform_8, window_bounds = array<i64: 64, 128>}, {pipeline_mode = #tpu.pipeline_mode<synchronous>, transform_indices = @transform_9, window_bounds = array<i64: 1, 128>}, {transform_indices = @transform_10, window_bounds = array<i64: 1, 32, 128>}]} {
    %cst = arith.constant 0.000000e+00 : bf16
    %0 = vector.broadcast %cst : bf16 to vector<6x10x128xbf16>
    %c0 = arith.constant 0 : index
    %c0_0 = arith.constant 0 : index
    %c0_1 = arith.constant 0 : index
    %1 = vector.load %arg13[%c0, %c0_0, %c0_1] : memref<6x10x128xbf16, #tpu.memory_space<vmem>>, vector<6x10x128xbf16>
    tpu.vector_store %arg13[%c0, %c0_0, %c0_1], %0 {strides = array<i32>} : memref<6x10x128xbf16, #tpu.memory_space<vmem>>, vector<6x10x128xbf16>,
    %c4_i32 = arith.constant 4 : i32
    %2 = arith.muli %arg1, %c4_i32 : i32
    %c0_i32 = arith.constant 0 : i32
    %3 = arith.addi %2, %c0_i32 : i32
    %c0_2 = arith.constant 0 : index
    %4 = arith.index_cast %3 : i32 to index
    %c0_3 = arith.constant 0 : index
    %c0_4 = arith.constant 0 : index
    %5 = vector.load %arg2[%c0_2, %4, %c0_3, %c0_4] : memref<1x9x9x64xbf16, #tpu.memory_space<vmem>>, vector<1x4x9x64xbf16>
    %6 = vector.shape_cast %5 : vector<1x4x9x64xbf16> to vector<4x9x64xbf16>
    %7 = vector.extract_strided_slice %6 {offsets = [0, 0, 0], sizes = [4, 8, 64], strides = [1, 1, 1]} : vector<4x9x64xbf16> to vector<4x8x64xbf16>
    %c0_i32_5 = arith.constant 0 : i32
    %8 = arith.addi %2, %c0_i32_5 : i32
    %c0_6 = arith.constant 0 : index
    %9 = arith.index_cast %8 : i32 to index
    %c0_7 = arith.constant 0 : index
    %c0_8 = arith.constant 0 : index
    %10 = vector.load %arg3[%c0_6, %9, %c0_7, %c0_8] : memref<1x9x9x64xbf16, #tpu.memory_space<vmem>>, vector<1x4x9x64xbf16>
    %11 = vector.shape_cast %10 : vector<1x4x9x64xbf16> to vector<4x9x64xbf16>
    %12 = vector.extract_strided_slice %11 {offsets = [0, 0, 0], sizes = [4, 8, 64], strides = [1, 1, 1]} : vector<4x9x64xbf16> to vector<4x8x64xbf16>
    %c0_i32_9 = arith.constant 0 : i32
    %13 = arith.addi %2, %c0_i32_9 : i32
    %c0_10 = arith.constant 0 : index
    %14 = arith.index_cast %13 : i32 to index
    %c0_11 = arith.constant 0 : index
    %c0_12 = arith.constant 0 : index
    %15 = vector.load %arg2[%c0_10, %14, %c0_11, %c0_12] : memref<1x9x9x64xbf16, #tpu.memory_space<vmem>>, vector<1x4x9x64xbf16>
    %16 = vector.shape_cast %15 : vector<1x4x9x64xbf16> to vector<4x9x64xbf16>
    %17 = vector.extract_strided_slice %16 {offsets = [0, 1, 0], sizes = [4, 8, 64], strides = [1, 1, 1]} : vector<4x9x64xbf16> to vector<4x8x64xbf16>
    %c0_i32_13 = arith.constant 0 : i32
    %18 = arith.addi %2, %c0_i32_13 : i32
    %c0_14 = arith.constant 0 : index
    %19 = arith.index_cast %18 : i32 to index
    %c0_15 = arith.constant 0 : index
    %c0_16 = arith.constant 0 : index
    %20 = vector.load %arg4[%c0_14, %19, %c0_15, %c0_16] : memref<1x9x9x64xbf16, #tpu.memory_space<vmem>>, vector<1x4x9x64xbf16>
    %21 = vector.shape_cast %20 : vector<1x4x9x64xbf16> to vector<4x9x64xbf16>
    %22 = vector.extract_strided_slice %21 {offsets = [0, 0, 0], sizes = [4, 8, 64], strides = [1, 1, 1]} : vector<4x9x64xbf16> to vector<4x8x64xbf16>
    %c0_i32_17 = arith.constant 0 : i32
    %23 = arith.addi %2, %c0_i32_17 : i32
    %c0_18 = arith.constant 0 : index
    %24 = arith.index_cast %23 : i32 to index
    %c0_19 = arith.constant 0 : index
    %c0_20 = arith.constant 0 : index
    %25 = vector.load %arg5[%c0_18, %24, %c0_19, %c0_20] : memref<1x9x9x64xbf16, #tpu.memory_space<vmem>>, vector<1x4x9x64xbf16>
    %26 = vector.shape_cast %25 : vector<1x4x9x64xbf16> to vector<4x9x64xbf16>
    %27 = vector.extract_strided_slice %26 {offsets = [0, 0, 0], sizes = [4, 8, 64], strides = [1, 1, 1]} : vector<4x9x64xbf16> to vector<4x8x64xbf16>
    %c0_i32_21 = arith.constant 0 : i32
    %28 = arith.addi %2, %c0_i32_21 : i32
    %c0_22 = arith.constant 0 : index
    %29 = arith.index_cast %28 : i32 to index
    %c0_23 = arith.constant 0 : index
    %c0_24 = arith.constant 0 : index
    %30 = vector.load %arg4[%c0_22, %29, %c0_23, %c0_24] : memref<1x9x9x64xbf16, #tpu.memory_space<vmem>>, vector<1x4x9x64xbf16>
    %31 = vector.shape_cast %30 : vector<1x4x9x64xbf16> to vector<4x9x64xbf16>
    %32 = vector.extract_strided_slice %31 {offsets = [0, 1, 0], sizes = [4, 8, 64], strides = [1, 1, 1]} : vector<4x9x64xbf16> to vector<4x8x64xbf16>
    %c1_i32 = arith.constant 1 : i32
    %33 = arith.addi %2, %c1_i32 : i32
    %c0_25 = arith.constant 0 : index
    %34 = arith.index_cast %33 : i32 to index
    %c0_26 = arith.constant 0 : index
    %c0_27 = arith.constant 0 : index
    %35 = vector.load %arg2[%c0_25, %34, %c0_26, %c0_27] : memref<1x9x9x64xbf16, #tpu.memory_space<vmem>>, vector<1x4x9x64xbf16>
    %36 = vector.shape_cast %35 : vector<1x4x9x64xbf16> to vector<4x9x64xbf16>
    %37 = vector.extract_strided_slice %36 {offsets = [0, 0, 0], sizes = [4, 8, 64], strides = [1, 1, 1]} : vector<4x9x64xbf16> to vector<4x8x64xbf16>
    %c1_i32_28 = arith.constant 1 : i32
    %38 = arith.addi %2, %c1_i32_28 : i32
    %c0_29 = arith.constant 0 : index
    %39 = arith.index_cast %38 : i32 to index
    %c0_30 = arith.constant 0 : index
    %c0_31 = arith.constant 0 : index
    %40 = vector.load %arg3[%c0_29, %39, %c0_30, %c0_31] : memref<1x9x9x64xbf16, #tpu.memory_space<vmem>>, vector<1x4x9x64xbf16>
    %41 = vector.shape_cast %40 : vector<1x4x9x64xbf16> to vector<4x9x64xbf16>
    %42 = vector.extract_strided_slice %41 {offsets = [0, 0, 0], sizes = [4, 8, 64], strides = [1, 1, 1]} : vector<4x9x64xbf16> to vector<4x8x64xbf16>
    %c1_i32_32 = arith.constant 1 : i32
    %43 = arith.addi %2, %c1_i32_32 : i32
    %c0_33 = arith.constant 0 : index
    %44 = arith.index_cast %43 : i32 to index
    %c0_34 = arith.constant 0 : index
    %c0_35 = arith.constant 0 : index
    %45 = vector.load %arg2[%c0_33, %44, %c0_34, %c0_35] : memref<1x9x9x64xbf16, #tpu.memory_space<vmem>>, vector<1x4x9x64xbf16>
    %46 = vector.shape_cast %45 : vector<1x4x9x64xbf16> to vector<4x9x64xbf16>
    %47 = vector.extract_strided_slice %46 {offsets = [0, 1, 0], sizes = [4, 8, 64], strides = [1, 1, 1]} : vector<4x9x64xbf16> to vector<4x8x64xbf16>
    %48 = tpu.concatenate %7, %12, %17, %22, %27, %32, %37, %42, %47 in 2 : vector<4x8x64xbf16>, vector<4x8x64xbf16>, vector<4x8x64xbf16>, vector<4x8x64xbf16>, vector<4x8x64xbf16>, vector<4x8x64xbf16>, vector<4x8x64xbf16>, vector<4x8x64xbf16>, vector<4x8x64xbf16> -> vector<4x8x576xbf16>
    %49 = vector.shape_cast %48 : vector<4x8x576xbf16> to vector<32x576xbf16>
    %c0_36 = arith.constant 0 : index
    %c0_37 = arith.constant 0 : index
    %50 = vector.load %arg6[%c0_36, %c0_37] : memref<576x128xbf16, #tpu.memory_space<vmem>>, vector<576x128xbf16>
    %cst_38 = arith.constant dense<0.000000e+00> : vector<32x128xf32>
    %51 = tpu.matmul %49, %50, %cst_38 {dimension_numbers = #tpu.dot_dimension_numbers<[1], [0], [0], [1], [0, 0, 1, 1], [], []>} : vector<32x576xbf16>, vector<576x128xbf16>, vector<32x128xf32> -> vector<32x128xf32>
    %c0_39 = arith.constant 0 : index
    %c0_40 = arith.constant 0 : index
    %52 = vector.load %arg7[%c0_39, %c0_40] : memref<1x128xf32, #tpu.memory_space<vmem>>, vector<1x128xf32>
    %53 = vector.broadcast %52 : vector<1x128xf32> to vector<32x128xf32>
    %54 = arith.addf %51, %53 : vector<32x128xf32>
    %cst_41 = arith.constant 0.000000e+00 : f32
    %55 = vector.broadcast %cst_41 : f32 to vector<32x128xf32>
    %56 = arith.maximumf %54, %55 : vector<32x128xf32>
    %57 = vector.shape_cast %56 : vector<32x128xf32> to vector<4x8x128xf32>
    %58 = arith.truncf %57 : vector<4x8x128xf32> to vector<4x8x128xbf16>
    %c1 = arith.constant 1 : index
    %c1_42 = arith.constant 1 : index
    %c0_43 = arith.constant 0 : index
    %59 = vector.load %arg13[%c1, %c1_42, %c0_43] : memref<6x10x128xbf16, #tpu.memory_space<vmem>>, vector<4x8x128xbf16>
    tpu.vector_store %arg13[%c1, %c1_42, %c0_43], %58 {strides = array<i32>} : memref<6x10x128xbf16, #tpu.memory_space<vmem>>, vector<4x8x128xbf16>,
    %c4_i32_44 = arith.constant 4 : i32
    %60 = arith.muli %arg1, %c4_i32_44 : i32
    %c1_i32_45 = arith.constant 1 : i32
    %61 = arith.subi %60, %c1_i32_45 : i32
    %c4_i32_46 = arith.constant 4 : i32
    %62 = arith.muli %arg1, %c4_i32_46 : i32
    %c4_i32_47 = arith.constant 4 : i32
    %63 = arith.addi %62, %c4_i32_47 : i32
    %c0_i32_48 = arith.constant 0 : i32
    %64 = arith.cmpi sge, %61, %c0_i32_48 : i32
    %c8_i32 = arith.constant 8 : i32
    %65 = arith.cmpi slt, %61, %c8_i32 : i32
    %66 = arith.andi %64, %65 : i1
    %67 = arith.extui %66 : i1 to i32
    %c0_i32_49 = arith.constant 0 : i32
    %68 = arith.cmpi ne, %67, %c0_i32_49 : i32
    scf.if %68 {
      %c0_i32_74 = arith.constant 0 : i32
      %109 = arith.addi %61, %c0_i32_74 : i32
      %c0_75 = arith.constant 0 : index
      %110 = arith.index_cast %109 : i32 to index
      %c0_76 = arith.constant 0 : index
      %c0_77 = arith.constant 0 : index
      %111 = vector.load %arg2[%c0_75, %110, %c0_76, %c0_77] : memref<1x9x9x64xbf16, #tpu.memory_space<vmem>>, vector<1x1x9x64xbf16>
      %112 = vector.shape_cast %111 : vector<1x1x9x64xbf16> to vector<1x9x64xbf16>
      %113 = vector.extract_strided_slice %112 {offsets = [0, 0, 0], sizes = [1, 8, 64], strides = [1, 1, 1]} : vector<1x9x64xbf16> to vector<1x8x64xbf16>
      %c0_i32_78 = arith.constant 0 : i32
      %114 = arith.addi %61, %c0_i32_78 : i32
      %c0_79 = arith.constant 0 : index
      %115 = arith.index_cast %114 : i32 to index
      %c0_80 = arith.constant 0 : index
      %c0_81 = arith.constant 0 : index
      %116 = vector.load %arg3[%c0_79, %115, %c0_80, %c0_81] : memref<1x9x9x64xbf16, #tpu.memory_space<vmem>>, vector<1x1x9x64xbf16>
      %117 = vector.shape_cast %116 : vector<1x1x9x64xbf16> to vector<1x9x64xbf16>
      %118 = vector.extract_strided_slice %117 {offsets = [0, 0, 0], sizes = [1, 8, 64], strides = [1, 1, 1]} : vector<1x9x64xbf16> to vector<1x8x64xbf16>
      %c0_i32_82 = arith.constant 0 : i32
      %119 = arith.addi %61, %c0_i32_82 : i32
      %c0_83 = arith.constant 0 : index
      %120 = arith.index_cast %119 : i32 to index
      %c0_84 = arith.constant 0 : index
      %c0_85 = arith.constant 0 : index
      %121 = vector.load %arg2[%c0_83, %120, %c0_84, %c0_85] : memref<1x9x9x64xbf16, #tpu.memory_space<vmem>>, vector<1x1x9x64xbf16>
      %122 = vector.shape_cast %121 : vector<1x1x9x64xbf16> to vector<1x9x64xbf16>
      %123 = vector.extract_strided_slice %122 {offsets = [0, 1, 0], sizes = [1, 8, 64], strides = [1, 1, 1]} : vector<1x9x64xbf16> to vector<1x8x64xbf16>
      %c0_i32_86 = arith.constant 0 : i32
      %124 = arith.addi %61, %c0_i32_86 : i32
      %c0_87 = arith.constant 0 : index
      %125 = arith.index_cast %124 : i32 to index
      %c0_88 = arith.constant 0 : index
      %c0_89 = arith.constant 0 : index
      %126 = vector.load %arg4[%c0_87, %125, %c0_88, %c0_89] : memref<1x9x9x64xbf16, #tpu.memory_space<vmem>>, vector<1x1x9x64xbf16>
      %127 = vector.shape_cast %126 : vector<1x1x9x64xbf16> to vector<1x9x64xbf16>
      %128 = vector.extract_strided_slice %127 {offsets = [0, 0, 0], sizes = [1, 8, 64], strides = [1, 1, 1]} : vector<1x9x64xbf16> to vector<1x8x64xbf16>
      %c0_i32_90 = arith.constant 0 : i32
      %129 = arith.addi %61, %c0_i32_90 : i32
      %c0_91 = arith.constant 0 : index
      %130 = arith.index_cast %129 : i32 to index
      %c0_92 = arith.constant 0 : index
      %c0_93 = arith.constant 0 : index
      %131 = vector.load %arg5[%c0_91, %130, %c0_92, %c0_93] : memref<1x9x9x64xbf16, #tpu.memory_space<vmem>>, vector<1x1x9x64xbf16>
      %132 = vector.shape_cast %131 : vector<1x1x9x64xbf16> to vector<1x9x64xbf16>
      %133 = vector.extract_strided_slice %132 {offsets = [0, 0, 0], sizes = [1, 8, 64], strides = [1, 1, 1]} : vector<1x9x64xbf16> to vector<1x8x64xbf16>
      %c0_i32_94 = arith.constant 0 : i32
      %134 = arith.addi %61, %c0_i32_94 : i32
      %c0_95 = arith.constant 0 : index
      %135 = arith.index_cast %134 : i32 to index
      %c0_96 = arith.constant 0 : index
      %c0_97 = arith.constant 0 : index
      %136 = vector.load %arg4[%c0_95, %135, %c0_96, %c0_97] : memref<1x9x9x64xbf16, #tpu.memory_space<vmem>>, vector<1x1x9x64xbf16>
      %137 = vector.shape_cast %136 : vector<1x1x9x64xbf16> to vector<1x9x64xbf16>
      %138 = vector.extract_strided_slice %137 {offsets = [0, 1, 0], sizes = [1, 8, 64], strides = [1, 1, 1]} : vector<1x9x64xbf16> to vector<1x8x64xbf16>
      %c1_i32_98 = arith.constant 1 : i32
      %139 = arith.addi %61, %c1_i32_98 : i32
      %c0_99 = arith.constant 0 : index
      %140 = arith.index_cast %139 : i32 to index
      %c0_100 = arith.constant 0 : index
      %c0_101 = arith.constant 0 : index
      %141 = vector.load %arg2[%c0_99, %140, %c0_100, %c0_101] : memref<1x9x9x64xbf16, #tpu.memory_space<vmem>>, vector<1x1x9x64xbf16>
      %142 = vector.shape_cast %141 : vector<1x1x9x64xbf16> to vector<1x9x64xbf16>
      %143 = vector.extract_strided_slice %142 {offsets = [0, 0, 0], sizes = [1, 8, 64], strides = [1, 1, 1]} : vector<1x9x64xbf16> to vector<1x8x64xbf16>
      %c1_i32_102 = arith.constant 1 : i32
      %144 = arith.addi %61, %c1_i32_102 : i32
      %c0_103 = arith.constant 0 : index
      %145 = arith.index_cast %144 : i32 to index
      %c0_104 = arith.constant 0 : index
      %c0_105 = arith.constant 0 : index
      %146 = vector.load %arg3[%c0_103, %145, %c0_104, %c0_105] : memref<1x9x9x64xbf16, #tpu.memory_space<vmem>>, vector<1x1x9x64xbf16>
      %147 = vector.shape_cast %146 : vector<1x1x9x64xbf16> to vector<1x9x64xbf16>
      %148 = vector.extract_strided_slice %147 {offsets = [0, 0, 0], sizes = [1, 8, 64], strides = [1, 1, 1]} : vector<1x9x64xbf16> to vector<1x8x64xbf16>
      %c1_i32_106 = arith.constant 1 : i32
      %149 = arith.addi %61, %c1_i32_106 : i32
      %c0_107 = arith.constant 0 : index
      %150 = arith.index_cast %149 : i32 to index
      %c0_108 = arith.constant 0 : index
      %c0_109 = arith.constant 0 : index
      %151 = vector.load %arg2[%c0_107, %150, %c0_108, %c0_109] : memref<1x9x9x64xbf16, #tpu.memory_space<vmem>>, vector<1x1x9x64xbf16>
      %152 = vector.shape_cast %151 : vector<1x1x9x64xbf16> to vector<1x9x64xbf16>
      %153 = vector.extract_strided_slice %152 {offsets = [0, 1, 0], sizes = [1, 8, 64], strides = [1, 1, 1]} : vector<1x9x64xbf16> to vector<1x8x64xbf16>
      %154 = tpu.concatenate %113, %118, %123, %128, %133, %138, %143, %148, %153 in 2 : vector<1x8x64xbf16>, vector<1x8x64xbf16>, vector<1x8x64xbf16>, vector<1x8x64xbf16>, vector<1x8x64xbf16>, vector<1x8x64xbf16>, vector<1x8x64xbf16>, vector<1x8x64xbf16>, vector<1x8x64xbf16> -> vector<1x8x576xbf16>
      %155 = vector.shape_cast %154 : vector<1x8x576xbf16> to vector<8x576xbf16>
      %c0_110 = arith.constant 0 : index
      %c0_111 = arith.constant 0 : index
      %156 = vector.load %arg6[%c0_110, %c0_111] : memref<576x128xbf16, #tpu.memory_space<vmem>>, vector<576x128xbf16>
      %cst_112 = arith.constant dense<0.000000e+00> : vector<8x128xf32>
      %157 = tpu.matmul %155, %156, %cst_112 {dimension_numbers = #tpu.dot_dimension_numbers<[1], [0], [0], [1], [0, 0, 1, 1], [], []>} : vector<8x576xbf16>, vector<576x128xbf16>, vector<8x128xf32> -> vector<8x128xf32>
      %c0_113 = arith.constant 0 : index
      %c0_114 = arith.constant 0 : index
      %158 = vector.load %arg7[%c0_113, %c0_114] : memref<1x128xf32, #tpu.memory_space<vmem>>, vector<1x128xf32>
      %159 = vector.broadcast %158 : vector<1x128xf32> to vector<8x128xf32>
      %160 = arith.addf %157, %159 : vector<8x128xf32>
      %cst_115 = arith.constant 0.000000e+00 : f32
      %161 = vector.broadcast %cst_115 : f32 to vector<8x128xf32>
      %162 = arith.maximumf %160, %161 : vector<8x128xf32>
      %163 = vector.shape_cast %162 : vector<8x128xf32> to vector<1x8x128xf32>
      %164 = arith.truncf %163 : vector<1x8x128xf32> to vector<1x8x128xbf16>
      %165 = vector.shape_cast %164 : vector<1x8x128xbf16> to vector<8x128xbf16>
      %c0_116 = arith.constant 0 : index
      %c1_117 = arith.constant 1 : index
      %c0_118 = arith.constant 0 : index
      %166 = vector.load %arg13[%c0_116, %c1_117, %c0_118] : memref<6x10x128xbf16, #tpu.memory_space<vmem>>, vector<1x8x128xbf16>
      %167 = vector.shape_cast %166 : vector<1x8x128xbf16> to vector<8x128xbf16>
      %168 = vector.shape_cast %165 : vector<8x128xbf16> to vector<1x8x128xbf16>
      tpu.vector_store %arg13[%c0_116, %c1_117, %c0_118], %168 {strides = array<i32>} : memref<6x10x128xbf16, #tpu.memory_space<vmem>>, vector<1x8x128xbf16>,
    } else {
    }
    %c0_i32_50 = arith.constant 0 : i32
    %69 = arith.cmpi sge, %63, %c0_i32_50 : i32
    %c8_i32_51 = arith.constant 8 : i32
    %70 = arith.cmpi slt, %63, %c8_i32_51 : i32
    %71 = arith.andi %69, %70 : i1
    %72 = arith.extui %71 : i1 to i32
    %c0_i32_52 = arith.constant 0 : i32
    %73 = arith.cmpi ne, %72, %c0_i32_52 : i32
    scf.if %73 {
      %c0_i32_74 = arith.constant 0 : i32
      %109 = arith.addi %63, %c0_i32_74 : i32
      %c0_75 = arith.constant 0 : index
      %110 = arith.index_cast %109 : i32 to index
      %c0_76 = arith.constant 0 : index
      %c0_77 = arith.constant 0 : index
      %111 = vector.load %arg2[%c0_75, %110, %c0_76, %c0_77] : memref<1x9x9x64xbf16, #tpu.memory_space<vmem>>, vector<1x1x9x64xbf16>
      %112 = vector.shape_cast %111 : vector<1x1x9x64xbf16> to vector<1x9x64xbf16>
      %113 = vector.extract_strided_slice %112 {offsets = [0, 0, 0], sizes = [1, 8, 64], strides = [1, 1, 1]} : vector<1x9x64xbf16> to vector<1x8x64xbf16>
      %c0_i32_78 = arith.constant 0 : i32
      %114 = arith.addi %63, %c0_i32_78 : i32
      %c0_79 = arith.constant 0 : index
      %115 = arith.index_cast %114 : i32 to index
      %c0_80 = arith.constant 0 : index
      %c0_81 = arith.constant 0 : index
      %116 = vector.load %arg3[%c0_79, %115, %c0_80, %c0_81] : memref<1x9x9x64xbf16, #tpu.memory_space<vmem>>, vector<1x1x9x64xbf16>
      %117 = vector.shape_cast %116 : vector<1x1x9x64xbf16> to vector<1x9x64xbf16>
      %118 = vector.extract_strided_slice %117 {offsets = [0, 0, 0], sizes = [1, 8, 64], strides = [1, 1, 1]} : vector<1x9x64xbf16> to vector<1x8x64xbf16>
      %c0_i32_82 = arith.constant 0 : i32
      %119 = arith.addi %63, %c0_i32_82 : i32
      %c0_83 = arith.constant 0 : index
      %120 = arith.index_cast %119 : i32 to index
      %c0_84 = arith.constant 0 : index
      %c0_85 = arith.constant 0 : index
      %121 = vector.load %arg2[%c0_83, %120, %c0_84, %c0_85] : memref<1x9x9x64xbf16, #tpu.memory_space<vmem>>, vector<1x1x9x64xbf16>
      %122 = vector.shape_cast %121 : vector<1x1x9x64xbf16> to vector<1x9x64xbf16>
      %123 = vector.extract_strided_slice %122 {offsets = [0, 1, 0], sizes = [1, 8, 64], strides = [1, 1, 1]} : vector<1x9x64xbf16> to vector<1x8x64xbf16>
      %c0_i32_86 = arith.constant 0 : i32
      %124 = arith.addi %63, %c0_i32_86 : i32
      %c0_87 = arith.constant 0 : index
      %125 = arith.index_cast %124 : i32 to index
      %c0_88 = arith.constant 0 : index
      %c0_89 = arith.constant 0 : index
      %126 = vector.load %arg4[%c0_87, %125, %c0_88, %c0_89] : memref<1x9x9x64xbf16, #tpu.memory_space<vmem>>, vector<1x1x9x64xbf16>
      %127 = vector.shape_cast %126 : vector<1x1x9x64xbf16> to vector<1x9x64xbf16>
      %128 = vector.extract_strided_slice %127 {offsets = [0, 0, 0], sizes = [1, 8, 64], strides = [1, 1, 1]} : vector<1x9x64xbf16> to vector<1x8x64xbf16>
      %c0_i32_90 = arith.constant 0 : i32
      %129 = arith.addi %63, %c0_i32_90 : i32
      %c0_91 = arith.constant 0 : index
      %130 = arith.index_cast %129 : i32 to index
      %c0_92 = arith.constant 0 : index
      %c0_93 = arith.constant 0 : index
      %131 = vector.load %arg5[%c0_91, %130, %c0_92, %c0_93] : memref<1x9x9x64xbf16, #tpu.memory_space<vmem>>, vector<1x1x9x64xbf16>
      %132 = vector.shape_cast %131 : vector<1x1x9x64xbf16> to vector<1x9x64xbf16>
      %133 = vector.extract_strided_slice %132 {offsets = [0, 0, 0], sizes = [1, 8, 64], strides = [1, 1, 1]} : vector<1x9x64xbf16> to vector<1x8x64xbf16>
      %c0_i32_94 = arith.constant 0 : i32
      %134 = arith.addi %63, %c0_i32_94 : i32
      %c0_95 = arith.constant 0 : index
      %135 = arith.index_cast %134 : i32 to index
      %c0_96 = arith.constant 0 : index
      %c0_97 = arith.constant 0 : index
      %136 = vector.load %arg4[%c0_95, %135, %c0_96, %c0_97] : memref<1x9x9x64xbf16, #tpu.memory_space<vmem>>, vector<1x1x9x64xbf16>
      %137 = vector.shape_cast %136 : vector<1x1x9x64xbf16> to vector<1x9x64xbf16>
      %138 = vector.extract_strided_slice %137 {offsets = [0, 1, 0], sizes = [1, 8, 64], strides = [1, 1, 1]} : vector<1x9x64xbf16> to vector<1x8x64xbf16>
      %c1_i32_98 = arith.constant 1 : i32
      %139 = arith.addi %63, %c1_i32_98 : i32
      %c0_99 = arith.constant 0 : index
      %140 = arith.index_cast %139 : i32 to index
      %c0_100 = arith.constant 0 : index
      %c0_101 = arith.constant 0 : index
      %141 = vector.load %arg2[%c0_99, %140, %c0_100, %c0_101] : memref<1x9x9x64xbf16, #tpu.memory_space<vmem>>, vector<1x1x9x64xbf16>
      %142 = vector.shape_cast %141 : vector<1x1x9x64xbf16> to vector<1x9x64xbf16>
      %143 = vector.extract_strided_slice %142 {offsets = [0, 0, 0], sizes = [1, 8, 64], strides = [1, 1, 1]} : vector<1x9x64xbf16> to vector<1x8x64xbf16>
      %c1_i32_102 = arith.constant 1 : i32
      %144 = arith.addi %63, %c1_i32_102 : i32
      %c0_103 = arith.constant 0 : index
      %145 = arith.index_cast %144 : i32 to index
      %c0_104 = arith.constant 0 : index
      %c0_105 = arith.constant 0 : index
      %146 = vector.load %arg3[%c0_103, %145, %c0_104, %c0_105] : memref<1x9x9x64xbf16, #tpu.memory_space<vmem>>, vector<1x1x9x64xbf16>
      %147 = vector.shape_cast %146 : vector<1x1x9x64xbf16> to vector<1x9x64xbf16>
      %148 = vector.extract_strided_slice %147 {offsets = [0, 0, 0], sizes = [1, 8, 64], strides = [1, 1, 1]} : vector<1x9x64xbf16> to vector<1x8x64xbf16>
      %c1_i32_106 = arith.constant 1 : i32
      %149 = arith.addi %63, %c1_i32_106 : i32
      %c0_107 = arith.constant 0 : index
      %150 = arith.index_cast %149 : i32 to index
      %c0_108 = arith.constant 0 : index
      %c0_109 = arith.constant 0 : index
      %151 = vector.load %arg2[%c0_107, %150, %c0_108, %c0_109] : memref<1x9x9x64xbf16, #tpu.memory_space<vmem>>, vector<1x1x9x64xbf16>
      %152 = vector.shape_cast %151 : vector<1x1x9x64xbf16> to vector<1x9x64xbf16>
      %153 = vector.extract_strided_slice %152 {offsets = [0, 1, 0], sizes = [1, 8, 64], strides = [1, 1, 1]} : vector<1x9x64xbf16> to vector<1x8x64xbf16>
      %154 = tpu.concatenate %113, %118, %123, %128, %133, %138, %143, %148, %153 in 2 : vector<1x8x64xbf16>, vector<1x8x64xbf16>, vector<1x8x64xbf16>, vector<1x8x64xbf16>, vector<1x8x64xbf16>, vector<1x8x64xbf16>, vector<1x8x64xbf16>, vector<1x8x64xbf16>, vector<1x8x64xbf16> -> vector<1x8x576xbf16>
      %155 = vector.shape_cast %154 : vector<1x8x576xbf16> to vector<8x576xbf16>
      %c0_110 = arith.constant 0 : index
      %c0_111 = arith.constant 0 : index
      %156 = vector.load %arg6[%c0_110, %c0_111] : memref<576x128xbf16, #tpu.memory_space<vmem>>, vector<576x128xbf16>
      %cst_112 = arith.constant dense<0.000000e+00> : vector<8x128xf32>
      %157 = tpu.matmul %155, %156, %cst_112 {dimension_numbers = #tpu.dot_dimension_numbers<[1], [0], [0], [1], [0, 0, 1, 1], [], []>} : vector<8x576xbf16>, vector<576x128xbf16>, vector<8x128xf32> -> vector<8x128xf32>
      %c0_113 = arith.constant 0 : index
      %c0_114 = arith.constant 0 : index
      %158 = vector.load %arg7[%c0_113, %c0_114] : memref<1x128xf32, #tpu.memory_space<vmem>>, vector<1x128xf32>
      %159 = vector.broadcast %158 : vector<1x128xf32> to vector<8x128xf32>
      %160 = arith.addf %157, %159 : vector<8x128xf32>
      %cst_115 = arith.constant 0.000000e+00 : f32
      %161 = vector.broadcast %cst_115 : f32 to vector<8x128xf32>
      %162 = arith.maximumf %160, %161 : vector<8x128xf32>
      %163 = vector.shape_cast %162 : vector<8x128xf32> to vector<1x8x128xf32>
      %164 = arith.truncf %163 : vector<1x8x128xf32> to vector<1x8x128xbf16>
      %165 = vector.shape_cast %164 : vector<1x8x128xbf16> to vector<8x128xbf16>
      %c5 = arith.constant 5 : index
      %c1_116 = arith.constant 1 : index
      %c0_117 = arith.constant 0 : index
      %166 = vector.load %arg13[%c5, %c1_116, %c0_117] : memref<6x10x128xbf16, #tpu.memory_space<vmem>>, vector<1x8x128xbf16>
      %167 = vector.shape_cast %166 : vector<1x8x128xbf16> to vector<8x128xbf16>
      %168 = vector.shape_cast %165 : vector<8x128xbf16> to vector<1x8x128xbf16>
      tpu.vector_store %arg13[%c5, %c1_116, %c0_117], %168 {strides = array<i32>} : memref<6x10x128xbf16, #tpu.memory_space<vmem>>, vector<1x8x128xbf16>,
    } else {
    }
    %c0_53 = arith.constant 0 : index
    %c0_54 = arith.constant 0 : index
    %c0_55 = arith.constant 0 : index
    %74 = vector.load %arg13[%c0_53, %c0_54, %c0_55] : memref<6x10x128xbf16, #tpu.memory_space<vmem>>, vector<6x10x128xbf16>
    %75 = vector.extract_strided_slice %74 {offsets = [0, 0, 0], sizes = [4, 8, 128], strides = [1, 1, 1]} : vector<6x10x128xbf16> to vector<4x8x128xbf16>
    %76 = vector.extract_strided_slice %74 {offsets = [0, 1, 0], sizes = [4, 8, 128], strides = [1, 1, 1]} : vector<6x10x128xbf16> to vector<4x8x128xbf16>
    %77 = vector.extract_strided_slice %74 {offsets = [0, 2, 0], sizes = [4, 8, 128], strides = [1, 1, 1]} : vector<6x10x128xbf16> to vector<4x8x128xbf16>
    %78 = vector.extract_strided_slice %74 {offsets = [1, 0, 0], sizes = [4, 8, 128], strides = [1, 1, 1]} : vector<6x10x128xbf16> to vector<4x8x128xbf16>
    %79 = vector.extract_strided_slice %74 {offsets = [1, 1, 0], sizes = [4, 8, 128], strides = [1, 1, 1]} : vector<6x10x128xbf16> to vector<4x8x128xbf16>
    %80 = vector.extract_strided_slice %74 {offsets = [1, 2, 0], sizes = [4, 8, 128], strides = [1, 1, 1]} : vector<6x10x128xbf16> to vector<4x8x128xbf16>
    %81 = vector.extract_strided_slice %74 {offsets = [2, 0, 0], sizes = [4, 8, 128], strides = [1, 1, 1]} : vector<6x10x128xbf16> to vector<4x8x128xbf16>
    %82 = vector.extract_strided_slice %74 {offsets = [2, 1, 0], sizes = [4, 8, 128], strides = [1, 1, 1]} : vector<6x10x128xbf16> to vector<4x8x128xbf16>
    %83 = vector.extract_strided_slice %74 {offsets = [2, 2, 0], sizes = [4, 8, 128], strides = [1, 1, 1]} : vector<6x10x128xbf16> to vector<4x8x128xbf16>
    %84 = tpu.concatenate %75, %76, %77, %78, %79, %80, %81, %82, %83 in 2 : vector<4x8x128xbf16>, vector<4x8x128xbf16>, vector<4x8x128xbf16>, vector<4x8x128xbf16>, vector<4x8x128xbf16>, vector<4x8x128xbf16>, vector<4x8x128xbf16>, vector<4x8x128xbf16>, vector<4x8x128xbf16> -> vector<4x8x1152xbf16>
    %85 = vector.shape_cast %84 : vector<4x8x1152xbf16> to vector<32x1152xbf16>
    %c0_56 = arith.constant 0 : index
    %c0_57 = arith.constant 0 : index
    %86 = vector.load %arg8[%c0_56, %c0_57] : memref<1152x128xbf16, #tpu.memory_space<vmem>>, vector<1152x128xbf16>
    %cst_58 = arith.constant dense<0.000000e+00> : vector<32x128xf32>
    %87 = tpu.matmul %85, %86, %cst_58 {dimension_numbers = #tpu.dot_dimension_numbers<[1], [0], [0], [1], [0, 0, 1, 1], [], []>} : vector<32x1152xbf16>, vector<1152x128xbf16>, vector<32x128xf32> -> vector<32x128xf32>
    %c0_59 = arith.constant 0 : index
    %c0_60 = arith.constant 0 : index
    %88 = vector.load %arg9[%c0_59, %c0_60] : memref<1x128xf32, #tpu.memory_space<vmem>>, vector<1x128xf32>
    %89 = vector.broadcast %88 : vector<1x128xf32> to vector<32x128xf32>
    %90 = arith.addf %87, %89 : vector<32x128xf32>
    %c4_i32_61 = arith.constant 4 : i32
    %91 = arith.muli %arg1, %c4_i32_61 : i32
    %c0_62 = arith.constant 0 : index
    %92 = arith.index_cast %91 : i32 to index
    %c0_63 = arith.constant 0 : index
    %c0_64 = arith.constant 0 : index
    %93 = vector.load %arg5[%c0_62, %92, %c0_63, %c0_64] : memref<1x9x9x64xbf16, #tpu.memory_space<vmem>>, vector<1x4x9x64xbf16>
    %94 = vector.shape_cast %93 : vector<1x4x9x64xbf16> to vector<4x9x64xbf16>
    %95 = vector.extract_strided_slice %94 {offsets = [0, 0, 0], sizes = [4, 8, 64], strides = [1, 1, 1]} : vector<4x9x64xbf16> to vector<4x8x64xbf16>
    %96 = vector.shape_cast %95 : vector<4x8x64xbf16> to vector<32x64xbf16>
    %c0_65 = arith.constant 0 : index
    %c0_66 = arith.constant 0 : index
    %97 = vector.load %arg10[%c0_65, %c0_66] : memref<64x128xbf16, #tpu.memory_space<vmem>>, vector<64x128xbf16>
    %cst_67 = arith.constant dense<0.000000e+00> : vector<32x128xf32>
    %98 = tpu.matmul %96, %97, %cst_67 {dimension_numbers = #tpu.dot_dimension_numbers<[1], [0], [0], [1], [0, 0, 1, 1], [], []>} : vector<32x64xbf16>, vector<64x128xbf16>, vector<32x128xf32> -> vector<32x128xf32>
    %c0_68 = arith.constant 0 : index
    %c0_69 = arith.constant 0 : index
    %99 = vector.load %arg11[%c0_68, %c0_69] : memref<1x128xf32, #tpu.memory_space<vmem>>, vector<1x128xf32>
    %100 = vector.broadcast %99 : vector<1x128xf32> to vector<32x128xf32>
    %101 = arith.addf %98, %100 : vector<32x128xf32>
    %102 = arith.addf %90, %101 : vector<32x128xf32>
    %cst_70 = arith.constant 0.000000e+00 : f32
    %103 = vector.broadcast %cst_70 : f32 to vector<32x128xf32>
    %104 = arith.maximumf %102, %103 : vector<32x128xf32>
    %105 = arith.truncf %104 : vector<32x128xf32> to vector<32x128xbf16>
    %c0_71 = arith.constant 0 : index
    %c0_72 = arith.constant 0 : index
    %c0_73 = arith.constant 0 : index
    %106 = vector.load %arg12[%c0_71, %c0_72, %c0_73] : memref<1x32x128xbf16, #tpu.memory_space<vmem>>, vector<1x32x128xbf16>
    %107 = vector.shape_cast %106 : vector<1x32x128xbf16> to vector<32x128xbf16>
    %108 = vector.shape_cast %105 : vector<32x128xbf16> to vector<1x32x128xbf16>
    tpu.vector_store %arg12[%c0_71, %c0_72, %c0_73], %108 {strides = array<i32>} : memref<1x32x128xbf16, #tpu.memory_space<vmem>>, vector<1x32x128xbf16>,
    return
  }
  func.func @transform_0(%arg0: i32, %arg1: i32) -> (i32, i32, i32, i32) {
    %c0_i32 = arith.constant 0 : i32
    %c0_i32_0 = arith.constant 0 : i32
    %c0_i32_1 = arith.constant 0 : i32
    %c0_i32_2 = arith.constant 0 : i32
    return %arg0, %c0_i32, %c0_i32_0, %c0_i32_1 : i32, i32, i32, i32
  }
  func.func @transform_1(%arg0: i32, %arg1: i32) -> (i32, i32, i32, i32) {
    %c0_i32 = arith.constant 0 : i32
    %c0_i32_0 = arith.constant 0 : i32
    %c0_i32_1 = arith.constant 0 : i32
    %c0_i32_2 = arith.constant 0 : i32
    return %arg0, %c0_i32, %c0_i32_0, %c0_i32_1 : i32, i32, i32, i32
  }
  func.func @transform_2(%arg0: i32, %arg1: i32) -> (i32, i32, i32, i32) {
    %c0_i32 = arith.constant 0 : i32
    %c0_i32_0 = arith.constant 0 : i32
    %c0_i32_1 = arith.constant 0 : i32
    %c0_i32_2 = arith.constant 0 : i32
    return %arg0, %c0_i32, %c0_i32_0, %c0_i32_1 : i32, i32, i32, i32
  }
  func.func @transform_3(%arg0: i32, %arg1: i32) -> (i32, i32, i32, i32) {
    %c0_i32 = arith.constant 0 : i32
    %c0_i32_0 = arith.constant 0 : i32
    %c0_i32_1 = arith.constant 0 : i32
    %c0_i32_2 = arith.constant 0 : i32
    return %arg0, %c0_i32, %c0_i32_0, %c0_i32_1 : i32, i32, i32, i32
  }
  func.func @transform_4(%arg0: i32, %arg1: i32) -> (i32, i32) {
    %c0_i32 = arith.constant 0 : i32
    %c0_i32_0 = arith.constant 0 : i32
    %c0_i32_1 = arith.constant 0 : i32
    return %c0_i32, %c0_i32_0 : i32, i32
  }
  func.func @transform_5(%arg0: i32, %arg1: i32) -> (i32, i32) {
    %c0_i32 = arith.constant 0 : i32
    %c0_i32_0 = arith.constant 0 : i32
    %c0_i32_1 = arith.constant 0 : i32
    return %c0_i32, %c0_i32_0 : i32, i32
  }
  func.func @transform_6(%arg0: i32, %arg1: i32) -> (i32, i32) {
    %c0_i32 = arith.constant 0 : i32
    %c0_i32_0 = arith.constant 0 : i32
    %c0_i32_1 = arith.constant 0 : i32
    return %c0_i32, %c0_i32_0 : i32, i32
  }
  func.func @transform_7(%arg0: i32, %arg1: i32) -> (i32, i32) {
    %c0_i32 = arith.constant 0 : i32
    %c0_i32_0 = arith.constant 0 : i32
    %c0_i32_1 = arith.constant 0 : i32
    return %c0_i32, %c0_i32_0 : i32, i32
  }
  func.func @transform_8(%arg0: i32, %arg1: i32) -> (i32, i32) {
    %c0_i32 = arith.constant 0 : i32
    %c0_i32_0 = arith.constant 0 : i32
    %c0_i32_1 = arith.constant 0 : i32
    return %c0_i32, %c0_i32_0 : i32, i32
  }
  func.func @transform_9(%arg0: i32, %arg1: i32) -> (i32, i32) {
    %c0_i32 = arith.constant 0 : i32
    %c0_i32_0 = arith.constant 0 : i32
    %c0_i32_1 = arith.constant 0 : i32
    return %c0_i32, %c0_i32_0 : i32, i32
  }
  func.func @transform_10(%arg0: i32, %arg1: i32) -> (i32, i32, i32) {
    %c0_i32 = arith.constant 0 : i32
    %c0_i32_0 = arith.constant 0 : i32
    return %arg0, %arg1, %c0_i32 : i32, i32, i32
  }
}

</mosaic_0001>

<llo_original>
// kernel: fwd.2
$region0: #{fwd.2}
  #allocation0 [shape = 'u32[]', space=smem, size = 0x4, offset = 0x4, fixed_abs, tag = 'smem constant byte address 0x4 - core index']
  #allocation1 [shape = 'u32[144,128]{1,0:T(1,128)}', space=vmem, size = 0x12000, scoped, tag = 'internal scratch']
  #allocation2 [shape = 'bf16[6,10,128]{2,1,0:T(8,128)(2,1)}', space=vmem, size = 0x6000, scoped, tag = 'scratch operand']
  %s0 = inlined_call_operand.vmem [shape: bf16[2,9,9,64], index: 0, kind: input, shape index: {}]
  %s1 = inlined_call_operand.vmem [shape: bf16[2,9,9,64], index: 1, kind: input, shape index: {}]
  %s2 = inlined_call_operand.vmem [shape: bf16[2,9,9,64], index: 2, kind: input, shape index: {}]
  %s3 = inlined_call_operand.vmem [shape: bf16[2,9,9,64], index: 3, kind: input, shape index: {}]
  %s4 = inlined_call_operand.vmem [shape: bf16[576,128], index: 4, kind: input, shape index: {}]
  %s5 = inlined_call_operand.vmem [shape: f32[1,128], index: 5, kind: input, shape index: {}]
  %s6 = inlined_call_operand.vmem [shape: bf16[1152,128], index: 6, kind: input, shape index: {}]
  %s7 = inlined_call_operand.vmem [shape: f32[1,128], index: 7, kind: input, shape index: {}]
  %s8 = inlined_call_operand.vmem [shape: bf16[64,128], index: 8, kind: input, shape index: {}]
  %s9 = inlined_call_operand.vmem [shape: f32[1,128], index: 9, kind: input, shape index: {}]
  %s10 = inlined_call_operand.vmem [shape: bf16[2,64,128], index: 10, kind: output, shape index: {}]
  %s11 = sld [smem:[#allocation0]]
  $region81: #{fwd.2} parent=0
    _
  %s13 = ssub.s32 1, %s11
  %s14 = scalar_select 0, %s13, %s11
  loop: start=0, step=1, limit=6
  $region2: #{fwd.2} parent=0 // loop_pre_header
    _
  $region3: #{fwd.2} parent=0 // loop_header
    %s16 = sphi 0, %s20
    %p17 = scmp.ge.s32.totalorder %s16, 6
    %s23 = sphi 0, %s35
    %s24 = sphi 0, %s31
    %s25 = sphi 0, %s23
    %s26 = sphi 0, %s24
    %s27 = sphi 0, %s25
    %s28 = sphi 0, %s26
    %s38 = sphi 0, %s40
    %s41 = sphi 0, %s38
    %s42 = sphi 0, %s41
    %s58 = sphi 0, %s42
    %s64 = sphi 0, %s66
    %s67 = sphi 0, %s64
    %s68 = sphi 0, %s67
    %s84 = sphi 0, %s68
    %s90 = sphi 0, %s92
    %s93 = sphi 0, %s90
    %s94 = sphi 0, %s93
    %s110 = sphi 0, %s94
    %s116 = sphi 0, %s118
    %s119 = sphi 0, %s116
    %s120 = sphi 0, %s119
    %s136 = sphi 0, %s120
    %s140 = sphi 0, %s140
    %s142 = sphi 0, %s140
    %s143 = sphi 0, %s142
    %s157 = sphi 0, %s143
    %s161 = sphi 0, %s161
    %s163 = sphi 0, %s161
    %s164 = sphi 0, %s163
    %s178 = sphi 0, %s164
    %s182 = sphi 0, %s182
    %s184 = sphi 0, %s182
    %s185 = sphi 0, %s184
    %s199 = sphi 0, %s185
    %s203 = sphi 0, %s203
    %s205 = sphi 0, %s203
    %s206 = sphi 0, %s205
    %s220 = sphi 0, %s206
    %s224 = sphi 0, %s224
    %s226 = sphi 0, %s224
    %s227 = sphi 0, %s226
    %s241 = sphi 0, %s227
    %s245 = sphi 0, %s245
    %s247 = sphi 0, %s245
    %s248 = sphi 0, %s247
    %s262 = sphi 0, %s248
    %s270 = sphi 0, %s272
    %s273 = sphi 0, %s270
    %s274 = sphi 0, %s273
    %s290 = sphi 0, %s274
  $region4: #{fwd.2} parent=0 // loop_header_branch
    %19 = sbr.rel (%p17) target = $region8
  $region5: #{fwd.2} parent=0 // loop_body
    %s21 = ssub.s32 %s16, 1
    %s22 = ssub.s32 %s16, 2
    %s29 = sadd.s32 1, %s24
    %p30 = scmp.ge.s32.totalorder %s29, 2
    %s31 = scalar_select %p30, 0, %s29
    %s32 = sadd.s32 1, %s23
    %s33 = scalar_select %p30, %s32, %s23
    %p34 = scmp.ge.s32.totalorder %s33, 2
    %s35 = scalar_select %p34, 0, %s33
    %s36 = ssub.s32 %s23, %s35
    %p37 = scmp.eq.s32.totalorder %s36, 0
    %s39 = sadd.s32 %s38, 1
    %s40 = scalar_select %p37, %s38, %s39
    %p43 = pneg %p37
    %p44 = scmp.eq.s32.totalorder %s16, 3
    %p45 = por %p43, %p44
    %p46 = scmp.ne.s32.totalorder %s38, %s41
    %p47 = scmp.eq.s32.totalorder %s16, 0
    %p48 = por %p46, %p47
    %p49 = scmp.ne.s32.totalorder %s38, %s41
    %p50 = scmp.eq.s32.totalorder %s21, 3
    %p51 = por %p49, %p50
    %p52 = scmp.ne.s32.totalorder %s41, %s42
    %p53 = scmp.eq.s32.totalorder %s21, 0
    %p54 = por %p52, %p53
    %p55 = scmp.ne.s32.totalorder %s41, %s42
    %p56 = scmp.eq.s32.totalorder %s22, 3
    %p57 = por %p55, %p56
    %p59 = scmp.ne.s32.totalorder %s42, %s58
    %p60 = scmp.eq.s32.totalorder %s22, 0
    %p61 = por %p59, %p60
    %s62 = ssub.s32 %s23, %s35
    %p63 = scmp.eq.s32.totalorder %s62, 0
    %s65 = sadd.s32 %s64, 1
    %s66 = scalar_select %p63, %s64, %s65
    %p69 = pneg %p63
    %p70 = scmp.eq.s32.totalorder %s16, 3
    %p71 = por %p69, %p70
    %p72 = scmp.ne.s32.totalorder %s64, %s67
    %p73 = scmp.eq.s32.totalorder %s16, 0
    %p74 = por %p72, %p73
    %p75 = scmp.ne.s32.totalorder %s64, %s67
    %p76 = scmp.eq.s32.totalorder %s21, 3
    %p77 = por %p75, %p76
    %p78 = scmp.ne.s32.totalorder %s67, %s68
    %p79 = scmp.eq.s32.totalorder %s21, 0
    %p80 = por %p78, %p79
    %p81 = scmp.ne.s32.totalorder %s67, %s68
    %p82 = scmp.eq.s32.totalorder %s22, 3
    %p83 = por %p81, %p82
    %p85 = scmp.ne.s32.totalorder %s68, %s84
    %p86 = scmp.eq.s32.totalorder %s22, 0
    %p87 = por %p85, %p86
    %s88 = ssub.s32 %s23, %s35
    %p89 = scmp.eq.s32.totalorder %s88, 0
    %s91 = sadd.s32 %s90, 1
    %s92 = scalar_select %p89, %s90, %s91
    %p95 = pneg %p89
    %p96 = scmp.eq.s32.totalorder %s16, 3
    %p97 = por %p95, %p96
    %p98 = scmp.ne.s32.totalorder %s90, %s93
    %p99 = scmp.eq.s32.totalorder %s16, 0
    %p100 = por %p98, %p99
    %p101 = scmp.ne.s32.totalorder %s90, %s93
    %p102 = scmp.eq.s32.totalorder %s21, 3
    %p103 = por %p101, %p102
    %p104 = scmp.ne.s32.totalorder %s93, %s94
    %p105 = scmp.eq.s32.totalorder %s21, 0
    %p106 = por %p104, %p105
    %p107 = scmp.ne.s32.totalorder %s93, %s94
    %p108 = scmp.eq.s32.totalorder %s22, 3
    %p109 = por %p107, %p108
    %p111 = scmp.ne.s32.totalorder %s94, %s110
    %p112 = scmp.eq.s32.totalorder %s22, 0
    %p113 = por %p111, %p112
    %s114 = ssub.s32 %s23, %s35
    %p115 = scmp.eq.s32.totalorder %s114, 0
    %s117 = sadd.s32 %s116, 1
    %s118 = scalar_select %p115, %s116, %s117
    %p121 = pneg %p115
    %p122 = scmp.eq.s32.totalorder %s16, 3
    %p123 = por %p121, %p122
    %p124 = scmp.ne.s32.totalorder %s116, %s119
    %p125 = scmp.eq.s32.totalorder %s16, 0
    %p126 = por %p124, %p125
    %p127 = scmp.ne.s32.totalorder %s116, %s119
    %p128 = scmp.eq.s32.totalorder %s21, 3
    %p129 = por %p127, %p128
    %p130 = scmp.ne.s32.totalorder %s119, %s120
    %p131 = scmp.eq.s32.totalorder %s21, 0
    %p132 = por %p130, %p131
    %p133 = scmp.ne.s32.totalorder %s119, %s120
    %p134 = scmp.eq.s32.totalorder %s22, 3
    %p135 = por %p133, %p134
    %p137 = scmp.ne.s32.totalorder %s120, %s136
    %p138 = scmp.eq.s32.totalorder %s22, 0
    %p139 = por %p137, %p138
    %s141 = sadd.s32 %s140, 1
    %p144 = scmp.eq.s32.totalorder %s16, 3
    %p145 = scmp.ne.s32.totalorder %s140, %s142
    %p146 = scmp.eq.s32.totalorder %s16, 0
    %p147 = por %p145, %p146
    %p148 = scmp.ne.s32.totalorder %s140, %s142
    %p149 = scmp.eq.s32.totalorder %s21, 3
    %p150 = por %p148, %p149
    %p151 = scmp.ne.s32.totalorder %s142, %s143
    %p152 = scmp.eq.s32.totalorder %s21, 0
    %p153 = por %p151, %p152
    %p154 = scmp.ne.s32.totalorder %s142, %s143
    %p155 = scmp.eq.s32.totalorder %s22, 3
    %p156 = por %p154, %p155
    %p158 = scmp.ne.s32.totalorder %s143, %s157
    %p159 = scmp.eq.s32.totalorder %s22, 0
    %p160 = por %p158, %p159
    %s162 = sadd.s32 %s161, 1
    %p165 = scmp.eq.s32.totalorder %s16, 3
    %p166 = scmp.ne.s32.totalorder %s161, %s163
    %p167 = scmp.eq.s32.totalorder %s16, 0
    %p168 = por %p166, %p167
    %p169 = scmp.ne.s32.totalorder %s161, %s163
    %p170 = scmp.eq.s32.totalorder %s21, 3
    %p171 = por %p169, %p170
    %p172 = scmp.ne.s32.totalorder %s163, %s164
    %p173 = scmp.eq.s32.totalorder %s21, 0
    %p174 = por %p172, %p173
    %p175 = scmp.ne.s32.totalorder %s163, %s164
    %p176 = scmp.eq.s32.totalorder %s22, 3
    %p177 = por %p175, %p176
    %p179 = scmp.ne.s32.totalorder %s164, %s178
    %p180 = scmp.eq.s32.totalorder %s22, 0
    %p181 = por %p179, %p180
    %s183 = sadd.s32 %s182, 1
    %p186 = scmp.eq.s32.totalorder %s16, 3
    %p187 = scmp.ne.s32.totalorder %s182, %s184
    %p188 = scmp.eq.s32.totalorder %s16, 0
    %p189 = por %p187, %p188
    %p190 = scmp.ne.s32.totalorder %s182, %s184
    %p191 = scmp.eq.s32.totalorder %s21, 3
    %p192 = por %p190, %p191
    %p193 = scmp.ne.s32.totalorder %s184, %s185
    %p194 = scmp.eq.s32.totalorder %s21, 0
    %p195 = por %p193, %p194
    %p196 = scmp.ne.s32.totalorder %s184, %s185
    %p197 = scmp.eq.s32.totalorder %s22, 3
    %p198 = por %p196, %p197
    %p200 = scmp.ne.s32.totalorder %s185, %s199
    %p201 = scmp.eq.s32.totalorder %s22, 0
    %p202 = por %p200, %p201
    %s204 = sadd.s32 %s203, 1
    %p207 = scmp.eq.s32.totalorder %s16, 3
    %p208 = scmp.ne.s32.totalorder %s203, %s205
    %p209 = scmp.eq.s32.totalorder %s16, 0
    %p210 = por %p208, %p209
    %p211 = scmp.ne.s32.totalorder %s203, %s205
    %p212 = scmp.eq.s32.totalorder %s21, 3
    %p213 = por %p211, %p212
    %p214 = scmp.ne.s32.totalorder %s205, %s206
    %p215 = scmp.eq.s32.totalorder %s21, 0
    %p216 = por %p214, %p215
    %p217 = scmp.ne.s32.totalorder %s205, %s206
    %p218 = scmp.eq.s32.totalorder %s22, 3
    %p219 = por %p217, %p218
    %p221 = scmp.ne.s32.totalorder %s206, %s220
    %p222 = scmp.eq.s32.totalorder %s22, 0
    %p223 = por %p221, %p222
    %s225 = sadd.s32 %s224, 1
    %p228 = scmp.eq.s32.totalorder %s16, 3
    %p229 = scmp.ne.s32.totalorder %s224, %s226
    %p230 = scmp.eq.s32.totalorder %s16, 0
    %p231 = por %p229, %p230
    %p232 = scmp.ne.s32.totalorder %s224, %s226
    %p233 = scmp.eq.s32.totalorder %s21, 3
    %p234 = por %p232, %p233
    %p235 = scmp.ne.s32.totalorder %s226, %s227
    %p236 = scmp.eq.s32.totalorder %s21, 0
    %p237 = por %p235, %p236
    %p238 = scmp.ne.s32.totalorder %s226, %s227
    %p239 = scmp.eq.s32.totalorder %s22, 3
    %p240 = por %p238, %p239
    %p242 = scmp.ne.s32.totalorder %s227, %s241
    %p243 = scmp.eq.s32.totalorder %s22, 0
    %p244 = por %p242, %p243
    %s246 = sadd.s32 %s245, 1
    %p249 = scmp.eq.s32.totalorder %s16, 3
    %p250 = scmp.ne.s32.totalorder %s245, %s247
    %p251 = scmp.eq.s32.totalorder %s16, 0
    %p252 = por %p250, %p251
    %p253 = scmp.ne.s32.totalorder %s245, %s247
    %p254 = scmp.eq.s32.totalorder %s21, 3
    %p255 = por %p253, %p254
    %p256 = scmp.ne.s32.totalorder %s247, %s248
    %p257 = scmp.eq.s32.totalorder %s21, 0
    %p258 = por %p256, %p257
    %p259 = scmp.ne.s32.totalorder %s247, %s248
    %p260 = scmp.eq.s32.totalorder %s22, 3
    %p261 = por %p259, %p260
    %p263 = scmp.ne.s32.totalorder %s248, %s262
    %p264 = scmp.eq.s32.totalorder %s22, 0
    %p265 = por %p263, %p264
    %s266 = ssub.s32 %s23, %s35
    %s267 = ssub.s32 %s24, %s31
    %s268 = sor.u32 %s266, %s267
    %p269 = scmp.eq.s32.totalorder %s268, 0
    %s271 = sadd.s32 %s270, 1
    %s272 = scalar_select %p269, %s270, %s271
    %p275 = pneg %p269
    %p276 = scmp.eq.s32.totalorder %s16, 3
    %p277 = por %p275, %p276
    %p278 = scmp.ne.s32.totalorder %s270, %s273
    %p279 = scmp.eq.s32.totalorder %s16, 0
    %p280 = por %p278, %p279
    %p281 = scmp.ne.s32.totalorder %s270, %s273
    %p282 = scmp.eq.s32.totalorder %s21, 3
    %p283 = por %p281, %p282
    %p284 = scmp.ne.s32.totalorder %s273, %s274
    %p285 = scmp.eq.s32.totalorder %s21, 0
    %p286 = por %p284, %p285
    %p287 = scmp.ne.s32.totalorder %s273, %s274
    %p288 = scmp.eq.s32.totalorder %s22, 3
    %p289 = por %p287, %p288
    %p291 = scmp.ne.s32.totalorder %s274, %s290
    %p292 = scmp.eq.s32.totalorder %s22, 0
    %p293 = por %p291, %p292
    %p294 = scmp.le.s32.totalorder 1, %s16
    %p295 = scmp.lt.s32.totalorder %s16, 5
    %p296 = pnand %p294, %p295
    %p297 = pneg %p296
    // Predicated region
    $region9: #{fwd.2} parent=5 // pred_check
      _
    $region10: #{fwd.2} parent=5 // pred_check_branch
      %299 = sbr.rel (%p296) target = $region12
    $region11: #{fwd.2} parent=5 // pred_region
      %s300 = ssub.s32 %s16, 1
      // Predicated region
      $region13: #{fwd.2} parent=11 // pred_check
        %p301 = pneg %p153
      $region14: #{fwd.2} parent=11 // pred_check_branch
        %303 = sbr.rel (%p301) target = $region16
      $region15: #{fwd.2} parent=11 // pred_region
        _
      $region16: #{fwd.2} parent=11 // pred_fallthru
        _
      // Predicated region
      $region17: #{fwd.2} parent=11 // pred_check
        %p304 = pneg %p174
      $region18: #{fwd.2} parent=11 // pred_check_branch
        %306 = sbr.rel (%p304) target = $region20
      $region19: #{fwd.2} parent=11 // pred_region
        _
      $region20: #{fwd.2} parent=11 // pred_fallthru
        _
      // Predicated region
      $region21: #{fwd.2} parent=11 // pred_check
        %p307 = pneg %p195
      $region22: #{fwd.2} parent=11 // pred_check_branch
        %309 = sbr.rel (%p307) target = $region24
      $region23: #{fwd.2} parent=11 // pred_region
        _
      $region24: #{fwd.2} parent=11 // pred_fallthru
        _
      // Predicated region
      $region25: #{fwd.2} parent=11 // pred_check
        %p310 = pneg %p216
      $region26: #{fwd.2} parent=11 // pred_check_branch
        %312 = sbr.rel (%p310) target = $region28
      $region27: #{fwd.2} parent=11 // pred_region
        _
      $region28: #{fwd.2} parent=11 // pred_fallthru
        _
      // Predicated region
      $region29: #{fwd.2} parent=11 // pred_check
        %p313 = pneg %p237
      $region30: #{fwd.2} parent=11 // pred_check_branch
        %315 = sbr.rel (%p313) target = $region32
      $region31: #{fwd.2} parent=11 // pred_region
        _
      $region32: #{fwd.2} parent=11 // pred_fallthru
        _
      // Predicated region
      $region33: #{fwd.2} parent=11 // pred_check
        %p316 = pneg %p258
      $region34: #{fwd.2} parent=11 // pred_check_branch
        %318 = sbr.rel (%p316) target = $region36
      $region35: #{fwd.2} parent=11 // pred_region
        _
      $region36: #{fwd.2} parent=11 // pred_fallthru
        _
    $region12: #{fwd.2} parent=5 // pred_fallthru
      _
    %p319 = scmp.lt.s32.totalorder %s16, 4
    // Predicated region
    $region37: #{fwd.2} parent=5 // pred_check
      %p320 = pneg %p319
    $region38: #{fwd.2} parent=5 // pred_check_branch
      %322 = sbr.rel (%p320) target = $region40
    $region39: #{fwd.2} parent=5 // pred_region
      // Predicated region
      $region41: #{fwd.2} parent=39 // pred_check
        %p323 = pneg %p48
      $region42: #{fwd.2} parent=39 // pred_check_branch
        %325 = sbr.rel (%p323) target = $region44
      $region43: #{fwd.2} parent=39 // pred_region
        %p326 = scmp.lt.s32.totalorder %s23, 1
        %s327 = scalar_select %p326, %s23, 1
        %s328 = smul.addr %s327, 18
        %s329 = smul.addr %s328, 4
        %s330 = scalar_lea.vmem %s0, %s329
      $region44: #{fwd.2} parent=39 // pred_fallthru
        _
      // Predicated region
      $region45: #{fwd.2} parent=39 // pred_check
        %p331 = pneg %p74
      $region46: #{fwd.2} parent=39 // pred_check_branch
        %333 = sbr.rel (%p331) target = $region48
      $region47: #{fwd.2} parent=39 // pred_region
        %p334 = scmp.lt.s32.totalorder %s23, 1
        %s335 = scalar_select %p334, %s23, 1
        %s336 = smul.addr %s335, 18
        %s337 = smul.addr %s336, 4
        %s338 = scalar_lea.vmem %s1, %s337
      $region48: #{fwd.2} parent=39 // pred_fallthru
        _
      // Predicated region
      $region49: #{fwd.2} parent=39 // pred_check
        %p339 = pneg %p100
      $region50: #{fwd.2} parent=39 // pred_check_branch
        %341 = sbr.rel (%p339) target = $region52
      $region51: #{fwd.2} parent=39 // pred_region
        %p342 = scmp.lt.s32.totalorder %s23, 1
        %s343 = scalar_select %p342, %s23, 1
        %s344 = smul.addr %s343, 18
        %s345 = smul.addr %s344, 4
        %s346 = scalar_lea.vmem %s2, %s345
      $region52: #{fwd.2} parent=39 // pred_fallthru
        _
      // Predicated region
      $region53: #{fwd.2} parent=39 // pred_check
        %p347 = pneg %p126
      $region54: #{fwd.2} parent=39 // pred_check_branch
        %349 = sbr.rel (%p347) target = $region56
      $region55: #{fwd.2} parent=39 // pred_region
        %p350 = scmp.lt.s32.totalorder %s23, 1
        %s351 = scalar_select %p350, %s23, 1
        %s352 = smul.addr %s351, 18
        %s353 = smul.addr %s352, 4
        %s354 = scalar_lea.vmem %s3, %s353
      $region56: #{fwd.2} parent=39 // pred_fallthru
        _
    $region40: #{fwd.2} parent=5 // pred_fallthru
      _
    %p355 = scmp.le.s32.totalorder 1, %s16
    %p356 = scmp.lt.s32.totalorder %s16, 5
    %p357 = pnand %p355, %p356
    %p358 = pneg %p357
    // Predicated region
    $region57: #{fwd.2} parent=5 // pred_check
      _
    $region58: #{fwd.2} parent=5 // pred_check_branch
      %360 = sbr.rel (%p357) target = $region60
    $region59: #{fwd.2} parent=5 // pred_region
      %s361 = ssub.s32 %s16, 1
      %p362 = scmp.lt.s32.totalorder %s25, 1
      %s363 = scalar_select %p362, %s25, 1
      %s364 = smul.addr %s363, 18
      %s365 = smul.addr %s364, 4
      %s366 = scalar_lea.vmem %s0, %s365
      %p367 = pneg %p54
      %p368 = pneg %p51
      %p369 = scmp.lt.s32.totalorder %s25, 1
      %s370 = scalar_select %p369, %s25, 1
      %s371 = smul.addr %s370, 18
      %s372 = smul.addr %s371, 4
      %s373 = scalar_lea.vmem %s1, %s372
      %p374 = pneg %p80
      %p375 = pneg %p77
      %p376 = scmp.lt.s32.totalorder %s25, 1
      %s377 = scalar_select %p376, %s25, 1
      %s378 = smul.addr %s377, 18
      %s379 = smul.addr %s378, 4
      %s380 = scalar_lea.vmem %s2, %s379
      %p381 = pneg %p106
      %p382 = pneg %p103
      %p383 = scmp.lt.s32.totalorder %s25, 1
      %s384 = scalar_select %p383, %s25, 1
      %s385 = smul.addr %s384, 18
      %s386 = smul.addr %s385, 4
      %s387 = scalar_lea.vmem %s3, %s386
      %p388 = pneg %p132
      %p389 = pneg %p129
      %p390 = pneg %p153
      %p391 = pneg %p150
      %p392 = pneg %p174
      %p393 = pneg %p171
      %p394 = pneg %p195
      %p395 = pneg %p192
      %p396 = pneg %p216
      %p397 = pneg %p213
      %p398 = pneg %p237
      %p399 = pneg %p234
      %p400 = pneg %p258
      %p401 = pneg %p255
      %p402 = pneg %p286
      %p403 = pneg %p283
      %s404 = smul.u32 4, %s26
      %p405 = scmp.lt.s32.totalorder %s25, 1
      %s406 = scalar_select %p405, %s25, 1
      %p407 = scmp.lt.s32.totalorder %s404, 7
      %s408 = scalar_select %p407, %s404, 7
      %s409 = smul.addr %s406, 8
      %s410 = sadd.s32 %s408, %s409
      %s411 = smul.addr %s410, 4
      %s412 = scalar_lea.vmem %s10, %s411
      %p413 = scmp.lt.s32.totalorder %s25, 1
      %s414 = scalar_select %p413, %s25, 1
      %s415 = smul.addr %s414, 18
      %s416 = smul.addr %s415, 4
      %s417 = scalar_lea.vmem %s0, %s416
      %p418 = scmp.lt.s32.totalorder %s25, 1
      %s419 = scalar_select %p418, %s25, 1
      %s420 = smul.addr %s419, 18
      %s421 = smul.addr %s420, 4
      %s422 = scalar_lea.vmem %s1, %s421
      %p423 = scmp.lt.s32.totalorder %s25, 1
      %s424 = scalar_select %p423, %s25, 1
      %s425 = smul.addr %s424, 18
      %s426 = smul.addr %s425, 4
      %s427 = scalar_lea.vmem %s2, %s426
      %p428 = scmp.lt.s32.totalorder %s25, 1
      %s429 = scalar_select %p428, %s25, 1
      %s430 = smul.addr %s429, 18
      %s431 = smul.addr %s430, 4
      %s432 = scalar_lea.vmem %s3, %s431
      %s433 = smul.u32 4, %s26
      %p434 = scmp.lt.s32.totalorder %s25, 1
      %s435 = scalar_select %p434, %s25, 1
      %p436 = scmp.lt.s32.totalorder %s433, 7
      %s437 = scalar_select %p436, %s433, 7
      %s438 = smul.addr %s435, 8
      %s439 = sadd.s32 %s437, %s438
      %s440 = smul.addr %s439, 4
      %s441 = scalar_lea.vmem %s10, %s440
      %s442 = smul.u32 4, %s26
      %444 = vst [vmem:[#allocation2] sm:$0xf] 0
      %445 = vst [vmem:[#allocation2 + $0x4] sm:$0x1] 0
      %446 = vst [vmem:[#allocation2 + $0x8] sm:$0xf] 0
      %447 = vst [vmem:[#allocation2 + $0xc] sm:$0x1] 0
      %448 = vst [vmem:[#allocation2 + $0x10] sm:$0xf] 0
      %449 = vst [vmem:[#allocation2 + $0x14] sm:$0x1] 0
      %450 = vst [vmem:[#allocation2 + $0x18] sm:$0xf] 0
      %451 = vst [vmem:[#allocation2 + $0x1c] sm:$0x1] 0
      %452 = vst [vmem:[#allocation2 + $0x20] sm:$0xf] 0
      %453 = vst [vmem:[#allocation2 + $0x24] sm:$0x1] 0
      %454 = vst [vmem:[#allocation2 + $0x28] sm:$0xf] 0
      %455 = vst [vmem:[#allocation2 + $0x2c] sm:$0x1] 0
      %s456 = smul.u32 %s26, 4
      %s457 = smul.u32 %s456, 2
      %s458 = smul.addr %s457, 4
      %s459 = scalar_lea.vmem %s417, %s458
      %v460 = vld [vmem:[%s459] sm:$0xf]
      %v461 = vld [vmem:[%s459 + $0x4] sm:$0x1]
      %v462 = vld [vmem:[%s459 + $0x8] sm:$0xf]
      %v463 = vld [vmem:[%s459 + $0xc] sm:$0x1]
      %v464 = vld [vmem:[%s459 + $0x10] sm:$0xf]
      %v465 = vld [vmem:[%s459 + $0x14] sm:$0x1]
      %v466 = vld [vmem:[%s459 + $0x18] sm:$0xf]
      %v467 = vld [vmem:[%s459 + $0x1c] sm:$0x1]
      %s468 = smul.addr %s457, 4
      %s469 = scalar_lea.vmem %s422, %s468
      %v470 = vld [vmem:[%s469] sm:$0xf]
      %v471 = vld [vmem:[%s469 + $0x8] sm:$0xf]
      %v472 = vld [vmem:[%s469 + $0x10] sm:$0xf]
      %v473 = vld [vmem:[%s469 + $0x18] sm:$0xf]
      %s474 = smul.addr %s457, 4
      %s475 = scalar_lea.vmem %s427, %s474
      %v476 = vld [vmem:[%s475] sm:$0xf]
      %v477 = vld [vmem:[%s475 + $0x4] sm:$0x1]
      %v478 = vld [vmem:[%s475 + $0x8] sm:$0xf]
      %v479 = vld [vmem:[%s475 + $0xc] sm:$0x1]
      %v480 = vld [vmem:[%s475 + $0x10] sm:$0xf]
      %v481 = vld [vmem:[%s475 + $0x14] sm:$0x1]
      %v482 = vld [vmem:[%s475 + $0x18] sm:$0xf]
      %v483 = vld [vmem:[%s475 + $0x1c] sm:$0x1]
      %s484 = smul.addr %s457, 4
      %s485 = scalar_lea.vmem %s432, %s484
      %v486 = vld [vmem:[%s485] sm:$0xf]
      %v487 = vld [vmem:[%s485 + $0x8] sm:$0xf]
      %v488 = vld [vmem:[%s485 + $0x10] sm:$0xf]
      %v489 = vld [vmem:[%s485 + $0x18] sm:$0xf]
      %s490 = sadd.s32 %s456, 1
      %s491 = smul.u32 %s490, 2
      %s492 = smul.addr %s491, 4
      %s493 = scalar_lea.vmem %s417, %s492
      %v494 = vld [vmem:[%s493] sm:$0xf]
      %v495 = vld [vmem:[%s493 + $0x4] sm:$0x1]
      %v496 = vld [vmem:[%s493 + $0x8] sm:$0xf]
      %v497 = vld [vmem:[%s493 + $0xc] sm:$0x1]
      %v498 = vld [vmem:[%s493 + $0x10] sm:$0xf]
      %v499 = vld [vmem:[%s493 + $0x14] sm:$0x1]
      %v500 = vld [vmem:[%s493 + $0x18] sm:$0xf]
      %v501 = vld [vmem:[%s493 + $0x1c] sm:$0x1]
      %s502 = smul.addr %s491, 4
      %s503 = scalar_lea.vmem %s422, %s502
      %v504 = vld [vmem:[%s503] sm:$0xf]
      %v505 = vld [vmem:[%s503 + $0x8] sm:$0xf]
      %v506 = vld [vmem:[%s503 + $0x10] sm:$0xf]
      %v507 = vld [vmem:[%s503 + $0x18] sm:$0xf]
      %v512 = vunpack.c.l.b16 %v470
      %v513 = vunpack.c.l.b16 %v471
      %v514 = vunpack.c.l.b16 %v472
      %v515 = vunpack.c.l.b16 %v473
      %v516 = vpack.c.b16 %v512, %v512
      %v517 = vpack.c.b16 %v513, %v513
      %v518 = vpack.c.b16 %v514, %v514
      %v519 = vpack.c.b16 %v515, %v515
      %520 = vrot.lane.b32.xlu0 %v516, 64
      %v521 = vpop.permute.xlu0 %520
      %522 = vrot.lane.b32.xlu0 %v517, 64
      %v523 = vpop.permute.xlu0 %522
      %524 = vrot.lane.b32.xlu0 %v518, 64
      %v525 = vpop.permute.xlu0 %524
      %526 = vrot.lane.b32.xlu0 %v519, 64
      %v527 = vpop.permute.xlu0 %526
      %v536 = vunpack.c.l.b16 %v460
      %v537 = vunpack.c.l.b16 %v461
      %v538 = vunpack.c.l.b16 %v462
      %v539 = vunpack.c.l.b16 %v463
      %v540 = vunpack.c.l.b16 %v464
      %v541 = vunpack.c.l.b16 %v465
      %v542 = vunpack.c.l.b16 %v466
      %v543 = vunpack.c.l.b16 %v467
      %v544 = vpack.c.b16 %v537, %v536
      %v545 = vpack.c.b16 %v539, %v538
      %v546 = vpack.c.b16 %v541, %v540
      %v547 = vpack.c.b16 %v543, %v542
      %v549 = vshrl.u32 %v544, 16
      %v551 = vshll.u32 %v544, 16
      %v553 = vrot.slane %v551, 1
      %v554 = vor.u32 %v549, %v553
      %v556 = vshrl.u32 %v545, 16
      %v558 = vshll.u32 %v545, 16
      %v560 = vrot.slane %v558, 1
      %v561 = vor.u32 %v556, %v560
      %v563 = vshrl.u32 %v546, 16
      %v565 = vshll.u32 %v546, 16
      %v567 = vrot.slane %v565, 1
      %v568 = vor.u32 %v563, %v567
      %v570 = vshrl.u32 %v547, 16
      %v572 = vshll.u32 %v547, 16
      %v574 = vrot.slane %v572, 1
      %v575 = vor.u32 %v570, %v574
      %v580 = vunpack.c.l.b16 %v476
      %v581 = vunpack.c.l.b16 %v478
      %v582 = vunpack.c.l.b16 %v480
      %v583 = vunpack.c.l.b16 %v482
      %v584 = vpack.c.b16 %v580, %v580
      %v585 = vpack.c.b16 %v581, %v581
      %v586 = vpack.c.b16 %v582, %v582
      %v587 = vpack.c.b16 %v583, %v583
      %588 = vrot.lane.b32.xlu0 %v584, 64
      %v589 = vpop.permute.xlu0 %588
      %590 = vrot.lane.b32.xlu0 %v585, 64
      %v591 = vpop.permute.xlu0 %590
      %592 = vrot.lane.b32.xlu0 %v586, 64
      %v593 = vpop.permute.xlu0 %592
      %594 = vrot.lane.b32.xlu0 %v587, 64
      %v595 = vpop.permute.xlu0 %594
      %v600 = vunpack.c.l.b16 %v477
      %v601 = vunpack.c.l.b16 %v479
      %v602 = vunpack.c.l.b16 %v481
      %v603 = vunpack.c.l.b16 %v483
      %v604 = vpack.c.b16 %v600, %v580
      %v605 = vpack.c.b16 %v601, %v581
      %v606 = vpack.c.b16 %v602, %v582
      %v607 = vpack.c.b16 %v603, %v583
      %v609 = vshrl.u32 %v604, 16
      %v611 = vshll.u32 %v604, 16
      %v613 = vrot.slane %v611, 1
      %v614 = vor.u32 %v609, %v613
      %v616 = vshrl.u32 %v605, 16
      %v618 = vshll.u32 %v605, 16
      %v620 = vrot.slane %v618, 1
      %v621 = vor.u32 %v616, %v620
      %v623 = vshrl.u32 %v606, 16
      %v625 = vshll.u32 %v606, 16
      %v627 = vrot.slane %v625, 1
      %v628 = vor.u32 %v623, %v627
      %v630 = vshrl.u32 %v607, 16
      %v632 = vshll.u32 %v607, 16
      %v634 = vrot.slane %v632, 1
      %v635 = vor.u32 %v630, %v634
      %636 = vrot.lane.b32.xlu0 %v614, 64
      %v637 = vpop.permute.xlu0 %636
      %638 = vrot.lane.b32.xlu0 %v621, 64
      %v639 = vpop.permute.xlu0 %638
      %640 = vrot.lane.b32.xlu0 %v628, 64
      %v641 = vpop.permute.xlu0 %640
      %642 = vrot.lane.b32.xlu0 %v635, 64
      %v643 = vpop.permute.xlu0 %642
      %v648 = vunpack.c.l.b16 %v504
      %v649 = vunpack.c.l.b16 %v505
      %v650 = vunpack.c.l.b16 %v506
      %v651 = vunpack.c.l.b16 %v507
      %v652 = vpack.c.b16 %v648, %v648
      %v653 = vpack.c.b16 %v649, %v649
      %v654 = vpack.c.b16 %v650, %v650
      %v655 = vpack.c.b16 %v651, %v651
      %656 = vrot.lane.b32.xlu0 %v652, 64
      %v657 = vpop.permute.xlu0 %656
      %658 = vrot.lane.b32.xlu0 %v653, 64
      %v659 = vpop.permute.xlu0 %658
      %660 = vrot.lane.b32.xlu0 %v654, 64
      %v661 = vpop.permute.xlu0 %660
      %662 = vrot.lane.b32.xlu0 %v655, 64
      %v663 = vpop.permute.xlu0 %662
      %v672 = vunpack.c.l.b16 %v494
      %v673 = vunpack.c.l.b16 %v495
      %v674 = vunpack.c.l.b16 %v496
      %v675 = vunpack.c.l.b16 %v497
      %v676 = vunpack.c.l.b16 %v498
      %v677 = vunpack.c.l.b16 %v499
      %v678 = vunpack.c.l.b16 %v500
      %v679 = vunpack.c.l.b16 %v501
      %v680 = vpack.c.b16 %v673, %v672
      %v681 = vpack.c.b16 %v675, %v674
      %v682 = vpack.c.b16 %v677, %v676
      %v683 = vpack.c.b16 %v679, %v678
      %v685 = vshrl.u32 %v680, 16
      %v687 = vshll.u32 %v680, 16
      %v689 = vrot.slane %v687, 1
      %v690 = vor.u32 %v685, %v689
      %v692 = vshrl.u32 %v681, 16
      %v694 = vshll.u32 %v681, 16
      %v696 = vrot.slane %v694, 1
      %v697 = vor.u32 %v692, %v696
      %v699 = vshrl.u32 %v682, 16
      %v701 = vshll.u32 %v682, 16
      %v703 = vrot.slane %v701, 1
      %v704 = vor.u32 %v699, %v703
      %v706 = vshrl.u32 %v683, 16
      %v708 = vshll.u32 %v683, 16
      %v710 = vrot.slane %v708, 1
      %v711 = vor.u32 %v706, %v710
      %vm712 = vcmask 523264
      %v715 = vsel %vm712, %v460, %v521
      %v718 = vsel %vm712, %v462, %v523
      %v721 = vsel %vm712, %v464, %v525
      %v724 = vsel %vm712, %v466, %v527
      %v727 = vsel %vm712, %v554, %v589
      %v730 = vsel %vm712, %v561, %v591
      %v733 = vsel %vm712, %v568, %v593
      %v736 = vsel %vm712, %v575, %v595
      %v739 = vsel %vm712, %v486, %v637
      %v742 = vsel %vm712, %v487, %v639
      %v745 = vsel %vm712, %v488, %v641
      %v748 = vsel %vm712, %v489, %v643
      %v751 = vsel %vm712, %v494, %v657
      %v754 = vsel %vm712, %v496, %v659
      %v757 = vsel %vm712, %v498, %v661
      %v760 = vsel %vm712, %v500, %v663
      %v777 = vunpack.c.l.b16 %v715
      %v778 = vunpack.c.l.b16 %v727
      %v779 = vunpack.c.l.b16 %v739
      %v780 = vunpack.c.l.b16 %v751
      %v781 = vunpack.c.l.b16 %v690
      %v782 = vunpack.c.l.b16 %v718
      %v783 = vunpack.c.l.b16 %v730
      %v784 = vunpack.c.l.b16 %v742
      %v785 = vunpack.c.l.b16 %v754
      %v786 = vunpack.c.l.b16 %v697
      %v787 = vunpack.c.l.b16 %v721
      %v788 = vunpack.c.l.b16 %v733
      %v789 = vunpack.c.l.b16 %v745
      %v790 = vunpack.c.l.b16 %v757
      %v791 = vunpack.c.l.b16 %v704
      %v792 = vunpack.c.l.b16 %v724
      %v793 = vunpack.c.l.b16 %v736
      %v794 = vunpack.c.l.b16 %v748
      %v795 = vunpack.c.l.b16 %v760
      %v796 = vunpack.c.l.b16 %v711
      %v797 = vld [vmem:[%s4] sm:$0xf]
      %v798 = vld [vmem:[%s4 + $0x4] sm:$0xf]
      %v799 = vld [vmem:[%s4 + $0x8] sm:$0xf]
      %v800 = vld [vmem:[%s4 + $0xc] sm:$0xf]
      %v801 = vld [vmem:[%s4 + $0x10] sm:$0xf]
      %v802 = vld [vmem:[%s4 + $0x14] sm:$0xf]
      %v803 = vld [vmem:[%s4 + $0x18] sm:$0xf]
      %v804 = vld [vmem:[%s4 + $0x1c] sm:$0xf]
      %v805 = vld [vmem:[%s4 + $0x20] sm:$0xf]
      %v806 = vld [vmem:[%s4 + $0x24] sm:$0xf]
      %v807 = vld [vmem:[%s4 + $0x28] sm:$0xf]
      %v808 = vld [vmem:[%s4 + $0x2c] sm:$0xf]
      %v809 = vld [vmem:[%s4 + $0x30] sm:$0xf]
      %v810 = vld [vmem:[%s4 + $0x34] sm:$0xf]
      %v811 = vld [vmem:[%s4 + $0x38] sm:$0xf]
      %v812 = vld [vmem:[%s4 + $0x3c] sm:$0xf]
      %v813 = vld [vmem:[%s4 + $0x40] sm:$0xf]
      %v814 = vld [vmem:[%s4 + $0x44] sm:$0xf]
      %v815 = vld [vmem:[%s4 + $0x48] sm:$0xf]
      %v816 = vld [vmem:[%s4 + $0x4c] sm:$0xf]
      %v817 = vld [vmem:[%s4 + $0x50] sm:$0xf]
      %v818 = vld [vmem:[%s4 + $0x54] sm:$0xf]
      %v819 = vld [vmem:[%s4 + $0x58] sm:$0xf]
      %v820 = vld [vmem:[%s4 + $0x5c] sm:$0xf]
      %v821 = vld [vmem:[%s4 + $0x60] sm:$0xf]
      %v822 = vld [vmem:[%s4 + $0x64] sm:$0xf]
      %v823 = vld [vmem:[%s4 + $0x68] sm:$0xf]
      %v824 = vld [vmem:[%s4 + $0x6c] sm:$0xf]
      %v825 = vld [vmem:[%s4 + $0x70] sm:$0xf]
      %v826 = vld [vmem:[%s4 + $0x74] sm:$0xf]
      %v827 = vld [vmem:[%s4 + $0x78] sm:$0xf]
      %v828 = vld [vmem:[%s4 + $0x7c] sm:$0xf]
      %v829 = vld [vmem:[%s4 + $0x80] sm:$0xf]
      %v830 = vld [vmem:[%s4 + $0x84] sm:$0xf]
      %v831 = vld [vmem:[%s4 + $0x88] sm:$0xf]
      %v832 = vld [vmem:[%s4 + $0x8c] sm:$0xf]
      %v833 = vld [vmem:[%s4 + $0x90] sm:$0xf]
      %v834 = vld [vmem:[%s4 + $0x94] sm:$0xf]
      %v835 = vld [vmem:[%s4 + $0x98] sm:$0xf]
      %v836 = vld [vmem:[%s4 + $0x9c] sm:$0xf]
      %v837 = vld [vmem:[%s4 + $0xa0] sm:$0xf]
      %v838 = vld [vmem:[%s4 + $0xa4] sm:$0xf]
      %v839 = vld [vmem:[%s4 + $0xa8] sm:$0xf]
      %v840 = vld [vmem:[%s4 + $0xac] sm:$0xf]
      %v841 = vld [vmem:[%s4 + $0xb0] sm:$0xf]
      %v842 = vld [vmem:[%s4 + $0xb4] sm:$0xf]
      %v843 = vld [vmem:[%s4 + $0xb8] sm:$0xf]
      %v844 = vld [vmem:[%s4 + $0xbc] sm:$0xf]
      %v845 = vld [vmem:[%s4 + $0xc0] sm:$0xf]
      %v846 = vld [vmem:[%s4 + $0xc4] sm:$0xf]
      %v847 = vld [vmem:[%s4 + $0xc8] sm:$0xf]
      %v848 = vld [vmem:[%s4 + $0xcc] sm:$0xf]
      %v849 = vld [vmem:[%s4 + $0xd0] sm:$0xf]
      %v850 = vld [vmem:[%s4 + $0xd4] sm:$0xf]
      %v851 = vld [vmem:[%s4 + $0xd8] sm:$0xf]
      %v852 = vld [vmem:[%s4 + $0xdc] sm:$0xf]
      %v853 = vld [vmem:[%s4 + $0xe0] sm:$0xf]
      %v854 = vld [vmem:[%s4 + $0xe4] sm:$0xf]
      %v855 = vld [vmem:[%s4 + $0xe8] sm:$0xf]
      %v856 = vld [vmem:[%s4 + $0xec] sm:$0xf]
      %v857 = vld [vmem:[%s4 + $0xf0] sm:$0xf]
      %v858 = vld [vmem:[%s4 + $0xf4] sm:$0xf]
      %v859 = vld [vmem:[%s4 + $0xf8] sm:$0xf]
      %v860 = vld [vmem:[%s4 + $0xfc] sm:$0xf]
      %v861 = vld [vmem:[%s4 + $0x100] sm:$0xf]
      %v862 = vld [vmem:[%s4 + $0x104] sm:$0xf]
      %v863 = vld [vmem:[%s4 + $0x108] sm:$0xf]
      %v864 = vld [vmem:[%s4 + $0x10c] sm:$0xf]
      %v865 = vld [vmem:[%s4 + $0x110] sm:$0xf]
      %v866 = vld [vmem:[%s4 + $0x114] sm:$0xf]
      %v867 = vld [vmem:[%s4 + $0x118] sm:$0xf]
      %v868 = vld [vmem:[%s4 + $0x11c] sm:$0xf]
      %v869 = vld [vmem:[%s5] sm:$0x1]
      %v871 = vlaneseq
      %v872 = vshrl.u32 %v871, 7
      %v873 = vsub.s32 0, %v872
      %v874 = vrot.slane %v869, %v873
      %v876 = vpack.c.b16 %v782, %v777
      %v877 = vpack.c.b16 %v783, %v778
      %v878 = vpack.c.b16 %v784, %v779
      %v879 = vpack.c.b16 %v785, %v780
      %v880 = vpack.c.b16 %v786, %v781
      %v881 = vpack.c.b16 %v792, %v787
      %v882 = vpack.c.b16 %v793, %v788
      %v883 = vpack.c.b16 %v794, %v789
      %v884 = vpack.c.b16 %v795, %v790
      %v885 = vpack.c.b16 %v796, %v791
      %v966 = vunpack.c.l.b16 %v797
      %v967 = vunpack.c.l.b16 %v798
      %v968 = vunpack.c.l.b16 %v799
      %v969 = vunpack.c.l.b16 %v800
      %v970 = vunpack.c.l.b16 %v801
      %v971 = vunpack.c.l.b16 %v802
      %v972 = vunpack.c.l.b16 %v803
      %v973 = vunpack.c.l.b16 %v804
      %v974 = vunpack.c.l.b16 %v805
      %v975 = vunpack.c.l.b16 %v806
      %v976 = vunpack.c.l.b16 %v807
      %v977 = vunpack.c.l.b16 %v808
      %v978 = vunpack.c.l.b16 %v809
      %v979 = vunpack.c.l.b16 %v810
      %v980 = vunpack.c.l.b16 %v811
      %v981 = vunpack.c.l.b16 %v812
      %v982 = vunpack.c.l.b16 %v813
      %v983 = vunpack.c.l.b16 %v814
      %v984 = vunpack.c.l.b16 %v815
      %v985 = vunpack.c.l.b16 %v816
      %v986 = vunpack.c.l.b16 %v817
      %v987 = vunpack.c.l.b16 %v818
      %v988 = vunpack.c.l.b16 %v819
      %v989 = vunpack.c.l.b16 %v820
      %v990 = vunpack.c.l.b16 %v821
      %v991 = vunpack.c.l.b16 %v822
      %v992 = vunpack.c.l.b16 %v823
      %v993 = vunpack.c.l.b16 %v824
      %v994 = vunpack.c.l.b16 %v825
      %v995 = vunpack.c.l.b16 %v826
      %v996 = vunpack.c.l.b16 %v827
      %v997 = vunpack.c.l.b16 %v828
      %v998 = vunpack.c.l.b16 %v829
      %v999 = vunpack.c.l.b16 %v830
      %v1000 = vunpack.c.l.b16 %v831
      %v1001 = vunpack.c.l.b16 %v832
      %v1002 = vunpack.c.l.b16 %v833
      %v1003 = vunpack.c.l.b16 %v834
      %v1004 = vunpack.c.l.b16 %v835
      %v1005 = vunpack.c.l.b16 %v836
      %v1006 = vunpack.c.l.b16 %v837
      %v1007 = vunpack.c.l.b16 %v838
      %v1008 = vunpack.c.l.b16 %v839
      %v1009 = vunpack.c.l.b16 %v840
      %v1010 = vunpack.c.l.b16 %v841
      %v1011 = vunpack.c.l.b16 %v842
      %v1012 = vunpack.c.l.b16 %v843
      %v1013 = vunpack.c.l.b16 %v844
      %v1014 = vunpack.c.l.b16 %v845
      %v1015 = vunpack.c.l.b16 %v846
      %v1016 = vunpack.c.l.b16 %v847
      %v1017 = vunpack.c.l.b16 %v848
      %v1018 = vunpack.c.l.b16 %v849
      %v1019 = vunpack.c.l.b16 %v850
      %v1020 = vunpack.c.l.b16 %v851
      %v1021 = vunpack.c.l.b16 %v852
      %v1022 = vunpack.c.l.b16 %v853
      %v1023 = vunpack.c.l.b16 %v854
      %v1024 = vunpack.c.l.b16 %v855
      %v1025 = vunpack.c.l.b16 %v856
      %v1026 = vunpack.c.l.b16 %v857
      %v1027 = vunpack.c.l.b16 %v858
      %v1028 = vunpack.c.l.b16 %v859
      %v1029 = vunpack.c.l.b16 %v860
      %v1030 = vunpack.c.l.b16 %v861
      %v1031 = vunpack.c.l.b16 %v862
      %v1032 = vunpack.c.l.b16 %v863
      %v1033 = vunpack.c.l.b16 %v864
      %v1034 = vunpack.c.l.b16 %v865
      %v1035 = vunpack.c.l.b16 %v866
      %v1036 = vunpack.c.l.b16 %v867
      %v1037 = vunpack.c.l.b16 %v868
      %v1038 = vpack.c.b16 %v967, %v966
      %v1039 = vpack.c.b16 %v969, %v968
      %v1040 = vpack.c.b16 %v971, %v970
      %v1041 = vpack.c.b16 %v973, %v972
      %v1042 = vpack.c.b16 %v975, %v974
      %v1043 = vpack.c.b16 %v977, %v976
      %v1044 = vpack.c.b16 %v979, %v978
      %v1045 = vpack.c.b16 %v981, %v980
      %v1046 = vpack.c.b16 %v983, %v982
      %v1047 = vpack.c.b16 %v985, %v984
      %v1048 = vpack.c.b16 %v987, %v986
      %v1049 = vpack.c.b16 %v989, %v988
      %v1050 = vpack.c.b16 %v991, %v990
      %v1051 = vpack.c.b16 %v993, %v992
      %v1052 = vpack.c.b16 %v995, %v994
      %v1053 = vpack.c.b16 %v997, %v996
      %v1054 = vpack.c.b16 %v999, %v998
      %v1055 = vpack.c.b16 %v1001, %v1000
      %v1056 = vpack.c.b16 %v1003, %v1002
      %v1057 = vpack.c.b16 %v1005, %v1004
      %v1058 = vpack.c.b16 %v1007, %v1006
      %v1059 = vpack.c.b16 %v1009, %v1008
      %v1060 = vpack.c.b16 %v1011, %v1010
      %v1061 = vpack.c.b16 %v1013, %v1012
      %v1062 = vpack.c.b16 %v1015, %v1014
      %v1063 = vpack.c.b16 %v1017, %v1016
      %v1064 = vpack.c.b16 %v1019, %v1018
      %v1065 = vpack.c.b16 %v1021, %v1020
      %v1066 = vpack.c.b16 %v1023, %v1022
      %v1067 = vpack.c.b16 %v1025, %v1024
      %v1068 = vpack.c.b16 %v1027, %v1026
      %v1069 = vpack.c.b16 %v1029, %v1028
      %v1070 = vpack.c.b16 %v1031, %v1030
      %v1071 = vpack.c.b16 %v1033, %v1032
      %v1072 = vpack.c.b16 %v1035, %v1034
      %v1073 = vpack.c.b16 %v1037, %v1036
      %v1111 = vsel %vm712, %v880, 0
      %v1114 = vsel %vm712, %v885, 0
      %1116 = vmatprep.subr.bf16.mxu0 0
      %1117 = vmatpush1.bf16.msra.mxu0 %v1045
      %1118 = vmatprep.subr.bf16.mxu0 0
      %1119 = vmatpush1.bf16.msra.mxu0 %v1044
      %1120 = vmatprep.subr.bf16.mxu0 0
      %1121 = vmatpush1.bf16.msra.mxu0 %v1043
      %1122 = vmatprep.subr.bf16.mxu0 0
      %1123 = vmatpush1.bf16.msra.mxu0 %v1042
      %1124 = vmatprep.subr.bf16.mxu0 0
      %1125 = vmatpush1.bf16.msra.mxu0 %v1041
      %1126 = vmatprep.subr.bf16.mxu0 0
      %1127 = vmatpush1.bf16.msra.mxu0 %v1040
      %1128 = vmatprep.subr.bf16.mxu0 0
      %1129 = vmatpush1.bf16.msra.mxu0 %v1039
      %1130 = vmatprep.subr.bf16.mxu0 0
      %1131 = vmatpush1.bf16.msra.mxu0 %v1038
      %1132 = vmatprep.subr.bf16.mxu0 0
      %1133 = vmatpush2.bf16.msra.mxu0 %v1053
      %1134 = vmatprep.subr.bf16.mxu0 0
      %1135 = vmatpush2.bf16.msra.mxu0 %v1052
      %1136 = vmatprep.subr.bf16.mxu0 0
      %1137 = vmatpush2.bf16.msra.mxu0 %v1051
      %1138 = vmatprep.subr.bf16.mxu0 0
      %1139 = vmatpush2.bf16.msra.mxu0 %v1050
      %1140 = vmatprep.subr.bf16.mxu0 0
      %1141 = vmatpush2.bf16.msra.mxu0 %v1049
      %1142 = vmatprep.subr.bf16.mxu0 0
      %1143 = vmatpush2.bf16.msra.mxu0 %v1048
      %1144 = vmatprep.subr.bf16.mxu0 0
      %1145 = vmatpush2.bf16.msra.mxu0 %v1047
      %1146 = vmatprep.subr.bf16.mxu0 0
      %1147 = vmatpush2.bf16.msra.mxu0 %v1046
      %1148 = vmatprep.mubr.bf16.mxu0 %v877
      %1149 = vmatmul.mubr.bf16.gmra.mxu0 %v876
      %v1150 = vpop.f32.mrf.mxu0
      %v1151 = vadd.f32 %v874, %v1150
      %v1152 = vpop.f32.mrf.mxu0
      %v1153 = vpop.f32.mrf.mxu0
      %v1154 = vadd.f32 %v874, %v1153
      %v1155 = vpop.f32.mrf.mxu0
      %1156 = vmatprep.mubr.bf16.mxu0 %v882
      %1157 = vmatmul.mubr.bf16.gmra.mxu0 %v881
      %v1158 = vpop.f32.mrf.mxu0
      %v1159 = vadd.f32 %v874, %v1158
      %v1160 = vpop.f32.mrf.mxu0
      %v1161 = vpop.f32.mrf.mxu0
      %v1162 = vadd.f32 %v874, %v1161
      %v1163 = vpop.f32.mrf.mxu0
      %1164 = vdwg.mxu0
      %1165 = vmatprep.subr.bf16.mxu0 0
      %1166 = vmatpush1.bf16.msra.mxu0 %v1061
      %1167 = vmatprep.subr.bf16.mxu0 0
      %1168 = vmatpush1.bf16.msra.mxu0 %v1060
      %1169 = vmatprep.subr.bf16.mxu0 0
      %1170 = vmatpush1.bf16.msra.mxu0 %v1059
      %1171 = vmatprep.subr.bf16.mxu0 0
      %1172 = vmatpush1.bf16.msra.mxu0 %v1058
      %1173 = vmatprep.subr.bf16.mxu0 0
      %1174 = vmatpush1.bf16.msra.mxu0 %v1057
      %1175 = vmatprep.subr.bf16.mxu0 0
      %1176 = vmatpush1.bf16.msra.mxu0 %v1056
      %1177 = vmatprep.subr.bf16.mxu0 0
      %1178 = vmatpush1.bf16.msra.mxu0 %v1055
      %1179 = vmatprep.subr.bf16.mxu0 0
      %1180 = vmatpush1.bf16.msra.mxu0 %v1054
      %1181 = vmatprep.subr.bf16.mxu0 0
      %1182 = vmatpush2.bf16.msra.mxu0 %v1069
      %1183 = vmatprep.subr.bf16.mxu0 0
      %1184 = vmatpush2.bf16.msra.mxu0 %v1068
      %1185 = vmatprep.subr.bf16.mxu0 0
      %1186 = vmatpush2.bf16.msra.mxu0 %v1067
      %1187 = vmatprep.subr.bf16.mxu0 0
      %1188 = vmatpush2.bf16.msra.mxu0 %v1066
      %1189 = vmatprep.subr.bf16.mxu0 0
      %1190 = vmatpush2.bf16.msra.mxu0 %v1065
      %1191 = vmatprep.subr.bf16.mxu0 0
      %1192 = vmatpush2.bf16.msra.mxu0 %v1064
      %1193 = vmatprep.subr.bf16.mxu0 0
      %1194 = vmatpush2.bf16.msra.mxu0 %v1063
      %1195 = vmatprep.subr.bf16.mxu0 0
      %1196 = vmatpush2.bf16.msra.mxu0 %v1062
      %1197 = vmatprep.mubr.bf16.mxu0 %v879
      %1198 = vmatmul.mubr.bf16.gmra.mxu0 %v878
      %v1199 = vpop.f32.mrf.mxu0
      %v1200 = vadd.f32 %v1151, %v1199
      %v1201 = vpop.f32.mrf.mxu0
      %v1202 = vpop.f32.mrf.mxu0
      %v1203 = vadd.f32 %v1154, %v1202
      %v1204 = vpop.f32.mrf.mxu0
      %1205 = vmatprep.mubr.bf16.mxu0 %v884
      %1206 = vmatmul.mubr.bf16.gmra.mxu0 %v883
      %v1207 = vpop.f32.mrf.mxu0
      %v1208 = vadd.f32 %v1159, %v1207
      %v1209 = vpop.f32.mrf.mxu0
      %v1210 = vpop.f32.mrf.mxu0
      %v1211 = vadd.f32 %v1162, %v1210
      %v1212 = vpop.f32.mrf.mxu0
      %1213 = vdwg.mxu0
      %1214 = vmatprep.subr.bf16.mxu0 0
      %1215 = vmatpush1.bf16.msra.mxu0 0
      %1216 = vmatprep.subr.bf16.mxu0 0
      %1217 = vmatpush1.bf16.msra.mxu0 0
      %1218 = vmatprep.subr.bf16.mxu0 0
      %1219 = vmatpush1.bf16.msra.mxu0 0
      %1220 = vmatprep.subr.bf16.mxu0 0
      %1221 = vmatpush1.bf16.msra.mxu0 0
      %1222 = vmatprep.subr.bf16.mxu0 0
      %1223 = vmatpush1.bf16.msra.mxu0 %v1073
      %1224 = vmatprep.subr.bf16.mxu0 0
      %1225 = vmatpush1.bf16.msra.mxu0 %v1072
      %1226 = vmatprep.subr.bf16.mxu0 0
      %1227 = vmatpush1.bf16.msra.mxu0 %v1071
      %1228 = vmatprep.subr.bf16.mxu0 0
      %1229 = vmatpush1.bf16.msra.mxu0 %v1070
      %1230 = vmatprep.subr.bf16.mxu0 0
      %1231 = vmatpush2.bf16.msra.mxu0 0
      %1232 = vmatprep.subr.bf16.mxu0 0
      %1233 = vmatpush2.bf16.msra.mxu0 0
      %1234 = vmatprep.subr.bf16.mxu0 0
      %1235 = vmatpush2.bf16.msra.mxu0 0
      %1236 = vmatprep.subr.bf16.mxu0 0
      %1237 = vmatpush2.bf16.msra.mxu0 0
      %1238 = vmatprep.subr.bf16.mxu0 0
      %1239 = vmatpush2.bf16.msra.mxu0 0
      %1240 = vmatprep.subr.bf16.mxu0 0
      %1241 = vmatpush2.bf16.msra.mxu0 0
      %1242 = vmatprep.subr.bf16.mxu0 0
      %1243 = vmatpush2.bf16.msra.mxu0 0
      %1244 = vmatprep.subr.bf16.mxu0 0
      %1245 = vmatpush2.bf16.msra.mxu0 0
      %1246 = vmatprep.mubr.bf16.mxu0 0
      %1247 = vmatmul.mubr.bf16.gmra.mxu0 %v1111
      %v1248 = vpop.f32.mrf.mxu0
      %v1249 = vadd.f32 %v1200, %v1248
      %v1250 = vpop.f32.mrf.mxu0
      %v1251 = vpop.f32.mrf.mxu0
      %v1252 = vadd.f32 %v1203, %v1251
      %v1253 = vpop.f32.mrf.mxu0
      %1254 = vmatprep.mubr.bf16.mxu0 0
      %1255 = vmatmul.mubr.bf16.gmra.mxu0 %v1114
      %v1256 = vpop.f32.mrf.mxu0
      %v1257 = vadd.f32 %v1208, %v1256
      %v1258 = vpop.f32.mrf.mxu0
      %v1259 = vpop.f32.mrf.mxu0
      %v1260 = vadd.f32 %v1211, %v1259
      %v1261 = vpop.f32.mrf.mxu0
      %1262 = vdwg.mxu0
      %v1263 = vmax.f32 %v1249, 0.0
      %v1264 = vmax.f32 %v1252, 0.0
      %v1265 = vmax.f32 %v1257, 0.0
      %v1266 = vmax.f32 %v1260, 0.0
      %v1267 = vpack.c.bf16 %v1263, %v1263
      %v1268 = vpack.c.bf16 %v1264, %v1264
      %v1269 = vpack.c.bf16 %v1265, %v1265
      %v1270 = vpack.c.bf16 %v1266, %v1266
      %v1275 = vunpack.c.l.b16 %v1267
      %v1276 = vunpack.c.l.b16 %v1268
      %v1277 = vunpack.c.l.b16 %v1269
      %v1278 = vunpack.c.l.b16 %v1270
      %v1279 = vpack.c.b16 %v1275, %v1275
      %v1280 = vpack.c.b16 %v1276, %v1276
      %v1281 = vpack.c.b16 %v1277, %v1277
      %v1282 = vpack.c.b16 %v1278, %v1278
      %v1284 = vshrl.u32 %v1279, 16
      %v1286 = vrot.slane %v1284, 7
      %v1287 = vshll.u32 %v1279, 16
      %v1289 = vor.u32 %v1286, %v1287
      %v1290 = vrot.slane %v1286, 4
      %v1292 = vshrl.u32 %v1280, 16
      %v1294 = vrot.slane %v1292, 7
      %v1295 = vshll.u32 %v1280, 16
      %v1297 = vor.u32 %v1294, %v1295
      %v1298 = vrot.slane %v1294, 4
      %v1300 = vshrl.u32 %v1281, 16
      %v1302 = vrot.slane %v1300, 7
      %v1303 = vshll.u32 %v1281, 16
      %v1305 = vor.u32 %v1302, %v1303
      %v1306 = vrot.slane %v1302, 4
      %v1308 = vshrl.u32 %v1282, 16
      %v1310 = vrot.slane %v1308, 7
      %v1311 = vshll.u32 %v1282, 16
      %v1313 = vor.u32 %v1310, %v1311
      %v1314 = vrot.slane %v1310, 4
      %s1323 = scalar_lea.vmem [#allocation2], 8
      %vm1324 = vcmask 1043456
      %vm1325 = vsmask.f32 7938
      %vm1326 = vmand %vm1324, %vm1325
      %v1327 = vld [vmem:[%s1323] sm:$0xf]
      %v1328 = vsel %vm1326, %v1289, %v1327
      %1329 = vst [vmem:[%s1323] sm:$0xf] %v1328
      %vm1330 = vcmask 1040384
      %vm1331 = vsmask.f32 256
      %vm1332 = vmand %vm1330, %vm1331
      %v1333 = vld [vmem:[%s1323 + $0x4] sm:$0x1]
      %v1334 = vsel %vm1332, %v1290, %v1333
      %1335 = vst [vmem:[%s1323 + $0x4] sm:$0x1] %v1334
      %v1336 = vld [vmem:[%s1323 + $0x8] sm:$0xf]
      %v1337 = vsel %vm1326, %v1297, %v1336
      %1338 = vst [vmem:[%s1323 + $0x8] sm:$0xf] %v1337
      %v1339 = vld [vmem:[%s1323 + $0xc] sm:$0x1]
      %v1340 = vsel %vm1332, %v1298, %v1339
      %1341 = vst [vmem:[%s1323 + $0xc] sm:$0x1] %v1340
      %v1342 = vld [vmem:[%s1323 + $0x10] sm:$0xf]
      %v1343 = vsel %vm1326, %v1305, %v1342
      %1344 = vst [vmem:[%s1323 + $0x10] sm:$0xf] %v1343
      %v1345 = vld [vmem:[%s1323 + $0x14] sm:$0x1]
      %v1346 = vsel %vm1332, %v1306, %v1345
      %1347 = vst [vmem:[%s1323 + $0x14] sm:$0x1] %v1346
      %v1348 = vld [vmem:[%s1323 + $0x18] sm:$0xf]
      %v1349 = vsel %vm1326, %v1313, %v1348
      %1350 = vst [vmem:[%s1323 + $0x18] sm:$0xf] %v1349
      %v1351 = vld [vmem:[%s1323 + $0x1c] sm:$0x1]
      %v1352 = vsel %vm1332, %v1314, %v1351
      %1353 = vst [vmem:[%s1323 + $0x1c] sm:$0x1] %v1352
      %s1354 = ssub.s32 %s456, 1
      %s1355 = sadd.s32 %s456, 4
      %p1356 = scmp.ge.s32.totalorder %s1354, 0
      %p1357 = scmp.lt.s32.totalorder %s1354, 8
      %p1358 = pnand %p1356, %p1357
      %p1359 = pneg %p1358
      // Predicated region
      $region61: #{fwd.2} parent=59 // pred_check
        _
      $region62: #{fwd.2} parent=59 // pred_check_branch
        %1361 = sbr.rel (%p1358) target = $region64
      $region63: #{fwd.2} parent=59 // pred_region
        %s1362 = smul.u32 %s1354, 2
        %s1363 = smul.addr %s1362, 4
        %s1364 = scalar_lea.vmem %s417, %s1363
        %v1365 = vld [vmem:[%s1364] sm:$0xf]
        %v1366 = vld [vmem:[%s1364 + $0x4] sm:$0x1]
        %s1367 = smul.addr %s1362, 4
        %s1368 = scalar_lea.vmem %s422, %s1367
        %v1369 = vld [vmem:[%s1368] sm:$0xf]
        %s1370 = smul.addr %s1362, 4
        %s1371 = scalar_lea.vmem %s427, %s1370
        %v1372 = vld [vmem:[%s1371] sm:$0xf]
        %v1373 = vld [vmem:[%s1371 + $0x4] sm:$0x1]
        %s1374 = smul.addr %s1362, 4
        %s1375 = scalar_lea.vmem %s432, %s1374
        %v1376 = vld [vmem:[%s1375] sm:$0xf]
        %v1377 = vld [vmem:[%s459] sm:$0xf]
        %v1378 = vld [vmem:[%s459 + $0x4] sm:$0x1]
        %v1379 = vld [vmem:[%s469] sm:$0xf]
        %v1381 = vunpack.c.l.b16 %v1369
        %v1382 = vpack.c.b16 %v1381, %v1381
        %1383 = vrot.lane.b32.xlu0 %v1382, 64
        %v1384 = vpop.permute.xlu0 %1383
        %v1387 = vunpack.c.l.b16 %v1365
        %v1388 = vunpack.c.l.b16 %v1366
        %v1389 = vpack.c.b16 %v1388, %v1387
        %v1391 = vshrl.u32 %v1389, 16
        %v1393 = vshll.u32 %v1389, 16
        %v1395 = vrot.slane %v1393, 1
        %v1396 = vor.u32 %v1391, %v1395
        %v1398 = vunpack.c.l.b16 %v1372
        %v1399 = vpack.c.b16 %v1398, %v1398
        %1400 = vrot.lane.b32.xlu0 %v1399, 64
        %v1401 = vpop.permute.xlu0 %1400
        %v1403 = vunpack.c.l.b16 %v1373
        %v1404 = vpack.c.b16 %v1403, %v1398
        %v1406 = vshrl.u32 %v1404, 16
        %v1408 = vshll.u32 %v1404, 16
        %v1410 = vrot.slane %v1408, 1
        %v1411 = vor.u32 %v1406, %v1410
        %1412 = vrot.lane.b32.xlu0 %v1411, 64
        %v1413 = vpop.permute.xlu0 %1412
        %v1415 = vunpack.c.l.b16 %v1379
        %v1416 = vpack.c.b16 %v1415, %v1415
        %1417 = vrot.lane.b32.xlu0 %v1416, 64
        %v1418 = vpop.permute.xlu0 %1417
        %v1421 = vunpack.c.l.b16 %v1377
        %v1422 = vunpack.c.l.b16 %v1378
        %v1423 = vpack.c.b16 %v1422, %v1421
        %v1425 = vshrl.u32 %v1423, 16
        %v1427 = vshll.u32 %v1423, 16
        %v1429 = vrot.slane %v1427, 1
        %v1430 = vor.u32 %v1425, %v1429
        %v1433 = vsel %vm712, %v1365, %v1384
        %v1437 = vsel %vm712, %v1396, %v1401
        %v1441 = vsel %vm712, %v1376, %v1413
        %v1445 = vsel %vm712, %v1377, %v1418
        %v1447 = vld [vmem:[%s4] sm:$0xf]
        %v1448 = vld [vmem:[%s4 + $0x4] sm:$0xf]
        %v1449 = vld [vmem:[%s4 + $0x8] sm:$0xf]
        %v1450 = vld [vmem:[%s4 + $0xc] sm:$0xf]
        %v1451 = vld [vmem:[%s4 + $0x10] sm:$0xf]
        %v1452 = vld [vmem:[%s4 + $0x14] sm:$0xf]
        %v1453 = vld [vmem:[%s4 + $0x18] sm:$0xf]
        %v1454 = vld [vmem:[%s4 + $0x1c] sm:$0xf]
        %v1455 = vld [vmem:[%s4 + $0x20] sm:$0xf]
        %v1456 = vld [vmem:[%s4 + $0x24] sm:$0xf]
        %v1457 = vld [vmem:[%s4 + $0x28] sm:$0xf]
        %v1458 = vld [vmem:[%s4 + $0x2c] sm:$0xf]
        %v1459 = vld [vmem:[%s4 + $0x30] sm:$0xf]
        %v1460 = vld [vmem:[%s4 + $0x34] sm:$0xf]
        %v1461 = vld [vmem:[%s4 + $0x38] sm:$0xf]
        %v1462 = vld [vmem:[%s4 + $0x3c] sm:$0xf]
        %v1463 = vld [vmem:[%s4 + $0x40] sm:$0xf]
        %v1464 = vld [vmem:[%s4 + $0x44] sm:$0xf]
        %v1465 = vld [vmem:[%s4 + $0x48] sm:$0xf]
        %v1466 = vld [vmem:[%s4 + $0x4c] sm:$0xf]
        %v1467 = vld [vmem:[%s4 + $0x50] sm:$0xf]
        %v1468 = vld [vmem:[%s4 + $0x54] sm:$0xf]
        %v1469 = vld [vmem:[%s4 + $0x58] sm:$0xf]
        %v1470 = vld [vmem:[%s4 + $0x5c] sm:$0xf]
        %v1471 = vld [vmem:[%s4 + $0x60] sm:$0xf]
        %v1472 = vld [vmem:[%s4 + $0x64] sm:$0xf]
        %v1473 = vld [vmem:[%s4 + $0x68] sm:$0xf]
        %v1474 = vld [vmem:[%s4 + $0x6c] sm:$0xf]
        %v1475 = vld [vmem:[%s4 + $0x70] sm:$0xf]
        %v1476 = vld [vmem:[%s4 + $0x74] sm:$0xf]
        %v1477 = vld [vmem:[%s4 + $0x78] sm:$0xf]
        %v1478 = vld [vmem:[%s4 + $0x7c] sm:$0xf]
        %v1479 = vld [vmem:[%s4 + $0x80] sm:$0xf]
        %v1480 = vld [vmem:[%s4 + $0x84] sm:$0xf]
        %v1481 = vld [vmem:[%s4 + $0x88] sm:$0xf]
        %v1482 = vld [vmem:[%s4 + $0x8c] sm:$0xf]
        %v1483 = vld [vmem:[%s4 + $0x90] sm:$0xf]
        %v1484 = vld [vmem:[%s4 + $0x94] sm:$0xf]
        %v1485 = vld [vmem:[%s4 + $0x98] sm:$0xf]
        %v1486 = vld [vmem:[%s4 + $0x9c] sm:$0xf]
        %v1487 = vld [vmem:[%s4 + $0xa0] sm:$0xf]
        %v1488 = vld [vmem:[%s4 + $0xa4] sm:$0xf]
        %v1489 = vld [vmem:[%s4 + $0xa8] sm:$0xf]
        %v1490 = vld [vmem:[%s4 + $0xac] sm:$0xf]
        %v1491 = vld [vmem:[%s4 + $0xb0] sm:$0xf]
        %v1492 = vld [vmem:[%s4 + $0xb4] sm:$0xf]
        %v1493 = vld [vmem:[%s4 + $0xb8] sm:$0xf]
        %v1494 = vld [vmem:[%s4 + $0xbc] sm:$0xf]
        %v1495 = vld [vmem:[%s4 + $0xc0] sm:$0xf]
        %v1496 = vld [vmem:[%s4 + $0xc4] sm:$0xf]
        %v1497 = vld [vmem:[%s4 + $0xc8] sm:$0xf]
        %v1498 = vld [vmem:[%s4 + $0xcc] sm:$0xf]
        %v1499 = vld [vmem:[%s4 + $0xd0] sm:$0xf]
        %v1500 = vld [vmem:[%s4 + $0xd4] sm:$0xf]
        %v1501 = vld [vmem:[%s4 + $0xd8] sm:$0xf]
        %v1502 = vld [vmem:[%s4 + $0xdc] sm:$0xf]
        %v1503 = vld [vmem:[%s4 + $0xe0] sm:$0xf]
        %v1504 = vld [vmem:[%s4 + $0xe4] sm:$0xf]
        %v1505 = vld [vmem:[%s4 + $0xe8] sm:$0xf]
        %v1506 = vld [vmem:[%s4 + $0xec] sm:$0xf]
        %v1507 = vld [vmem:[%s4 + $0xf0] sm:$0xf]
        %v1508 = vld [vmem:[%s4 + $0xf4] sm:$0xf]
        %v1509 = vld [vmem:[%s4 + $0xf8] sm:$0xf]
        %v1510 = vld [vmem:[%s4 + $0xfc] sm:$0xf]
        %v1511 = vld [vmem:[%s4 + $0x100] sm:$0xf]
        %v1512 = vld [vmem:[%s4 + $0x104] sm:$0xf]
        %v1513 = vld [vmem:[%s4 + $0x108] sm:$0xf]
        %v1514 = vld [vmem:[%s4 + $0x10c] sm:$0xf]
        %v1515 = vld [vmem:[%s4 + $0x110] sm:$0xf]
        %v1516 = vld [vmem:[%s4 + $0x114] sm:$0xf]
        %v1517 = vld [vmem:[%s4 + $0x118] sm:$0xf]
        %v1518 = vld [vmem:[%s4 + $0x11c] sm:$0xf]
        %v1519 = vld [vmem:[%s5] sm:$0x1]
        %v1521 = vlaneseq
        %v1522 = vshrl.u32 %v1521, 7
        %v1523 = vsub.s32 0, %v1522
        %v1524 = vrot.slane %v1519, %v1523
        %v1598 = vunpack.c.l.b16 %v1447
        %v1599 = vunpack.c.l.b16 %v1448
        %v1600 = vunpack.c.l.b16 %v1449
        %v1601 = vunpack.c.l.b16 %v1450
        %v1602 = vunpack.c.l.b16 %v1451
        %v1603 = vunpack.c.l.b16 %v1452
        %v1604 = vunpack.c.l.b16 %v1453
        %v1605 = vunpack.c.l.b16 %v1454
        %v1606 = vunpack.c.l.b16 %v1455
        %v1607 = vunpack.c.l.b16 %v1456
        %v1608 = vunpack.c.l.b16 %v1457
        %v1609 = vunpack.c.l.b16 %v1458
        %v1610 = vunpack.c.l.b16 %v1459
        %v1611 = vunpack.c.l.b16 %v1460
        %v1612 = vunpack.c.l.b16 %v1461
        %v1613 = vunpack.c.l.b16 %v1462
        %v1614 = vunpack.c.l.b16 %v1463
        %v1615 = vunpack.c.l.b16 %v1464
        %v1616 = vunpack.c.l.b16 %v1465
        %v1617 = vunpack.c.l.b16 %v1466
        %v1618 = vunpack.c.l.b16 %v1467
        %v1619 = vunpack.c.l.b16 %v1468
        %v1620 = vunpack.c.l.b16 %v1469
        %v1621 = vunpack.c.l.b16 %v1470
        %v1622 = vunpack.c.l.b16 %v1471
        %v1623 = vunpack.c.l.b16 %v1472
        %v1624 = vunpack.c.l.b16 %v1473
        %v1625 = vunpack.c.l.b16 %v1474
        %v1626 = vunpack.c.l.b16 %v1475
        %v1627 = vunpack.c.l.b16 %v1476
        %v1628 = vunpack.c.l.b16 %v1477
        %v1629 = vunpack.c.l.b16 %v1478
        %v1630 = vunpack.c.l.b16 %v1479
        %v1631 = vunpack.c.l.b16 %v1480
        %v1632 = vunpack.c.l.b16 %v1481
        %v1633 = vunpack.c.l.b16 %v1482
        %v1634 = vunpack.c.l.b16 %v1483
        %v1635 = vunpack.c.l.b16 %v1484
        %v1636 = vunpack.c.l.b16 %v1485
        %v1637 = vunpack.c.l.b16 %v1486
        %v1638 = vunpack.c.l.b16 %v1487
        %v1639 = vunpack.c.l.b16 %v1488
        %v1640 = vunpack.c.l.b16 %v1489
        %v1641 = vunpack.c.l.b16 %v1490
        %v1642 = vunpack.c.l.b16 %v1491
        %v1643 = vunpack.c.l.b16 %v1492
        %v1644 = vunpack.c.l.b16 %v1493
        %v1645 = vunpack.c.l.b16 %v1494
        %v1646 = vunpack.c.l.b16 %v1495
        %v1647 = vunpack.c.l.b16 %v1496
        %v1648 = vunpack.c.l.b16 %v1497
        %v1649 = vunpack.c.l.b16 %v1498
        %v1650 = vunpack.c.l.b16 %v1499
        %v1651 = vunpack.c.l.b16 %v1500
        %v1652 = vunpack.c.l.b16 %v1501
        %v1653 = vunpack.c.l.b16 %v1502
        %v1654 = vunpack.c.l.b16 %v1503
        %v1655 = vunpack.c.l.b16 %v1504
        %v1656 = vunpack.c.l.b16 %v1505
        %v1657 = vunpack.c.l.b16 %v1506
        %v1658 = vunpack.c.l.b16 %v1507
        %v1659 = vunpack.c.l.b16 %v1508
        %v1660 = vunpack.c.l.b16 %v1509
        %v1661 = vunpack.c.l.b16 %v1510
        %v1662 = vunpack.c.l.b16 %v1511
        %v1663 = vunpack.c.l.b16 %v1512
        %v1664 = vunpack.c.l.b16 %v1513
        %v1665 = vunpack.c.l.b16 %v1514
        %v1666 = vunpack.c.l.b16 %v1515
        %v1667 = vunpack.c.l.b16 %v1516
        %v1668 = vunpack.c.l.b16 %v1517
        %v1669 = vunpack.c.l.b16 %v1518
        %v1670 = vpack.c.b16 %v1599, %v1598
        %v1671 = vpack.c.b16 %v1601, %v1600
        %v1672 = vpack.c.b16 %v1603, %v1602
        %v1673 = vpack.c.b16 %v1605, %v1604
        %v1674 = vpack.c.b16 %v1607, %v1606
        %v1675 = vpack.c.b16 %v1609, %v1608
        %v1676 = vpack.c.b16 %v1611, %v1610
        %v1677 = vpack.c.b16 %v1613, %v1612
        %v1678 = vpack.c.b16 %v1615, %v1614
        %v1679 = vpack.c.b16 %v1617, %v1616
        %v1680 = vpack.c.b16 %v1619, %v1618
        %v1681 = vpack.c.b16 %v1621, %v1620
        %v1682 = vpack.c.b16 %v1623, %v1622
        %v1683 = vpack.c.b16 %v1625, %v1624
        %v1684 = vpack.c.b16 %v1627, %v1626
        %v1685 = vpack.c.b16 %v1629, %v1628
        %v1686 = vpack.c.b16 %v1631, %v1630
        %v1687 = vpack.c.b16 %v1633, %v1632
        %v1688 = vpack.c.b16 %v1635, %v1634
        %v1689 = vpack.c.b16 %v1637, %v1636
        %v1690 = vpack.c.b16 %v1639, %v1638
        %v1691 = vpack.c.b16 %v1641, %v1640
        %v1692 = vpack.c.b16 %v1643, %v1642
        %v1693 = vpack.c.b16 %v1645, %v1644
        %v1694 = vpack.c.b16 %v1647, %v1646
        %v1695 = vpack.c.b16 %v1649, %v1648
        %v1696 = vpack.c.b16 %v1651, %v1650
        %v1697 = vpack.c.b16 %v1653, %v1652
        %v1698 = vpack.c.b16 %v1655, %v1654
        %v1699 = vpack.c.b16 %v1657, %v1656
        %v1700 = vpack.c.b16 %v1659, %v1658
        %v1701 = vpack.c.b16 %v1661, %v1660
        %v1702 = vpack.c.b16 %v1663, %v1662
        %v1703 = vpack.c.b16 %v1665, %v1664
        %v1704 = vpack.c.b16 %v1667, %v1666
        %v1705 = vpack.c.b16 %v1669, %v1668
        %v1743 = vsel %vm712, %v1430, 0
        %1745 = vmatprep.subr.bf16.mxu0 0
        %1746 = vmatpush1.bf16.msra.mxu0 %v1677
        %1747 = vmatprep.subr.bf16.mxu0 0
        %1748 = vmatpush1.bf16.msra.mxu0 %v1676
        %1749 = vmatprep.subr.bf16.mxu0 0
        %1750 = vmatpush1.bf16.msra.mxu0 %v1675
        %1751 = vmatprep.subr.bf16.mxu0 0
        %1752 = vmatpush1.bf16.msra.mxu0 %v1674
        %1753 = vmatprep.subr.bf16.mxu0 0
        %1754 = vmatpush1.bf16.msra.mxu0 %v1673
        %1755 = vmatprep.subr.bf16.mxu0 0
        %1756 = vmatpush1.bf16.msra.mxu0 %v1672
        %1757 = vmatprep.subr.bf16.mxu0 0
        %1758 = vmatpush1.bf16.msra.mxu0 %v1671
        %1759 = vmatprep.subr.bf16.mxu0 0
        %1760 = vmatpush1.bf16.msra.mxu0 %v1670
        %1761 = vmatprep.subr.bf16.mxu0 0
        %1762 = vmatpush2.bf16.msra.mxu0 %v1685
        %1763 = vmatprep.subr.bf16.mxu0 0
        %1764 = vmatpush2.bf16.msra.mxu0 %v1684
        %1765 = vmatprep.subr.bf16.mxu0 0
        %1766 = vmatpush2.bf16.msra.mxu0 %v1683
        %1767 = vmatprep.subr.bf16.mxu0 0
        %1768 = vmatpush2.bf16.msra.mxu0 %v1682
        %1769 = vmatprep.subr.bf16.mxu0 0
        %1770 = vmatpush2.bf16.msra.mxu0 %v1681
        %1771 = vmatprep.subr.bf16.mxu0 0
        %1772 = vmatpush2.bf16.msra.mxu0 %v1680
        %1773 = vmatprep.subr.bf16.mxu0 0
        %1774 = vmatpush2.bf16.msra.mxu0 %v1679
        %1775 = vmatprep.subr.bf16.mxu0 0
        %1776 = vmatpush2.bf16.msra.mxu0 %v1678
        %1777 = vmatprep.mubr.bf16.mxu0 %v1437
        %1778 = vmatmul.mubr.bf16.gmra.mxu0 %v1433
        %v1779 = vpop.f32.mrf.mxu0
        %v1780 = vadd.f32 %v1524, %v1779
        %v1781 = vpop.f32.mrf.mxu0
        %v1782 = vpop.f32.mrf.mxu0
        %v1783 = vpop.f32.mrf.mxu0
        %1784 = vdwg.mxu0
        %1785 = vmatprep.subr.bf16.mxu0 0
        %1786 = vmatpush1.bf16.msra.mxu0 %v1693
        %1787 = vmatprep.subr.bf16.mxu0 0
        %1788 = vmatpush1.bf16.msra.mxu0 %v1692
        %1789 = vmatprep.subr.bf16.mxu0 0
        %1790 = vmatpush1.bf16.msra.mxu0 %v1691
        %1791 = vmatprep.subr.bf16.mxu0 0
        %1792 = vmatpush1.bf16.msra.mxu0 %v1690
        %1793 = vmatprep.subr.bf16.mxu0 0
        %1794 = vmatpush1.bf16.msra.mxu0 %v1689
        %1795 = vmatprep.subr.bf16.mxu0 0
        %1796 = vmatpush1.bf16.msra.mxu0 %v1688
        %1797 = vmatprep.subr.bf16.mxu0 0
        %1798 = vmatpush1.bf16.msra.mxu0 %v1687
        %1799 = vmatprep.subr.bf16.mxu0 0
        %1800 = vmatpush1.bf16.msra.mxu0 %v1686
        %1801 = vmatprep.subr.bf16.mxu0 0
        %1802 = vmatpush2.bf16.msra.mxu0 %v1701
        %1803 = vmatprep.subr.bf16.mxu0 0
        %1804 = vmatpush2.bf16.msra.mxu0 %v1700
        %1805 = vmatprep.subr.bf16.mxu0 0
        %1806 = vmatpush2.bf16.msra.mxu0 %v1699
        %1807 = vmatprep.subr.bf16.mxu0 0
        %1808 = vmatpush2.bf16.msra.mxu0 %v1698
        %1809 = vmatprep.subr.bf16.mxu0 0
        %1810 = vmatpush2.bf16.msra.mxu0 %v1697
        %1811 = vmatprep.subr.bf16.mxu0 0
        %1812 = vmatpush2.bf16.msra.mxu0 %v1696
        %1813 = vmatprep.subr.bf16.mxu0 0
        %1814 = vmatpush2.bf16.msra.mxu0 %v1695
        %1815 = vmatprep.subr.bf16.mxu0 0
        %1816 = vmatpush2.bf16.msra.mxu0 %v1694
        %1817 = vmatprep.mubr.bf16.mxu0 %v1445
        %1818 = vmatmul.mubr.bf16.gmra.mxu0 %v1441
        %v1819 = vpop.f32.mrf.mxu0
        %v1820 = vadd.f32 %v1780, %v1819
        %v1821 = vpop.f32.mrf.mxu0
        %v1822 = vpop.f32.mrf.mxu0
        %v1823 = vpop.f32.mrf.mxu0
        %1824 = vdwg.mxu0
        %1825 = vmatprep.subr.bf16.mxu0 0
        %1826 = vmatpush1.bf16.msra.mxu0 0
        %1827 = vmatprep.subr.bf16.mxu0 0
        %1828 = vmatpush1.bf16.msra.mxu0 0
        %1829 = vmatprep.subr.bf16.mxu0 0
        %1830 = vmatpush1.bf16.msra.mxu0 0
        %1831 = vmatprep.subr.bf16.mxu0 0
        %1832 = vmatpush1.bf16.msra.mxu0 0
        %1833 = vmatprep.subr.bf16.mxu0 0
        %1834 = vmatpush1.bf16.msra.mxu0 %v1705
        %1835 = vmatprep.subr.bf16.mxu0 0
        %1836 = vmatpush1.bf16.msra.mxu0 %v1704
        %1837 = vmatprep.subr.bf16.mxu0 0
        %1838 = vmatpush1.bf16.msra.mxu0 %v1703
        %1839 = vmatprep.subr.bf16.mxu0 0
        %1840 = vmatpush1.bf16.msra.mxu0 %v1702
        %1841 = vmatprep.subr.bf16.mxu0 0
        %1842 = vmatpush2.bf16.msra.mxu0 0
        %1843 = vmatprep.subr.bf16.mxu0 0
        %1844 = vmatpush2.bf16.msra.mxu0 0
        %1845 = vmatprep.subr.bf16.mxu0 0
        %1846 = vmatpush2.bf16.msra.mxu0 0
        %1847 = vmatprep.subr.bf16.mxu0 0
        %1848 = vmatpush2.bf16.msra.mxu0 0
        %1849 = vmatprep.subr.bf16.mxu0 0
        %1850 = vmatpush2.bf16.msra.mxu0 0
        %1851 = vmatprep.subr.bf16.mxu0 0
        %1852 = vmatpush2.bf16.msra.mxu0 0
        %1853 = vmatprep.subr.bf16.mxu0 0
        %1854 = vmatpush2.bf16.msra.mxu0 0
        %1855 = vmatprep.subr.bf16.mxu0 0
        %1856 = vmatpush2.bf16.msra.mxu0 0
        %1857 = vmatprep.mubr.bf16.mxu0 0
        %1858 = vmatmul.mubr.bf16.gmra.mxu0 %v1743
        %v1859 = vpop.f32.mrf.mxu0
        %v1860 = vadd.f32 %v1820, %v1859
        %v1861 = vpop.f32.mrf.mxu0
        %v1862 = vpop.f32.mrf.mxu0
        %v1863 = vpop.f32.mrf.mxu0
        %1864 = vdwg.mxu0
        %v1865 = vmax.f32 %v1860, 0.0
        %v1866 = vpack.c.bf16 %v1865, %v1865
        %v1868 = vunpack.c.l.b16 %v1866
        %v1869 = vpack.c.b16 %v1868, %v1868
        %v1871 = vshrl.u32 %v1869, 16
        %v1873 = vrot.slane %v1871, 7
        %v1874 = vshll.u32 %v1869, 16
        %v1876 = vor.u32 %v1873, %v1874
        %v1877 = vrot.slane %v1873, 4
        %v1880 = vld [vmem:[#allocation2] sm:$0xf]
        %v1881 = vsel %vm1326, %v1876, %v1880
        %1882 = vst [vmem:[#allocation2] sm:$0xf] %v1881
        %v1883 = vld [vmem:[#allocation2 + $0x4] sm:$0x1]
        %v1884 = vsel %vm1332, %v1877, %v1883
        %1885 = vst [vmem:[#allocation2 + $0x4] sm:$0x1] %v1884
      $region64: #{fwd.2} parent=59 // pred_fallthru
        _
      %p1886 = scmp.ge.s32.totalorder %s1355, 0
      %p1887 = scmp.lt.s32.totalorder %s1355, 8
      %p1888 = pnand %p1886, %p1887
      %p1889 = pneg %p1888
      // Predicated region
      $region65: #{fwd.2} parent=59 // pred_check
        _
      $region66: #{fwd.2} parent=59 // pred_check_branch
        %1891 = sbr.rel (%p1888) target = $region68
      $region67: #{fwd.2} parent=59 // pred_region
        %s1892 = smul.u32 %s1355, 2
        %s1893 = smul.addr %s1892, 4
        %s1894 = scalar_lea.vmem %s417, %s1893
        %v1895 = vld [vmem:[%s1894] sm:$0xf]
        %v1896 = vld [vmem:[%s1894 + $0x4] sm:$0x1]
        %s1897 = smul.addr %s1892, 4
        %s1898 = scalar_lea.vmem %s422, %s1897
        %v1899 = vld [vmem:[%s1898] sm:$0xf]
        %s1900 = smul.addr %s1892, 4
        %s1901 = scalar_lea.vmem %s427, %s1900
        %v1902 = vld [vmem:[%s1901] sm:$0xf]
        %v1903 = vld [vmem:[%s1901 + $0x4] sm:$0x1]
        %s1904 = smul.addr %s1892, 4
        %s1905 = scalar_lea.vmem %s432, %s1904
        %v1906 = vld [vmem:[%s1905] sm:$0xf]
        %s1907 = sadd.s32 %s456, 5
        %s1908 = smul.u32 %s1907, 2
        %s1909 = smul.addr %s1908, 4
        %s1910 = scalar_lea.vmem %s417, %s1909
        %v1911 = vld [vmem:[%s1910] sm:$0xf]
        %v1912 = vld [vmem:[%s1910 + $0x4] sm:$0x1]
        %s1913 = smul.addr %s1908, 4
        %s1914 = scalar_lea.vmem %s422, %s1913
        %v1915 = vld [vmem:[%s1914] sm:$0xf]
        %v1917 = vunpack.c.l.b16 %v1899
        %v1918 = vpack.c.b16 %v1917, %v1917
        %1919 = vrot.lane.b32.xlu0 %v1918, 64
        %v1920 = vpop.permute.xlu0 %1919
        %v1923 = vunpack.c.l.b16 %v1895
        %v1924 = vunpack.c.l.b16 %v1896
        %v1925 = vpack.c.b16 %v1924, %v1923
        %v1927 = vshrl.u32 %v1925, 16
        %v1929 = vshll.u32 %v1925, 16
        %v1931 = vrot.slane %v1929, 1
        %v1932 = vor.u32 %v1927, %v1931
        %v1934 = vunpack.c.l.b16 %v1902
        %v1935 = vpack.c.b16 %v1934, %v1934
        %1936 = vrot.lane.b32.xlu0 %v1935, 64
        %v1937 = vpop.permute.xlu0 %1936
        %v1939 = vunpack.c.l.b16 %v1903
        %v1940 = vpack.c.b16 %v1939, %v1934
        %v1942 = vshrl.u32 %v1940, 16
        %v1944 = vshll.u32 %v1940, 16
        %v1946 = vrot.slane %v1944, 1
        %v1947 = vor.u32 %v1942, %v1946
        %1948 = vrot.lane.b32.xlu0 %v1947, 64
        %v1949 = vpop.permute.xlu0 %1948
        %v1951 = vunpack.c.l.b16 %v1915
        %v1952 = vpack.c.b16 %v1951, %v1951
        %1953 = vrot.lane.b32.xlu0 %v1952, 64
        %v1954 = vpop.permute.xlu0 %1953
        %v1957 = vunpack.c.l.b16 %v1911
        %v1958 = vunpack.c.l.b16 %v1912
        %v1959 = vpack.c.b16 %v1958, %v1957
        %v1961 = vshrl.u32 %v1959, 16
        %v1963 = vshll.u32 %v1959, 16
        %v1965 = vrot.slane %v1963, 1
        %v1966 = vor.u32 %v1961, %v1965
        %v1969 = vsel %vm712, %v1895, %v1920
        %v1973 = vsel %vm712, %v1932, %v1937
        %v1977 = vsel %vm712, %v1906, %v1949
        %v1981 = vsel %vm712, %v1911, %v1954
        %v1983 = vld [vmem:[%s4] sm:$0xf]
        %v1984 = vld [vmem:[%s4 + $0x4] sm:$0xf]
        %v1985 = vld [vmem:[%s4 + $0x8] sm:$0xf]
        %v1986 = vld [vmem:[%s4 + $0xc] sm:$0xf]
        %v1987 = vld [vmem:[%s4 + $0x10] sm:$0xf]
        %v1988 = vld [vmem:[%s4 + $0x14] sm:$0xf]
        %v1989 = vld [vmem:[%s4 + $0x18] sm:$0xf]
        %v1990 = vld [vmem:[%s4 + $0x1c] sm:$0xf]
        %v1991 = vld [vmem:[%s4 + $0x20] sm:$0xf]
        %v1992 = vld [vmem:[%s4 + $0x24] sm:$0xf]
        %v1993 = vld [vmem:[%s4 + $0x28] sm:$0xf]
        %v1994 = vld [vmem:[%s4 + $0x2c] sm:$0xf]
        %v1995 = vld [vmem:[%s4 + $0x30] sm:$0xf]
        %v1996 = vld [vmem:[%s4 + $0x34] sm:$0xf]
        %v1997 = vld [vmem:[%s4 + $0x38] sm:$0xf]
        %v1998 = vld [vmem:[%s4 + $0x3c] sm:$0xf]
        %v1999 = vld [vmem:[%s4 + $0x40] sm:$0xf]
        %v2000 = vld [vmem:[%s4 + $0x44] sm:$0xf]
        %v2001 = vld [vmem:[%s4 + $0x48] sm:$0xf]
        %v2002 = vld [vmem:[%s4 + $0x4c] sm:$0xf]
        %v2003 = vld [vmem:[%s4 + $0x50] sm:$0xf]
        %v2004 = vld [vmem:[%s4 + $0x54] sm:$0xf]
        %v2005 = vld [vmem:[%s4 + $0x58] sm:$0xf]
        %v2006 = vld [vmem:[%s4 + $0x5c] sm:$0xf]
        %v2007 = vld [vmem:[%s4 + $0x60] sm:$0xf]
        %v2008 = vld [vmem:[%s4 + $0x64] sm:$0xf]
        %v2009 = vld [vmem:[%s4 + $0x68] sm:$0xf]
        %v2010 = vld [vmem:[%s4 + $0x6c] sm:$0xf]
        %v2011 = vld [vmem:[%s4 + $0x70] sm:$0xf]
        %v2012 = vld [vmem:[%s4 + $0x74] sm:$0xf]
        %v2013 = vld [vmem:[%s4 + $0x78] sm:$0xf]
        %v2014 = vld [vmem:[%s4 + $0x7c] sm:$0xf]
        %v2015 = vld [vmem:[%s4 + $0x80] sm:$0xf]
        %v2016 = vld [vmem:[%s4 + $0x84] sm:$0xf]
        %v2017 = vld [vmem:[%s4 + $0x88] sm:$0xf]
        %v2018 = vld [vmem:[%s4 + $0x8c] sm:$0xf]
        %v2019 = vld [vmem:[%s4 + $0x90] sm:$0xf]
        %v2020 = vld [vmem:[%s4 + $0x94] sm:$0xf]
        %v2021 = vld [vmem:[%s4 + $0x98] sm:$0xf]
        %v2022 = vld [vmem:[%s4 + $0x9c] sm:$0xf]
        %v2023 = vld [vmem:[%s4 + $0xa0] sm:$0xf]
        %v2024 = vld [vmem:[%s4 + $0xa4] sm:$0xf]
        %v2025 = vld [vmem:[%s4 + $0xa8] sm:$0xf]
        %v2026 = vld [vmem:[%s4 + $0xac] sm:$0xf]
        %v2027 = vld [vmem:[%s4 + $0xb0] sm:$0xf]
        %v2028 = vld [vmem:[%s4 + $0xb4] sm:$0xf]
        %v2029 = vld [vmem:[%s4 + $0xb8] sm:$0xf]
        %v2030 = vld [vmem:[%s4 + $0xbc] sm:$0xf]
        %v2031 = vld [vmem:[%s4 + $0xc0] sm:$0xf]
        %v2032 = vld [vmem:[%s4 + $0xc4] sm:$0xf]
        %v2033 = vld [vmem:[%s4 + $0xc8] sm:$0xf]
        %v2034 = vld [vmem:[%s4 + $0xcc] sm:$0xf]
        %v2035 = vld [vmem:[%s4 + $0xd0] sm:$0xf]
        %v2036 = vld [vmem:[%s4 + $0xd4] sm:$0xf]
        %v2037 = vld [vmem:[%s4 + $0xd8] sm:$0xf]
        %v2038 = vld [vmem:[%s4 + $0xdc] sm:$0xf]
        %v2039 = vld [vmem:[%s4 + $0xe0] sm:$0xf]
        %v2040 = vld [vmem:[%s4 + $0xe4] sm:$0xf]
        %v2041 = vld [vmem:[%s4 + $0xe8] sm:$0xf]
        %v2042 = vld [vmem:[%s4 + $0xec] sm:$0xf]
        %v2043 = vld [vmem:[%s4 + $0xf0] sm:$0xf]
        %v2044 = vld [vmem:[%s4 + $0xf4] sm:$0xf]
        %v2045 = vld [vmem:[%s4 + $0xf8] sm:$0xf]
        %v2046 = vld [vmem:[%s4 + $0xfc] sm:$0xf]
        %v2047 = vld [vmem:[%s4 + $0x100] sm:$0xf]
        %v2048 = vld [vmem:[%s4 + $0x104] sm:$0xf]
        %v2049 = vld [vmem:[%s4 + $0x108] sm:$0xf]
        %v2050 = vld [vmem:[%s4 + $0x10c] sm:$0xf]
        %v2051 = vld [vmem:[%s4 + $0x110] sm:$0xf]
        %v2052 = vld [vmem:[%s4 + $0x114] sm:$0xf]
        %v2053 = vld [vmem:[%s4 + $0x118] sm:$0xf]
        %v2054 = vld [vmem:[%s4 + $0x11c] sm:$0xf]
        %v2055 = vld [vmem:[%s5] sm:$0x1]
        %v2057 = vlaneseq
        %v2058 = vshrl.u32 %v2057, 7
        %v2059 = vsub.s32 0, %v2058
        %v2060 = vrot.slane %v2055, %v2059
        %v2134 = vunpack.c.l.b16 %v1983
        %v2135 = vunpack.c.l.b16 %v1984
        %v2136 = vunpack.c.l.b16 %v1985
        %v2137 = vunpack.c.l.b16 %v1986
        %v2138 = vunpack.c.l.b16 %v1987
        %v2139 = vunpack.c.l.b16 %v1988
        %v2140 = vunpack.c.l.b16 %v1989
        %v2141 = vunpack.c.l.b16 %v1990
        %v2142 = vunpack.c.l.b16 %v1991
        %v2143 = vunpack.c.l.b16 %v1992
        %v2144 = vunpack.c.l.b16 %v1993
        %v2145 = vunpack.c.l.b16 %v1994
        %v2146 = vunpack.c.l.b16 %v1995
        %v2147 = vunpack.c.l.b16 %v1996
        %v2148 = vunpack.c.l.b16 %v1997
        %v2149 = vunpack.c.l.b16 %v1998
        %v2150 = vunpack.c.l.b16 %v1999
        %v2151 = vunpack.c.l.b16 %v2000
        %v2152 = vunpack.c.l.b16 %v2001
        %v2153 = vunpack.c.l.b16 %v2002
        %v2154 = vunpack.c.l.b16 %v2003
        %v2155 = vunpack.c.l.b16 %v2004
        %v2156 = vunpack.c.l.b16 %v2005
        %v2157 = vunpack.c.l.b16 %v2006
        %v2158 = vunpack.c.l.b16 %v2007
        %v2159 = vunpack.c.l.b16 %v2008
        %v2160 = vunpack.c.l.b16 %v2009
        %v2161 = vunpack.c.l.b16 %v2010
        %v2162 = vunpack.c.l.b16 %v2011
        %v2163 = vunpack.c.l.b16 %v2012
        %v2164 = vunpack.c.l.b16 %v2013
        %v2165 = vunpack.c.l.b16 %v2014
        %v2166 = vunpack.c.l.b16 %v2015
        %v2167 = vunpack.c.l.b16 %v2016
        %v2168 = vunpack.c.l.b16 %v2017
        %v2169 = vunpack.c.l.b16 %v2018
        %v2170 = vunpack.c.l.b16 %v2019
        %v2171 = vunpack.c.l.b16 %v2020
        %v2172 = vunpack.c.l.b16 %v2021
        %v2173 = vunpack.c.l.b16 %v2022
        %v2174 = vunpack.c.l.b16 %v2023
        %v2175 = vunpack.c.l.b16 %v2024
        %v2176 = vunpack.c.l.b16 %v2025
        %v2177 = vunpack.c.l.b16 %v2026
        %v2178 = vunpack.c.l.b16 %v2027
        %v2179 = vunpack.c.l.b16 %v2028
        %v2180 = vunpack.c.l.b16 %v2029
        %v2181 = vunpack.c.l.b16 %v2030
        %v2182 = vunpack.c.l.b16 %v2031
        %v2183 = vunpack.c.l.b16 %v2032
        %v2184 = vunpack.c.l.b16 %v2033
        %v2185 = vunpack.c.l.b16 %v2034
        %v2186 = vunpack.c.l.b16 %v2035
        %v2187 = vunpack.c.l.b16 %v2036
        %v2188 = vunpack.c.l.b16 %v2037
        %v2189 = vunpack.c.l.b16 %v2038
        %v2190 = vunpack.c.l.b16 %v2039
        %v2191 = vunpack.c.l.b16 %v2040
        %v2192 = vunpack.c.l.b16 %v2041
        %v2193 = vunpack.c.l.b16 %v2042
        %v2194 = vunpack.c.l.b16 %v2043
        %v2195 = vunpack.c.l.b16 %v2044
        %v2196 = vunpack.c.l.b16 %v2045
        %v2197 = vunpack.c.l.b16 %v2046
        %v2198 = vunpack.c.l.b16 %v2047
        %v2199 = vunpack.c.l.b16 %v2048
        %v2200 = vunpack.c.l.b16 %v2049
        %v2201 = vunpack.c.l.b16 %v2050
        %v2202 = vunpack.c.l.b16 %v2051
        %v2203 = vunpack.c.l.b16 %v2052
        %v2204 = vunpack.c.l.b16 %v2053
        %v2205 = vunpack.c.l.b16 %v2054
        %v2206 = vpack.c.b16 %v2135, %v2134
        %v2207 = vpack.c.b16 %v2137, %v2136
        %v2208 = vpack.c.b16 %v2139, %v2138
        %v2209 = vpack.c.b16 %v2141, %v2140
        %v2210 = vpack.c.b16 %v2143, %v2142
        %v2211 = vpack.c.b16 %v2145, %v2144
        %v2212 = vpack.c.b16 %v2147, %v2146
        %v2213 = vpack.c.b16 %v2149, %v2148
        %v2214 = vpack.c.b16 %v2151, %v2150
        %v2215 = vpack.c.b16 %v2153, %v2152
        %v2216 = vpack.c.b16 %v2155, %v2154
        %v2217 = vpack.c.b16 %v2157, %v2156
        %v2218 = vpack.c.b16 %v2159, %v2158
        %v2219 = vpack.c.b16 %v2161, %v2160
        %v2220 = vpack.c.b16 %v2163, %v2162
        %v2221 = vpack.c.b16 %v2165, %v2164
        %v2222 = vpack.c.b16 %v2167, %v2166
        %v2223 = vpack.c.b16 %v2169, %v2168
        %v2224 = vpack.c.b16 %v2171, %v2170
        %v2225 = vpack.c.b16 %v2173, %v2172
        %v2226 = vpack.c.b16 %v2175, %v2174
        %v2227 = vpack.c.b16 %v2177, %v2176
        %v2228 = vpack.c.b16 %v2179, %v2178
        %v2229 = vpack.c.b16 %v2181, %v2180
        %v2230 = vpack.c.b16 %v2183, %v2182
        %v2231 = vpack.c.b16 %v2185, %v2184
        %v2232 = vpack.c.b16 %v2187, %v2186
        %v2233 = vpack.c.b16 %v2189, %v2188
        %v2234 = vpack.c.b16 %v2191, %v2190
        %v2235 = vpack.c.b16 %v2193, %v2192
        %v2236 = vpack.c.b16 %v2195, %v2194
        %v2237 = vpack.c.b16 %v2197, %v2196
        %v2238 = vpack.c.b16 %v2199, %v2198
        %v2239 = vpack.c.b16 %v2201, %v2200
        %v2240 = vpack.c.b16 %v2203, %v2202
        %v2241 = vpack.c.b16 %v2205, %v2204
        %v2279 = vsel %vm712, %v1966, 0
        %2281 = vmatprep.subr.bf16.mxu0 0
        %2282 = vmatpush1.bf16.msra.mxu0 %v2213
        %2283 = vmatprep.subr.bf16.mxu0 0
        %2284 = vmatpush1.bf16.msra.mxu0 %v2212
        %2285 = vmatprep.subr.bf16.mxu0 0
        %2286 = vmatpush1.bf16.msra.mxu0 %v2211
        %2287 = vmatprep.subr.bf16.mxu0 0
        %2288 = vmatpush1.bf16.msra.mxu0 %v2210
        %2289 = vmatprep.subr.bf16.mxu0 0
        %2290 = vmatpush1.bf16.msra.mxu0 %v2209
        %2291 = vmatprep.subr.bf16.mxu0 0
        %2292 = vmatpush1.bf16.msra.mxu0 %v2208
        %2293 = vmatprep.subr.bf16.mxu0 0
        %2294 = vmatpush1.bf16.msra.mxu0 %v2207
        %2295 = vmatprep.subr.bf16.mxu0 0
        %2296 = vmatpush1.bf16.msra.mxu0 %v2206
        %2297 = vmatprep.subr.bf16.mxu0 0
        %2298 = vmatpush2.bf16.msra.mxu0 %v2221
        %2299 = vmatprep.subr.bf16.mxu0 0
        %2300 = vmatpush2.bf16.msra.mxu0 %v2220
        %2301 = vmatprep.subr.bf16.mxu0 0
        %2302 = vmatpush2.bf16.msra.mxu0 %v2219
        %2303 = vmatprep.subr.bf16.mxu0 0
        %2304 = vmatpush2.bf16.msra.mxu0 %v2218
        %2305 = vmatprep.subr.bf16.mxu0 0
        %2306 = vmatpush2.bf16.msra.mxu0 %v2217
        %2307 = vmatprep.subr.bf16.mxu0 0
        %2308 = vmatpush2.bf16.msra.mxu0 %v2216
        %2309 = vmatprep.subr.bf16.mxu0 0
        %2310 = vmatpush2.bf16.msra.mxu0 %v2215
        %2311 = vmatprep.subr.bf16.mxu0 0
        %2312 = vmatpush2.bf16.msra.mxu0 %v2214
        %2313 = vmatprep.mubr.bf16.mxu0 %v1973
        %2314 = vmatmul.mubr.bf16.gmra.mxu0 %v1969
        %v2315 = vpop.f32.mrf.mxu0
        %v2316 = vadd.f32 %v2060, %v2315
        %v2317 = vpop.f32.mrf.mxu0
        %v2318 = vpop.f32.mrf.mxu0
        %v2319 = vpop.f32.mrf.mxu0
        %2320 = vdwg.mxu0
        %2321 = vmatprep.subr.bf16.mxu0 0
        %2322 = vmatpush1.bf16.msra.mxu0 %v2229
        %2323 = vmatprep.subr.bf16.mxu0 0
        %2324 = vmatpush1.bf16.msra.mxu0 %v2228
        %2325 = vmatprep.subr.bf16.mxu0 0
        %2326 = vmatpush1.bf16.msra.mxu0 %v2227
        %2327 = vmatprep.subr.bf16.mxu0 0
        %2328 = vmatpush1.bf16.msra.mxu0 %v2226
        %2329 = vmatprep.subr.bf16.mxu0 0
        %2330 = vmatpush1.bf16.msra.mxu0 %v2225
        %2331 = vmatprep.subr.bf16.mxu0 0
        %2332 = vmatpush1.bf16.msra.mxu0 %v2224
        %2333 = vmatprep.subr.bf16.mxu0 0
        %2334 = vmatpush1.bf16.msra.mxu0 %v2223
        %2335 = vmatprep.subr.bf16.mxu0 0
        %2336 = vmatpush1.bf16.msra.mxu0 %v2222
        %2337 = vmatprep.subr.bf16.mxu0 0
        %2338 = vmatpush2.bf16.msra.mxu0 %v2237
        %2339 = vmatprep.subr.bf16.mxu0 0
        %2340 = vmatpush2.bf16.msra.mxu0 %v2236
        %2341 = vmatprep.subr.bf16.mxu0 0
        %2342 = vmatpush2.bf16.msra.mxu0 %v2235
        %2343 = vmatprep.subr.bf16.mxu0 0
        %2344 = vmatpush2.bf16.msra.mxu0 %v2234
        %2345 = vmatprep.subr.bf16.mxu0 0
        %2346 = vmatpush2.bf16.msra.mxu0 %v2233
        %2347 = vmatprep.subr.bf16.mxu0 0
        %2348 = vmatpush2.bf16.msra.mxu0 %v2232
        %2349 = vmatprep.subr.bf16.mxu0 0
        %2350 = vmatpush2.bf16.msra.mxu0 %v2231
        %2351 = vmatprep.subr.bf16.mxu0 0
        %2352 = vmatpush2.bf16.msra.mxu0 %v2230
        %2353 = vmatprep.mubr.bf16.mxu0 %v1981
        %2354 = vmatmul.mubr.bf16.gmra.mxu0 %v1977
        %v2355 = vpop.f32.mrf.mxu0
        %v2356 = vadd.f32 %v2316, %v2355
        %v2357 = vpop.f32.mrf.mxu0
        %v2358 = vpop.f32.mrf.mxu0
        %v2359 = vpop.f32.mrf.mxu0
        %2360 = vdwg.mxu0
        %2361 = vmatprep.subr.bf16.mxu0 0
        %2362 = vmatpush1.bf16.msra.mxu0 0
        %2363 = vmatprep.subr.bf16.mxu0 0
        %2364 = vmatpush1.bf16.msra.mxu0 0
        %2365 = vmatprep.subr.bf16.mxu0 0
        %2366 = vmatpush1.bf16.msra.mxu0 0
        %2367 = vmatprep.subr.bf16.mxu0 0
        %2368 = vmatpush1.bf16.msra.mxu0 0
        %2369 = vmatprep.subr.bf16.mxu0 0
        %2370 = vmatpush1.bf16.msra.mxu0 %v2241
        %2371 = vmatprep.subr.bf16.mxu0 0
        %2372 = vmatpush1.bf16.msra.mxu0 %v2240
        %2373 = vmatprep.subr.bf16.mxu0 0
        %2374 = vmatpush1.bf16.msra.mxu0 %v2239
        %2375 = vmatprep.subr.bf16.mxu0 0
        %2376 = vmatpush1.bf16.msra.mxu0 %v2238
        %2377 = vmatprep.subr.bf16.mxu0 0
        %2378 = vmatpush2.bf16.msra.mxu0 0
        %2379 = vmatprep.subr.bf16.mxu0 0
        %2380 = vmatpush2.bf16.msra.mxu0 0
        %2381 = vmatprep.subr.bf16.mxu0 0
        %2382 = vmatpush2.bf16.msra.mxu0 0
        %2383 = vmatprep.subr.bf16.mxu0 0
        %2384 = vmatpush2.bf16.msra.mxu0 0
        %2385 = vmatprep.subr.bf16.mxu0 0
        %2386 = vmatpush2.bf16.msra.mxu0 0
        %2387 = vmatprep.subr.bf16.mxu0 0
        %2388 = vmatpush2.bf16.msra.mxu0 0
        %2389 = vmatprep.subr.bf16.mxu0 0
        %2390 = vmatpush2.bf16.msra.mxu0 0
        %2391 = vmatprep.subr.bf16.mxu0 0
        %2392 = vmatpush2.bf16.msra.mxu0 0
        %2393 = vmatprep.mubr.bf16.mxu0 0
        %2394 = vmatmul.mubr.bf16.gmra.mxu0 %v2279
        %v2395 = vpop.f32.mrf.mxu0
        %v2396 = vadd.f32 %v2356, %v2395
        %v2397 = vpop.f32.mrf.mxu0
        %v2398 = vpop.f32.mrf.mxu0
        %v2399 = vpop.f32.mrf.mxu0
        %2400 = vdwg.mxu0
        %v2401 = vmax.f32 %v2396, 0.0
        %v2402 = vpack.c.bf16 %v2401, %v2401
        %v2404 = vunpack.c.l.b16 %v2402
        %v2405 = vpack.c.b16 %v2404, %v2404
        %v2407 = vshrl.u32 %v2405, 16
        %v2409 = vrot.slane %v2407, 7
        %v2410 = vshll.u32 %v2405, 16
        %v2412 = vor.u32 %v2409, %v2410
        %v2413 = vrot.slane %v2409, 4
        %s2416 = scalar_lea.vmem [#allocation2], 40
        %v2417 = vld [vmem:[%s2416] sm:$0xf]
        %v2418 = vsel %vm1326, %v2412, %v2417
        %2419 = vst [vmem:[%s2416] sm:$0xf] %v2418
        %v2420 = vld [vmem:[%s2416 + $0x4] sm:$0x1]
        %v2421 = vsel %vm1332, %v2413, %v2420
        %2422 = vst [vmem:[%s2416 + $0x4] sm:$0x1] %v2421
      $region68: #{fwd.2} parent=59 // pred_fallthru
        _
      %v2423 = vld [vmem:[#allocation2] sm:$0xf]
      %v2424 = vld [vmem:[#allocation2 + $0x4] sm:$0x1]
      %v2425 = vld [vmem:[#allocation2 + $0x8] sm:$0xf]
      %v2426 = vld [vmem:[#allocation2 + $0xc] sm:$0x1]
      %v2427 = vld [vmem:[#allocation2 + $0x10] sm:$0xf]
      %v2428 = vld [vmem:[#allocation2 + $0x14] sm:$0x1]
      %v2429 = vld [vmem:[#allocation2 + $0x18] sm:$0xf]
      %v2430 = vld [vmem:[#allocation2 + $0x1c] sm:$0x1]
      %v2431 = vld [vmem:[#allocation2 + $0x20] sm:$0xf]
      %v2432 = vld [vmem:[#allocation2 + $0x24] sm:$0x1]
      %v2433 = vld [vmem:[#allocation2 + $0x28] sm:$0xf]
      %v2434 = vld [vmem:[#allocation2 + $0x2c] sm:$0x1]
      %v2443 = vunpack.c.l.b16 %v2423
      %v2444 = vunpack.c.l.b16 %v2424
      %v2445 = vunpack.c.l.b16 %v2425
      %v2446 = vunpack.c.l.b16 %v2426
      %v2447 = vunpack.c.l.b16 %v2427
      %v2448 = vunpack.c.l.b16 %v2428
      %v2449 = vunpack.c.l.b16 %v2429
      %v2450 = vunpack.c.l.b16 %v2430
      %v2451 = vpack.c.b16 %v2444, %v2443
      %v2452 = vpack.c.b16 %v2446, %v2445
      %v2453 = vpack.c.b16 %v2448, %v2447
      %v2454 = vpack.c.b16 %v2450, %v2449
      %v2456 = vshrl.u32 %v2451, 16
      %v2458 = vshll.u32 %v2451, 16
      %v2460 = vrot.slane %v2458, 1
      %v2461 = vor.u32 %v2456, %v2460
      %v2463 = vshrl.u32 %v2452, 16
      %v2465 = vshll.u32 %v2452, 16
      %v2467 = vrot.slane %v2465, 1
      %v2468 = vor.u32 %v2463, %v2467
      %v2470 = vshrl.u32 %v2453, 16
      %v2472 = vshll.u32 %v2453, 16
      %v2474 = vrot.slane %v2472, 1
      %v2475 = vor.u32 %v2470, %v2474
      %v2477 = vshrl.u32 %v2454, 16
      %v2479 = vshll.u32 %v2454, 16
      %v2481 = vrot.slane %v2479, 1
      %v2482 = vor.u32 %v2477, %v2481
      %v2483 = vrot.slane %v2451, 1
      %v2484 = vrot.slane %v2452, 1
      %v2485 = vrot.slane %v2453, 1
      %v2486 = vrot.slane %v2454, 1
      %v2489 = vunpack.c.l.b16 %v2431
      %v2490 = vunpack.c.l.b16 %v2432
      %v2491 = vpack.c.b16 %v2490, %v2489
      %v2493 = vshrl.u32 %v2491, 16
      %v2495 = vshll.u32 %v2491, 16
      %v2497 = vrot.slane %v2495, 1
      %v2498 = vor.u32 %v2493, %v2497
      %v2499 = vrot.slane %v2491, 1
      %v2502 = vunpack.c.l.b16 %v2433
      %v2503 = vunpack.c.l.b16 %v2434
      %v2504 = vpack.c.b16 %v2503, %v2502
      %v2506 = vshrl.u32 %v2504, 16
      %v2508 = vshll.u32 %v2504, 16
      %v2510 = vrot.slane %v2508, 1
      %v2511 = vor.u32 %v2506, %v2510
      %v2512 = vrot.slane %v2504, 1
      %v2513 = vunpack.c.l.b16 %v2461
      %v2514 = vunpack.c.l.b16 %v2483
      %v2515 = vunpack.c.l.b16 %v2468
      %v2516 = vunpack.c.l.b16 %v2484
      %v2517 = vunpack.c.l.b16 %v2475
      %v2518 = vunpack.c.l.b16 %v2485
      %v2519 = vunpack.c.l.b16 %v2482
      %v2520 = vunpack.c.l.b16 %v2486
      %v2521 = vunpack.c.l.b16 %v2498
      %v2522 = vunpack.c.l.b16 %v2499
      %v2523 = vunpack.c.l.b16 %v2511
      %v2524 = vunpack.c.l.b16 %v2512
      %v2525 = vld [vmem:[%s6] sm:$0xf]
      %v2526 = vld [vmem:[%s6 + $0x4] sm:$0xf]
      %v2527 = vld [vmem:[%s6 + $0x8] sm:$0xf]
      %v2528 = vld [vmem:[%s6 + $0xc] sm:$0xf]
      %v2529 = vld [vmem:[%s6 + $0x10] sm:$0xf]
      %v2530 = vld [vmem:[%s6 + $0x14] sm:$0xf]
      %v2531 = vld [vmem:[%s6 + $0x18] sm:$0xf]
      %v2532 = vld [vmem:[%s6 + $0x1c] sm:$0xf]
      %v2533 = vld [vmem:[%s6 + $0x20] sm:$0xf]
      %v2534 = vld [vmem:[%s6 + $0x24] sm:$0xf]
      %v2535 = vld [vmem:[%s6 + $0x28] sm:$0xf]
      %v2536 = vld [vmem:[%s6 + $0x2c] sm:$0xf]
      %v2537 = vld [vmem:[%s6 + $0x30] sm:$0xf]
      %v2538 = vld [vmem:[%s6 + $0x34] sm:$0xf]
      %v2539 = vld [vmem:[%s6 + $0x38] sm:$0xf]
      %v2540 = vld [vmem:[%s6 + $0x3c] sm:$0xf]
      %v2541 = vld [vmem:[%s6 + $0x40] sm:$0xf]
      %v2542 = vld [vmem:[%s6 + $0x44] sm:$0xf]
      %v2543 = vld [vmem:[%s6 + $0x48] sm:$0xf]
      %v2544 = vld [vmem:[%s6 + $0x4c] sm:$0xf]
      %v2545 = vld [vmem:[%s6 + $0x50] sm:$0xf]
      %v2546 = vld [vmem:[%s6 + $0x54] sm:$0xf]
      %v2547 = vld [vmem:[%s6 + $0x58] sm:$0xf]
      %v2548 = vld [vmem:[%s6 + $0x5c] sm:$0xf]
      %v2549 = vld [vmem:[%s6 + $0x60] sm:$0xf]
      %v2550 = vld [vmem:[%s6 + $0x64] sm:$0xf]
      %v2551 = vld [vmem:[%s6 + $0x68] sm:$0xf]
      %v2552 = vld [vmem:[%s6 + $0x6c] sm:$0xf]
      %v2553 = vld [vmem:[%s6 + $0x70] sm:$0xf]
      %v2554 = vld [vmem:[%s6 + $0x74] sm:$0xf]
      %v2555 = vld [vmem:[%s6 + $0x78] sm:$0xf]
      %v2556 = vld [vmem:[%s6 + $0x7c] sm:$0xf]
      %v2557 = vld [vmem:[%s6 + $0x80] sm:$0xf]
      %v2558 = vld [vmem:[%s6 + $0x84] sm:$0xf]
      %v2559 = vld [vmem:[%s6 + $0x88] sm:$0xf]
      %v2560 = vld [vmem:[%s6 + $0x8c] sm:$0xf]
      %v2561 = vld [vmem:[%s6 + $0x90] sm:$0xf]
      %v2562 = vld [vmem:[%s6 + $0x94] sm:$0xf]
      %v2563 = vld [vmem:[%s6 + $0x98] sm:$0xf]
      %v2564 = vld [vmem:[%s6 + $0x9c] sm:$0xf]
      %v2565 = vld [vmem:[%s6 + $0xa0] sm:$0xf]
      %v2566 = vld [vmem:[%s6 + $0xa4] sm:$0xf]
      %v2567 = vld [vmem:[%s6 + $0xa8] sm:$0xf]
      %v2568 = vld [vmem:[%s6 + $0xac] sm:$0xf]
      %v2569 = vld [vmem:[%s6 + $0xb0] sm:$0xf]
      %v2570 = vld [vmem:[%s6 + $0xb4] sm:$0xf]
      %v2571 = vld [vmem:[%s6 + $0xb8] sm:$0xf]
      %v2572 = vld [vmem:[%s6 + $0xbc] sm:$0xf]
      %v2573 = vld [vmem:[%s6 + $0xc0] sm:$0xf]
      %v2574 = vld [vmem:[%s6 + $0xc4] sm:$0xf]
      %v2575 = vld [vmem:[%s6 + $0xc8] sm:$0xf]
      %v2576 = vld [vmem:[%s6 + $0xcc] sm:$0xf]
      %v2577 = vld [vmem:[%s6 + $0xd0] sm:$0xf]
      %v2578 = vld [vmem:[%s6 + $0xd4] sm:$0xf]
      %v2579 = vld [vmem:[%s6 + $0xd8] sm:$0xf]
      %v2580 = vld [vmem:[%s6 + $0xdc] sm:$0xf]
      %v2581 = vld [vmem:[%s6 + $0xe0] sm:$0xf]
      %v2582 = vld [vmem:[%s6 + $0xe4] sm:$0xf]
      %v2583 = vld [vmem:[%s6 + $0xe8] sm:$0xf]
      %v2584 = vld [vmem:[%s6 + $0xec] sm:$0xf]
      %v2585 = vld [vmem:[%s6 + $0xf0] sm:$0xf]
      %v2586 = vld [vmem:[%s6 + $0xf4] sm:$0xf]
      %v2587 = vld [vmem:[%s6 + $0xf8] sm:$0xf]
      %v2588 = vld [vmem:[%s6 + $0xfc] sm:$0xf]
      %v2589 = vld [vmem:[%s6 + $0x100] sm:$0xf]
      %v2590 = vld [vmem:[%s6 + $0x104] sm:$0xf]
      %v2591 = vld [vmem:[%s6 + $0x108] sm:$0xf]
      %v2592 = vld [vmem:[%s6 + $0x10c] sm:$0xf]
      %v2593 = vld [vmem:[%s6 + $0x110] sm:$0xf]
      %v2594 = vld [vmem:[%s6 + $0x114] sm:$0xf]
      %v2595 = vld [vmem:[%s6 + $0x118] sm:$0xf]
      %v2596 = vld [vmem:[%s6 + $0x11c] sm:$0xf]
      %v2597 = vld [vmem:[%s6 + $0x120] sm:$0xf]
      %v2598 = vld [vmem:[%s6 + $0x124] sm:$0xf]
      %v2599 = vld [vmem:[%s6 + $0x128] sm:$0xf]
      %v2600 = vld [vmem:[%s6 + $0x12c] sm:$0xf]
      %v2601 = vld [vmem:[%s6 + $0x130] sm:$0xf]
      %v2602 = vld [vmem:[%s6 + $0x134] sm:$0xf]
      %v2603 = vld [vmem:[%s6 + $0x138] sm:$0xf]
      %v2604 = vld [vmem:[%s6 + $0x13c] sm:$0xf]
      %v2605 = vld [vmem:[%s6 + $0x140] sm:$0xf]
      %v2606 = vld [vmem:[%s6 + $0x144] sm:$0xf]
      %v2607 = vld [vmem:[%s6 + $0x148] sm:$0xf]
      %v2608 = vld [vmem:[%s6 + $0x14c] sm:$0xf]
      %v2609 = vld [vmem:[%s6 + $0x150] sm:$0xf]
      %v2610 = vld [vmem:[%s6 + $0x154] sm:$0xf]
      %v2611 = vld [vmem:[%s6 + $0x158] sm:$0xf]
      %v2612 = vld [vmem:[%s6 + $0x15c] sm:$0xf]
      %v2613 = vld [vmem:[%s6 + $0x160] sm:$0xf]
      %v2614 = vld [vmem:[%s6 + $0x164] sm:$0xf]
      %v2615 = vld [vmem:[%s6 + $0x168] sm:$0xf]
      %v2616 = vld [vmem:[%s6 + $0x16c] sm:$0xf]
      %v2617 = vld [vmem:[%s6 + $0x170] sm:$0xf]
      %v2618 = vld [vmem:[%s6 + $0x174] sm:$0xf]
      %v2619 = vld [vmem:[%s6 + $0x178] sm:$0xf]
      %v2620 = vld [vmem:[%s6 + $0x17c] sm:$0xf]
      %v2621 = vld [vmem:[%s6 + $0x180] sm:$0xf]
      %v2622 = vld [vmem:[%s6 + $0x184] sm:$0xf]
      %v2623 = vld [vmem:[%s6 + $0x188] sm:$0xf]
      %v2624 = vld [vmem:[%s6 + $0x18c] sm:$0xf]
      %v2625 = vld [vmem:[%s6 + $0x190] sm:$0xf]
      %v2626 = vld [vmem:[%s6 + $0x194] sm:$0xf]
      %v2627 = vld [vmem:[%s6 + $0x198] sm:$0xf]
      %v2628 = vld [vmem:[%s6 + $0x19c] sm:$0xf]
      %v2629 = vld [vmem:[%s6 + $0x1a0] sm:$0xf]
      %v2630 = vld [vmem:[%s6 + $0x1a4] sm:$0xf]
      %v2631 = vld [vmem:[%s6 + $0x1a8] sm:$0xf]
      %v2632 = vld [vmem:[%s6 + $0x1ac] sm:$0xf]
      %v2633 = vld [vmem:[%s6 + $0x1b0] sm:$0xf]
      %v2634 = vld [vmem:[%s6 + $0x1b4] sm:$0xf]
      %v2635 = vld [vmem:[%s6 + $0x1b8] sm:$0xf]
      %v2636 = vld [vmem:[%s6 + $0x1bc] sm:$0xf]
      %v2637 = vld [vmem:[%s6 + $0x1c0] sm:$0xf]
      %v2638 = vld [vmem:[%s6 + $0x1c4] sm:$0xf]
      %v2639 = vld [vmem:[%s6 + $0x1c8] sm:$0xf]
      %v2640 = vld [vmem:[%s6 + $0x1cc] sm:$0xf]
      %v2641 = vld [vmem:[%s6 + $0x1d0] sm:$0xf]
      %v2642 = vld [vmem:[%s6 + $0x1d4] sm:$0xf]
      %v2643 = vld [vmem:[%s6 + $0x1d8] sm:$0xf]
      %v2644 = vld [vmem:[%s6 + $0x1dc] sm:$0xf]
      %v2645 = vld [vmem:[%s6 + $0x1e0] sm:$0xf]
      %v2646 = vld [vmem:[%s6 + $0x1e4] sm:$0xf]
      %v2647 = vld [vmem:[%s6 + $0x1e8] sm:$0xf]
      %v2648 = vld [vmem:[%s6 + $0x1ec] sm:$0xf]
      %v2649 = vld [vmem:[%s6 + $0x1f0] sm:$0xf]
      %v2650 = vld [vmem:[%s6 + $0x1f4] sm:$0xf]
      %v2651 = vld [vmem:[%s6 + $0x1f8] sm:$0xf]
      %v2652 = vld [vmem:[%s6 + $0x1fc] sm:$0xf]
      %v2653 = vld [vmem:[%s6 + $0x200] sm:$0xf]
      %v2654 = vld [vmem:[%s6 + $0x204] sm:$0xf]
      %v2655 = vld [vmem:[%s6 + $0x208] sm:$0xf]
      %v2656 = vld [vmem:[%s6 + $0x20c] sm:$0xf]
      %v2657 = vld [vmem:[%s6 + $0x210] sm:$0xf]
      %v2658 = vld [vmem:[%s6 + $0x214] sm:$0xf]
      %v2659 = vld [vmem:[%s6 + $0x218] sm:$0xf]
      %v2660 = vld [vmem:[%s6 + $0x21c] sm:$0xf]
      %v2661 = vld [vmem:[%s6 + $0x220] sm:$0xf]
      %v2662 = vld [vmem:[%s6 + $0x224] sm:$0xf]
      %v2663 = vld [vmem:[%s6 + $0x228] sm:$0xf]
      %v2664 = vld [vmem:[%s6 + $0x22c] sm:$0xf]
      %v2665 = vld [vmem:[%s6 + $0x230] sm:$0xf]
      %v2666 = vld [vmem:[%s6 + $0x234] sm:$0xf]
      %v2667 = vld [vmem:[%s6 + $0x238] sm:$0xf]
      %v2668 = vld [vmem:[%s6 + $0x23c] sm:$0xf]
      %v2669 = vld [vmem:[%s7] sm:$0x1]
      %v2671 = vlaneseq
      %v2672 = vshrl.u32 %v2671, 7
      %v2673 = vsub.s32 0, %v2672
      %v2674 = vrot.slane %v2669, %v2673
      %v2676 = vpack.c.b16 %v2445, %v2443
      %v2677 = vpack.c.b16 %v2515, %v2513
      %v2678 = vpack.c.b16 %v2516, %v2514
      %v2679 = vpack.c.b16 %v2447, %v2445
      %v2680 = vpack.c.b16 %v2517, %v2515
      %v2681 = vpack.c.b16 %v2518, %v2516
      %v2682 = vpack.c.b16 %v2449, %v2447
      %v2683 = vpack.c.b16 %v2519, %v2517
      %v2684 = vpack.c.b16 %v2520, %v2518
      %v2685 = vpack.c.b16 %v2489, %v2449
      %v2686 = vpack.c.b16 %v2521, %v2519
      %v2687 = vpack.c.b16 %v2522, %v2520
      %v2688 = vpack.c.b16 %v2502, %v2489
      %v2689 = vpack.c.b16 %v2523, %v2521
      %v2690 = vpack.c.b16 %v2524, %v2522
      %v2850 = vunpack.c.l.b16 %v2525
      %v2851 = vunpack.c.l.b16 %v2526
      %v2852 = vunpack.c.l.b16 %v2527
      %v2853 = vunpack.c.l.b16 %v2528
      %v2854 = vunpack.c.l.b16 %v2529
      %v2855 = vunpack.c.l.b16 %v2530
      %v2856 = vunpack.c.l.b16 %v2531
      %v2857 = vunpack.c.l.b16 %v2532
      %v2858 = vunpack.c.l.b16 %v2533
      %v2859 = vunpack.c.l.b16 %v2534
      %v2860 = vunpack.c.l.b16 %v2535
      %v2861 = vunpack.c.l.b16 %v2536
      %v2862 = vunpack.c.l.b16 %v2537
      %v2863 = vunpack.c.l.b16 %v2538
      %v2864 = vunpack.c.l.b16 %v2539
      %v2865 = vunpack.c.l.b16 %v2540
      %v2866 = vunpack.c.l.b16 %v2541
      %v2867 = vunpack.c.l.b16 %v2542
      %v2868 = vunpack.c.l.b16 %v2543
      %v2869 = vunpack.c.l.b16 %v2544
      %v2870 = vunpack.c.l.b16 %v2545
      %v2871 = vunpack.c.l.b16 %v2546
      %v2872 = vunpack.c.l.b16 %v2547
      %v2873 = vunpack.c.l.b16 %v2548
      %v2874 = vunpack.c.l.b16 %v2549
      %v2875 = vunpack.c.l.b16 %v2550
      %v2876 = vunpack.c.l.b16 %v2551
      %v2877 = vunpack.c.l.b16 %v2552
      %v2878 = vunpack.c.l.b16 %v2553
      %v2879 = vunpack.c.l.b16 %v2554
      %v2880 = vunpack.c.l.b16 %v2555
      %v2881 = vunpack.c.l.b16 %v2556
      %v2882 = vunpack.c.l.b16 %v2557
      %v2883 = vunpack.c.l.b16 %v2558
      %v2884 = vunpack.c.l.b16 %v2559
      %v2885 = vunpack.c.l.b16 %v2560
      %v2886 = vunpack.c.l.b16 %v2561
      %v2887 = vunpack.c.l.b16 %v2562
      %v2888 = vunpack.c.l.b16 %v2563
      %v2889 = vunpack.c.l.b16 %v2564
      %v2890 = vunpack.c.l.b16 %v2565
      %v2891 = vunpack.c.l.b16 %v2566
      %v2892 = vunpack.c.l.b16 %v2567
      %v2893 = vunpack.c.l.b16 %v2568
      %v2894 = vunpack.c.l.b16 %v2569
      %v2895 = vunpack.c.l.b16 %v2570
      %v2896 = vunpack.c.l.b16 %v2571
      %v2897 = vunpack.c.l.b16 %v2572
      %v2898 = vunpack.c.l.b16 %v2573
      %v2899 = vunpack.c.l.b16 %v2574
      %v2900 = vunpack.c.l.b16 %v2575
      %v2901 = vunpack.c.l.b16 %v2576
      %v2902 = vunpack.c.l.b16 %v2577
      %v2903 = vunpack.c.l.b16 %v2578
      %v2904 = vunpack.c.l.b16 %v2579
      %v2905 = vunpack.c.l.b16 %v2580
      %v2906 = vunpack.c.l.b16 %v2581
      %v2907 = vunpack.c.l.b16 %v2582
      %v2908 = vunpack.c.l.b16 %v2583
      %v2909 = vunpack.c.l.b16 %v2584
      %v2910 = vunpack.c.l.b16 %v2585
      %v2911 = vunpack.c.l.b16 %v2586
      %v2912 = vunpack.c.l.b16 %v2587
      %v2913 = vunpack.c.l.b16 %v2588
      %v2914 = vunpack.c.l.b16 %v2589
      %v2915 = vunpack.c.l.b16 %v2590
      %v2916 = vunpack.c.l.b16 %v2591
      %v2917 = vunpack.c.l.b16 %v2592
      %v2918 = vunpack.c.l.b16 %v2593
      %v2919 = vunpack.c.l.b16 %v2594
      %v2920 = vunpack.c.l.b16 %v2595
      %v2921 = vunpack.c.l.b16 %v2596
      %v2922 = vunpack.c.l.b16 %v2597
      %v2923 = vunpack.c.l.b16 %v2598
      %v2924 = vunpack.c.l.b16 %v2599
      %v2925 = vunpack.c.l.b16 %v2600
      %v2926 = vunpack.c.l.b16 %v2601
      %v2927 = vunpack.c.l.b16 %v2602
      %v2928 = vunpack.c.l.b16 %v2603
      %v2929 = vunpack.c.l.b16 %v2604
      %v2930 = vunpack.c.l.b16 %v2605
      %v2931 = vunpack.c.l.b16 %v2606
      %v2932 = vunpack.c.l.b16 %v2607
      %v2933 = vunpack.c.l.b16 %v2608
      %v2934 = vunpack.c.l.b16 %v2609
      %v2935 = vunpack.c.l.b16 %v2610
      %v2936 = vunpack.c.l.b16 %v2611
      %v2937 = vunpack.c.l.b16 %v2612
      %v2938 = vunpack.c.l.b16 %v2613
      %v2939 = vunpack.c.l.b16 %v2614
      %v2940 = vunpack.c.l.b16 %v2615
      %v2941 = vunpack.c.l.b16 %v2616
      %v2942 = vunpack.c.l.b16 %v2617
      %v2943 = vunpack.c.l.b16 %v2618
      %v2944 = vunpack.c.l.b16 %v2619
      %v2945 = vunpack.c.l.b16 %v2620
      %v2946 = vunpack.c.l.b16 %v2621
      %v2947 = vunpack.c.l.b16 %v2622
      %v2948 = vunpack.c.l.b16 %v2623
      %v2949 = vunpack.c.l.b16 %v2624
      %v2950 = vunpack.c.l.b16 %v2625
      %v2951 = vunpack.c.l.b16 %v2626
      %v2952 = vunpack.c.l.b16 %v2627
      %v2953 = vunpack.c.l.b16 %v2628
      %v2954 = vunpack.c.l.b16 %v2629
      %v2955 = vunpack.c.l.b16 %v2630
      %v2956 = vunpack.c.l.b16 %v2631
      %v2957 = vunpack.c.l.b16 %v2632
      %v2958 = vunpack.c.l.b16 %v2633
      %v2959 = vunpack.c.l.b16 %v2634
      %v2960 = vunpack.c.l.b16 %v2635
      %v2961 = vunpack.c.l.b16 %v2636
      %v2962 = vunpack.c.l.b16 %v2637
      %v2963 = vunpack.c.l.b16 %v2638
      %v2964 = vunpack.c.l.b16 %v2639
      %v2965 = vunpack.c.l.b16 %v2640
      %v2966 = vunpack.c.l.b16 %v2641
      %v2967 = vunpack.c.l.b16 %v2642
      %v2968 = vunpack.c.l.b16 %v2643
      %v2969 = vunpack.c.l.b16 %v2644
      %v2970 = vunpack.c.l.b16 %v2645
      %v2971 = vunpack.c.l.b16 %v2646
      %v2972 = vunpack.c.l.b16 %v2647
      %v2973 = vunpack.c.l.b16 %v2648
      %v2974 = vunpack.c.l.b16 %v2649
      %v2975 = vunpack.c.l.b16 %v2650
      %v2976 = vunpack.c.l.b16 %v2651
      %v2977 = vunpack.c.l.b16 %v2652
      %v2978 = vunpack.c.l.b16 %v2653
      %v2979 = vunpack.c.l.b16 %v2654
      %v2980 = vunpack.c.l.b16 %v2655
      %v2981 = vunpack.c.l.b16 %v2656
      %v2982 = vunpack.c.l.b16 %v2657
      %v2983 = vunpack.c.l.b16 %v2658
      %v2984 = vunpack.c.l.b16 %v2659
      %v2985 = vunpack.c.l.b16 %v2660
      %v2986 = vunpack.c.l.b16 %v2661
      %v2987 = vunpack.c.l.b16 %v2662
      %v2988 = vunpack.c.l.b16 %v2663
      %v2989 = vunpack.c.l.b16 %v2664
      %v2990 = vunpack.c.l.b16 %v2665
      %v2991 = vunpack.c.l.b16 %v2666
      %v2992 = vunpack.c.l.b16 %v2667
      %v2993 = vunpack.c.l.b16 %v2668
      %v2994 = vpack.c.b16 %v2851, %v2850
      %v2995 = vpack.c.b16 %v2853, %v2852
      %v2996 = vpack.c.b16 %v2855, %v2854
      %v2997 = vpack.c.b16 %v2857, %v2856
      %v2998 = vpack.c.b16 %v2859, %v2858
      %v2999 = vpack.c.b16 %v2861, %v2860
      %v3000 = vpack.c.b16 %v2863, %v2862
      %v3001 = vpack.c.b16 %v2865, %v2864
      %v3002 = vpack.c.b16 %v2867, %v2866
      %v3003 = vpack.c.b16 %v2869, %v2868
      %v3004 = vpack.c.b16 %v2871, %v2870
      %v3005 = vpack.c.b16 %v2873, %v2872
      %v3006 = vpack.c.b16 %v2875, %v2874
      %v3007 = vpack.c.b16 %v2877, %v2876
      %v3008 = vpack.c.b16 %v2879, %v2878
      %v3009 = vpack.c.b16 %v2881, %v2880
      %v3010 = vpack.c.b16 %v2883, %v2882
      %v3011 = vpack.c.b16 %v2885, %v2884
      %v3012 = vpack.c.b16 %v2887, %v2886
      %v3013 = vpack.c.b16 %v2889, %v2888
      %v3014 = vpack.c.b16 %v2891, %v2890
      %v3015 = vpack.c.b16 %v2893, %v2892
      %v3016 = vpack.c.b16 %v2895, %v2894
      %v3017 = vpack.c.b16 %v2897, %v2896
      %v3018 = vpack.c.b16 %v2899, %v2898
      %v3019 = vpack.c.b16 %v2901, %v2900
      %v3020 = vpack.c.b16 %v2903, %v2902
      %v3021 = vpack.c.b16 %v2905, %v2904
      %v3022 = vpack.c.b16 %v2907, %v2906
      %v3023 = vpack.c.b16 %v2909, %v2908
      %v3024 = vpack.c.b16 %v2911, %v2910
      %v3025 = vpack.c.b16 %v2913, %v2912
      %v3026 = vpack.c.b16 %v2915, %v2914
      %v3027 = vpack.c.b16 %v2917, %v2916
      %v3028 = vpack.c.b16 %v2919, %v2918
      %v3029 = vpack.c.b16 %v2921, %v2920
      %v3030 = vpack.c.b16 %v2923, %v2922
      %v3031 = vpack.c.b16 %v2925, %v2924
      %v3032 = vpack.c.b16 %v2927, %v2926
      %v3033 = vpack.c.b16 %v2929, %v2928
      %v3034 = vpack.c.b16 %v2931, %v2930
      %v3035 = vpack.c.b16 %v2933, %v2932
      %v3036 = vpack.c.b16 %v2935, %v2934
      %v3037 = vpack.c.b16 %v2937, %v2936
      %v3038 = vpack.c.b16 %v2939, %v2938
      %v3039 = vpack.c.b16 %v2941, %v2940
      %v3040 = vpack.c.b16 %v2943, %v2942
      %v3041 = vpack.c.b16 %v2945, %v2944
      %v3042 = vpack.c.b16 %v2947, %v2946
      %v3043 = vpack.c.b16 %v2949, %v2948
      %v3044 = vpack.c.b16 %v2951, %v2950
      %v3045 = vpack.c.b16 %v2953, %v2952
      %v3046 = vpack.c.b16 %v2955, %v2954
      %v3047 = vpack.c.b16 %v2957, %v2956
      %v3048 = vpack.c.b16 %v2959, %v2958
      %v3049 = vpack.c.b16 %v2961, %v2960
      %v3050 = vpack.c.b16 %v2963, %v2962
      %v3051 = vpack.c.b16 %v2965, %v2964
      %v3052 = vpack.c.b16 %v2967, %v2966
      %v3053 = vpack.c.b16 %v2969, %v2968
      %v3054 = vpack.c.b16 %v2971, %v2970
      %v3055 = vpack.c.b16 %v2973, %v2972
      %v3056 = vpack.c.b16 %v2975, %v2974
      %v3057 = vpack.c.b16 %v2977, %v2976
      %v3058 = vpack.c.b16 %v2979, %v2978
      %v3059 = vpack.c.b16 %v2981, %v2980
      %v3060 = vpack.c.b16 %v2983, %v2982
      %v3061 = vpack.c.b16 %v2985, %v2984
      %v3062 = vpack.c.b16 %v2987, %v2986
      %v3063 = vpack.c.b16 %v2989, %v2988
      %v3064 = vpack.c.b16 %v2991, %v2990
      %v3065 = vpack.c.b16 %v2993, %v2992
      %3138 = vmatprep.subr.bf16.mxu0 0
      %3139 = vmatpush1.bf16.msra.mxu0 %v3001
      %3140 = vmatprep.subr.bf16.mxu0 0
      %3141 = vmatpush1.bf16.msra.mxu0 %v3000
      %3142 = vmatprep.subr.bf16.mxu0 0
      %3143 = vmatpush1.bf16.msra.mxu0 %v2999
      %3144 = vmatprep.subr.bf16.mxu0 0
      %3145 = vmatpush1.bf16.msra.mxu0 %v2998
      %3146 = vmatprep.subr.bf16.mxu0 0
      %3147 = vmatpush1.bf16.msra.mxu0 %v2997
      %3148 = vmatprep.subr.bf16.mxu0 0
      %3149 = vmatpush1.bf16.msra.mxu0 %v2996
      %3150 = vmatprep.subr.bf16.mxu0 0
      %3151 = vmatpush1.bf16.msra.mxu0 %v2995
      %3152 = vmatprep.subr.bf16.mxu0 0
      %3153 = vmatpush1.bf16.msra.mxu0 %v2994
      %3154 = vmatprep.subr.bf16.mxu0 0
      %3155 = vmatpush2.bf16.msra.mxu0 %v3009
      %3156 = vmatprep.subr.bf16.mxu0 0
      %3157 = vmatpush2.bf16.msra.mxu0 %v3008
      %3158 = vmatprep.subr.bf16.mxu0 0
      %3159 = vmatpush2.bf16.msra.mxu0 %v3007
      %3160 = vmatprep.subr.bf16.mxu0 0
      %3161 = vmatpush2.bf16.msra.mxu0 %v3006
      %3162 = vmatprep.subr.bf16.mxu0 0
      %3163 = vmatpush2.bf16.msra.mxu0 %v3005
      %3164 = vmatprep.subr.bf16.mxu0 0
      %3165 = vmatpush2.bf16.msra.mxu0 %v3004
      %3166 = vmatprep.subr.bf16.mxu0 0
      %3167 = vmatpush2.bf16.msra.mxu0 %v3003
      %3168 = vmatprep.subr.bf16.mxu0 0
      %3169 = vmatpush2.bf16.msra.mxu0 %v3002
      %3170 = vmatprep.mubr.bf16.mxu0 %v2677
      %3171 = vmatmul.mubr.bf16.gmra.mxu0 %v2676
      %v3172 = vpop.f32.mrf.mxu0
      %v3173 = vadd.f32 %v2674, %v3172
      %v3174 = vpop.f32.mrf.mxu0
      %v3175 = vpop.f32.mrf.mxu0
      %v3176 = vadd.f32 %v2674, %v3175
      %v3177 = vpop.f32.mrf.mxu0
      %3178 = vmatprep.mubr.bf16.mxu0 %v2683
      %3179 = vmatmul.mubr.bf16.gmra.mxu0 %v2682
      %v3180 = vpop.f32.mrf.mxu0
      %v3181 = vadd.f32 %v2674, %v3180
      %v3182 = vpop.f32.mrf.mxu0
      %v3183 = vpop.f32.mrf.mxu0
      %v3184 = vadd.f32 %v2674, %v3183
      %v3185 = vpop.f32.mrf.mxu0
      %3186 = vdwg.mxu0
      %3187 = vmatprep.subr.bf16.mxu0 0
      %3188 = vmatpush1.bf16.msra.mxu0 %v3017
      %3189 = vmatprep.subr.bf16.mxu0 0
      %3190 = vmatpush1.bf16.msra.mxu0 %v3016
      %3191 = vmatprep.subr.bf16.mxu0 0
      %3192 = vmatpush1.bf16.msra.mxu0 %v3015
      %3193 = vmatprep.subr.bf16.mxu0 0
      %3194 = vmatpush1.bf16.msra.mxu0 %v3014
      %3195 = vmatprep.subr.bf16.mxu0 0
      %3196 = vmatpush1.bf16.msra.mxu0 %v3013
      %3197 = vmatprep.subr.bf16.mxu0 0
      %3198 = vmatpush1.bf16.msra.mxu0 %v3012
      %3199 = vmatprep.subr.bf16.mxu0 0
      %3200 = vmatpush1.bf16.msra.mxu0 %v3011
      %3201 = vmatprep.subr.bf16.mxu0 0
      %3202 = vmatpush1.bf16.msra.mxu0 %v3010
      %3203 = vmatprep.subr.bf16.mxu0 0
      %3204 = vmatpush2.bf16.msra.mxu0 %v3025
      %3205 = vmatprep.subr.bf16.mxu0 0
      %3206 = vmatpush2.bf16.msra.mxu0 %v3024
      %3207 = vmatprep.subr.bf16.mxu0 0
      %3208 = vmatpush2.bf16.msra.mxu0 %v3023
      %3209 = vmatprep.subr.bf16.mxu0 0
      %3210 = vmatpush2.bf16.msra.mxu0 %v3022
      %3211 = vmatprep.subr.bf16.mxu0 0
      %3212 = vmatpush2.bf16.msra.mxu0 %v3021
      %3213 = vmatprep.subr.bf16.mxu0 0
      %3214 = vmatpush2.bf16.msra.mxu0 %v3020
      %3215 = vmatprep.subr.bf16.mxu0 0
      %3216 = vmatpush2.bf16.msra.mxu0 %v3019
      %3217 = vmatprep.subr.bf16.mxu0 0
      %3218 = vmatpush2.bf16.msra.mxu0 %v3018
      %3219 = vmatprep.mubr.bf16.mxu0 %v2679
      %3220 = vmatmul.mubr.bf16.gmra.mxu0 %v2678
      %v3221 = vpop.f32.mrf.mxu0
      %v3222 = vadd.f32 %v3173, %v3221
      %v3223 = vpop.f32.mrf.mxu0
      %v3224 = vpop.f32.mrf.mxu0
      %v3225 = vadd.f32 %v3176, %v3224
      %v3226 = vpop.f32.mrf.mxu0
      %3227 = vmatprep.mubr.bf16.mxu0 %v2685
      %3228 = vmatmul.mubr.bf16.gmra.mxu0 %v2684
      %v3229 = vpop.f32.mrf.mxu0
      %v3230 = vadd.f32 %v3181, %v3229
      %v3231 = vpop.f32.mrf.mxu0
      %v3232 = vpop.f32.mrf.mxu0
      %v3233 = vadd.f32 %v3184, %v3232
      %v3234 = vpop.f32.mrf.mxu0
      %3235 = vdwg.mxu0
      %3236 = vmatprep.subr.bf16.mxu0 0
      %3237 = vmatpush1.bf16.msra.mxu0 %v3033
      %3238 = vmatprep.subr.bf16.mxu0 0
      %3239 = vmatpush1.bf16.msra.mxu0 %v3032
      %3240 = vmatprep.subr.bf16.mxu0 0
      %3241 = vmatpush1.bf16.msra.mxu0 %v3031
      %3242 = vmatprep.subr.bf16.mxu0 0
      %3243 = vmatpush1.bf16.msra.mxu0 %v3030
      %3244 = vmatprep.subr.bf16.mxu0 0
      %3245 = vmatpush1.bf16.msra.mxu0 %v3029
      %3246 = vmatprep.subr.bf16.mxu0 0
      %3247 = vmatpush1.bf16.msra.mxu0 %v3028
      %3248 = vmatprep.subr.bf16.mxu0 0
      %3249 = vmatpush1.bf16.msra.mxu0 %v3027
      %3250 = vmatprep.subr.bf16.mxu0 0
      %3251 = vmatpush1.bf16.msra.mxu0 %v3026
      %3252 = vmatprep.subr.bf16.mxu0 0
      %3253 = vmatpush2.bf16.msra.mxu0 %v3041
      %3254 = vmatprep.subr.bf16.mxu0 0
      %3255 = vmatpush2.bf16.msra.mxu0 %v3040
      %3256 = vmatprep.subr.bf16.mxu0 0
      %3257 = vmatpush2.bf16.msra.mxu0 %v3039
      %3258 = vmatprep.subr.bf16.mxu0 0
      %3259 = vmatpush2.bf16.msra.mxu0 %v3038
      %3260 = vmatprep.subr.bf16.mxu0 0
      %3261 = vmatpush2.bf16.msra.mxu0 %v3037
      %3262 = vmatprep.subr.bf16.mxu0 0
      %3263 = vmatpush2.bf16.msra.mxu0 %v3036
      %3264 = vmatprep.subr.bf16.mxu0 0
      %3265 = vmatpush2.bf16.msra.mxu0 %v3035
      %3266 = vmatprep.subr.bf16.mxu0 0
      %3267 = vmatpush2.bf16.msra.mxu0 %v3034
      %3268 = vmatprep.mubr.bf16.mxu0 %v2681
      %3269 = vmatmul.mubr.bf16.gmra.mxu0 %v2680
      %v3270 = vpop.f32.mrf.mxu0
      %v3271 = vadd.f32 %v3222, %v3270
      %v3272 = vpop.f32.mrf.mxu0
      %v3273 = vpop.f32.mrf.mxu0
      %v3274 = vadd.f32 %v3225, %v3273
      %v3275 = vpop.f32.mrf.mxu0
      %3276 = vmatprep.mubr.bf16.mxu0 %v2687
      %3277 = vmatmul.mubr.bf16.gmra.mxu0 %v2686
      %v3278 = vpop.f32.mrf.mxu0
      %v3279 = vadd.f32 %v3230, %v3278
      %v3280 = vpop.f32.mrf.mxu0
      %v3281 = vpop.f32.mrf.mxu0
      %v3282 = vadd.f32 %v3233, %v3281
      %v3283 = vpop.f32.mrf.mxu0
      %3284 = vdwg.mxu0
      %3285 = vmatprep.subr.bf16.mxu0 0
      %3286 = vmatpush1.bf16.msra.mxu0 %v3049
      %3287 = vmatprep.subr.bf16.mxu0 0
      %3288 = vmatpush1.bf16.msra.mxu0 %v3048
      %3289 = vmatprep.subr.bf16.mxu0 0
      %3290 = vmatpush1.bf16.msra.mxu0 %v3047
      %3291 = vmatprep.subr.bf16.mxu0 0
      %3292 = vmatpush1.bf16.msra.mxu0 %v3046
      %3293 = vmatprep.subr.bf16.mxu0 0
      %3294 = vmatpush1.bf16.msra.mxu0 %v3045
      %3295 = vmatprep.subr.bf16.mxu0 0
      %3296 = vmatpush1.bf16.msra.mxu0 %v3044
      %3297 = vmatprep.subr.bf16.mxu0 0
      %3298 = vmatpush1.bf16.msra.mxu0 %v3043
      %3299 = vmatprep.subr.bf16.mxu0 0
      %3300 = vmatpush1.bf16.msra.mxu0 %v3042
      %3301 = vmatprep.subr.bf16.mxu0 0
      %3302 = vmatpush2.bf16.msra.mxu0 %v3057
      %3303 = vmatprep.subr.bf16.mxu0 0
      %3304 = vmatpush2.bf16.msra.mxu0 %v3056
      %3305 = vmatprep.subr.bf16.mxu0 0
      %3306 = vmatpush2.bf16.msra.mxu0 %v3055
      %3307 = vmatprep.subr.bf16.mxu0 0
      %3308 = vmatpush2.bf16.msra.mxu0 %v3054
      %3309 = vmatprep.subr.bf16.mxu0 0
      %3310 = vmatpush2.bf16.msra.mxu0 %v3053
      %3311 = vmatprep.subr.bf16.mxu0 0
      %3312 = vmatpush2.bf16.msra.mxu0 %v3052
      %3313 = vmatprep.subr.bf16.mxu0 0
      %3314 = vmatpush2.bf16.msra.mxu0 %v3051
      %3315 = vmatprep.subr.bf16.mxu0 0
      %3316 = vmatpush2.bf16.msra.mxu0 %v3050
      %3317 = vmatprep.mubr.bf16.mxu0 %v2683
      %3318 = vmatmul.mubr.bf16.gmra.mxu0 %v2682
      %v3319 = vpop.f32.mrf.mxu0
      %v3320 = vadd.f32 %v3271, %v3319
      %v3321 = vpop.f32.mrf.mxu0
      %v3322 = vpop.f32.mrf.mxu0
      %v3323 = vadd.f32 %v3274, %v3322
      %v3324 = vpop.f32.mrf.mxu0
      %3325 = vmatprep.mubr.bf16.mxu0 %v2689
      %3326 = vmatmul.mubr.bf16.gmra.mxu0 %v2688
      %v3327 = vpop.f32.mrf.mxu0
      %v3328 = vadd.f32 %v3279, %v3327
      %v3329 = vpop.f32.mrf.mxu0
      %v3330 = vpop.f32.mrf.mxu0
      %v3331 = vadd.f32 %v3282, %v3330
      %v3332 = vpop.f32.mrf.mxu0
      %3333 = vdwg.mxu0
      %3334 = vmatprep.subr.bf16.mxu0 0
      %3335 = vmatpush1.bf16.msra.mxu0 %v3065
      %3336 = vmatprep.subr.bf16.mxu0 0
      %3337 = vmatpush1.bf16.msra.mxu0 %v3064
      %3338 = vmatprep.subr.bf16.mxu0 0
      %3339 = vmatpush1.bf16.msra.mxu0 %v3063
      %3340 = vmatprep.subr.bf16.mxu0 0
      %3341 = vmatpush1.bf16.msra.mxu0 %v3062
      %3342 = vmatprep.subr.bf16.mxu0 0
      %3343 = vmatpush1.bf16.msra.mxu0 %v3061
      %3344 = vmatprep.subr.bf16.mxu0 0
      %3345 = vmatpush1.bf16.msra.mxu0 %v3060
      %3346 = vmatprep.subr.bf16.mxu0 0
      %3347 = vmatpush1.bf16.msra.mxu0 %v3059
      %3348 = vmatprep.subr.bf16.mxu0 0
      %3349 = vmatpush1.bf16.msra.mxu0 %v3058
      %3350 = vmatprep.subr.bf16.mxu0 0
      %3351 = vmatpush2.bf16.msra.mxu0 0
      %3352 = vmatprep.subr.bf16.mxu0 0
      %3353 = vmatpush2.bf16.msra.mxu0 0
      %3354 = vmatprep.subr.bf16.mxu0 0
      %3355 = vmatpush2.bf16.msra.mxu0 0
      %3356 = vmatprep.subr.bf16.mxu0 0
      %3357 = vmatpush2.bf16.msra.mxu0 0
      %3358 = vmatprep.subr.bf16.mxu0 0
      %3359 = vmatpush2.bf16.msra.mxu0 0
      %3360 = vmatprep.subr.bf16.mxu0 0
      %3361 = vmatpush2.bf16.msra.mxu0 0
      %3362 = vmatprep.subr.bf16.mxu0 0
      %3363 = vmatpush2.bf16.msra.mxu0 0
      %3364 = vmatprep.subr.bf16.mxu0 0
      %3365 = vmatpush2.bf16.msra.mxu0 0
      %3366 = vmatprep.mubr.bf16.mxu0 0
      %3367 = vmatmul.mubr.bf16.gmra.mxu0 %v2684
      %v3368 = vpop.f32.mrf.mxu0
      %v3369 = vadd.f32 %v3320, %v3368
      %v3370 = vpop.f32.mrf.mxu0
      %v3371 = vpop.f32.mrf.mxu0
      %v3372 = vadd.f32 %v3323, %v3371
      %v3373 = vpop.f32.mrf.mxu0
      %3374 = vmatprep.mubr.bf16.mxu0 0
      %3375 = vmatmul.mubr.bf16.gmra.mxu0 %v2690
      %v3376 = vpop.f32.mrf.mxu0
      %v3377 = vadd.f32 %v3328, %v3376
      %v3378 = vpop.f32.mrf.mxu0
      %v3379 = vpop.f32.mrf.mxu0
      %v3380 = vadd.f32 %v3331, %v3379
      %v3381 = vpop.f32.mrf.mxu0
      %3382 = vdwg.mxu0
      %v3383 = vld [vmem:[%s485] sm:$0xf]
      %v3384 = vld [vmem:[%s485 + $0x8] sm:$0xf]
      %v3385 = vld [vmem:[%s485 + $0x10] sm:$0xf]
      %v3386 = vld [vmem:[%s485 + $0x18] sm:$0xf]
      %v3387 = vld [vmem:[%s8] sm:$0xf]
      %v3388 = vld [vmem:[%s8 + $0x4] sm:$0xf]
      %v3389 = vld [vmem:[%s8 + $0x8] sm:$0xf]
      %v3390 = vld [vmem:[%s8 + $0xc] sm:$0xf]
      %v3391 = vld [vmem:[%s8 + $0x10] sm:$0xf]
      %v3392 = vld [vmem:[%s8 + $0x14] sm:$0xf]
      %v3393 = vld [vmem:[%s8 + $0x18] sm:$0xf]
      %v3394 = vld [vmem:[%s8 + $0x1c] sm:$0xf]
      %v3395 = vld [vmem:[%s9] sm:$0x1]
      %v3397 = vlaneseq
      %v3398 = vshrl.u32 %v3397, 7
      %v3399 = vsub.s32 0, %v3398
      %v3400 = vrot.slane %v3395, %v3399
      %v3406 = vunpack.c.l.b16 %v3383
      %v3407 = vunpack.c.l.b16 %v3384
      %v3408 = vunpack.c.l.b16 %v3385
      %v3409 = vunpack.c.l.b16 %v3386
      %v3410 = vpack.c.b16 %v3407, %v3406
      %v3411 = vpack.c.b16 %v3409, %v3408
      %v3420 = vunpack.c.l.b16 %v3387
      %v3421 = vunpack.c.l.b16 %v3388
      %v3422 = vunpack.c.l.b16 %v3389
      %v3423 = vunpack.c.l.b16 %v3390
      %v3424 = vunpack.c.l.b16 %v3391
      %v3425 = vunpack.c.l.b16 %v3392
      %v3426 = vunpack.c.l.b16 %v3393
      %v3427 = vunpack.c.l.b16 %v3394
      %v3428 = vpack.c.b16 %v3421, %v3420
      %v3429 = vpack.c.b16 %v3423, %v3422
      %v3430 = vpack.c.b16 %v3425, %v3424
      %v3431 = vpack.c.b16 %v3427, %v3426
      %v3437 = vsel %vm712, %v3410, 0
      %v3440 = vsel %vm712, %v3411, 0
      %3442 = vmatprep.subr.bf16.mxu0 0
      %3443 = vmatpush1.bf16.msra.mxu0 0
      %3444 = vmatprep.subr.bf16.mxu0 0
      %3445 = vmatpush1.bf16.msra.mxu0 0
      %3446 = vmatprep.subr.bf16.mxu0 0
      %3447 = vmatpush1.bf16.msra.mxu0 0
      %3448 = vmatprep.subr.bf16.mxu0 0
      %3449 = vmatpush1.bf16.msra.mxu0 0
      %3450 = vmatprep.subr.bf16.mxu0 0
      %3451 = vmatpush1.bf16.msra.mxu0 %v3431
      %3452 = vmatprep.subr.bf16.mxu0 0
      %3453 = vmatpush1.bf16.msra.mxu0 %v3430
      %3454 = vmatprep.subr.bf16.mxu0 0
      %3455 = vmatpush1.bf16.msra.mxu0 %v3429
      %3456 = vmatprep.subr.bf16.mxu0 0
      %3457 = vmatpush1.bf16.msra.mxu0 %v3428
      %3458 = vmatprep.subr.bf16.mxu0 0
      %3459 = vmatpush2.bf16.msra.mxu0 0
      %3460 = vmatprep.subr.bf16.mxu0 0
      %3461 = vmatpush2.bf16.msra.mxu0 0
      %3462 = vmatprep.subr.bf16.mxu0 0
      %3463 = vmatpush2.bf16.msra.mxu0 0
      %3464 = vmatprep.subr.bf16.mxu0 0
      %3465 = vmatpush2.bf16.msra.mxu0 0
      %3466 = vmatprep.subr.bf16.mxu0 0
      %3467 = vmatpush2.bf16.msra.mxu0 0
      %3468 = vmatprep.subr.bf16.mxu0 0
      %3469 = vmatpush2.bf16.msra.mxu0 0
      %3470 = vmatprep.subr.bf16.mxu0 0
      %3471 = vmatpush2.bf16.msra.mxu0 0
      %3472 = vmatprep.subr.bf16.mxu0 0
      %3473 = vmatpush2.bf16.msra.mxu0 0
      %3474 = vmatprep.mubr.bf16.mxu0 0
      %3475 = vmatmul.mubr.bf16.gmra.mxu0 %v3437
      %v3476 = vpop.f32.mrf.mxu0
      %v3477 = vadd.f32 %v3400, %v3476
      %v3478 = vpop.f32.mrf.mxu0
      %v3479 = vpop.f32.mrf.mxu0
      %v3480 = vadd.f32 %v3400, %v3479
      %v3481 = vpop.f32.mrf.mxu0
      %3482 = vmatprep.mubr.bf16.mxu0 0
      %3483 = vmatmul.mubr.bf16.gmra.mxu0 %v3440
      %v3484 = vpop.f32.mrf.mxu0
      %v3485 = vadd.f32 %v3400, %v3484
      %v3486 = vpop.f32.mrf.mxu0
      %v3487 = vpop.f32.mrf.mxu0
      %v3488 = vadd.f32 %v3400, %v3487
      %v3489 = vpop.f32.mrf.mxu0
      %3490 = vdwg.mxu0
      %v3491 = vadd.f32 %v3369, %v3477
      %v3492 = vadd.f32 %v3372, %v3480
      %v3493 = vadd.f32 %v3377, %v3485
      %v3494 = vadd.f32 %v3380, %v3488
      %v3495 = vmax.f32 %v3491, 0.0
      %v3496 = vmax.f32 %v3492, 0.0
      %v3497 = vmax.f32 %v3493, 0.0
      %v3498 = vmax.f32 %v3494, 0.0
      %v3499 = vpack.c.bf16 %v3496, %v3495
      %v3500 = vpack.c.bf16 %v3498, %v3497
      %v3503 = vunpack.c.l.b16 %v3499
      %v3504 = vunpack.c.h.b16 %v3499
      %v3505 = vunpack.c.l.b16 %v3500
      %v3506 = vunpack.c.h.b16 %v3500
      %v3507 = vpack.c.b16 %v3503, %v3503
      %v3508 = vpack.c.b16 %v3504, %v3504
      %v3509 = vpack.c.b16 %v3505, %v3505
      %v3510 = vpack.c.b16 %v3506, %v3506
      %3515 = vst [vmem:[%s441] sm:$0xf] %v3507
      %3516 = vst [vmem:[%s441 + $0x4] sm:$0xf] %v3508
      %3517 = vst [vmem:[%s441 + $0x8] sm:$0xf] %v3509
      %3518 = vst [vmem:[%s441 + $0xc] sm:$0xf] %v3510
      %s3519 = smul.u32 4, %s26
      %p3520 = scmp.lt.s32.totalorder %s25, 1
      %s3521 = scalar_select %p3520, %s25, 1
      %p3522 = scmp.lt.s32.totalorder %s3519, 7
      %s3523 = scalar_select %p3522, %s3519, 7
      %s3524 = smul.addr %s3521, 8
      %s3525 = sadd.s32 %s3523, %s3524
      %s3526 = smul.addr %s3525, 4
      %s3527 = scalar_lea.vmem %s10, %s3526
      // Predicated region
      $region69: #{fwd.2} parent=59 // pred_check
        %p3528 = pneg %p283
      $region70: #{fwd.2} parent=59 // pred_check_branch
        %3530 = sbr.rel (%p3528) target = $region72
      $region71: #{fwd.2} parent=59 // pred_region
        %s3531 = smul.u32 4, %s26
      $region72: #{fwd.2} parent=59 // pred_fallthru
        _
    $region60: #{fwd.2} parent=5 // pred_fallthru
      _
    %p3532 = scmp.le.s32.totalorder 2, %s16
    // Predicated region
    $region73: #{fwd.2} parent=5 // pred_check
      %p3533 = pneg %p3532
    $region74: #{fwd.2} parent=5 // pred_check_branch
      %3535 = sbr.rel (%p3533) target = $region76
    $region75: #{fwd.2} parent=5 // pred_region
      %s3536 = ssub.s32 %s16, 2
      // Predicated region
      $region77: #{fwd.2} parent=75 // pred_check
        %p3537 = pneg %p289
      $region78: #{fwd.2} parent=75 // pred_check_branch
        %3539 = sbr.rel (%p3537) target = $region80
      $region79: #{fwd.2} parent=75 // pred_region
        %s3540 = smul.u32 4, %s28
        %p3541 = scmp.lt.s32.totalorder %s27, 1
        %s3542 = scalar_select %p3541, %s27, 1
        %p3543 = scmp.lt.s32.totalorder %s3540, 7
        %s3544 = scalar_select %p3543, %s3540, 7
        %s3545 = smul.addr %s3542, 8
        %s3546 = sadd.s32 %s3544, %s3545
        %s3547 = smul.addr %s3546, 4
        %s3548 = scalar_lea.vmem %s10, %s3547
      $region80: #{fwd.2} parent=75 // pred_fallthru
        _
    $region76: #{fwd.2} parent=5 // pred_fallthru
      _
  $region6: #{fwd.2} parent=0 // loop_footer
    %s20 = sadd.s32 1, %s16
  $region7: #{fwd.2} parent=0 // loop_footer_branch
    %15 = sbr.rel target = $region3
  $region8: #{fwd.2} parent=0 // loop_exit
    _

// kernel: fwd.3
$region0: #{fwd.3}
  #allocation0 [shape = 'u32[]', space=smem, size = 0x4, offset = 0x4, fixed_abs, tag = 'smem constant byte address 0x4 - core index']
  #allocation1 [shape = 'u32[144,128]{1,0:T(1,128)}', space=vmem, size = 0x12000, scoped, tag = 'internal scratch']
  #allocation2 [shape = 'bf16[6,10,128]{2,1,0:T(8,128)(2,1)}', space=vmem, size = 0x6000, scoped, tag = 'scratch operand']
  %s0 = inlined_call_operand.vmem [shape: bf16[2,10,10,128], index: 0, kind: input, shape index: {}]
  %s1 = inlined_call_operand.vmem [shape: bf16[1152,128], index: 1, kind: input, shape index: {}]
  %s2 = inlined_call_operand.vmem [shape: f32[1,128], index: 2, kind: input, shape index: {}]
  %s3 = inlined_call_operand.vmem [shape: bf16[1152,128], index: 3, kind: input, shape index: {}]
  %s4 = inlined_call_operand.vmem [shape: f32[1,128], index: 4, kind: input, shape index: {}]
  %s5 = inlined_call_operand.hbm [shape: bf16[2,64,128], index: 5, kind: output, shape index: {}]
  %s6 = sld [smem:[#allocation0]]
  $region61: #{fwd.3} parent=0
    _
  %s8 = ssub.s32 1, %s6
  %s9 = scalar_select 0, %s8, %s6
  $region1: #{fwd.3} parent=0
    #allocation3 [shape = 'u8[16384]{0}', space=vmem, size = 0x4000, scoped, tag = 'output window, operand 0']
    #allocation4 [shape = 's32[2]{0}', space=sflag, size = 0x8, scoped, tag = 'scoped memory for fwd.3']
    %10 = vsyncpa [#allocation4], 0
    %s11 = scalar_lea.sflag [#allocation4], 1
    %12 = vsyncpa %s11, 0
    loop: start=0, step=1, limit=6
    $region2: #{fwd.3} parent=1 // loop_pre_header
      _
    $region3: #{fwd.3} parent=1 // loop_header
      %s14 = sphi 0, %s18
      %p15 = scmp.ge.s32.totalorder %s14, 6
      %s21 = sphi 0, %s33
      %s22 = sphi 0, %s29
      %s23 = sphi 0, %s21
      %s24 = sphi 0, %s22
      %s25 = sphi 0, %s23
      %s26 = sphi 0, %s24
      %s36 = sphi 0, %s38
      %s39 = sphi 0, %s36
      %s40 = sphi 0, %s39
      %s56 = sphi 0, %s40
      %s60 = sphi 0, %s60
      %s62 = sphi 0, %s60
      %s63 = sphi 0, %s62
      %s77 = sphi 0, %s63
      %s81 = sphi 0, %s81
      %s83 = sphi 0, %s81
      %s84 = sphi 0, %s83
      %s98 = sphi 0, %s84
      %s102 = sphi 0, %s102
      %s104 = sphi 0, %s102
      %s105 = sphi 0, %s104
      %s119 = sphi 0, %s105
      %s123 = sphi 0, %s123
      %s125 = sphi 0, %s123
      %s126 = sphi 0, %s125
      %s140 = sphi 0, %s126
      %s148 = sphi 0, %s150
      %s151 = sphi 0, %s148
      %s152 = sphi 0, %s151
      %s168 = sphi 0, %s152
    $region4: #{fwd.3} parent=1 // loop_header_branch
      %17 = sbr.rel (%p15) target = $region8
    $region5: #{fwd.3} parent=1 // loop_body
      %s19 = ssub.s32 %s14, 1
      %s20 = ssub.s32 %s14, 2
      %s27 = sadd.s32 1, %s22
      %p28 = scmp.ge.s32.totalorder %s27, 2
      %s29 = scalar_select %p28, 0, %s27
      %s30 = sadd.s32 1, %s21
      %s31 = scalar_select %p28, %s30, %s21
      %p32 = scmp.ge.s32.totalorder %s31, 2
      %s33 = scalar_select %p32, 0, %s31
      %s34 = ssub.s32 %s21, %s33
      %p35 = scmp.eq.s32.totalorder %s34, 0
      %s37 = sadd.s32 %s36, 1
      %s38 = scalar_select %p35, %s36, %s37
      %p41 = pneg %p35
      %p42 = scmp.eq.s32.totalorder %s14, 3
      %p43 = por %p41, %p42
      %p44 = scmp.ne.s32.totalorder %s36, %s39
      %p45 = scmp.eq.s32.totalorder %s14, 0
      %p46 = por %p44, %p45
      %p47 = scmp.ne.s32.totalorder %s36, %s39
      %p48 = scmp.eq.s32.totalorder %s19, 3
      %p49 = por %p47, %p48
      %p50 = scmp.ne.s32.totalorder %s39, %s40
      %p51 = scmp.eq.s32.totalorder %s19, 0
      %p52 = por %p50, %p51
      %p53 = scmp.ne.s32.totalorder %s39, %s40
      %p54 = scmp.eq.s32.totalorder %s20, 3
      %p55 = por %p53, %p54
      %p57 = scmp.ne.s32.totalorder %s40, %s56
      %p58 = scmp.eq.s32.totalorder %s20, 0
      %p59 = por %p57, %p58
      %s61 = sadd.s32 %s60, 1
      %p64 = scmp.eq.s32.totalorder %s14, 3
      %p65 = scmp.ne.s32.totalorder %s60, %s62
      %p66 = scmp.eq.s32.totalorder %s14, 0
      %p67 = por %p65, %p66
      %p68 = scmp.ne.s32.totalorder %s60, %s62
      %p69 = scmp.eq.s32.totalorder %s19, 3
      %p70 = por %p68, %p69
      %p71 = scmp.ne.s32.totalorder %s62, %s63
      %p72 = scmp.eq.s32.totalorder %s19, 0
      %p73 = por %p71, %p72
      %p74 = scmp.ne.s32.totalorder %s62, %s63
      %p75 = scmp.eq.s32.totalorder %s20, 3
      %p76 = por %p74, %p75
      %p78 = scmp.ne.s32.totalorder %s63, %s77
      %p79 = scmp.eq.s32.totalorder %s20, 0
      %p80 = por %p78, %p79
      %s82 = sadd.s32 %s81, 1
      %p85 = scmp.eq.s32.totalorder %s14, 3
      %p86 = scmp.ne.s32.totalorder %s81, %s83
      %p87 = scmp.eq.s32.totalorder %s14, 0
      %p88 = por %p86, %p87
      %p89 = scmp.ne.s32.totalorder %s81, %s83
      %p90 = scmp.eq.s32.totalorder %s19, 3
      %p91 = por %p89, %p90
      %p92 = scmp.ne.s32.totalorder %s83, %s84
      %p93 = scmp.eq.s32.totalorder %s19, 0
      %p94 = por %p92, %p93
      %p95 = scmp.ne.s32.totalorder %s83, %s84
      %p96 = scmp.eq.s32.totalorder %s20, 3
      %p97 = por %p95, %p96
      %p99 = scmp.ne.s32.totalorder %s84, %s98
      %p100 = scmp.eq.s32.totalorder %s20, 0
      %p101 = por %p99, %p100
      %s103 = sadd.s32 %s102, 1
      %p106 = scmp.eq.s32.totalorder %s14, 3
      %p107 = scmp.ne.s32.totalorder %s102, %s104
      %p108 = scmp.eq.s32.totalorder %s14, 0
      %p109 = por %p107, %p108
      %p110 = scmp.ne.s32.totalorder %s102, %s104
      %p111 = scmp.eq.s32.totalorder %s19, 3
      %p112 = por %p110, %p111
      %p113 = scmp.ne.s32.totalorder %s104, %s105
      %p114 = scmp.eq.s32.totalorder %s19, 0
      %p115 = por %p113, %p114
      %p116 = scmp.ne.s32.totalorder %s104, %s105
      %p117 = scmp.eq.s32.totalorder %s20, 3
      %p118 = por %p116, %p117
      %p120 = scmp.ne.s32.totalorder %s105, %s119
      %p121 = scmp.eq.s32.totalorder %s20, 0
      %p122 = por %p120, %p121
      %s124 = sadd.s32 %s123, 1
      %p127 = scmp.eq.s32.totalorder %s14, 3
      %p128 = scmp.ne.s32.totalorder %s123, %s125
      %p129 = scmp.eq.s32.totalorder %s14, 0
      %p130 = por %p128, %p129
      %p131 = scmp.ne.s32.totalorder %s123, %s125
      %p132 = scmp.eq.s32.totalorder %s19, 3
      %p133 = por %p131, %p132
      %p134 = scmp.ne.s32.totalorder %s125, %s126
      %p135 = scmp.eq.s32.totalorder %s19, 0
      %p136 = por %p134, %p135
      %p137 = scmp.ne.s32.totalorder %s125, %s126
      %p138 = scmp.eq.s32.totalorder %s20, 3
      %p139 = por %p137, %p138
      %p141 = scmp.ne.s32.totalorder %s126, %s140
      %p142 = scmp.eq.s32.totalorder %s20, 0
      %p143 = por %p141, %p142
      %s144 = ssub.s32 %s21, %s33
      %s145 = ssub.s32 %s22, %s29
      %s146 = sor.u32 %s144, %s145
      %p147 = scmp.eq.s32.totalorder %s146, 0
      %s149 = sadd.s32 %s148, 1
      %s150 = scalar_select %p147, %s148, %s149
      %p153 = pneg %p147
      %p154 = scmp.eq.s32.totalorder %s14, 3
      %p155 = por %p153, %p154
      %p156 = scmp.ne.s32.totalorder %s148, %s151
      %p157 = scmp.eq.s32.totalorder %s14, 0
      %p158 = por %p156, %p157
      %p159 = scmp.ne.s32.totalorder %s148, %s151
      %p160 = scmp.eq.s32.totalorder %s19, 3
      %p161 = por %p159, %p160
      %p162 = scmp.ne.s32.totalorder %s151, %s152
      %p163 = scmp.eq.s32.totalorder %s19, 0
      %p164 = por %p162, %p163
      %p165 = scmp.ne.s32.totalorder %s151, %s152
      %p166 = scmp.eq.s32.totalorder %s20, 3
      %p167 = por %p165, %p166
      %p169 = scmp.ne.s32.totalorder %s152, %s168
      %p170 = scmp.eq.s32.totalorder %s20, 0
      %p171 = por %p169, %p170
      %p172 = scmp.le.s32.totalorder 1, %s14
      %p173 = scmp.lt.s32.totalorder %s14, 5
      %p174 = pnand %p172, %p173
      %p175 = pneg %p174
      // Predicated region
      $region9: #{fwd.3} parent=5 // pred_check
        _
      $region10: #{fwd.3} parent=5 // pred_check_branch
        %177 = sbr.rel (%p174) target = $region12
      $region11: #{fwd.3} parent=5 // pred_region
        %s178 = ssub.s32 %s14, 1
        // Predicated region
        $region13: #{fwd.3} parent=11 // pred_check
          %p179 = pneg %p73
        $region14: #{fwd.3} parent=11 // pred_check_branch
          %181 = sbr.rel (%p179) target = $region16
        $region15: #{fwd.3} parent=11 // pred_region
          _
        $region16: #{fwd.3} parent=11 // pred_fallthru
          _
        // Predicated region
        $region17: #{fwd.3} parent=11 // pred_check
          %p182 = pneg %p94
        $region18: #{fwd.3} parent=11 // pred_check_branch
          %184 = sbr.rel (%p182) target = $region20
        $region19: #{fwd.3} parent=11 // pred_region
          _
        $region20: #{fwd.3} parent=11 // pred_fallthru
          _
        // Predicated region
        $region21: #{fwd.3} parent=11 // pred_check
          %p185 = pneg %p115
        $region22: #{fwd.3} parent=11 // pred_check_branch
          %187 = sbr.rel (%p185) target = $region24
        $region23: #{fwd.3} parent=11 // pred_region
          _
        $region24: #{fwd.3} parent=11 // pred_fallthru
          _
        // Predicated region
        $region25: #{fwd.3} parent=11 // pred_check
          %p188 = pneg %p136
        $region26: #{fwd.3} parent=11 // pred_check_branch
          %190 = sbr.rel (%p188) target = $region28
        $region27: #{fwd.3} parent=11 // pred_region
          _
        $region28: #{fwd.3} parent=11 // pred_fallthru
          _
      $region12: #{fwd.3} parent=5 // pred_fallthru
        _
      %p191 = scmp.lt.s32.totalorder %s14, 4
      // Predicated region
      $region29: #{fwd.3} parent=5 // pred_check
        %p192 = pneg %p191
      $region30: #{fwd.3} parent=5 // pred_check_branch
        %194 = sbr.rel (%p192) target = $region32
      $region31: #{fwd.3} parent=5 // pred_region
        // Predicated region
        $region33: #{fwd.3} parent=31 // pred_check
          %p195 = pneg %p46
        $region34: #{fwd.3} parent=31 // pred_check_branch
          %197 = sbr.rel (%p195) target = $region36
        $region35: #{fwd.3} parent=31 // pred_region
          %p198 = scmp.lt.s32.totalorder %s21, 1
          %s199 = scalar_select %p198, %s21, 1
          %s200 = smul.addr %s199, 20
          %s201 = smul.addr %s200, 4
          %s202 = scalar_lea.vmem %s0, %s201
        $region36: #{fwd.3} parent=31 // pred_fallthru
          _
      $region32: #{fwd.3} parent=5 // pred_fallthru
        _
      %p203 = scmp.le.s32.totalorder 1, %s14
      %p204 = scmp.lt.s32.totalorder %s14, 5
      %p205 = pnand %p203, %p204
      %p206 = pneg %p205
      // Predicated region
      $region37: #{fwd.3} parent=5 // pred_check
        _
      $region38: #{fwd.3} parent=5 // pred_check_branch
        %208 = sbr.rel (%p205) target = $region40
      $region39: #{fwd.3} parent=5 // pred_region
        %s209 = ssub.s32 %s14, 1
        %p210 = scmp.lt.s32.totalorder %s23, 1
        %s211 = scalar_select %p210, %s23, 1
        %s212 = smul.addr %s211, 20
        %s213 = smul.addr %s212, 4
        %s214 = scalar_lea.vmem %s0, %s213
        %p215 = pneg %p52
        %p216 = pneg %p49
        %p217 = pneg %p73
        %p218 = pneg %p70
        %p219 = pneg %p94
        %p220 = pneg %p91
        %p221 = pneg %p115
        %p222 = pneg %p112
        %p223 = pneg %p136
        %p224 = pneg %p133
        %p225 = pneg %p164
        %p226 = pneg %p161
        %s227 = sand.u32 %s151, 1
        %s228 = scalar_lea.sflag [#allocation4], %s227
        %s229 = sand.u32 %s151, 1
        %s230 = smul.addr %s229, 16
        %s231 = scalar_lea.vmem [#allocation3], %s230
        %p232 = scmp.lt.s32.totalorder %s23, 1
        %s233 = scalar_select %p232, %s23, 1
        %s234 = smul.addr %s233, 20
        %s235 = smul.addr %s234, 4
        %s236 = scalar_lea.vmem %s0, %s235
        %s237 = smul.u32 4, %s24
        %239 = vst [vmem:[#allocation2] sm:$0xf] 0
        %240 = vst [vmem:[#allocation2 + $0x4] sm:$0x1] 0
        %241 = vst [vmem:[#allocation2 + $0x8] sm:$0xf] 0
        %242 = vst [vmem:[#allocation2 + $0xc] sm:$0x1] 0
        %243 = vst [vmem:[#allocation2 + $0x10] sm:$0xf] 0
        %244 = vst [vmem:[#allocation2 + $0x14] sm:$0x1] 0
        %245 = vst [vmem:[#allocation2 + $0x18] sm:$0xf] 0
        %246 = vst [vmem:[#allocation2 + $0x1c] sm:$0x1] 0
        %247 = vst [vmem:[#allocation2 + $0x20] sm:$0xf] 0
        %248 = vst [vmem:[#allocation2 + $0x24] sm:$0x1] 0
        %249 = vst [vmem:[#allocation2 + $0x28] sm:$0xf] 0
        %250 = vst [vmem:[#allocation2 + $0x2c] sm:$0x1] 0
        %s251 = smul.u32 %s24, 4
        %s252 = smul.u32 %s251, 2
        %s253 = smul.addr %s252, 4
        %s254 = scalar_lea.vmem %s236, %s253
        %v255 = vld [vmem:[%s254] sm:$0xf]
        %v256 = vld [vmem:[%s254 + $0x4] sm:$0x1]
        %v257 = vld [vmem:[%s254 + $0x8] sm:$0xf]
        %v258 = vld [vmem:[%s254 + $0xc] sm:$0x1]
        %v259 = vld [vmem:[%s254 + $0x10] sm:$0xf]
        %v260 = vld [vmem:[%s254 + $0x14] sm:$0x1]
        %v261 = vld [vmem:[%s254 + $0x18] sm:$0xf]
        %v262 = vld [vmem:[%s254 + $0x1c] sm:$0x1]
        %s263 = sadd.s32 %s251, 1
        %s264 = smul.u32 %s263, 2
        %s265 = smul.addr %s264, 4
        %s266 = scalar_lea.vmem %s236, %s265
        %v267 = vld [vmem:[%s266] sm:$0xf]
        %v268 = vld [vmem:[%s266 + $0x4] sm:$0x1]
        %v269 = vld [vmem:[%s266 + $0x8] sm:$0xf]
        %v270 = vld [vmem:[%s266 + $0xc] sm:$0x1]
        %v271 = vld [vmem:[%s266 + $0x10] sm:$0xf]
        %v272 = vld [vmem:[%s266 + $0x14] sm:$0x1]
        %v273 = vld [vmem:[%s266 + $0x18] sm:$0xf]
        %v274 = vld [vmem:[%s266 + $0x1c] sm:$0x1]
        %s275 = sadd.s32 %s251, 2
        %s276 = smul.u32 %s275, 2
        %s277 = smul.addr %s276, 4
        %s278 = scalar_lea.vmem %s236, %s277
        %v279 = vld [vmem:[%s278] sm:$0xf]
        %v280 = vld [vmem:[%s278 + $0x4] sm:$0x1]
        %v281 = vld [vmem:[%s278 + $0x8] sm:$0xf]
        %v282 = vld [vmem:[%s278 + $0xc] sm:$0x1]
        %v283 = vld [vmem:[%s278 + $0x10] sm:$0xf]
        %v284 = vld [vmem:[%s278 + $0x14] sm:$0x1]
        %v285 = vld [vmem:[%s278 + $0x18] sm:$0xf]
        %v286 = vld [vmem:[%s278 + $0x1c] sm:$0x1]
        %v295 = vunpack.c.l.b16 %v255
        %v296 = vunpack.c.l.b16 %v256
        %v297 = vunpack.c.l.b16 %v257
        %v298 = vunpack.c.l.b16 %v258
        %v299 = vunpack.c.l.b16 %v259
        %v300 = vunpack.c.l.b16 %v260
        %v301 = vunpack.c.l.b16 %v261
        %v302 = vunpack.c.l.b16 %v262
        %v303 = vpack.c.b16 %v296, %v295
        %v304 = vpack.c.b16 %v298, %v297
        %v305 = vpack.c.b16 %v300, %v299
        %v306 = vpack.c.b16 %v302, %v301
        %v308 = vshrl.u32 %v303, 16
        %v310 = vshll.u32 %v303, 16
        %v312 = vrot.slane %v310, 1
        %v313 = vor.u32 %v308, %v312
        %v315 = vshrl.u32 %v304, 16
        %v317 = vshll.u32 %v304, 16
        %v319 = vrot.slane %v317, 1
        %v320 = vor.u32 %v315, %v319
        %v322 = vshrl.u32 %v305, 16
        %v324 = vshll.u32 %v305, 16
        %v326 = vrot.slane %v324, 1
        %v327 = vor.u32 %v322, %v326
        %v329 = vshrl.u32 %v306, 16
        %v331 = vshll.u32 %v306, 16
        %v333 = vrot.slane %v331, 1
        %v334 = vor.u32 %v329, %v333
        %v335 = vrot.slane %v303, 1
        %v336 = vrot.slane %v304, 1
        %v337 = vrot.slane %v305, 1
        %v338 = vrot.slane %v306, 1
        %v347 = vunpack.c.l.b16 %v267
        %v348 = vunpack.c.l.b16 %v268
        %v349 = vunpack.c.l.b16 %v269
        %v350 = vunpack.c.l.b16 %v270
        %v351 = vunpack.c.l.b16 %v271
        %v352 = vunpack.c.l.b16 %v272
        %v353 = vunpack.c.l.b16 %v273
        %v354 = vunpack.c.l.b16 %v274
        %v355 = vpack.c.b16 %v348, %v347
        %v356 = vpack.c.b16 %v350, %v349
        %v357 = vpack.c.b16 %v352, %v351
        %v358 = vpack.c.b16 %v354, %v353
        %v360 = vshrl.u32 %v355, 16
        %v362 = vshll.u32 %v355, 16
        %v364 = vrot.slane %v362, 1
        %v365 = vor.u32 %v360, %v364
        %v367 = vshrl.u32 %v356, 16
        %v369 = vshll.u32 %v356, 16
        %v371 = vrot.slane %v369, 1
        %v372 = vor.u32 %v367, %v371
        %v374 = vshrl.u32 %v357, 16
        %v376 = vshll.u32 %v357, 16
        %v378 = vrot.slane %v376, 1
        %v379 = vor.u32 %v374, %v378
        %v381 = vshrl.u32 %v358, 16
        %v383 = vshll.u32 %v358, 16
        %v385 = vrot.slane %v383, 1
        %v386 = vor.u32 %v381, %v385
        %v387 = vrot.slane %v355, 1
        %v388 = vrot.slane %v356, 1
        %v389 = vrot.slane %v357, 1
        %v390 = vrot.slane %v358, 1
        %v399 = vunpack.c.l.b16 %v279
        %v400 = vunpack.c.l.b16 %v280
        %v401 = vunpack.c.l.b16 %v281
        %v402 = vunpack.c.l.b16 %v282
        %v403 = vunpack.c.l.b16 %v283
        %v404 = vunpack.c.l.b16 %v284
        %v405 = vunpack.c.l.b16 %v285
        %v406 = vunpack.c.l.b16 %v286
        %v407 = vpack.c.b16 %v400, %v399
        %v408 = vpack.c.b16 %v402, %v401
        %v409 = vpack.c.b16 %v404, %v403
        %v410 = vpack.c.b16 %v406, %v405
        %v412 = vshrl.u32 %v407, 16
        %v414 = vshll.u32 %v407, 16
        %v416 = vrot.slane %v414, 1
        %v417 = vor.u32 %v412, %v416
        %v419 = vshrl.u32 %v408, 16
        %v421 = vshll.u32 %v408, 16
        %v423 = vrot.slane %v421, 1
        %v424 = vor.u32 %v419, %v423
        %v426 = vshrl.u32 %v409, 16
        %v428 = vshll.u32 %v409, 16
        %v430 = vrot.slane %v428, 1
        %v431 = vor.u32 %v426, %v430
        %v433 = vshrl.u32 %v410, 16
        %v435 = vshll.u32 %v410, 16
        %v437 = vrot.slane %v435, 1
        %v438 = vor.u32 %v433, %v437
        %v439 = vrot.slane %v407, 1
        %v440 = vrot.slane %v408, 1
        %v441 = vrot.slane %v409, 1
        %v442 = vrot.slane %v410, 1
        %v443 = vunpack.c.l.b16 %v313
        %v444 = vunpack.c.l.b16 %v335
        %v445 = vunpack.c.l.b16 %v365
        %v446 = vunpack.c.l.b16 %v387
        %v447 = vunpack.c.l.b16 %v417
        %v448 = vunpack.c.l.b16 %v439
        %v449 = vunpack.c.l.b16 %v320
        %v450 = vunpack.c.l.b16 %v336
        %v451 = vunpack.c.l.b16 %v372
        %v452 = vunpack.c.l.b16 %v388
        %v453 = vunpack.c.l.b16 %v424
        %v454 = vunpack.c.l.b16 %v440
        %v455 = vunpack.c.l.b16 %v327
        %v456 = vunpack.c.l.b16 %v337
        %v457 = vunpack.c.l.b16 %v379
        %v458 = vunpack.c.l.b16 %v389
        %v459 = vunpack.c.l.b16 %v431
        %v460 = vunpack.c.l.b16 %v441
        %v461 = vunpack.c.l.b16 %v334
        %v462 = vunpack.c.l.b16 %v338
        %v463 = vunpack.c.l.b16 %v386
        %v464 = vunpack.c.l.b16 %v390
        %v465 = vunpack.c.l.b16 %v438
        %v466 = vunpack.c.l.b16 %v442
        %v467 = vld [vmem:[%s1] sm:$0xf]
        %v468 = vld [vmem:[%s1 + $0x4] sm:$0xf]
        %v469 = vld [vmem:[%s1 + $0x8] sm:$0xf]
        %v470 = vld [vmem:[%s1 + $0xc] sm:$0xf]
        %v471 = vld [vmem:[%s1 + $0x10] sm:$0xf]
        %v472 = vld [vmem:[%s1 + $0x14] sm:$0xf]
        %v473 = vld [vmem:[%s1 + $0x18] sm:$0xf]
        %v474 = vld [vmem:[%s1 + $0x1c] sm:$0xf]
        %v475 = vld [vmem:[%s1 + $0x20] sm:$0xf]
        %v476 = vld [vmem:[%s1 + $0x24] sm:$0xf]
        %v477 = vld [vmem:[%s1 + $0x28] sm:$0xf]
        %v478 = vld [vmem:[%s1 + $0x2c] sm:$0xf]
        %v479 = vld [vmem:[%s1 + $0x30] sm:$0xf]
        %v480 = vld [vmem:[%s1 + $0x34] sm:$0xf]
        %v481 = vld [vmem:[%s1 + $0x38] sm:$0xf]
        %v482 = vld [vmem:[%s1 + $0x3c] sm:$0xf]
        %v483 = vld [vmem:[%s1 + $0x40] sm:$0xf]
        %v484 = vld [vmem:[%s1 + $0x44] sm:$0xf]
        %v485 = vld [vmem:[%s1 + $0x48] sm:$0xf]
        %v486 = vld [vmem:[%s1 + $0x4c] sm:$0xf]
        %v487 = vld [vmem:[%s1 + $0x50] sm:$0xf]
        %v488 = vld [vmem:[%s1 + $0x54] sm:$0xf]
        %v489 = vld [vmem:[%s1 + $0x58] sm:$0xf]
        %v490 = vld [vmem:[%s1 + $0x5c] sm:$0xf]
        %v491 = vld [vmem:[%s1 + $0x60] sm:$0xf]
        %v492 = vld [vmem:[%s1 + $0x64] sm:$0xf]
        %v493 = vld [vmem:[%s1 + $0x68] sm:$0xf]
        %v494 = vld [vmem:[%s1 + $0x6c] sm:$0xf]
        %v495 = vld [vmem:[%s1 + $0x70] sm:$0xf]
        %v496 = vld [vmem:[%s1 + $0x74] sm:$0xf]
        %v497 = vld [vmem:[%s1 + $0x78] sm:$0xf]
        %v498 = vld [vmem:[%s1 + $0x7c] sm:$0xf]
        %v499 = vld [vmem:[%s1 + $0x80] sm:$0xf]
        %v500 = vld [vmem:[%s1 + $0x84] sm:$0xf]
        %v501 = vld [vmem:[%s1 + $0x88] sm:$0xf]
        %v502 = vld [vmem:[%s1 + $0x8c] sm:$0xf]
        %v503 = vld [vmem:[%s1 + $0x90] sm:$0xf]
        %v504 = vld [vmem:[%s1 + $0x94] sm:$0xf]
        %v505 = vld [vmem:[%s1 + $0x98] sm:$0xf]
        %v506 = vld [vmem:[%s1 + $0x9c] sm:$0xf]
        %v507 = vld [vmem:[%s1 + $0xa0] sm:$0xf]
        %v508 = vld [vmem:[%s1 + $0xa4] sm:$0xf]
        %v509 = vld [vmem:[%s1 + $0xa8] sm:$0xf]
        %v510 = vld [vmem:[%s1 + $0xac] sm:$0xf]
        %v511 = vld [vmem:[%s1 + $0xb0] sm:$0xf]
        %v512 = vld [vmem:[%s1 + $0xb4] sm:$0xf]
        %v513 = vld [vmem:[%s1 + $0xb8] sm:$0xf]
        %v514 = vld [vmem:[%s1 + $0xbc] sm:$0xf]
        %v515 = vld [vmem:[%s1 + $0xc0] sm:$0xf]
        %v516 = vld [vmem:[%s1 + $0xc4] sm:$0xf]
        %v517 = vld [vmem:[%s1 + $0xc8] sm:$0xf]
        %v518 = vld [vmem:[%s1 + $0xcc] sm:$0xf]
        %v519 = vld [vmem:[%s1 + $0xd0] sm:$0xf]
        %v520 = vld [vmem:[%s1 + $0xd4] sm:$0xf]
        %v521 = vld [vmem:[%s1 + $0xd8] sm:$0xf]
        %v522 = vld [vmem:[%s1 + $0xdc] sm:$0xf]
        %v523 = vld [vmem:[%s1 + $0xe0] sm:$0xf]
        %v524 = vld [vmem:[%s1 + $0xe4] sm:$0xf]
        %v525 = vld [vmem:[%s1 + $0xe8] sm:$0xf]
        %v526 = vld [vmem:[%s1 + $0xec] sm:$0xf]
        %v527 = vld [vmem:[%s1 + $0xf0] sm:$0xf]
        %v528 = vld [vmem:[%s1 + $0xf4] sm:$0xf]
        %v529 = vld [vmem:[%s1 + $0xf8] sm:$0xf]
        %v530 = vld [vmem:[%s1 + $0xfc] sm:$0xf]
        %v531 = vld [vmem:[%s1 + $0x100] sm:$0xf]
        %v532 = vld [vmem:[%s1 + $0x104] sm:$0xf]
        %v533 = vld [vmem:[%s1 + $0x108] sm:$0xf]
        %v534 = vld [vmem:[%s1 + $0x10c] sm:$0xf]
        %v535 = vld [vmem:[%s1 + $0x110] sm:$0xf]
        %v536 = vld [vmem:[%s1 + $0x114] sm:$0xf]
        %v537 = vld [vmem:[%s1 + $0x118] sm:$0xf]
        %v538 = vld [vmem:[%s1 + $0x11c] sm:$0xf]
        %v539 = vld [vmem:[%s1 + $0x120] sm:$0xf]
        %v540 = vld [vmem:[%s1 + $0x124] sm:$0xf]
        %v541 = vld [vmem:[%s1 + $0x128] sm:$0xf]
        %v542 = vld [vmem:[%s1 + $0x12c] sm:$0xf]
        %v543 = vld [vmem:[%s1 + $0x130] sm:$0xf]
        %v544 = vld [vmem:[%s1 + $0x134] sm:$0xf]
        %v545 = vld [vmem:[%s1 + $0x138] sm:$0xf]
        %v546 = vld [vmem:[%s1 + $0x13c] sm:$0xf]
        %v547 = vld [vmem:[%s1 + $0x140] sm:$0xf]
        %v548 = vld [vmem:[%s1 + $0x144] sm:$0xf]
        %v549 = vld [vmem:[%s1 + $0x148] sm:$0xf]
        %v550 = vld [vmem:[%s1 + $0x14c] sm:$0xf]
        %v551 = vld [vmem:[%s1 + $0x150] sm:$0xf]
        %v552 = vld [vmem:[%s1 + $0x154] sm:$0xf]
        %v553 = vld [vmem:[%s1 + $0x158] sm:$0xf]
        %v554 = vld [vmem:[%s1 + $0x15c] sm:$0xf]
        %v555 = vld [vmem:[%s1 + $0x160] sm:$0xf]
        %v556 = vld [vmem:[%s1 + $0x164] sm:$0xf]
        %v557 = vld [vmem:[%s1 + $0x168] sm:$0xf]
        %v558 = vld [vmem:[%s1 + $0x16c] sm:$0xf]
        %v559 = vld [vmem:[%s1 + $0x170] sm:$0xf]
        %v560 = vld [vmem:[%s1 + $0x174] sm:$0xf]
        %v561 = vld [vmem:[%s1 + $0x178] sm:$0xf]
        %v562 = vld [vmem:[%s1 + $0x17c] sm:$0xf]
        %v563 = vld [vmem:[%s1 + $0x180] sm:$0xf]
        %v564 = vld [vmem:[%s1 + $0x184] sm:$0xf]
        %v565 = vld [vmem:[%s1 + $0x188] sm:$0xf]
        %v566 = vld [vmem:[%s1 + $0x18c] sm:$0xf]
        %v567 = vld [vmem:[%s1 + $0x190] sm:$0xf]
        %v568 = vld [vmem:[%s1 + $0x194] sm:$0xf]
        %v569 = vld [vmem:[%s1 + $0x198] sm:$0xf]
        %v570 = vld [vmem:[%s1 + $0x19c] sm:$0xf]
        %v571 = vld [vmem:[%s1 + $0x1a0] sm:$0xf]
        %v572 = vld [vmem:[%s1 + $0x1a4] sm:$0xf]
        %v573 = vld [vmem:[%s1 + $0x1a8] sm:$0xf]
        %v574 = vld [vmem:[%s1 + $0x1ac] sm:$0xf]
        %v575 = vld [vmem:[%s1 + $0x1b0] sm:$0xf]
        %v576 = vld [vmem:[%s1 + $0x1b4] sm:$0xf]
        %v577 = vld [vmem:[%s1 + $0x1b8] sm:$0xf]
        %v578 = vld [vmem:[%s1 + $0x1bc] sm:$0xf]
        %v579 = vld [vmem:[%s1 + $0x1c0] sm:$0xf]
        %v580 = vld [vmem:[%s1 + $0x1c4] sm:$0xf]
        %v581 = vld [vmem:[%s1 + $0x1c8] sm:$0xf]
        %v582 = vld [vmem:[%s1 + $0x1cc] sm:$0xf]
        %v583 = vld [vmem:[%s1 + $0x1d0] sm:$0xf]
        %v584 = vld [vmem:[%s1 + $0x1d4] sm:$0xf]
        %v585 = vld [vmem:[%s1 + $0x1d8] sm:$0xf]
        %v586 = vld [vmem:[%s1 + $0x1dc] sm:$0xf]
        %v587 = vld [vmem:[%s1 + $0x1e0] sm:$0xf]
        %v588 = vld [vmem:[%s1 + $0x1e4] sm:$0xf]
        %v589 = vld [vmem:[%s1 + $0x1e8] sm:$0xf]
        %v590 = vld [vmem:[%s1 + $0x1ec] sm:$0xf]
        %v591 = vld [vmem:[%s1 + $0x1f0] sm:$0xf]
        %v592 = vld [vmem:[%s1 + $0x1f4] sm:$0xf]
        %v593 = vld [vmem:[%s1 + $0x1f8] sm:$0xf]
        %v594 = vld [vmem:[%s1 + $0x1fc] sm:$0xf]
        %v595 = vld [vmem:[%s1 + $0x200] sm:$0xf]
        %v596 = vld [vmem:[%s1 + $0x204] sm:$0xf]
        %v597 = vld [vmem:[%s1 + $0x208] sm:$0xf]
        %v598 = vld [vmem:[%s1 + $0x20c] sm:$0xf]
        %v599 = vld [vmem:[%s1 + $0x210] sm:$0xf]
        %v600 = vld [vmem:[%s1 + $0x214] sm:$0xf]
        %v601 = vld [vmem:[%s1 + $0x218] sm:$0xf]
        %v602 = vld [vmem:[%s1 + $0x21c] sm:$0xf]
        %v603 = vld [vmem:[%s1 + $0x220] sm:$0xf]
        %v604 = vld [vmem:[%s1 + $0x224] sm:$0xf]
        %v605 = vld [vmem:[%s1 + $0x228] sm:$0xf]
        %v606 = vld [vmem:[%s1 + $0x22c] sm:$0xf]
        %v607 = vld [vmem:[%s1 + $0x230] sm:$0xf]
        %v608 = vld [vmem:[%s1 + $0x234] sm:$0xf]
        %v609 = vld [vmem:[%s1 + $0x238] sm:$0xf]
        %v610 = vld [vmem:[%s1 + $0x23c] sm:$0xf]
        %v611 = vld [vmem:[%s2] sm:$0x1]
        %v613 = vlaneseq
        %v614 = vshrl.u32 %v613, 7
        %v615 = vsub.s32 0, %v614
        %v616 = vrot.slane %v611, %v615
        %v618 = vpack.c.b16 %v297, %v295
        %v619 = vpack.c.b16 %v449, %v443
        %v620 = vpack.c.b16 %v450, %v444
        %v621 = vpack.c.b16 %v349, %v347
        %v622 = vpack.c.b16 %v451, %v445
        %v623 = vpack.c.b16 %v452, %v446
        %v624 = vpack.c.b16 %v401, %v399
        %v625 = vpack.c.b16 %v453, %v447
        %v626 = vpack.c.b16 %v454, %v448
        %v627 = vpack.c.b16 %v301, %v299
        %v628 = vpack.c.b16 %v461, %v455
        %v629 = vpack.c.b16 %v462, %v456
        %v630 = vpack.c.b16 %v353, %v351
        %v631 = vpack.c.b16 %v463, %v457
        %v632 = vpack.c.b16 %v464, %v458
        %v633 = vpack.c.b16 %v405, %v403
        %v634 = vpack.c.b16 %v465, %v459
        %v635 = vpack.c.b16 %v466, %v460
        %v798 = vunpack.c.l.b16 %v467
        %v799 = vunpack.c.l.b16 %v468
        %v800 = vunpack.c.l.b16 %v469
        %v801 = vunpack.c.l.b16 %v470
        %v802 = vunpack.c.l.b16 %v471
        %v803 = vunpack.c.l.b16 %v472
        %v804 = vunpack.c.l.b16 %v473
        %v805 = vunpack.c.l.b16 %v474
        %v806 = vunpack.c.l.b16 %v475
        %v807 = vunpack.c.l.b16 %v476
        %v808 = vunpack.c.l.b16 %v477
        %v809 = vunpack.c.l.b16 %v478
        %v810 = vunpack.c.l.b16 %v479
        %v811 = vunpack.c.l.b16 %v480
        %v812 = vunpack.c.l.b16 %v481
        %v813 = vunpack.c.l.b16 %v482
        %v814 = vunpack.c.l.b16 %v483
        %v815 = vunpack.c.l.b16 %v484
        %v816 = vunpack.c.l.b16 %v485
        %v817 = vunpack.c.l.b16 %v486
        %v818 = vunpack.c.l.b16 %v487
        %v819 = vunpack.c.l.b16 %v488
        %v820 = vunpack.c.l.b16 %v489
        %v821 = vunpack.c.l.b16 %v490
        %v822 = vunpack.c.l.b16 %v491
        %v823 = vunpack.c.l.b16 %v492
        %v824 = vunpack.c.l.b16 %v493
        %v825 = vunpack.c.l.b16 %v494
        %v826 = vunpack.c.l.b16 %v495
        %v827 = vunpack.c.l.b16 %v496
        %v828 = vunpack.c.l.b16 %v497
        %v829 = vunpack.c.l.b16 %v498
        %v830 = vunpack.c.l.b16 %v499
        %v831 = vunpack.c.l.b16 %v500
        %v832 = vunpack.c.l.b16 %v501
        %v833 = vunpack.c.l.b16 %v502
        %v834 = vunpack.c.l.b16 %v503
        %v835 = vunpack.c.l.b16 %v504
        %v836 = vunpack.c.l.b16 %v505
        %v837 = vunpack.c.l.b16 %v506
        %v838 = vunpack.c.l.b16 %v507
        %v839 = vunpack.c.l.b16 %v508
        %v840 = vunpack.c.l.b16 %v509
        %v841 = vunpack.c.l.b16 %v510
        %v842 = vunpack.c.l.b16 %v511
        %v843 = vunpack.c.l.b16 %v512
        %v844 = vunpack.c.l.b16 %v513
        %v845 = vunpack.c.l.b16 %v514
        %v846 = vunpack.c.l.b16 %v515
        %v847 = vunpack.c.l.b16 %v516
        %v848 = vunpack.c.l.b16 %v517
        %v849 = vunpack.c.l.b16 %v518
        %v850 = vunpack.c.l.b16 %v519
        %v851 = vunpack.c.l.b16 %v520
        %v852 = vunpack.c.l.b16 %v521
        %v853 = vunpack.c.l.b16 %v522
        %v854 = vunpack.c.l.b16 %v523
        %v855 = vunpack.c.l.b16 %v524
        %v856 = vunpack.c.l.b16 %v525
        %v857 = vunpack.c.l.b16 %v526
        %v858 = vunpack.c.l.b16 %v527
        %v859 = vunpack.c.l.b16 %v528
        %v860 = vunpack.c.l.b16 %v529
        %v861 = vunpack.c.l.b16 %v530
        %v862 = vunpack.c.l.b16 %v531
        %v863 = vunpack.c.l.b16 %v532
        %v864 = vunpack.c.l.b16 %v533
        %v865 = vunpack.c.l.b16 %v534
        %v866 = vunpack.c.l.b16 %v535
        %v867 = vunpack.c.l.b16 %v536
        %v868 = vunpack.c.l.b16 %v537
        %v869 = vunpack.c.l.b16 %v538
        %v870 = vunpack.c.l.b16 %v539
        %v871 = vunpack.c.l.b16 %v540
        %v872 = vunpack.c.l.b16 %v541
        %v873 = vunpack.c.l.b16 %v542
        %v874 = vunpack.c.l.b16 %v543
        %v875 = vunpack.c.l.b16 %v544
        %v876 = vunpack.c.l.b16 %v545
        %v877 = vunpack.c.l.b16 %v546
        %v878 = vunpack.c.l.b16 %v547
        %v879 = vunpack.c.l.b16 %v548
        %v880 = vunpack.c.l.b16 %v549
        %v881 = vunpack.c.l.b16 %v550
        %v882 = vunpack.c.l.b16 %v551
        %v883 = vunpack.c.l.b16 %v552
        %v884 = vunpack.c.l.b16 %v553
        %v885 = vunpack.c.l.b16 %v554
        %v886 = vunpack.c.l.b16 %v555
        %v887 = vunpack.c.l.b16 %v556
        %v888 = vunpack.c.l.b16 %v557
        %v889 = vunpack.c.l.b16 %v558
        %v890 = vunpack.c.l.b16 %v559
        %v891 = vunpack.c.l.b16 %v560
        %v892 = vunpack.c.l.b16 %v561
        %v893 = vunpack.c.l.b16 %v562
        %v894 = vunpack.c.l.b16 %v563
        %v895 = vunpack.c.l.b16 %v564
        %v896 = vunpack.c.l.b16 %v565
        %v897 = vunpack.c.l.b16 %v566
        %v898 = vunpack.c.l.b16 %v567
        %v899 = vunpack.c.l.b16 %v568
        %v900 = vunpack.c.l.b16 %v569
        %v901 = vunpack.c.l.b16 %v570
        %v902 = vunpack.c.l.b16 %v571
        %v903 = vunpack.c.l.b16 %v572
        %v904 = vunpack.c.l.b16 %v573
        %v905 = vunpack.c.l.b16 %v574
        %v906 = vunpack.c.l.b16 %v575
        %v907 = vunpack.c.l.b16 %v576
        %v908 = vunpack.c.l.b16 %v577
        %v909 = vunpack.c.l.b16 %v578
        %v910 = vunpack.c.l.b16 %v579
        %v911 = vunpack.c.l.b16 %v580
        %v912 = vunpack.c.l.b16 %v581
        %v913 = vunpack.c.l.b16 %v582
        %v914 = vunpack.c.l.b16 %v583
        %v915 = vunpack.c.l.b16 %v584
        %v916 = vunpack.c.l.b16 %v585
        %v917 = vunpack.c.l.b16 %v586
        %v918 = vunpack.c.l.b16 %v587
        %v919 = vunpack.c.l.b16 %v588
        %v920 = vunpack.c.l.b16 %v589
        %v921 = vunpack.c.l.b16 %v590
        %v922 = vunpack.c.l.b16 %v591
        %v923 = vunpack.c.l.b16 %v592
        %v924 = vunpack.c.l.b16 %v593
        %v925 = vunpack.c.l.b16 %v594
        %v926 = vunpack.c.l.b16 %v595
        %v927 = vunpack.c.l.b16 %v596
        %v928 = vunpack.c.l.b16 %v597
        %v929 = vunpack.c.l.b16 %v598
        %v930 = vunpack.c.l.b16 %v599
        %v931 = vunpack.c.l.b16 %v600
        %v932 = vunpack.c.l.b16 %v601
        %v933 = vunpack.c.l.b16 %v602
        %v934 = vunpack.c.l.b16 %v603
        %v935 = vunpack.c.l.b16 %v604
        %v936 = vunpack.c.l.b16 %v605
        %v937 = vunpack.c.l.b16 %v606
        %v938 = vunpack.c.l.b16 %v607
        %v939 = vunpack.c.l.b16 %v608
        %v940 = vunpack.c.l.b16 %v609
        %v941 = vunpack.c.l.b16 %v610
        %v942 = vpack.c.b16 %v799, %v798
        %v943 = vpack.c.b16 %v801, %v800
        %v944 = vpack.c.b16 %v803, %v802
        %v945 = vpack.c.b16 %v805, %v804
        %v946 = vpack.c.b16 %v807, %v806
        %v947 = vpack.c.b16 %v809, %v808
        %v948 = vpack.c.b16 %v811, %v810
        %v949 = vpack.c.b16 %v813, %v812
        %v950 = vpack.c.b16 %v815, %v814
        %v951 = vpack.c.b16 %v817, %v816
        %v952 = vpack.c.b16 %v819, %v818
        %v953 = vpack.c.b16 %v821, %v820
        %v954 = vpack.c.b16 %v823, %v822
        %v955 = vpack.c.b16 %v825, %v824
        %v956 = vpack.c.b16 %v827, %v826
        %v957 = vpack.c.b16 %v829, %v828
        %v958 = vpack.c.b16 %v831, %v830
        %v959 = vpack.c.b16 %v833, %v832
        %v960 = vpack.c.b16 %v835, %v834
        %v961 = vpack.c.b16 %v837, %v836
        %v962 = vpack.c.b16 %v839, %v838
        %v963 = vpack.c.b16 %v841, %v840
        %v964 = vpack.c.b16 %v843, %v842
        %v965 = vpack.c.b16 %v845, %v844
        %v966 = vpack.c.b16 %v847, %v846
        %v967 = vpack.c.b16 %v849, %v848
        %v968 = vpack.c.b16 %v851, %v850
        %v969 = vpack.c.b16 %v853, %v852
        %v970 = vpack.c.b16 %v855, %v854
        %v971 = vpack.c.b16 %v857, %v856
        %v972 = vpack.c.b16 %v859, %v858
        %v973 = vpack.c.b16 %v861, %v860
        %v974 = vpack.c.b16 %v863, %v862
        %v975 = vpack.c.b16 %v865, %v864
        %v976 = vpack.c.b16 %v867, %v866
        %v977 = vpack.c.b16 %v869, %v868
        %v978 = vpack.c.b16 %v871, %v870
        %v979 = vpack.c.b16 %v873, %v872
        %v980 = vpack.c.b16 %v875, %v874
        %v981 = vpack.c.b16 %v877, %v876
        %v982 = vpack.c.b16 %v879, %v878
        %v983 = vpack.c.b16 %v881, %v880
        %v984 = vpack.c.b16 %v883, %v882
        %v985 = vpack.c.b16 %v885, %v884
        %v986 = vpack.c.b16 %v887, %v886
        %v987 = vpack.c.b16 %v889, %v888
        %v988 = vpack.c.b16 %v891, %v890
        %v989 = vpack.c.b16 %v893, %v892
        %v990 = vpack.c.b16 %v895, %v894
        %v991 = vpack.c.b16 %v897, %v896
        %v992 = vpack.c.b16 %v899, %v898
        %v993 = vpack.c.b16 %v901, %v900
        %v994 = vpack.c.b16 %v903, %v902
        %v995 = vpack.c.b16 %v905, %v904
        %v996 = vpack.c.b16 %v907, %v906
        %v997 = vpack.c.b16 %v909, %v908
        %v998 = vpack.c.b16 %v911, %v910
        %v999 = vpack.c.b16 %v913, %v912
        %v1000 = vpack.c.b16 %v915, %v914
        %v1001 = vpack.c.b16 %v917, %v916
        %v1002 = vpack.c.b16 %v919, %v918
        %v1003 = vpack.c.b16 %v921, %v920
        %v1004 = vpack.c.b16 %v923, %v922
        %v1005 = vpack.c.b16 %v925, %v924
        %v1006 = vpack.c.b16 %v927, %v926
        %v1007 = vpack.c.b16 %v929, %v928
        %v1008 = vpack.c.b16 %v931, %v930
        %v1009 = vpack.c.b16 %v933, %v932
        %v1010 = vpack.c.b16 %v935, %v934
        %v1011 = vpack.c.b16 %v937, %v936
        %v1012 = vpack.c.b16 %v939, %v938
        %v1013 = vpack.c.b16 %v941, %v940
        %1086 = vmatprep.subr.bf16.mxu0 0
        %1087 = vmatpush1.bf16.msra.mxu0 %v949
        %1088 = vmatprep.subr.bf16.mxu0 0
        %1089 = vmatpush1.bf16.msra.mxu0 %v948
        %1090 = vmatprep.subr.bf16.mxu0 0
        %1091 = vmatpush1.bf16.msra.mxu0 %v947
        %1092 = vmatprep.subr.bf16.mxu0 0
        %1093 = vmatpush1.bf16.msra.mxu0 %v946
        %1094 = vmatprep.subr.bf16.mxu0 0
        %1095 = vmatpush1.bf16.msra.mxu0 %v945
        %1096 = vmatprep.subr.bf16.mxu0 0
        %1097 = vmatpush1.bf16.msra.mxu0 %v944
        %1098 = vmatprep.subr.bf16.mxu0 0
        %1099 = vmatpush1.bf16.msra.mxu0 %v943
        %1100 = vmatprep.subr.bf16.mxu0 0
        %1101 = vmatpush1.bf16.msra.mxu0 %v942
        %1102 = vmatprep.subr.bf16.mxu0 0
        %1103 = vmatpush2.bf16.msra.mxu0 %v957
        %1104 = vmatprep.subr.bf16.mxu0 0
        %1105 = vmatpush2.bf16.msra.mxu0 %v956
        %1106 = vmatprep.subr.bf16.mxu0 0
        %1107 = vmatpush2.bf16.msra.mxu0 %v955
        %1108 = vmatprep.subr.bf16.mxu0 0
        %1109 = vmatpush2.bf16.msra.mxu0 %v954
        %1110 = vmatprep.subr.bf16.mxu0 0
        %1111 = vmatpush2.bf16.msra.mxu0 %v953
        %1112 = vmatprep.subr.bf16.mxu0 0
        %1113 = vmatpush2.bf16.msra.mxu0 %v952
        %1114 = vmatprep.subr.bf16.mxu0 0
        %1115 = vmatpush2.bf16.msra.mxu0 %v951
        %1116 = vmatprep.subr.bf16.mxu0 0
        %1117 = vmatpush2.bf16.msra.mxu0 %v950
        %1118 = vmatprep.mubr.bf16.mxu0 %v619
        %1119 = vmatmul.mubr.bf16.gmra.mxu0 %v618
        %v1120 = vpop.f32.mrf.mxu0
        %v1121 = vadd.f32 %v616, %v1120
        %v1122 = vpop.f32.mrf.mxu0
        %v1123 = vpop.f32.mrf.mxu0
        %v1124 = vadd.f32 %v616, %v1123
        %v1125 = vpop.f32.mrf.mxu0
        %1126 = vmatprep.mubr.bf16.mxu0 %v628
        %1127 = vmatmul.mubr.bf16.gmra.mxu0 %v627
        %v1128 = vpop.f32.mrf.mxu0
        %v1129 = vadd.f32 %v616, %v1128
        %v1130 = vpop.f32.mrf.mxu0
        %v1131 = vpop.f32.mrf.mxu0
        %v1132 = vadd.f32 %v616, %v1131
        %v1133 = vpop.f32.mrf.mxu0
        %1134 = vdwg.mxu0
        %1135 = vmatprep.subr.bf16.mxu0 0
        %1136 = vmatpush1.bf16.msra.mxu0 %v965
        %1137 = vmatprep.subr.bf16.mxu0 0
        %1138 = vmatpush1.bf16.msra.mxu0 %v964
        %1139 = vmatprep.subr.bf16.mxu0 0
        %1140 = vmatpush1.bf16.msra.mxu0 %v963
        %1141 = vmatprep.subr.bf16.mxu0 0
        %1142 = vmatpush1.bf16.msra.mxu0 %v962
        %1143 = vmatprep.subr.bf16.mxu0 0
        %1144 = vmatpush1.bf16.msra.mxu0 %v961
        %1145 = vmatprep.subr.bf16.mxu0 0
        %1146 = vmatpush1.bf16.msra.mxu0 %v960
        %1147 = vmatprep.subr.bf16.mxu0 0
        %1148 = vmatpush1.bf16.msra.mxu0 %v959
        %1149 = vmatprep.subr.bf16.mxu0 0
        %1150 = vmatpush1.bf16.msra.mxu0 %v958
        %1151 = vmatprep.subr.bf16.mxu0 0
        %1152 = vmatpush2.bf16.msra.mxu0 %v973
        %1153 = vmatprep.subr.bf16.mxu0 0
        %1154 = vmatpush2.bf16.msra.mxu0 %v972
        %1155 = vmatprep.subr.bf16.mxu0 0
        %1156 = vmatpush2.bf16.msra.mxu0 %v971
        %1157 = vmatprep.subr.bf16.mxu0 0
        %1158 = vmatpush2.bf16.msra.mxu0 %v970
        %1159 = vmatprep.subr.bf16.mxu0 0
        %1160 = vmatpush2.bf16.msra.mxu0 %v969
        %1161 = vmatprep.subr.bf16.mxu0 0
        %1162 = vmatpush2.bf16.msra.mxu0 %v968
        %1163 = vmatprep.subr.bf16.mxu0 0
        %1164 = vmatpush2.bf16.msra.mxu0 %v967
        %1165 = vmatprep.subr.bf16.mxu0 0
        %1166 = vmatpush2.bf16.msra.mxu0 %v966
        %1167 = vmatprep.mubr.bf16.mxu0 %v621
        %1168 = vmatmul.mubr.bf16.gmra.mxu0 %v620
        %v1169 = vpop.f32.mrf.mxu0
        %v1170 = vadd.f32 %v1121, %v1169
        %v1171 = vpop.f32.mrf.mxu0
        %v1172 = vpop.f32.mrf.mxu0
        %v1173 = vadd.f32 %v1124, %v1172
        %v1174 = vpop.f32.mrf.mxu0
        %1175 = vmatprep.mubr.bf16.mxu0 %v630
        %1176 = vmatmul.mubr.bf16.gmra.mxu0 %v629
        %v1177 = vpop.f32.mrf.mxu0
        %v1178 = vadd.f32 %v1129, %v1177
        %v1179 = vpop.f32.mrf.mxu0
        %v1180 = vpop.f32.mrf.mxu0
        %v1181 = vadd.f32 %v1132, %v1180
        %v1182 = vpop.f32.mrf.mxu0
        %1183 = vdwg.mxu0
        %1184 = vmatprep.subr.bf16.mxu0 0
        %1185 = vmatpush1.bf16.msra.mxu0 %v981
        %1186 = vmatprep.subr.bf16.mxu0 0
        %1187 = vmatpush1.bf16.msra.mxu0 %v980
        %1188 = vmatprep.subr.bf16.mxu0 0
        %1189 = vmatpush1.bf16.msra.mxu0 %v979
        %1190 = vmatprep.subr.bf16.mxu0 0
        %1191 = vmatpush1.bf16.msra.mxu0 %v978
        %1192 = vmatprep.subr.bf16.mxu0 0
        %1193 = vmatpush1.bf16.msra.mxu0 %v977
        %1194 = vmatprep.subr.bf16.mxu0 0
        %1195 = vmatpush1.bf16.msra.mxu0 %v976
        %1196 = vmatprep.subr.bf16.mxu0 0
        %1197 = vmatpush1.bf16.msra.mxu0 %v975
        %1198 = vmatprep.subr.bf16.mxu0 0
        %1199 = vmatpush1.bf16.msra.mxu0 %v974
        %1200 = vmatprep.subr.bf16.mxu0 0
        %1201 = vmatpush2.bf16.msra.mxu0 %v989
        %1202 = vmatprep.subr.bf16.mxu0 0
        %1203 = vmatpush2.bf16.msra.mxu0 %v988
        %1204 = vmatprep.subr.bf16.mxu0 0
        %1205 = vmatpush2.bf16.msra.mxu0 %v987
        %1206 = vmatprep.subr.bf16.mxu0 0
        %1207 = vmatpush2.bf16.msra.mxu0 %v986
        %1208 = vmatprep.subr.bf16.mxu0 0
        %1209 = vmatpush2.bf16.msra.mxu0 %v985
        %1210 = vmatprep.subr.bf16.mxu0 0
        %1211 = vmatpush2.bf16.msra.mxu0 %v984
        %1212 = vmatprep.subr.bf16.mxu0 0
        %1213 = vmatpush2.bf16.msra.mxu0 %v983
        %1214 = vmatprep.subr.bf16.mxu0 0
        %1215 = vmatpush2.bf16.msra.mxu0 %v982
        %1216 = vmatprep.mubr.bf16.mxu0 %v623
        %1217 = vmatmul.mubr.bf16.gmra.mxu0 %v622
        %v1218 = vpop.f32.mrf.mxu0
        %v1219 = vadd.f32 %v1170, %v1218
        %v1220 = vpop.f32.mrf.mxu0
        %v1221 = vpop.f32.mrf.mxu0
        %v1222 = vadd.f32 %v1173, %v1221
        %v1223 = vpop.f32.mrf.mxu0
        %1224 = vmatprep.mubr.bf16.mxu0 %v632
        %1225 = vmatmul.mubr.bf16.gmra.mxu0 %v631
        %v1226 = vpop.f32.mrf.mxu0
        %v1227 = vadd.f32 %v1178, %v1226
        %v1228 = vpop.f32.mrf.mxu0
        %v1229 = vpop.f32.mrf.mxu0
        %v1230 = vadd.f32 %v1181, %v1229
        %v1231 = vpop.f32.mrf.mxu0
        %1232 = vdwg.mxu0
        %1233 = vmatprep.subr.bf16.mxu0 0
        %1234 = vmatpush1.bf16.msra.mxu0 %v997
        %1235 = vmatprep.subr.bf16.mxu0 0
        %1236 = vmatpush1.bf16.msra.mxu0 %v996
        %1237 = vmatprep.subr.bf16.mxu0 0
        %1238 = vmatpush1.bf16.msra.mxu0 %v995
        %1239 = vmatprep.subr.bf16.mxu0 0
        %1240 = vmatpush1.bf16.msra.mxu0 %v994
        %1241 = vmatprep.subr.bf16.mxu0 0
        %1242 = vmatpush1.bf16.msra.mxu0 %v993
        %1243 = vmatprep.subr.bf16.mxu0 0
        %1244 = vmatpush1.bf16.msra.mxu0 %v992
        %1245 = vmatprep.subr.bf16.mxu0 0
        %1246 = vmatpush1.bf16.msra.mxu0 %v991
        %1247 = vmatprep.subr.bf16.mxu0 0
        %1248 = vmatpush1.bf16.msra.mxu0 %v990
        %1249 = vmatprep.subr.bf16.mxu0 0
        %1250 = vmatpush2.bf16.msra.mxu0 %v1005
        %1251 = vmatprep.subr.bf16.mxu0 0
        %1252 = vmatpush2.bf16.msra.mxu0 %v1004
        %1253 = vmatprep.subr.bf16.mxu0 0
        %1254 = vmatpush2.bf16.msra.mxu0 %v1003
        %1255 = vmatprep.subr.bf16.mxu0 0
        %1256 = vmatpush2.bf16.msra.mxu0 %v1002
        %1257 = vmatprep.subr.bf16.mxu0 0
        %1258 = vmatpush2.bf16.msra.mxu0 %v1001
        %1259 = vmatprep.subr.bf16.mxu0 0
        %1260 = vmatpush2.bf16.msra.mxu0 %v1000
        %1261 = vmatprep.subr.bf16.mxu0 0
        %1262 = vmatpush2.bf16.msra.mxu0 %v999
        %1263 = vmatprep.subr.bf16.mxu0 0
        %1264 = vmatpush2.bf16.msra.mxu0 %v998
        %1265 = vmatprep.mubr.bf16.mxu0 %v625
        %1266 = vmatmul.mubr.bf16.gmra.mxu0 %v624
        %v1267 = vpop.f32.mrf.mxu0
        %v1268 = vadd.f32 %v1219, %v1267
        %v1269 = vpop.f32.mrf.mxu0
        %v1270 = vpop.f32.mrf.mxu0
        %v1271 = vadd.f32 %v1222, %v1270
        %v1272 = vpop.f32.mrf.mxu0
        %1273 = vmatprep.mubr.bf16.mxu0 %v634
        %1274 = vmatmul.mubr.bf16.gmra.mxu0 %v633
        %v1275 = vpop.f32.mrf.mxu0
        %v1276 = vadd.f32 %v1227, %v1275
        %v1277 = vpop.f32.mrf.mxu0
        %v1278 = vpop.f32.mrf.mxu0
        %v1279 = vadd.f32 %v1230, %v1278
        %v1280 = vpop.f32.mrf.mxu0
        %1281 = vdwg.mxu0
        %1282 = vmatprep.subr.bf16.mxu0 0
        %1283 = vmatpush1.bf16.msra.mxu0 %v1013
        %1284 = vmatprep.subr.bf16.mxu0 0
        %1285 = vmatpush1.bf16.msra.mxu0 %v1012
        %1286 = vmatprep.subr.bf16.mxu0 0
        %1287 = vmatpush1.bf16.msra.mxu0 %v1011
        %1288 = vmatprep.subr.bf16.mxu0 0
        %1289 = vmatpush1.bf16.msra.mxu0 %v1010
        %1290 = vmatprep.subr.bf16.mxu0 0
        %1291 = vmatpush1.bf16.msra.mxu0 %v1009
        %1292 = vmatprep.subr.bf16.mxu0 0
        %1293 = vmatpush1.bf16.msra.mxu0 %v1008
        %1294 = vmatprep.subr.bf16.mxu0 0
        %1295 = vmatpush1.bf16.msra.mxu0 %v1007
        %1296 = vmatprep.subr.bf16.mxu0 0
        %1297 = vmatpush1.bf16.msra.mxu0 %v1006
        %1298 = vmatprep.subr.bf16.mxu0 0
        %1299 = vmatpush2.bf16.msra.mxu0 0
        %1300 = vmatprep.subr.bf16.mxu0 0
        %1301 = vmatpush2.bf16.msra.mxu0 0
        %1302 = vmatprep.subr.bf16.mxu0 0
        %1303 = vmatpush2.bf16.msra.mxu0 0
        %1304 = vmatprep.subr.bf16.mxu0 0
        %1305 = vmatpush2.bf16.msra.mxu0 0
        %1306 = vmatprep.subr.bf16.mxu0 0
        %1307 = vmatpush2.bf16.msra.mxu0 0
        %1308 = vmatprep.subr.bf16.mxu0 0
        %1309 = vmatpush2.bf16.msra.mxu0 0
        %1310 = vmatprep.subr.bf16.mxu0 0
        %1311 = vmatpush2.bf16.msra.mxu0 0
        %1312 = vmatprep.subr.bf16.mxu0 0
        %1313 = vmatpush2.bf16.msra.mxu0 0
        %1314 = vmatprep.mubr.bf16.mxu0 0
        %1315 = vmatmul.mubr.bf16.gmra.mxu0 %v626
        %v1316 = vpop.f32.mrf.mxu0
        %v1317 = vadd.f32 %v1268, %v1316
        %v1318 = vpop.f32.mrf.mxu0
        %v1319 = vpop.f32.mrf.mxu0
        %v1320 = vadd.f32 %v1271, %v1319
        %v1321 = vpop.f32.mrf.mxu0
        %1322 = vmatprep.mubr.bf16.mxu0 0
        %1323 = vmatmul.mubr.bf16.gmra.mxu0 %v635
        %v1324 = vpop.f32.mrf.mxu0
        %v1325 = vadd.f32 %v1276, %v1324
        %v1326 = vpop.f32.mrf.mxu0
        %v1327 = vpop.f32.mrf.mxu0
        %v1328 = vadd.f32 %v1279, %v1327
        %v1329 = vpop.f32.mrf.mxu0
        %1330 = vdwg.mxu0
        %v1331 = vmax.f32 %v1317, 0.0
        %v1332 = vmax.f32 %v1320, 0.0
        %v1333 = vmax.f32 %v1325, 0.0
        %v1334 = vmax.f32 %v1328, 0.0
        %v1335 = vpack.c.bf16 %v1331, %v1331
        %v1336 = vpack.c.bf16 %v1332, %v1332
        %v1337 = vpack.c.bf16 %v1333, %v1333
        %v1338 = vpack.c.bf16 %v1334, %v1334
        %v1343 = vunpack.c.l.b16 %v1335
        %v1344 = vunpack.c.l.b16 %v1336
        %v1345 = vunpack.c.l.b16 %v1337
        %v1346 = vunpack.c.l.b16 %v1338
        %v1347 = vpack.c.b16 %v1343, %v1343
        %v1348 = vpack.c.b16 %v1344, %v1344
        %v1349 = vpack.c.b16 %v1345, %v1345
        %v1350 = vpack.c.b16 %v1346, %v1346
        %v1352 = vshrl.u32 %v1347, 16
        %v1354 = vrot.slane %v1352, 7
        %v1355 = vshll.u32 %v1347, 16
        %v1357 = vor.u32 %v1354, %v1355
        %v1358 = vrot.slane %v1354, 4
        %v1360 = vshrl.u32 %v1348, 16
        %v1362 = vrot.slane %v1360, 7
        %v1363 = vshll.u32 %v1348, 16
        %v1365 = vor.u32 %v1362, %v1363
        %v1366 = vrot.slane %v1362, 4
        %v1368 = vshrl.u32 %v1349, 16
        %v1370 = vrot.slane %v1368, 7
        %v1371 = vshll.u32 %v1349, 16
        %v1373 = vor.u32 %v1370, %v1371
        %v1374 = vrot.slane %v1370, 4
        %v1376 = vshrl.u32 %v1350, 16
        %v1378 = vrot.slane %v1376, 7
        %v1379 = vshll.u32 %v1350, 16
        %v1381 = vor.u32 %v1378, %v1379
        %v1382 = vrot.slane %v1378, 4
        %s1391 = scalar_lea.vmem [#allocation2], 8
        %vm1392 = vcmask 1043456
        %vm1393 = vsmask.f32 7938
        %vm1394 = vmand %vm1392, %vm1393
        %v1395 = vld [vmem:[%s1391] sm:$0xf]
        %v1396 = vsel %vm1394, %v1357, %v1395
        %1397 = vst [vmem:[%s1391] sm:$0xf] %v1396
        %vm1398 = vcmask 1040384
        %vm1399 = vsmask.f32 256
        %vm1400 = vmand %vm1398, %vm1399
        %v1401 = vld [vmem:[%s1391 + $0x4] sm:$0x1]
        %v1402 = vsel %vm1400, %v1358, %v1401
        %1403 = vst [vmem:[%s1391 + $0x4] sm:$0x1] %v1402
        %v1404 = vld [vmem:[%s1391 + $0x8] sm:$0xf]
        %v1405 = vsel %vm1394, %v1365, %v1404
        %1406 = vst [vmem:[%s1391 + $0x8] sm:$0xf] %v1405
        %v1407 = vld [vmem:[%s1391 + $0xc] sm:$0x1]
        %v1408 = vsel %vm1400, %v1366, %v1407
        %1409 = vst [vmem:[%s1391 + $0xc] sm:$0x1] %v1408
        %v1410 = vld [vmem:[%s1391 + $0x10] sm:$0xf]
        %v1411 = vsel %vm1394, %v1373, %v1410
        %1412 = vst [vmem:[%s1391 + $0x10] sm:$0xf] %v1411
        %v1413 = vld [vmem:[%s1391 + $0x14] sm:$0x1]
        %v1414 = vsel %vm1400, %v1374, %v1413
        %1415 = vst [vmem:[%s1391 + $0x14] sm:$0x1] %v1414
        %v1416 = vld [vmem:[%s1391 + $0x18] sm:$0xf]
        %v1417 = vsel %vm1394, %v1381, %v1416
        %1418 = vst [vmem:[%s1391 + $0x18] sm:$0xf] %v1417
        %v1419 = vld [vmem:[%s1391 + $0x1c] sm:$0x1]
        %v1420 = vsel %vm1400, %v1382, %v1419
        %1421 = vst [vmem:[%s1391 + $0x1c] sm:$0x1] %v1420
        %s1422 = ssub.s32 %s251, 1
        %s1423 = sadd.s32 %s251, 4
        %p1424 = scmp.ge.s32.totalorder %s1422, 0
        %p1425 = scmp.lt.s32.totalorder %s1422, 8
        %p1426 = pnand %p1424, %p1425
        %p1427 = pneg %p1426
        // Predicated region
        $region41: #{fwd.3} parent=39 // pred_check
          _
        $region42: #{fwd.3} parent=39 // pred_check_branch
          %1429 = sbr.rel (%p1426) target = $region44
        $region43: #{fwd.3} parent=39 // pred_region
          %s1430 = smul.u32 %s1422, 2
          %s1431 = smul.addr %s1430, 4
          %s1432 = scalar_lea.vmem %s236, %s1431
          %v1433 = vld [vmem:[%s1432] sm:$0xf]
          %v1434 = vld [vmem:[%s1432 + $0x4] sm:$0x1]
          %v1435 = vld [vmem:[%s254] sm:$0xf]
          %v1436 = vld [vmem:[%s254 + $0x4] sm:$0x1]
          %v1437 = vld [vmem:[%s266] sm:$0xf]
          %v1438 = vld [vmem:[%s266 + $0x4] sm:$0x1]
          %v1441 = vunpack.c.l.b16 %v1433
          %v1442 = vunpack.c.l.b16 %v1434
          %v1443 = vpack.c.b16 %v1442, %v1441
          %v1445 = vshrl.u32 %v1443, 16
          %v1447 = vshll.u32 %v1443, 16
          %v1449 = vrot.slane %v1447, 1
          %v1450 = vor.u32 %v1445, %v1449
          %v1452 = vrot.slane %v1443, 1
          %v1456 = vunpack.c.l.b16 %v1435
          %v1457 = vunpack.c.l.b16 %v1436
          %v1458 = vpack.c.b16 %v1457, %v1456
          %v1460 = vshrl.u32 %v1458, 16
          %v1462 = vshll.u32 %v1458, 16
          %v1464 = vrot.slane %v1462, 1
          %v1465 = vor.u32 %v1460, %v1464
          %v1467 = vrot.slane %v1458, 1
          %v1471 = vunpack.c.l.b16 %v1437
          %v1472 = vunpack.c.l.b16 %v1438
          %v1473 = vpack.c.b16 %v1472, %v1471
          %v1475 = vshrl.u32 %v1473, 16
          %v1477 = vshll.u32 %v1473, 16
          %v1479 = vrot.slane %v1477, 1
          %v1480 = vor.u32 %v1475, %v1479
          %v1482 = vrot.slane %v1473, 1
          %v1484 = vld [vmem:[%s1] sm:$0xf]
          %v1485 = vld [vmem:[%s1 + $0x4] sm:$0xf]
          %v1486 = vld [vmem:[%s1 + $0x8] sm:$0xf]
          %v1487 = vld [vmem:[%s1 + $0xc] sm:$0xf]
          %v1488 = vld [vmem:[%s1 + $0x10] sm:$0xf]
          %v1489 = vld [vmem:[%s1 + $0x14] sm:$0xf]
          %v1490 = vld [vmem:[%s1 + $0x18] sm:$0xf]
          %v1491 = vld [vmem:[%s1 + $0x1c] sm:$0xf]
          %v1492 = vld [vmem:[%s1 + $0x20] sm:$0xf]
          %v1493 = vld [vmem:[%s1 + $0x24] sm:$0xf]
          %v1494 = vld [vmem:[%s1 + $0x28] sm:$0xf]
          %v1495 = vld [vmem:[%s1 + $0x2c] sm:$0xf]
          %v1496 = vld [vmem:[%s1 + $0x30] sm:$0xf]
          %v1497 = vld [vmem:[%s1 + $0x34] sm:$0xf]
          %v1498 = vld [vmem:[%s1 + $0x38] sm:$0xf]
          %v1499 = vld [vmem:[%s1 + $0x3c] sm:$0xf]
          %v1500 = vld [vmem:[%s1 + $0x40] sm:$0xf]
          %v1501 = vld [vmem:[%s1 + $0x44] sm:$0xf]
          %v1502 = vld [vmem:[%s1 + $0x48] sm:$0xf]
          %v1503 = vld [vmem:[%s1 + $0x4c] sm:$0xf]
          %v1504 = vld [vmem:[%s1 + $0x50] sm:$0xf]
          %v1505 = vld [vmem:[%s1 + $0x54] sm:$0xf]
          %v1506 = vld [vmem:[%s1 + $0x58] sm:$0xf]
          %v1507 = vld [vmem:[%s1 + $0x5c] sm:$0xf]
          %v1508 = vld [vmem:[%s1 + $0x60] sm:$0xf]
          %v1509 = vld [vmem:[%s1 + $0x64] sm:$0xf]
          %v1510 = vld [vmem:[%s1 + $0x68] sm:$0xf]
          %v1511 = vld [vmem:[%s1 + $0x6c] sm:$0xf]
          %v1512 = vld [vmem:[%s1 + $0x70] sm:$0xf]
          %v1513 = vld [vmem:[%s1 + $0x74] sm:$0xf]
          %v1514 = vld [vmem:[%s1 + $0x78] sm:$0xf]
          %v1515 = vld [vmem:[%s1 + $0x7c] sm:$0xf]
          %v1516 = vld [vmem:[%s1 + $0x80] sm:$0xf]
          %v1517 = vld [vmem:[%s1 + $0x84] sm:$0xf]
          %v1518 = vld [vmem:[%s1 + $0x88] sm:$0xf]
          %v1519 = vld [vmem:[%s1 + $0x8c] sm:$0xf]
          %v1520 = vld [vmem:[%s1 + $0x90] sm:$0xf]
          %v1521 = vld [vmem:[%s1 + $0x94] sm:$0xf]
          %v1522 = vld [vmem:[%s1 + $0x98] sm:$0xf]
          %v1523 = vld [vmem:[%s1 + $0x9c] sm:$0xf]
          %v1524 = vld [vmem:[%s1 + $0xa0] sm:$0xf]
          %v1525 = vld [vmem:[%s1 + $0xa4] sm:$0xf]
          %v1526 = vld [vmem:[%s1 + $0xa8] sm:$0xf]
          %v1527 = vld [vmem:[%s1 + $0xac] sm:$0xf]
          %v1528 = vld [vmem:[%s1 + $0xb0] sm:$0xf]
          %v1529 = vld [vmem:[%s1 + $0xb4] sm:$0xf]
          %v1530 = vld [vmem:[%s1 + $0xb8] sm:$0xf]
          %v1531 = vld [vmem:[%s1 + $0xbc] sm:$0xf]
          %v1532 = vld [vmem:[%s1 + $0xc0] sm:$0xf]
          %v1533 = vld [vmem:[%s1 + $0xc4] sm:$0xf]
          %v1534 = vld [vmem:[%s1 + $0xc8] sm:$0xf]
          %v1535 = vld [vmem:[%s1 + $0xcc] sm:$0xf]
          %v1536 = vld [vmem:[%s1 + $0xd0] sm:$0xf]
          %v1537 = vld [vmem:[%s1 + $0xd4] sm:$0xf]
          %v1538 = vld [vmem:[%s1 + $0xd8] sm:$0xf]
          %v1539 = vld [vmem:[%s1 + $0xdc] sm:$0xf]
          %v1540 = vld [vmem:[%s1 + $0xe0] sm:$0xf]
          %v1541 = vld [vmem:[%s1 + $0xe4] sm:$0xf]
          %v1542 = vld [vmem:[%s1 + $0xe8] sm:$0xf]
          %v1543 = vld [vmem:[%s1 + $0xec] sm:$0xf]
          %v1544 = vld [vmem:[%s1 + $0xf0] sm:$0xf]
          %v1545 = vld [vmem:[%s1 + $0xf4] sm:$0xf]
          %v1546 = vld [vmem:[%s1 + $0xf8] sm:$0xf]
          %v1547 = vld [vmem:[%s1 + $0xfc] sm:$0xf]
          %v1548 = vld [vmem:[%s1 + $0x100] sm:$0xf]
          %v1549 = vld [vmem:[%s1 + $0x104] sm:$0xf]
          %v1550 = vld [vmem:[%s1 + $0x108] sm:$0xf]
          %v1551 = vld [vmem:[%s1 + $0x10c] sm:$0xf]
          %v1552 = vld [vmem:[%s1 + $0x110] sm:$0xf]
          %v1553 = vld [vmem:[%s1 + $0x114] sm:$0xf]
          %v1554 = vld [vmem:[%s1 + $0x118] sm:$0xf]
          %v1555 = vld [vmem:[%s1 + $0x11c] sm:$0xf]
          %v1556 = vld [vmem:[%s1 + $0x120] sm:$0xf]
          %v1557 = vld [vmem:[%s1 + $0x124] sm:$0xf]
          %v1558 = vld [vmem:[%s1 + $0x128] sm:$0xf]
          %v1559 = vld [vmem:[%s1 + $0x12c] sm:$0xf]
          %v1560 = vld [vmem:[%s1 + $0x130] sm:$0xf]
          %v1561 = vld [vmem:[%s1 + $0x134] sm:$0xf]
          %v1562 = vld [vmem:[%s1 + $0x138] sm:$0xf]
          %v1563 = vld [vmem:[%s1 + $0x13c] sm:$0xf]
          %v1564 = vld [vmem:[%s1 + $0x140] sm:$0xf]
          %v1565 = vld [vmem:[%s1 + $0x144] sm:$0xf]
          %v1566 = vld [vmem:[%s1 + $0x148] sm:$0xf]
          %v1567 = vld [vmem:[%s1 + $0x14c] sm:$0xf]
          %v1568 = vld [vmem:[%s1 + $0x150] sm:$0xf]
          %v1569 = vld [vmem:[%s1 + $0x154] sm:$0xf]
          %v1570 = vld [vmem:[%s1 + $0x158] sm:$0xf]
          %v1571 = vld [vmem:[%s1 + $0x15c] sm:$0xf]
          %v1572 = vld [vmem:[%s1 + $0x160] sm:$0xf]
          %v1573 = vld [vmem:[%s1 + $0x164] sm:$0xf]
          %v1574 = vld [vmem:[%s1 + $0x168] sm:$0xf]
          %v1575 = vld [vmem:[%s1 + $0x16c] sm:$0xf]
          %v1576 = vld [vmem:[%s1 + $0x170] sm:$0xf]
          %v1577 = vld [vmem:[%s1 + $0x174] sm:$0xf]
          %v1578 = vld [vmem:[%s1 + $0x178] sm:$0xf]
          %v1579 = vld [vmem:[%s1 + $0x17c] sm:$0xf]
          %v1580 = vld [vmem:[%s1 + $0x180] sm:$0xf]
          %v1581 = vld [vmem:[%s1 + $0x184] sm:$0xf]
          %v1582 = vld [vmem:[%s1 + $0x188] sm:$0xf]
          %v1583 = vld [vmem:[%s1 + $0x18c] sm:$0xf]
          %v1584 = vld [vmem:[%s1 + $0x190] sm:$0xf]
          %v1585 = vld [vmem:[%s1 + $0x194] sm:$0xf]
          %v1586 = vld [vmem:[%s1 + $0x198] sm:$0xf]
          %v1587 = vld [vmem:[%s1 + $0x19c] sm:$0xf]
          %v1588 = vld [vmem:[%s1 + $0x1a0] sm:$0xf]
          %v1589 = vld [vmem:[%s1 + $0x1a4] sm:$0xf]
          %v1590 = vld [vmem:[%s1 + $0x1a8] sm:$0xf]
          %v1591 = vld [vmem:[%s1 + $0x1ac] sm:$0xf]
          %v1592 = vld [vmem:[%s1 + $0x1b0] sm:$0xf]
          %v1593 = vld [vmem:[%s1 + $0x1b4] sm:$0xf]
          %v1594 = vld [vmem:[%s1 + $0x1b8] sm:$0xf]
          %v1595 = vld [vmem:[%s1 + $0x1bc] sm:$0xf]
          %v1596 = vld [vmem:[%s1 + $0x1c0] sm:$0xf]
          %v1597 = vld [vmem:[%s1 + $0x1c4] sm:$0xf]
          %v1598 = vld [vmem:[%s1 + $0x1c8] sm:$0xf]
          %v1599 = vld [vmem:[%s1 + $0x1cc] sm:$0xf]
          %v1600 = vld [vmem:[%s1 + $0x1d0] sm:$0xf]
          %v1601 = vld [vmem:[%s1 + $0x1d4] sm:$0xf]
          %v1602 = vld [vmem:[%s1 + $0x1d8] sm:$0xf]
          %v1603 = vld [vmem:[%s1 + $0x1dc] sm:$0xf]
          %v1604 = vld [vmem:[%s1 + $0x1e0] sm:$0xf]
          %v1605 = vld [vmem:[%s1 + $0x1e4] sm:$0xf]
          %v1606 = vld [vmem:[%s1 + $0x1e8] sm:$0xf]
          %v1607 = vld [vmem:[%s1 + $0x1ec] sm:$0xf]
          %v1608 = vld [vmem:[%s1 + $0x1f0] sm:$0xf]
          %v1609 = vld [vmem:[%s1 + $0x1f4] sm:$0xf]
          %v1610 = vld [vmem:[%s1 + $0x1f8] sm:$0xf]
          %v1611 = vld [vmem:[%s1 + $0x1fc] sm:$0xf]
          %v1612 = vld [vmem:[%s1 + $0x200] sm:$0xf]
          %v1613 = vld [vmem:[%s1 + $0x204] sm:$0xf]
          %v1614 = vld [vmem:[%s1 + $0x208] sm:$0xf]
          %v1615 = vld [vmem:[%s1 + $0x20c] sm:$0xf]
          %v1616 = vld [vmem:[%s1 + $0x210] sm:$0xf]
          %v1617 = vld [vmem:[%s1 + $0x214] sm:$0xf]
          %v1618 = vld [vmem:[%s1 + $0x218] sm:$0xf]
          %v1619 = vld [vmem:[%s1 + $0x21c] sm:$0xf]
          %v1620 = vld [vmem:[%s1 + $0x220] sm:$0xf]
          %v1621 = vld [vmem:[%s1 + $0x224] sm:$0xf]
          %v1622 = vld [vmem:[%s1 + $0x228] sm:$0xf]
          %v1623 = vld [vmem:[%s1 + $0x22c] sm:$0xf]
          %v1624 = vld [vmem:[%s1 + $0x230] sm:$0xf]
          %v1625 = vld [vmem:[%s1 + $0x234] sm:$0xf]
          %v1626 = vld [vmem:[%s1 + $0x238] sm:$0xf]
          %v1627 = vld [vmem:[%s1 + $0x23c] sm:$0xf]
          %v1628 = vld [vmem:[%s2] sm:$0x1]
          %v1630 = vlaneseq
          %v1631 = vshrl.u32 %v1630, 7
          %v1632 = vsub.s32 0, %v1631
          %v1633 = vrot.slane %v1628, %v1632
          %v1779 = vunpack.c.l.b16 %v1484
          %v1780 = vunpack.c.l.b16 %v1485
          %v1781 = vunpack.c.l.b16 %v1486
          %v1782 = vunpack.c.l.b16 %v1487
          %v1783 = vunpack.c.l.b16 %v1488
          %v1784 = vunpack.c.l.b16 %v1489
          %v1785 = vunpack.c.l.b16 %v1490
          %v1786 = vunpack.c.l.b16 %v1491
          %v1787 = vunpack.c.l.b16 %v1492
          %v1788 = vunpack.c.l.b16 %v1493
          %v1789 = vunpack.c.l.b16 %v1494
          %v1790 = vunpack.c.l.b16 %v1495
          %v1791 = vunpack.c.l.b16 %v1496
          %v1792 = vunpack.c.l.b16 %v1497
          %v1793 = vunpack.c.l.b16 %v1498
          %v1794 = vunpack.c.l.b16 %v1499
          %v1795 = vunpack.c.l.b16 %v1500
          %v1796 = vunpack.c.l.b16 %v1501
          %v1797 = vunpack.c.l.b16 %v1502
          %v1798 = vunpack.c.l.b16 %v1503
          %v1799 = vunpack.c.l.b16 %v1504
          %v1800 = vunpack.c.l.b16 %v1505
          %v1801 = vunpack.c.l.b16 %v1506
          %v1802 = vunpack.c.l.b16 %v1507
          %v1803 = vunpack.c.l.b16 %v1508
          %v1804 = vunpack.c.l.b16 %v1509
          %v1805 = vunpack.c.l.b16 %v1510
          %v1806 = vunpack.c.l.b16 %v1511
          %v1807 = vunpack.c.l.b16 %v1512
          %v1808 = vunpack.c.l.b16 %v1513
          %v1809 = vunpack.c.l.b16 %v1514
          %v1810 = vunpack.c.l.b16 %v1515
          %v1811 = vunpack.c.l.b16 %v1516
          %v1812 = vunpack.c.l.b16 %v1517
          %v1813 = vunpack.c.l.b16 %v1518
          %v1814 = vunpack.c.l.b16 %v1519
          %v1815 = vunpack.c.l.b16 %v1520
          %v1816 = vunpack.c.l.b16 %v1521
          %v1817 = vunpack.c.l.b16 %v1522
          %v1818 = vunpack.c.l.b16 %v1523
          %v1819 = vunpack.c.l.b16 %v1524
          %v1820 = vunpack.c.l.b16 %v1525
          %v1821 = vunpack.c.l.b16 %v1526
          %v1822 = vunpack.c.l.b16 %v1527
          %v1823 = vunpack.c.l.b16 %v1528
          %v1824 = vunpack.c.l.b16 %v1529
          %v1825 = vunpack.c.l.b16 %v1530
          %v1826 = vunpack.c.l.b16 %v1531
          %v1827 = vunpack.c.l.b16 %v1532
          %v1828 = vunpack.c.l.b16 %v1533
          %v1829 = vunpack.c.l.b16 %v1534
          %v1830 = vunpack.c.l.b16 %v1535
          %v1831 = vunpack.c.l.b16 %v1536
          %v1832 = vunpack.c.l.b16 %v1537
          %v1833 = vunpack.c.l.b16 %v1538
          %v1834 = vunpack.c.l.b16 %v1539
          %v1835 = vunpack.c.l.b16 %v1540
          %v1836 = vunpack.c.l.b16 %v1541
          %v1837 = vunpack.c.l.b16 %v1542
          %v1838 = vunpack.c.l.b16 %v1543
          %v1839 = vunpack.c.l.b16 %v1544
          %v1840 = vunpack.c.l.b16 %v1545
          %v1841 = vunpack.c.l.b16 %v1546
          %v1842 = vunpack.c.l.b16 %v1547
          %v1843 = vunpack.c.l.b16 %v1548
          %v1844 = vunpack.c.l.b16 %v1549
          %v1845 = vunpack.c.l.b16 %v1550
          %v1846 = vunpack.c.l.b16 %v1551
          %v1847 = vunpack.c.l.b16 %v1552
          %v1848 = vunpack.c.l.b16 %v1553
          %v1849 = vunpack.c.l.b16 %v1554
          %v1850 = vunpack.c.l.b16 %v1555
          %v1851 = vunpack.c.l.b16 %v1556
          %v1852 = vunpack.c.l.b16 %v1557
          %v1853 = vunpack.c.l.b16 %v1558
          %v1854 = vunpack.c.l.b16 %v1559
          %v1855 = vunpack.c.l.b16 %v1560
          %v1856 = vunpack.c.l.b16 %v1561
          %v1857 = vunpack.c.l.b16 %v1562
          %v1858 = vunpack.c.l.b16 %v1563
          %v1859 = vunpack.c.l.b16 %v1564
          %v1860 = vunpack.c.l.b16 %v1565
          %v1861 = vunpack.c.l.b16 %v1566
          %v1862 = vunpack.c.l.b16 %v1567
          %v1863 = vunpack.c.l.b16 %v1568
          %v1864 = vunpack.c.l.b16 %v1569
          %v1865 = vunpack.c.l.b16 %v1570
          %v1866 = vunpack.c.l.b16 %v1571
          %v1867 = vunpack.c.l.b16 %v1572
          %v1868 = vunpack.c.l.b16 %v1573
          %v1869 = vunpack.c.l.b16 %v1574
          %v1870 = vunpack.c.l.b16 %v1575
          %v1871 = vunpack.c.l.b16 %v1576
          %v1872 = vunpack.c.l.b16 %v1577
          %v1873 = vunpack.c.l.b16 %v1578
          %v1874 = vunpack.c.l.b16 %v1579
          %v1875 = vunpack.c.l.b16 %v1580
          %v1876 = vunpack.c.l.b16 %v1581
          %v1877 = vunpack.c.l.b16 %v1582
          %v1878 = vunpack.c.l.b16 %v1583
          %v1879 = vunpack.c.l.b16 %v1584
          %v1880 = vunpack.c.l.b16 %v1585
          %v1881 = vunpack.c.l.b16 %v1586
          %v1882 = vunpack.c.l.b16 %v1587
          %v1883 = vunpack.c.l.b16 %v1588
          %v1884 = vunpack.c.l.b16 %v1589
          %v1885 = vunpack.c.l.b16 %v1590
          %v1886 = vunpack.c.l.b16 %v1591
          %v1887 = vunpack.c.l.b16 %v1592
          %v1888 = vunpack.c.l.b16 %v1593
          %v1889 = vunpack.c.l.b16 %v1594
          %v1890 = vunpack.c.l.b16 %v1595
          %v1891 = vunpack.c.l.b16 %v1596
          %v1892 = vunpack.c.l.b16 %v1597
          %v1893 = vunpack.c.l.b16 %v1598
          %v1894 = vunpack.c.l.b16 %v1599
          %v1895 = vunpack.c.l.b16 %v1600
          %v1896 = vunpack.c.l.b16 %v1601
          %v1897 = vunpack.c.l.b16 %v1602
          %v1898 = vunpack.c.l.b16 %v1603
          %v1899 = vunpack.c.l.b16 %v1604
          %v1900 = vunpack.c.l.b16 %v1605
          %v1901 = vunpack.c.l.b16 %v1606
          %v1902 = vunpack.c.l.b16 %v1607
          %v1903 = vunpack.c.l.b16 %v1608
          %v1904 = vunpack.c.l.b16 %v1609
          %v1905 = vunpack.c.l.b16 %v1610
          %v1906 = vunpack.c.l.b16 %v1611
          %v1907 = vunpack.c.l.b16 %v1612
          %v1908 = vunpack.c.l.b16 %v1613
          %v1909 = vunpack.c.l.b16 %v1614
          %v1910 = vunpack.c.l.b16 %v1615
          %v1911 = vunpack.c.l.b16 %v1616
          %v1912 = vunpack.c.l.b16 %v1617
          %v1913 = vunpack.c.l.b16 %v1618
          %v1914 = vunpack.c.l.b16 %v1619
          %v1915 = vunpack.c.l.b16 %v1620
          %v1916 = vunpack.c.l.b16 %v1621
          %v1917 = vunpack.c.l.b16 %v1622
          %v1918 = vunpack.c.l.b16 %v1623
          %v1919 = vunpack.c.l.b16 %v1624
          %v1920 = vunpack.c.l.b16 %v1625
          %v1921 = vunpack.c.l.b16 %v1626
          %v1922 = vunpack.c.l.b16 %v1627
          %v1923 = vpack.c.b16 %v1780, %v1779
          %v1924 = vpack.c.b16 %v1782, %v1781
          %v1925 = vpack.c.b16 %v1784, %v1783
          %v1926 = vpack.c.b16 %v1786, %v1785
          %v1927 = vpack.c.b16 %v1788, %v1787
          %v1928 = vpack.c.b16 %v1790, %v1789
          %v1929 = vpack.c.b16 %v1792, %v1791
          %v1930 = vpack.c.b16 %v1794, %v1793
          %v1931 = vpack.c.b16 %v1796, %v1795
          %v1932 = vpack.c.b16 %v1798, %v1797
          %v1933 = vpack.c.b16 %v1800, %v1799
          %v1934 = vpack.c.b16 %v1802, %v1801
          %v1935 = vpack.c.b16 %v1804, %v1803
          %v1936 = vpack.c.b16 %v1806, %v1805
          %v1937 = vpack.c.b16 %v1808, %v1807
          %v1938 = vpack.c.b16 %v1810, %v1809
          %v1939 = vpack.c.b16 %v1812, %v1811
          %v1940 = vpack.c.b16 %v1814, %v1813
          %v1941 = vpack.c.b16 %v1816, %v1815
          %v1942 = vpack.c.b16 %v1818, %v1817
          %v1943 = vpack.c.b16 %v1820, %v1819
          %v1944 = vpack.c.b16 %v1822, %v1821
          %v1945 = vpack.c.b16 %v1824, %v1823
          %v1946 = vpack.c.b16 %v1826, %v1825
          %v1947 = vpack.c.b16 %v1828, %v1827
          %v1948 = vpack.c.b16 %v1830, %v1829
          %v1949 = vpack.c.b16 %v1832, %v1831
          %v1950 = vpack.c.b16 %v1834, %v1833
          %v1951 = vpack.c.b16 %v1836, %v1835
          %v1952 = vpack.c.b16 %v1838, %v1837
          %v1953 = vpack.c.b16 %v1840, %v1839
          %v1954 = vpack.c.b16 %v1842, %v1841
          %v1955 = vpack.c.b16 %v1844, %v1843
          %v1956 = vpack.c.b16 %v1846, %v1845
          %v1957 = vpack.c.b16 %v1848, %v1847
          %v1958 = vpack.c.b16 %v1850, %v1849
          %v1959 = vpack.c.b16 %v1852, %v1851
          %v1960 = vpack.c.b16 %v1854, %v1853
          %v1961 = vpack.c.b16 %v1856, %v1855
          %v1962 = vpack.c.b16 %v1858, %v1857
          %v1963 = vpack.c.b16 %v1860, %v1859
          %v1964 = vpack.c.b16 %v1862, %v1861
          %v1965 = vpack.c.b16 %v1864, %v1863
          %v1966 = vpack.c.b16 %v1866, %v1865
          %v1967 = vpack.c.b16 %v1868, %v1867
          %v1968 = vpack.c.b16 %v1870, %v1869
          %v1969 = vpack.c.b16 %v1872, %v1871
          %v1970 = vpack.c.b16 %v1874, %v1873
          %v1971 = vpack.c.b16 %v1876, %v1875
          %v1972 = vpack.c.b16 %v1878, %v1877
          %v1973 = vpack.c.b16 %v1880, %v1879
          %v1974 = vpack.c.b16 %v1882, %v1881
          %v1975 = vpack.c.b16 %v1884, %v1883
          %v1976 = vpack.c.b16 %v1886, %v1885
          %v1977 = vpack.c.b16 %v1888, %v1887
          %v1978 = vpack.c.b16 %v1890, %v1889
          %v1979 = vpack.c.b16 %v1892, %v1891
          %v1980 = vpack.c.b16 %v1894, %v1893
          %v1981 = vpack.c.b16 %v1896, %v1895
          %v1982 = vpack.c.b16 %v1898, %v1897
          %v1983 = vpack.c.b16 %v1900, %v1899
          %v1984 = vpack.c.b16 %v1902, %v1901
          %v1985 = vpack.c.b16 %v1904, %v1903
          %v1986 = vpack.c.b16 %v1906, %v1905
          %v1987 = vpack.c.b16 %v1908, %v1907
          %v1988 = vpack.c.b16 %v1910, %v1909
          %v1989 = vpack.c.b16 %v1912, %v1911
          %v1990 = vpack.c.b16 %v1914, %v1913
          %v1991 = vpack.c.b16 %v1916, %v1915
          %v1992 = vpack.c.b16 %v1918, %v1917
          %v1993 = vpack.c.b16 %v1920, %v1919
          %v1994 = vpack.c.b16 %v1922, %v1921
          %2067 = vmatprep.subr.bf16.mxu0 0
          %2068 = vmatpush1.bf16.msra.mxu0 %v1930
          %2069 = vmatprep.subr.bf16.mxu0 0
          %2070 = vmatpush1.bf16.msra.mxu0 %v1929
          %2071 = vmatprep.subr.bf16.mxu0 0
          %2072 = vmatpush1.bf16.msra.mxu0 %v1928
          %2073 = vmatprep.subr.bf16.mxu0 0
          %2074 = vmatpush1.bf16.msra.mxu0 %v1927
          %2075 = vmatprep.subr.bf16.mxu0 0
          %2076 = vmatpush1.bf16.msra.mxu0 %v1926
          %2077 = vmatprep.subr.bf16.mxu0 0
          %2078 = vmatpush1.bf16.msra.mxu0 %v1925
          %2079 = vmatprep.subr.bf16.mxu0 0
          %2080 = vmatpush1.bf16.msra.mxu0 %v1924
          %2081 = vmatprep.subr.bf16.mxu0 0
          %2082 = vmatpush1.bf16.msra.mxu0 %v1923
          %2083 = vmatprep.subr.bf16.mxu0 0
          %2084 = vmatpush2.bf16.msra.mxu0 %v1938
          %2085 = vmatprep.subr.bf16.mxu0 0
          %2086 = vmatpush2.bf16.msra.mxu0 %v1937
          %2087 = vmatprep.subr.bf16.mxu0 0
          %2088 = vmatpush2.bf16.msra.mxu0 %v1936
          %2089 = vmatprep.subr.bf16.mxu0 0
          %2090 = vmatpush2.bf16.msra.mxu0 %v1935
          %2091 = vmatprep.subr.bf16.mxu0 0
          %2092 = vmatpush2.bf16.msra.mxu0 %v1934
          %2093 = vmatprep.subr.bf16.mxu0 0
          %2094 = vmatpush2.bf16.msra.mxu0 %v1933
          %2095 = vmatprep.subr.bf16.mxu0 0
          %2096 = vmatpush2.bf16.msra.mxu0 %v1932
          %2097 = vmatprep.subr.bf16.mxu0 0
          %2098 = vmatpush2.bf16.msra.mxu0 %v1931
          %2099 = vmatprep.mubr.bf16.mxu0 %v1450
          %2100 = vmatmul.mubr.bf16.gmra.mxu0 %v1433
          %v2101 = vpop.f32.mrf.mxu0
          %v2102 = vadd.f32 %v1633, %v2101
          %v2103 = vpop.f32.mrf.mxu0
          %v2104 = vpop.f32.mrf.mxu0
          %v2105 = vpop.f32.mrf.mxu0
          %2106 = vdwg.mxu0
          %2107 = vmatprep.subr.bf16.mxu0 0
          %2108 = vmatpush1.bf16.msra.mxu0 %v1946
          %2109 = vmatprep.subr.bf16.mxu0 0
          %2110 = vmatpush1.bf16.msra.mxu0 %v1945
          %2111 = vmatprep.subr.bf16.mxu0 0
          %2112 = vmatpush1.bf16.msra.mxu0 %v1944
          %2113 = vmatprep.subr.bf16.mxu0 0
          %2114 = vmatpush1.bf16.msra.mxu0 %v1943
          %2115 = vmatprep.subr.bf16.mxu0 0
          %2116 = vmatpush1.bf16.msra.mxu0 %v1942
          %2117 = vmatprep.subr.bf16.mxu0 0
          %2118 = vmatpush1.bf16.msra.mxu0 %v1941
          %2119 = vmatprep.subr.bf16.mxu0 0
          %2120 = vmatpush1.bf16.msra.mxu0 %v1940
          %2121 = vmatprep.subr.bf16.mxu0 0
          %2122 = vmatpush1.bf16.msra.mxu0 %v1939
          %2123 = vmatprep.subr.bf16.mxu0 0
          %2124 = vmatpush2.bf16.msra.mxu0 %v1954
          %2125 = vmatprep.subr.bf16.mxu0 0
          %2126 = vmatpush2.bf16.msra.mxu0 %v1953
          %2127 = vmatprep.subr.bf16.mxu0 0
          %2128 = vmatpush2.bf16.msra.mxu0 %v1952
          %2129 = vmatprep.subr.bf16.mxu0 0
          %2130 = vmatpush2.bf16.msra.mxu0 %v1951
          %2131 = vmatprep.subr.bf16.mxu0 0
          %2132 = vmatpush2.bf16.msra.mxu0 %v1950
          %2133 = vmatprep.subr.bf16.mxu0 0
          %2134 = vmatpush2.bf16.msra.mxu0 %v1949
          %2135 = vmatprep.subr.bf16.mxu0 0
          %2136 = vmatpush2.bf16.msra.mxu0 %v1948
          %2137 = vmatprep.subr.bf16.mxu0 0
          %2138 = vmatpush2.bf16.msra.mxu0 %v1947
          %2139 = vmatprep.mubr.bf16.mxu0 %v1435
          %2140 = vmatmul.mubr.bf16.gmra.mxu0 %v1452
          %v2141 = vpop.f32.mrf.mxu0
          %v2142 = vadd.f32 %v2102, %v2141
          %v2143 = vpop.f32.mrf.mxu0
          %v2144 = vpop.f32.mrf.mxu0
          %v2145 = vpop.f32.mrf.mxu0
          %2146 = vdwg.mxu0
          %2147 = vmatprep.subr.bf16.mxu0 0
          %2148 = vmatpush1.bf16.msra.mxu0 %v1962
          %2149 = vmatprep.subr.bf16.mxu0 0
          %2150 = vmatpush1.bf16.msra.mxu0 %v1961
          %2151 = vmatprep.subr.bf16.mxu0 0
          %2152 = vmatpush1.bf16.msra.mxu0 %v1960
          %2153 = vmatprep.subr.bf16.mxu0 0
          %2154 = vmatpush1.bf16.msra.mxu0 %v1959
          %2155 = vmatprep.subr.bf16.mxu0 0
          %2156 = vmatpush1.bf16.msra.mxu0 %v1958
          %2157 = vmatprep.subr.bf16.mxu0 0
          %2158 = vmatpush1.bf16.msra.mxu0 %v1957
          %2159 = vmatprep.subr.bf16.mxu0 0
          %2160 = vmatpush1.bf16.msra.mxu0 %v1956
          %2161 = vmatprep.subr.bf16.mxu0 0
          %2162 = vmatpush1.bf16.msra.mxu0 %v1955
          %2163 = vmatprep.subr.bf16.mxu0 0
          %2164 = vmatpush2.bf16.msra.mxu0 %v1970
          %2165 = vmatprep.subr.bf16.mxu0 0
          %2166 = vmatpush2.bf16.msra.mxu0 %v1969
          %2167 = vmatprep.subr.bf16.mxu0 0
          %2168 = vmatpush2.bf16.msra.mxu0 %v1968
          %2169 = vmatprep.subr.bf16.mxu0 0
          %2170 = vmatpush2.bf16.msra.mxu0 %v1967
          %2171 = vmatprep.subr.bf16.mxu0 0
          %2172 = vmatpush2.bf16.msra.mxu0 %v1966
          %2173 = vmatprep.subr.bf16.mxu0 0
          %2174 = vmatpush2.bf16.msra.mxu0 %v1965
          %2175 = vmatprep.subr.bf16.mxu0 0
          %2176 = vmatpush2.bf16.msra.mxu0 %v1964
          %2177 = vmatprep.subr.bf16.mxu0 0
          %2178 = vmatpush2.bf16.msra.mxu0 %v1963
          %2179 = vmatprep.mubr.bf16.mxu0 %v1467
          %2180 = vmatmul.mubr.bf16.gmra.mxu0 %v1465
          %v2181 = vpop.f32.mrf.mxu0
          %v2182 = vadd.f32 %v2142, %v2181
          %v2183 = vpop.f32.mrf.mxu0
          %v2184 = vpop.f32.mrf.mxu0
          %v2185 = vpop.f32.mrf.mxu0
          %2186 = vdwg.mxu0
          %2187 = vmatprep.subr.bf16.mxu0 0
          %2188 = vmatpush1.bf16.msra.mxu0 %v1978
          %2189 = vmatprep.subr.bf16.mxu0 0
          %2190 = vmatpush1.bf16.msra.mxu0 %v1977
          %2191 = vmatprep.subr.bf16.mxu0 0
          %2192 = vmatpush1.bf16.msra.mxu0 %v1976
          %2193 = vmatprep.subr.bf16.mxu0 0
          %2194 = vmatpush1.bf16.msra.mxu0 %v1975
          %2195 = vmatprep.subr.bf16.mxu0 0
          %2196 = vmatpush1.bf16.msra.mxu0 %v1974
          %2197 = vmatprep.subr.bf16.mxu0 0
          %2198 = vmatpush1.bf16.msra.mxu0 %v1973
          %2199 = vmatprep.subr.bf16.mxu0 0
          %2200 = vmatpush1.bf16.msra.mxu0 %v1972
          %2201 = vmatprep.subr.bf16.mxu0 0
          %2202 = vmatpush1.bf16.msra.mxu0 %v1971
          %2203 = vmatprep.subr.bf16.mxu0 0
          %2204 = vmatpush2.bf16.msra.mxu0 %v1986
          %2205 = vmatprep.subr.bf16.mxu0 0
          %2206 = vmatpush2.bf16.msra.mxu0 %v1985
          %2207 = vmatprep.subr.bf16.mxu0 0
          %2208 = vmatpush2.bf16.msra.mxu0 %v1984
          %2209 = vmatprep.subr.bf16.mxu0 0
          %2210 = vmatpush2.bf16.msra.mxu0 %v1983
          %2211 = vmatprep.subr.bf16.mxu0 0
          %2212 = vmatpush2.bf16.msra.mxu0 %v1982
          %2213 = vmatprep.subr.bf16.mxu0 0
          %2214 = vmatpush2.bf16.msra.mxu0 %v1981
          %2215 = vmatprep.subr.bf16.mxu0 0
          %2216 = vmatpush2.bf16.msra.mxu0 %v1980
          %2217 = vmatprep.subr.bf16.mxu0 0
          %2218 = vmatpush2.bf16.msra.mxu0 %v1979
          %2219 = vmatprep.mubr.bf16.mxu0 %v1480
          %2220 = vmatmul.mubr.bf16.gmra.mxu0 %v1437
          %v2221 = vpop.f32.mrf.mxu0
          %v2222 = vadd.f32 %v2182, %v2221
          %v2223 = vpop.f32.mrf.mxu0
          %v2224 = vpop.f32.mrf.mxu0
          %v2225 = vpop.f32.mrf.mxu0
          %2226 = vdwg.mxu0
          %2227 = vmatprep.subr.bf16.mxu0 0
          %2228 = vmatpush1.bf16.msra.mxu0 %v1994
          %2229 = vmatprep.subr.bf16.mxu0 0
          %2230 = vmatpush1.bf16.msra.mxu0 %v1993
          %2231 = vmatprep.subr.bf16.mxu0 0
          %2232 = vmatpush1.bf16.msra.mxu0 %v1992
          %2233 = vmatprep.subr.bf16.mxu0 0
          %2234 = vmatpush1.bf16.msra.mxu0 %v1991
          %2235 = vmatprep.subr.bf16.mxu0 0
          %2236 = vmatpush1.bf16.msra.mxu0 %v1990
          %2237 = vmatprep.subr.bf16.mxu0 0
          %2238 = vmatpush1.bf16.msra.mxu0 %v1989
          %2239 = vmatprep.subr.bf16.mxu0 0
          %2240 = vmatpush1.bf16.msra.mxu0 %v1988
          %2241 = vmatprep.subr.bf16.mxu0 0
          %2242 = vmatpush1.bf16.msra.mxu0 %v1987
          %2243 = vmatprep.subr.bf16.mxu0 0
          %2244 = vmatpush2.bf16.msra.mxu0 0
          %2245 = vmatprep.subr.bf16.mxu0 0
          %2246 = vmatpush2.bf16.msra.mxu0 0
          %2247 = vmatprep.subr.bf16.mxu0 0
          %2248 = vmatpush2.bf16.msra.mxu0 0
          %2249 = vmatprep.subr.bf16.mxu0 0
          %2250 = vmatpush2.bf16.msra.mxu0 0
          %2251 = vmatprep.subr.bf16.mxu0 0
          %2252 = vmatpush2.bf16.msra.mxu0 0
          %2253 = vmatprep.subr.bf16.mxu0 0
          %2254 = vmatpush2.bf16.msra.mxu0 0
          %2255 = vmatprep.subr.bf16.mxu0 0
          %2256 = vmatpush2.bf16.msra.mxu0 0
          %2257 = vmatprep.subr.bf16.mxu0 0
          %2258 = vmatpush2.bf16.msra.mxu0 0
          %2259 = vmatprep.mubr.bf16.mxu0 0
          %2260 = vmatmul.mubr.bf16.gmra.mxu0 %v1482
          %v2261 = vpop.f32.mrf.mxu0
          %v2262 = vadd.f32 %v2222, %v2261
          %v2263 = vpop.f32.mrf.mxu0
          %v2264 = vpop.f32.mrf.mxu0
          %v2265 = vpop.f32.mrf.mxu0
          %2266 = vdwg.mxu0
          %v2267 = vmax.f32 %v2262, 0.0
          %v2268 = vpack.c.bf16 %v2267, %v2267
          %v2270 = vunpack.c.l.b16 %v2268
          %v2271 = vpack.c.b16 %v2270, %v2270
          %v2273 = vshrl.u32 %v2271, 16
          %v2275 = vrot.slane %v2273, 7
          %v2276 = vshll.u32 %v2271, 16
          %v2278 = vor.u32 %v2275, %v2276
          %v2279 = vrot.slane %v2275, 4
          %v2282 = vld [vmem:[#allocation2] sm:$0xf]
          %v2283 = vsel %vm1394, %v2278, %v2282
          %2284 = vst [vmem:[#allocation2] sm:$0xf] %v2283
          %v2285 = vld [vmem:[#allocation2 + $0x4] sm:$0x1]
          %v2286 = vsel %vm1400, %v2279, %v2285
          %2287 = vst [vmem:[#allocation2 + $0x4] sm:$0x1] %v2286
        $region44: #{fwd.3} parent=39 // pred_fallthru
          _
        %p2288 = scmp.ge.s32.totalorder %s1423, 0
        %p2289 = scmp.lt.s32.totalorder %s1423, 8
        %p2290 = pnand %p2288, %p2289
        %p2291 = pneg %p2290
        // Predicated region
        $region45: #{fwd.3} parent=39 // pred_check
          _
        $region46: #{fwd.3} parent=39 // pred_check_branch
          %2293 = sbr.rel (%p2290) target = $region48
        $region47: #{fwd.3} parent=39 // pred_region
          %s2294 = smul.u32 %s1423, 2
          %s2295 = smul.addr %s2294, 4
          %s2296 = scalar_lea.vmem %s236, %s2295
          %v2297 = vld [vmem:[%s2296] sm:$0xf]
          %v2298 = vld [vmem:[%s2296 + $0x4] sm:$0x1]
          %s2299 = sadd.s32 %s251, 5
          %s2300 = smul.u32 %s2299, 2
          %s2301 = smul.addr %s2300, 4
          %s2302 = scalar_lea.vmem %s236, %s2301
          %v2303 = vld [vmem:[%s2302] sm:$0xf]
          %v2304 = vld [vmem:[%s2302 + $0x4] sm:$0x1]
          %s2305 = sadd.s32 %s251, 6
          %s2306 = smul.u32 %s2305, 2
          %s2307 = smul.addr %s2306, 4
          %s2308 = scalar_lea.vmem %s236, %s2307
          %v2309 = vld [vmem:[%s2308] sm:$0xf]
          %v2310 = vld [vmem:[%s2308 + $0x4] sm:$0x1]
          %v2313 = vunpack.c.l.b16 %v2297
          %v2314 = vunpack.c.l.b16 %v2298
          %v2315 = vpack.c.b16 %v2314, %v2313
          %v2317 = vshrl.u32 %v2315, 16
          %v2319 = vshll.u32 %v2315, 16
          %v2321 = vrot.slane %v2319, 1
          %v2322 = vor.u32 %v2317, %v2321
          %v2324 = vrot.slane %v2315, 1
          %v2328 = vunpack.c.l.b16 %v2303
          %v2329 = vunpack.c.l.b16 %v2304
          %v2330 = vpack.c.b16 %v2329, %v2328
          %v2332 = vshrl.u32 %v2330, 16
          %v2334 = vshll.u32 %v2330, 16
          %v2336 = vrot.slane %v2334, 1
          %v2337 = vor.u32 %v2332, %v2336
          %v2339 = vrot.slane %v2330, 1
          %v2343 = vunpack.c.l.b16 %v2309
          %v2344 = vunpack.c.l.b16 %v2310
          %v2345 = vpack.c.b16 %v2344, %v2343
          %v2347 = vshrl.u32 %v2345, 16
          %v2349 = vshll.u32 %v2345, 16
          %v2351 = vrot.slane %v2349, 1
          %v2352 = vor.u32 %v2347, %v2351
          %v2354 = vrot.slane %v2345, 1
          %v2356 = vld [vmem:[%s1] sm:$0xf]
          %v2357 = vld [vmem:[%s1 + $0x4] sm:$0xf]
          %v2358 = vld [vmem:[%s1 + $0x8] sm:$0xf]
          %v2359 = vld [vmem:[%s1 + $0xc] sm:$0xf]
          %v2360 = vld [vmem:[%s1 + $0x10] sm:$0xf]
          %v2361 = vld [vmem:[%s1 + $0x14] sm:$0xf]
          %v2362 = vld [vmem:[%s1 + $0x18] sm:$0xf]
          %v2363 = vld [vmem:[%s1 + $0x1c] sm:$0xf]
          %v2364 = vld [vmem:[%s1 + $0x20] sm:$0xf]
          %v2365 = vld [vmem:[%s1 + $0x24] sm:$0xf]
          %v2366 = vld [vmem:[%s1 + $0x28] sm:$0xf]
          %v2367 = vld [vmem:[%s1 + $0x2c] sm:$0xf]
          %v2368 = vld [vmem:[%s1 + $0x30] sm:$0xf]
          %v2369 = vld [vmem:[%s1 + $0x34] sm:$0xf]
          %v2370 = vld [vmem:[%s1 + $0x38] sm:$0xf]
          %v2371 = vld [vmem:[%s1 + $0x3c] sm:$0xf]
          %v2372 = vld [vmem:[%s1 + $0x40] sm:$0xf]
          %v2373 = vld [vmem:[%s1 + $0x44] sm:$0xf]
          %v2374 = vld [vmem:[%s1 + $0x48] sm:$0xf]
          %v2375 = vld [vmem:[%s1 + $0x4c] sm:$0xf]
          %v2376 = vld [vmem:[%s1 + $0x50] sm:$0xf]
          %v2377 = vld [vmem:[%s1 + $0x54] sm:$0xf]
          %v2378 = vld [vmem:[%s1 + $0x58] sm:$0xf]
          %v2379 = vld [vmem:[%s1 + $0x5c] sm:$0xf]
          %v2380 = vld [vmem:[%s1 + $0x60] sm:$0xf]
          %v2381 = vld [vmem:[%s1 + $0x64] sm:$0xf]
          %v2382 = vld [vmem:[%s1 + $0x68] sm:$0xf]
          %v2383 = vld [vmem:[%s1 + $0x6c] sm:$0xf]
          %v2384 = vld [vmem:[%s1 + $0x70] sm:$0xf]
          %v2385 = vld [vmem:[%s1 + $0x74] sm:$0xf]
          %v2386 = vld [vmem:[%s1 + $0x78] sm:$0xf]
          %v2387 = vld [vmem:[%s1 + $0x7c] sm:$0xf]
          %v2388 = vld [vmem:[%s1 + $0x80] sm:$0xf]
          %v2389 = vld [vmem:[%s1 + $0x84] sm:$0xf]
          %v2390 = vld [vmem:[%s1 + $0x88] sm:$0xf]
          %v2391 = vld [vmem:[%s1 + $0x8c] sm:$0xf]
          %v2392 = vld [vmem:[%s1 + $0x90] sm:$0xf]
          %v2393 = vld [vmem:[%s1 + $0x94] sm:$0xf]
          %v2394 = vld [vmem:[%s1 + $0x98] sm:$0xf]
          %v2395 = vld [vmem:[%s1 + $0x9c] sm:$0xf]
          %v2396 = vld [vmem:[%s1 + $0xa0] sm:$0xf]
          %v2397 = vld [vmem:[%s1 + $0xa4] sm:$0xf]
          %v2398 = vld [vmem:[%s1 + $0xa8] sm:$0xf]
          %v2399 = vld [vmem:[%s1 + $0xac] sm:$0xf]
          %v2400 = vld [vmem:[%s1 + $0xb0] sm:$0xf]
          %v2401 = vld [vmem:[%s1 + $0xb4] sm:$0xf]
          %v2402 = vld [vmem:[%s1 + $0xb8] sm:$0xf]
          %v2403 = vld [vmem:[%s1 + $0xbc] sm:$0xf]
          %v2404 = vld [vmem:[%s1 + $0xc0] sm:$0xf]
          %v2405 = vld [vmem:[%s1 + $0xc4] sm:$0xf]
          %v2406 = vld [vmem:[%s1 + $0xc8] sm:$0xf]
          %v2407 = vld [vmem:[%s1 + $0xcc] sm:$0xf]
          %v2408 = vld [vmem:[%s1 + $0xd0] sm:$0xf]
          %v2409 = vld [vmem:[%s1 + $0xd4] sm:$0xf]
          %v2410 = vld [vmem:[%s1 + $0xd8] sm:$0xf]
          %v2411 = vld [vmem:[%s1 + $0xdc] sm:$0xf]
          %v2412 = vld [vmem:[%s1 + $0xe0] sm:$0xf]
          %v2413 = vld [vmem:[%s1 + $0xe4] sm:$0xf]
          %v2414 = vld [vmem:[%s1 + $0xe8] sm:$0xf]
          %v2415 = vld [vmem:[%s1 + $0xec] sm:$0xf]
          %v2416 = vld [vmem:[%s1 + $0xf0] sm:$0xf]
          %v2417 = vld [vmem:[%s1 + $0xf4] sm:$0xf]
          %v2418 = vld [vmem:[%s1 + $0xf8] sm:$0xf]
          %v2419 = vld [vmem:[%s1 + $0xfc] sm:$0xf]
          %v2420 = vld [vmem:[%s1 + $0x100] sm:$0xf]
          %v2421 = vld [vmem:[%s1 + $0x104] sm:$0xf]
          %v2422 = vld [vmem:[%s1 + $0x108] sm:$0xf]
          %v2423 = vld [vmem:[%s1 + $0x10c] sm:$0xf]
          %v2424 = vld [vmem:[%s1 + $0x110] sm:$0xf]
          %v2425 = vld [vmem:[%s1 + $0x114] sm:$0xf]
          %v2426 = vld [vmem:[%s1 + $0x118] sm:$0xf]
          %v2427 = vld [vmem:[%s1 + $0x11c] sm:$0xf]
          %v2428 = vld [vmem:[%s1 + $0x120] sm:$0xf]
          %v2429 = vld [vmem:[%s1 + $0x124] sm:$0xf]
          %v2430 = vld [vmem:[%s1 + $0x128] sm:$0xf]
          %v2431 = vld [vmem:[%s1 + $0x12c] sm:$0xf]
          %v2432 = vld [vmem:[%s1 + $0x130] sm:$0xf]
          %v2433 = vld [vmem:[%s1 + $0x134] sm:$0xf]
          %v2434 = vld [vmem:[%s1 + $0x138] sm:$0xf]
          %v2435 = vld [vmem:[%s1 + $0x13c] sm:$0xf]
          %v2436 = vld [vmem:[%s1 + $0x140] sm:$0xf]
          %v2437 = vld [vmem:[%s1 + $0x144] sm:$0xf]
          %v2438 = vld [vmem:[%s1 + $0x148] sm:$0xf]
          %v2439 = vld [vmem:[%s1 + $0x14c] sm:$0xf]
          %v2440 = vld [vmem:[%s1 + $0x150] sm:$0xf]
          %v2441 = vld [vmem:[%s1 + $0x154] sm:$0xf]
          %v2442 = vld [vmem:[%s1 + $0x158] sm:$0xf]
          %v2443 = vld [vmem:[%s1 + $0x15c] sm:$0xf]
          %v2444 = vld [vmem:[%s1 + $0x160] sm:$0xf]
          %v2445 = vld [vmem:[%s1 + $0x164] sm:$0xf]
          %v2446 = vld [vmem:[%s1 + $0x168] sm:$0xf]
          %v2447 = vld [vmem:[%s1 + $0x16c] sm:$0xf]
          %v2448 = vld [vmem:[%s1 + $0x170] sm:$0xf]
          %v2449 = vld [vmem:[%s1 + $0x174] sm:$0xf]
          %v2450 = vld [vmem:[%s1 + $0x178] sm:$0xf]
          %v2451 = vld [vmem:[%s1 + $0x17c] sm:$0xf]
          %v2452 = vld [vmem:[%s1 + $0x180] sm:$0xf]
          %v2453 = vld [vmem:[%s1 + $0x184] sm:$0xf]
          %v2454 = vld [vmem:[%s1 + $0x188] sm:$0xf]
          %v2455 = vld [vmem:[%s1 + $0x18c] sm:$0xf]
          %v2456 = vld [vmem:[%s1 + $0x190] sm:$0xf]
          %v2457 = vld [vmem:[%s1 + $0x194] sm:$0xf]
          %v2458 = vld [vmem:[%s1 + $0x198] sm:$0xf]
          %v2459 = vld [vmem:[%s1 + $0x19c] sm:$0xf]
          %v2460 = vld [vmem:[%s1 + $0x1a0] sm:$0xf]
          %v2461 = vld [vmem:[%s1 + $0x1a4] sm:$0xf]
          %v2462 = vld [vmem:[%s1 + $0x1a8] sm:$0xf]
          %v2463 = vld [vmem:[%s1 + $0x1ac] sm:$0xf]
          %v2464 = vld [vmem:[%s1 + $0x1b0] sm:$0xf]
          %v2465 = vld [vmem:[%s1 + $0x1b4] sm:$0xf]
          %v2466 = vld [vmem:[%s1 + $0x1b8] sm:$0xf]
          %v2467 = vld [vmem:[%s1 + $0x1bc] sm:$0xf]
          %v2468 = vld [vmem:[%s1 + $0x1c0] sm:$0xf]
          %v2469 = vld [vmem:[%s1 + $0x1c4] sm:$0xf]
          %v2470 = vld [vmem:[%s1 + $0x1c8] sm:$0xf]
          %v2471 = vld [vmem:[%s1 + $0x1cc] sm:$0xf]
          %v2472 = vld [vmem:[%s1 + $0x1d0] sm:$0xf]
          %v2473 = vld [vmem:[%s1 + $0x1d4] sm:$0xf]
          %v2474 = vld [vmem:[%s1 + $0x1d8] sm:$0xf]
          %v2475 = vld [vmem:[%s1 + $0x1dc] sm:$0xf]
          %v2476 = vld [vmem:[%s1 + $0x1e0] sm:$0xf]
          %v2477 = vld [vmem:[%s1 + $0x1e4] sm:$0xf]
          %v2478 = vld [vmem:[%s1 + $0x1e8] sm:$0xf]
          %v2479 = vld [vmem:[%s1 + $0x1ec] sm:$0xf]
          %v2480 = vld [vmem:[%s1 + $0x1f0] sm:$0xf]
          %v2481 = vld [vmem:[%s1 + $0x1f4] sm:$0xf]
          %v2482 = vld [vmem:[%s1 + $0x1f8] sm:$0xf]
          %v2483 = vld [vmem:[%s1 + $0x1fc] sm:$0xf]
          %v2484 = vld [vmem:[%s1 + $0x200] sm:$0xf]
          %v2485 = vld [vmem:[%s1 + $0x204] sm:$0xf]
          %v2486 = vld [vmem:[%s1 + $0x208] sm:$0xf]
          %v2487 = vld [vmem:[%s1 + $0x20c] sm:$0xf]
          %v2488 = vld [vmem:[%s1 + $0x210] sm:$0xf]
          %v2489 = vld [vmem:[%s1 + $0x214] sm:$0xf]
          %v2490 = vld [vmem:[%s1 + $0x218] sm:$0xf]
          %v2491 = vld [vmem:[%s1 + $0x21c] sm:$0xf]
          %v2492 = vld [vmem:[%s1 + $0x220] sm:$0xf]
          %v2493 = vld [vmem:[%s1 + $0x224] sm:$0xf]
          %v2494 = vld [vmem:[%s1 + $0x228] sm:$0xf]
          %v2495 = vld [vmem:[%s1 + $0x22c] sm:$0xf]
          %v2496 = vld [vmem:[%s1 + $0x230] sm:$0xf]
          %v2497 = vld [vmem:[%s1 + $0x234] sm:$0xf]
          %v2498 = vld [vmem:[%s1 + $0x238] sm:$0xf]
          %v2499 = vld [vmem:[%s1 + $0x23c] sm:$0xf]
          %v2500 = vld [vmem:[%s2] sm:$0x1]
          %v2502 = vlaneseq
          %v2503 = vshrl.u32 %v2502, 7
          %v2504 = vsub.s32 0, %v2503
          %v2505 = vrot.slane %v2500, %v2504
          %v2651 = vunpack.c.l.b16 %v2356
          %v2652 = vunpack.c.l.b16 %v2357
          %v2653 = vunpack.c.l.b16 %v2358
          %v2654 = vunpack.c.l.b16 %v2359
          %v2655 = vunpack.c.l.b16 %v2360
          %v2656 = vunpack.c.l.b16 %v2361
          %v2657 = vunpack.c.l.b16 %v2362
          %v2658 = vunpack.c.l.b16 %v2363
          %v2659 = vunpack.c.l.b16 %v2364
          %v2660 = vunpack.c.l.b16 %v2365
          %v2661 = vunpack.c.l.b16 %v2366
          %v2662 = vunpack.c.l.b16 %v2367
          %v2663 = vunpack.c.l.b16 %v2368
          %v2664 = vunpack.c.l.b16 %v2369
          %v2665 = vunpack.c.l.b16 %v2370
          %v2666 = vunpack.c.l.b16 %v2371
          %v2667 = vunpack.c.l.b16 %v2372
          %v2668 = vunpack.c.l.b16 %v2373
          %v2669 = vunpack.c.l.b16 %v2374
          %v2670 = vunpack.c.l.b16 %v2375
          %v2671 = vunpack.c.l.b16 %v2376
          %v2672 = vunpack.c.l.b16 %v2377
          %v2673 = vunpack.c.l.b16 %v2378
          %v2674 = vunpack.c.l.b16 %v2379
          %v2675 = vunpack.c.l.b16 %v2380
          %v2676 = vunpack.c.l.b16 %v2381
          %v2677 = vunpack.c.l.b16 %v2382
          %v2678 = vunpack.c.l.b16 %v2383
          %v2679 = vunpack.c.l.b16 %v2384
          %v2680 = vunpack.c.l.b16 %v2385
          %v2681 = vunpack.c.l.b16 %v2386
          %v2682 = vunpack.c.l.b16 %v2387
          %v2683 = vunpack.c.l.b16 %v2388
          %v2684 = vunpack.c.l.b16 %v2389
          %v2685 = vunpack.c.l.b16 %v2390
          %v2686 = vunpack.c.l.b16 %v2391
          %v2687 = vunpack.c.l.b16 %v2392
          %v2688 = vunpack.c.l.b16 %v2393
          %v2689 = vunpack.c.l.b16 %v2394
          %v2690 = vunpack.c.l.b16 %v2395
          %v2691 = vunpack.c.l.b16 %v2396
          %v2692 = vunpack.c.l.b16 %v2397
          %v2693 = vunpack.c.l.b16 %v2398
          %v2694 = vunpack.c.l.b16 %v2399
          %v2695 = vunpack.c.l.b16 %v2400
          %v2696 = vunpack.c.l.b16 %v2401
          %v2697 = vunpack.c.l.b16 %v2402
          %v2698 = vunpack.c.l.b16 %v2403
          %v2699 = vunpack.c.l.b16 %v2404
          %v2700 = vunpack.c.l.b16 %v2405
          %v2701 = vunpack.c.l.b16 %v2406
          %v2702 = vunpack.c.l.b16 %v2407
          %v2703 = vunpack.c.l.b16 %v2408
          %v2704 = vunpack.c.l.b16 %v2409
          %v2705 = vunpack.c.l.b16 %v2410
          %v2706 = vunpack.c.l.b16 %v2411
          %v2707 = vunpack.c.l.b16 %v2412
          %v2708 = vunpack.c.l.b16 %v2413
          %v2709 = vunpack.c.l.b16 %v2414
          %v2710 = vunpack.c.l.b16 %v2415
          %v2711 = vunpack.c.l.b16 %v2416
          %v2712 = vunpack.c.l.b16 %v2417
          %v2713 = vunpack.c.l.b16 %v2418
          %v2714 = vunpack.c.l.b16 %v2419
          %v2715 = vunpack.c.l.b16 %v2420
          %v2716 = vunpack.c.l.b16 %v2421
          %v2717 = vunpack.c.l.b16 %v2422
          %v2718 = vunpack.c.l.b16 %v2423
          %v2719 = vunpack.c.l.b16 %v2424
          %v2720 = vunpack.c.l.b16 %v2425
          %v2721 = vunpack.c.l.b16 %v2426
          %v2722 = vunpack.c.l.b16 %v2427
          %v2723 = vunpack.c.l.b16 %v2428
          %v2724 = vunpack.c.l.b16 %v2429
          %v2725 = vunpack.c.l.b16 %v2430
          %v2726 = vunpack.c.l.b16 %v2431
          %v2727 = vunpack.c.l.b16 %v2432
          %v2728 = vunpack.c.l.b16 %v2433
          %v2729 = vunpack.c.l.b16 %v2434
          %v2730 = vunpack.c.l.b16 %v2435
          %v2731 = vunpack.c.l.b16 %v2436
          %v2732 = vunpack.c.l.b16 %v2437
          %v2733 = vunpack.c.l.b16 %v2438
          %v2734 = vunpack.c.l.b16 %v2439
          %v2735 = vunpack.c.l.b16 %v2440
          %v2736 = vunpack.c.l.b16 %v2441
          %v2737 = vunpack.c.l.b16 %v2442
          %v2738 = vunpack.c.l.b16 %v2443
          %v2739 = vunpack.c.l.b16 %v2444
          %v2740 = vunpack.c.l.b16 %v2445
          %v2741 = vunpack.c.l.b16 %v2446
          %v2742 = vunpack.c.l.b16 %v2447
          %v2743 = vunpack.c.l.b16 %v2448
          %v2744 = vunpack.c.l.b16 %v2449
          %v2745 = vunpack.c.l.b16 %v2450
          %v2746 = vunpack.c.l.b16 %v2451
          %v2747 = vunpack.c.l.b16 %v2452
          %v2748 = vunpack.c.l.b16 %v2453
          %v2749 = vunpack.c.l.b16 %v2454
          %v2750 = vunpack.c.l.b16 %v2455
          %v2751 = vunpack.c.l.b16 %v2456
          %v2752 = vunpack.c.l.b16 %v2457
          %v2753 = vunpack.c.l.b16 %v2458
          %v2754 = vunpack.c.l.b16 %v2459
          %v2755 = vunpack.c.l.b16 %v2460
          %v2756 = vunpack.c.l.b16 %v2461
          %v2757 = vunpack.c.l.b16 %v2462
          %v2758 = vunpack.c.l.b16 %v2463
          %v2759 = vunpack.c.l.b16 %v2464
          %v2760 = vunpack.c.l.b16 %v2465
          %v2761 = vunpack.c.l.b16 %v2466
          %v2762 = vunpack.c.l.b16 %v2467
          %v2763 = vunpack.c.l.b16 %v2468
          %v2764 = vunpack.c.l.b16 %v2469
          %v2765 = vunpack.c.l.b16 %v2470
          %v2766 = vunpack.c.l.b16 %v2471
          %v2767 = vunpack.c.l.b16 %v2472
          %v2768 = vunpack.c.l.b16 %v2473
          %v2769 = vunpack.c.l.b16 %v2474
          %v2770 = vunpack.c.l.b16 %v2475
          %v2771 = vunpack.c.l.b16 %v2476
          %v2772 = vunpack.c.l.b16 %v2477
          %v2773 = vunpack.c.l.b16 %v2478
          %v2774 = vunpack.c.l.b16 %v2479
          %v2775 = vunpack.c.l.b16 %v2480
          %v2776 = vunpack.c.l.b16 %v2481
          %v2777 = vunpack.c.l.b16 %v2482
          %v2778 = vunpack.c.l.b16 %v2483
          %v2779 = vunpack.c.l.b16 %v2484
          %v2780 = vunpack.c.l.b16 %v2485
          %v2781 = vunpack.c.l.b16 %v2486
          %v2782 = vunpack.c.l.b16 %v2487
          %v2783 = vunpack.c.l.b16 %v2488
          %v2784 = vunpack.c.l.b16 %v2489
          %v2785 = vunpack.c.l.b16 %v2490
          %v2786 = vunpack.c.l.b16 %v2491
          %v2787 = vunpack.c.l.b16 %v2492
          %v2788 = vunpack.c.l.b16 %v2493
          %v2789 = vunpack.c.l.b16 %v2494
          %v2790 = vunpack.c.l.b16 %v2495
          %v2791 = vunpack.c.l.b16 %v2496
          %v2792 = vunpack.c.l.b16 %v2497
          %v2793 = vunpack.c.l.b16 %v2498
          %v2794 = vunpack.c.l.b16 %v2499
          %v2795 = vpack.c.b16 %v2652, %v2651
          %v2796 = vpack.c.b16 %v2654, %v2653
          %v2797 = vpack.c.b16 %v2656, %v2655
          %v2798 = vpack.c.b16 %v2658, %v2657
          %v2799 = vpack.c.b16 %v2660, %v2659
          %v2800 = vpack.c.b16 %v2662, %v2661
          %v2801 = vpack.c.b16 %v2664, %v2663
          %v2802 = vpack.c.b16 %v2666, %v2665
          %v2803 = vpack.c.b16 %v2668, %v2667
          %v2804 = vpack.c.b16 %v2670, %v2669
          %v2805 = vpack.c.b16 %v2672, %v2671
          %v2806 = vpack.c.b16 %v2674, %v2673
          %v2807 = vpack.c.b16 %v2676, %v2675
          %v2808 = vpack.c.b16 %v2678, %v2677
          %v2809 = vpack.c.b16 %v2680, %v2679
          %v2810 = vpack.c.b16 %v2682, %v2681
          %v2811 = vpack.c.b16 %v2684, %v2683
          %v2812 = vpack.c.b16 %v2686, %v2685
          %v2813 = vpack.c.b16 %v2688, %v2687
          %v2814 = vpack.c.b16 %v2690, %v2689
          %v2815 = vpack.c.b16 %v2692, %v2691
          %v2816 = vpack.c.b16 %v2694, %v2693
          %v2817 = vpack.c.b16 %v2696, %v2695
          %v2818 = vpack.c.b16 %v2698, %v2697
          %v2819 = vpack.c.b16 %v2700, %v2699
          %v2820 = vpack.c.b16 %v2702, %v2701
          %v2821 = vpack.c.b16 %v2704, %v2703
          %v2822 = vpack.c.b16 %v2706, %v2705
          %v2823 = vpack.c.b16 %v2708, %v2707
          %v2824 = vpack.c.b16 %v2710, %v2709
          %v2825 = vpack.c.b16 %v2712, %v2711
          %v2826 = vpack.c.b16 %v2714, %v2713
          %v2827 = vpack.c.b16 %v2716, %v2715
          %v2828 = vpack.c.b16 %v2718, %v2717
          %v2829 = vpack.c.b16 %v2720, %v2719
          %v2830 = vpack.c.b16 %v2722, %v2721
          %v2831 = vpack.c.b16 %v2724, %v2723
          %v2832 = vpack.c.b16 %v2726, %v2725
          %v2833 = vpack.c.b16 %v2728, %v2727
          %v2834 = vpack.c.b16 %v2730, %v2729
          %v2835 = vpack.c.b16 %v2732, %v2731
          %v2836 = vpack.c.b16 %v2734, %v2733
          %v2837 = vpack.c.b16 %v2736, %v2735
          %v2838 = vpack.c.b16 %v2738, %v2737
          %v2839 = vpack.c.b16 %v2740, %v2739
          %v2840 = vpack.c.b16 %v2742, %v2741
          %v2841 = vpack.c.b16 %v2744, %v2743
          %v2842 = vpack.c.b16 %v2746, %v2745
          %v2843 = vpack.c.b16 %v2748, %v2747
          %v2844 = vpack.c.b16 %v2750, %v2749
          %v2845 = vpack.c.b16 %v2752, %v2751
          %v2846 = vpack.c.b16 %v2754, %v2753
          %v2847 = vpack.c.b16 %v2756, %v2755
          %v2848 = vpack.c.b16 %v2758, %v2757
          %v2849 = vpack.c.b16 %v2760, %v2759
          %v2850 = vpack.c.b16 %v2762, %v2761
          %v2851 = vpack.c.b16 %v2764, %v2763
          %v2852 = vpack.c.b16 %v2766, %v2765
          %v2853 = vpack.c.b16 %v2768, %v2767
          %v2854 = vpack.c.b16 %v2770, %v2769
          %v2855 = vpack.c.b16 %v2772, %v2771
          %v2856 = vpack.c.b16 %v2774, %v2773
          %v2857 = vpack.c.b16 %v2776, %v2775
          %v2858 = vpack.c.b16 %v2778, %v2777
          %v2859 = vpack.c.b16 %v2780, %v2779
          %v2860 = vpack.c.b16 %v2782, %v2781
          %v2861 = vpack.c.b16 %v2784, %v2783
          %v2862 = vpack.c.b16 %v2786, %v2785
          %v2863 = vpack.c.b16 %v2788, %v2787
          %v2864 = vpack.c.b16 %v2790, %v2789
          %v2865 = vpack.c.b16 %v2792, %v2791
          %v2866 = vpack.c.b16 %v2794, %v2793
          %2939 = vmatprep.subr.bf16.mxu0 0
          %2940 = vmatpush1.bf16.msra.mxu0 %v2802
          %2941 = vmatprep.subr.bf16.mxu0 0
          %2942 = vmatpush1.bf16.msra.mxu0 %v2801
          %2943 = vmatprep.subr.bf16.mxu0 0
          %2944 = vmatpush1.bf16.msra.mxu0 %v2800
          %2945 = vmatprep.subr.bf16.mxu0 0
          %2946 = vmatpush1.bf16.msra.mxu0 %v2799
          %2947 = vmatprep.subr.bf16.mxu0 0
          %2948 = vmatpush1.bf16.msra.mxu0 %v2798
          %2949 = vmatprep.subr.bf16.mxu0 0
          %2950 = vmatpush1.bf16.msra.mxu0 %v2797
          %2951 = vmatprep.subr.bf16.mxu0 0
          %2952 = vmatpush1.bf16.msra.mxu0 %v2796
          %2953 = vmatprep.subr.bf16.mxu0 0
          %2954 = vmatpush1.bf16.msra.mxu0 %v2795
          %2955 = vmatprep.subr.bf16.mxu0 0
          %2956 = vmatpush2.bf16.msra.mxu0 %v2810
          %2957 = vmatprep.subr.bf16.mxu0 0
          %2958 = vmatpush2.bf16.msra.mxu0 %v2809
          %2959 = vmatprep.subr.bf16.mxu0 0
          %2960 = vmatpush2.bf16.msra.mxu0 %v2808
          %2961 = vmatprep.subr.bf16.mxu0 0
          %2962 = vmatpush2.bf16.msra.mxu0 %v2807
          %2963 = vmatprep.subr.bf16.mxu0 0
          %2964 = vmatpush2.bf16.msra.mxu0 %v2806
          %2965 = vmatprep.subr.bf16.mxu0 0
          %2966 = vmatpush2.bf16.msra.mxu0 %v2805
          %2967 = vmatprep.subr.bf16.mxu0 0
          %2968 = vmatpush2.bf16.msra.mxu0 %v2804
          %2969 = vmatprep.subr.bf16.mxu0 0
          %2970 = vmatpush2.bf16.msra.mxu0 %v2803
          %2971 = vmatprep.mubr.bf16.mxu0 %v2322
          %2972 = vmatmul.mubr.bf16.gmra.mxu0 %v2297
          %v2973 = vpop.f32.mrf.mxu0
          %v2974 = vadd.f32 %v2505, %v2973
          %v2975 = vpop.f32.mrf.mxu0
          %v2976 = vpop.f32.mrf.mxu0
          %v2977 = vpop.f32.mrf.mxu0
          %2978 = vdwg.mxu0
          %2979 = vmatprep.subr.bf16.mxu0 0
          %2980 = vmatpush1.bf16.msra.mxu0 %v2818
          %2981 = vmatprep.subr.bf16.mxu0 0
          %2982 = vmatpush1.bf16.msra.mxu0 %v2817
          %2983 = vmatprep.subr.bf16.mxu0 0
          %2984 = vmatpush1.bf16.msra.mxu0 %v2816
          %2985 = vmatprep.subr.bf16.mxu0 0
          %2986 = vmatpush1.bf16.msra.mxu0 %v2815
          %2987 = vmatprep.subr.bf16.mxu0 0
          %2988 = vmatpush1.bf16.msra.mxu0 %v2814
          %2989 = vmatprep.subr.bf16.mxu0 0
          %2990 = vmatpush1.bf16.msra.mxu0 %v2813
          %2991 = vmatprep.subr.bf16.mxu0 0
          %2992 = vmatpush1.bf16.msra.mxu0 %v2812
          %2993 = vmatprep.subr.bf16.mxu0 0
          %2994 = vmatpush1.bf16.msra.mxu0 %v2811
          %2995 = vmatprep.subr.bf16.mxu0 0
          %2996 = vmatpush2.bf16.msra.mxu0 %v2826
          %2997 = vmatprep.subr.bf16.mxu0 0
          %2998 = vmatpush2.bf16.msra.mxu0 %v2825
          %2999 = vmatprep.subr.bf16.mxu0 0
          %3000 = vmatpush2.bf16.msra.mxu0 %v2824
          %3001 = vmatprep.subr.bf16.mxu0 0
          %3002 = vmatpush2.bf16.msra.mxu0 %v2823
          %3003 = vmatprep.subr.bf16.mxu0 0
          %3004 = vmatpush2.bf16.msra.mxu0 %v2822
          %3005 = vmatprep.subr.bf16.mxu0 0
          %3006 = vmatpush2.bf16.msra.mxu0 %v2821
          %3007 = vmatprep.subr.bf16.mxu0 0
          %3008 = vmatpush2.bf16.msra.mxu0 %v2820
          %3009 = vmatprep.subr.bf16.mxu0 0
          %3010 = vmatpush2.bf16.msra.mxu0 %v2819
          %3011 = vmatprep.mubr.bf16.mxu0 %v2303
          %3012 = vmatmul.mubr.bf16.gmra.mxu0 %v2324
          %v3013 = vpop.f32.mrf.mxu0
          %v3014 = vadd.f32 %v2974, %v3013
          %v3015 = vpop.f32.mrf.mxu0
          %v3016 = vpop.f32.mrf.mxu0
          %v3017 = vpop.f32.mrf.mxu0
          %3018 = vdwg.mxu0
          %3019 = vmatprep.subr.bf16.mxu0 0
          %3020 = vmatpush1.bf16.msra.mxu0 %v2834
          %3021 = vmatprep.subr.bf16.mxu0 0
          %3022 = vmatpush1.bf16.msra.mxu0 %v2833
          %3023 = vmatprep.subr.bf16.mxu0 0
          %3024 = vmatpush1.bf16.msra.mxu0 %v2832
          %3025 = vmatprep.subr.bf16.mxu0 0
          %3026 = vmatpush1.bf16.msra.mxu0 %v2831
          %3027 = vmatprep.subr.bf16.mxu0 0
          %3028 = vmatpush1.bf16.msra.mxu0 %v2830
          %3029 = vmatprep.subr.bf16.mxu0 0
          %3030 = vmatpush1.bf16.msra.mxu0 %v2829
          %3031 = vmatprep.subr.bf16.mxu0 0
          %3032 = vmatpush1.bf16.msra.mxu0 %v2828
          %3033 = vmatprep.subr.bf16.mxu0 0
          %3034 = vmatpush1.bf16.msra.mxu0 %v2827
          %3035 = vmatprep.subr.bf16.mxu0 0
          %3036 = vmatpush2.bf16.msra.mxu0 %v2842
          %3037 = vmatprep.subr.bf16.mxu0 0
          %3038 = vmatpush2.bf16.msra.mxu0 %v2841
          %3039 = vmatprep.subr.bf16.mxu0 0
          %3040 = vmatpush2.bf16.msra.mxu0 %v2840
          %3041 = vmatprep.subr.bf16.mxu0 0
          %3042 = vmatpush2.bf16.msra.mxu0 %v2839
          %3043 = vmatprep.subr.bf16.mxu0 0
          %3044 = vmatpush2.bf16.msra.mxu0 %v2838
          %3045 = vmatprep.subr.bf16.mxu0 0
          %3046 = vmatpush2.bf16.msra.mxu0 %v2837
          %3047 = vmatprep.subr.bf16.mxu0 0
          %3048 = vmatpush2.bf16.msra.mxu0 %v2836
          %3049 = vmatprep.subr.bf16.mxu0 0
          %3050 = vmatpush2.bf16.msra.mxu0 %v2835
          %3051 = vmatprep.mubr.bf16.mxu0 %v2339
          %3052 = vmatmul.mubr.bf16.gmra.mxu0 %v2337
          %v3053 = vpop.f32.mrf.mxu0
          %v3054 = vadd.f32 %v3014, %v3053
          %v3055 = vpop.f32.mrf.mxu0
          %v3056 = vpop.f32.mrf.mxu0
          %v3057 = vpop.f32.mrf.mxu0
          %3058 = vdwg.mxu0
          %3059 = vmatprep.subr.bf16.mxu0 0
          %3060 = vmatpush1.bf16.msra.mxu0 %v2850
          %3061 = vmatprep.subr.bf16.mxu0 0
          %3062 = vmatpush1.bf16.msra.mxu0 %v2849
          %3063 = vmatprep.subr.bf16.mxu0 0
          %3064 = vmatpush1.bf16.msra.mxu0 %v2848
          %3065 = vmatprep.subr.bf16.mxu0 0
          %3066 = vmatpush1.bf16.msra.mxu0 %v2847
          %3067 = vmatprep.subr.bf16.mxu0 0
          %3068 = vmatpush1.bf16.msra.mxu0 %v2846
          %3069 = vmatprep.subr.bf16.mxu0 0
          %3070 = vmatpush1.bf16.msra.mxu0 %v2845
          %3071 = vmatprep.subr.bf16.mxu0 0
          %3072 = vmatpush1.bf16.msra.mxu0 %v2844
          %3073 = vmatprep.subr.bf16.mxu0 0
          %3074 = vmatpush1.bf16.msra.mxu0 %v2843
          %3075 = vmatprep.subr.bf16.mxu0 0
          %3076 = vmatpush2.bf16.msra.mxu0 %v2858
          %3077 = vmatprep.subr.bf16.mxu0 0
          %3078 = vmatpush2.bf16.msra.mxu0 %v2857
          %3079 = vmatprep.subr.bf16.mxu0 0
          %3080 = vmatpush2.bf16.msra.mxu0 %v2856
          %3081 = vmatprep.subr.bf16.mxu0 0
          %3082 = vmatpush2.bf16.msra.mxu0 %v2855
          %3083 = vmatprep.subr.bf16.mxu0 0
          %3084 = vmatpush2.bf16.msra.mxu0 %v2854
          %3085 = vmatprep.subr.bf16.mxu0 0
          %3086 = vmatpush2.bf16.msra.mxu0 %v2853
          %3087 = vmatprep.subr.bf16.mxu0 0
          %3088 = vmatpush2.bf16.msra.mxu0 %v2852
          %3089 = vmatprep.subr.bf16.mxu0 0
          %3090 = vmatpush2.bf16.msra.mxu0 %v2851
          %3091 = vmatprep.mubr.bf16.mxu0 %v2352
          %3092 = vmatmul.mubr.bf16.gmra.mxu0 %v2309
          %v3093 = vpop.f32.mrf.mxu0
          %v3094 = vadd.f32 %v3054, %v3093
          %v3095 = vpop.f32.mrf.mxu0
          %v3096 = vpop.f32.mrf.mxu0
          %v3097 = vpop.f32.mrf.mxu0
          %3098 = vdwg.mxu0
          %3099 = vmatprep.subr.bf16.mxu0 0
          %3100 = vmatpush1.bf16.msra.mxu0 %v2866
          %3101 = vmatprep.subr.bf16.mxu0 0
          %3102 = vmatpush1.bf16.msra.mxu0 %v2865
          %3103 = vmatprep.subr.bf16.mxu0 0
          %3104 = vmatpush1.bf16.msra.mxu0 %v2864
          %3105 = vmatprep.subr.bf16.mxu0 0
          %3106 = vmatpush1.bf16.msra.mxu0 %v2863
          %3107 = vmatprep.subr.bf16.mxu0 0
          %3108 = vmatpush1.bf16.msra.mxu0 %v2862
          %3109 = vmatprep.subr.bf16.mxu0 0
          %3110 = vmatpush1.bf16.msra.mxu0 %v2861
          %3111 = vmatprep.subr.bf16.mxu0 0
          %3112 = vmatpush1.bf16.msra.mxu0 %v2860
          %3113 = vmatprep.subr.bf16.mxu0 0
          %3114 = vmatpush1.bf16.msra.mxu0 %v2859
          %3115 = vmatprep.subr.bf16.mxu0 0
          %3116 = vmatpush2.bf16.msra.mxu0 0
          %3117 = vmatprep.subr.bf16.mxu0 0
          %3118 = vmatpush2.bf16.msra.mxu0 0
          %3119 = vmatprep.subr.bf16.mxu0 0
          %3120 = vmatpush2.bf16.msra.mxu0 0
          %3121 = vmatprep.subr.bf16.mxu0 0
          %3122 = vmatpush2.bf16.msra.mxu0 0
          %3123 = vmatprep.subr.bf16.mxu0 0
          %3124 = vmatpush2.bf16.msra.mxu0 0
          %3125 = vmatprep.subr.bf16.mxu0 0
          %3126 = vmatpush2.bf16.msra.mxu0 0
          %3127 = vmatprep.subr.bf16.mxu0 0
          %3128 = vmatpush2.bf16.msra.mxu0 0
          %3129 = vmatprep.subr.bf16.mxu0 0
          %3130 = vmatpush2.bf16.msra.mxu0 0
          %3131 = vmatprep.mubr.bf16.mxu0 0
          %3132 = vmatmul.mubr.bf16.gmra.mxu0 %v2354
          %v3133 = vpop.f32.mrf.mxu0
          %v3134 = vadd.f32 %v3094, %v3133
          %v3135 = vpop.f32.mrf.mxu0
          %v3136 = vpop.f32.mrf.mxu0
          %v3137 = vpop.f32.mrf.mxu0
          %3138 = vdwg.mxu0
          %v3139 = vmax.f32 %v3134, 0.0
          %v3140 = vpack.c.bf16 %v3139, %v3139
          %v3142 = vunpack.c.l.b16 %v3140
          %v3143 = vpack.c.b16 %v3142, %v3142
          %v3145 = vshrl.u32 %v3143, 16
          %v3147 = vrot.slane %v3145, 7
          %v3148 = vshll.u32 %v3143, 16
          %v3150 = vor.u32 %v3147, %v3148
          %v3151 = vrot.slane %v3147, 4
          %s3154 = scalar_lea.vmem [#allocation2], 40
          %v3155 = vld [vmem:[%s3154] sm:$0xf]
          %v3156 = vsel %vm1394, %v3150, %v3155
          %3157 = vst [vmem:[%s3154] sm:$0xf] %v3156
          %v3158 = vld [vmem:[%s3154 + $0x4] sm:$0x1]
          %v3159 = vsel %vm1400, %v3151, %v3158
          %3160 = vst [vmem:[%s3154 + $0x4] sm:$0x1] %v3159
        $region48: #{fwd.3} parent=39 // pred_fallthru
          _
        %v3161 = vld [vmem:[#allocation2] sm:$0xf]
        %v3162 = vld [vmem:[#allocation2 + $0x4] sm:$0x1]
        %v3163 = vld [vmem:[#allocation2 + $0x8] sm:$0xf]
        %v3164 = vld [vmem:[#allocation2 + $0xc] sm:$0x1]
        %v3165 = vld [vmem:[#allocation2 + $0x10] sm:$0xf]
        %v3166 = vld [vmem:[#allocation2 + $0x14] sm:$0x1]
        %v3167 = vld [vmem:[#allocation2 + $0x18] sm:$0xf]
        %v3168 = vld [vmem:[#allocation2 + $0x1c] sm:$0x1]
        %v3169 = vld [vmem:[#allocation2 + $0x20] sm:$0xf]
        %v3170 = vld [vmem:[#allocation2 + $0x24] sm:$0x1]
        %v3171 = vld [vmem:[#allocation2 + $0x28] sm:$0xf]
        %v3172 = vld [vmem:[#allocation2 + $0x2c] sm:$0x1]
        %v3181 = vunpack.c.l.b16 %v3161
        %v3182 = vunpack.c.l.b16 %v3162
        %v3183 = vunpack.c.l.b16 %v3163
        %v3184 = vunpack.c.l.b16 %v3164
        %v3185 = vunpack.c.l.b16 %v3165
        %v3186 = vunpack.c.l.b16 %v3166
        %v3187 = vunpack.c.l.b16 %v3167
        %v3188 = vunpack.c.l.b16 %v3168
        %v3189 = vpack.c.b16 %v3182, %v3181
        %v3190 = vpack.c.b16 %v3184, %v3183
        %v3191 = vpack.c.b16 %v3186, %v3185
        %v3192 = vpack.c.b16 %v3188, %v3187
        %v3194 = vshrl.u32 %v3189, 16
        %v3196 = vshll.u32 %v3189, 16
        %v3198 = vrot.slane %v3196, 1
        %v3199 = vor.u32 %v3194, %v3198
        %v3201 = vshrl.u32 %v3190, 16
        %v3203 = vshll.u32 %v3190, 16
        %v3205 = vrot.slane %v3203, 1
        %v3206 = vor.u32 %v3201, %v3205
        %v3208 = vshrl.u32 %v3191, 16
        %v3210 = vshll.u32 %v3191, 16
        %v3212 = vrot.slane %v3210, 1
        %v3213 = vor.u32 %v3208, %v3212
        %v3215 = vshrl.u32 %v3192, 16
        %v3217 = vshll.u32 %v3192, 16
        %v3219 = vrot.slane %v3217, 1
        %v3220 = vor.u32 %v3215, %v3219
        %v3221 = vrot.slane %v3189, 1
        %v3222 = vrot.slane %v3190, 1
        %v3223 = vrot.slane %v3191, 1
        %v3224 = vrot.slane %v3192, 1
        %v3227 = vunpack.c.l.b16 %v3169
        %v3228 = vunpack.c.l.b16 %v3170
        %v3229 = vpack.c.b16 %v3228, %v3227
        %v3231 = vshrl.u32 %v3229, 16
        %v3233 = vshll.u32 %v3229, 16
        %v3235 = vrot.slane %v3233, 1
        %v3236 = vor.u32 %v3231, %v3235
        %v3237 = vrot.slane %v3229, 1
        %v3240 = vunpack.c.l.b16 %v3171
        %v3241 = vunpack.c.l.b16 %v3172
        %v3242 = vpack.c.b16 %v3241, %v3240
        %v3244 = vshrl.u32 %v3242, 16
        %v3246 = vshll.u32 %v3242, 16
        %v3248 = vrot.slane %v3246, 1
        %v3249 = vor.u32 %v3244, %v3248
        %v3250 = vrot.slane %v3242, 1
        %v3251 = vunpack.c.l.b16 %v3199
        %v3252 = vunpack.c.l.b16 %v3221
        %v3253 = vunpack.c.l.b16 %v3206
        %v3254 = vunpack.c.l.b16 %v3222
        %v3255 = vunpack.c.l.b16 %v3213
        %v3256 = vunpack.c.l.b16 %v3223
        %v3257 = vunpack.c.l.b16 %v3220
        %v3258 = vunpack.c.l.b16 %v3224
        %v3259 = vunpack.c.l.b16 %v3236
        %v3260 = vunpack.c.l.b16 %v3237
        %v3261 = vunpack.c.l.b16 %v3249
        %v3262 = vunpack.c.l.b16 %v3250
        %v3263 = vld [vmem:[%s3] sm:$0xf]
        %v3264 = vld [vmem:[%s3 + $0x4] sm:$0xf]
        %v3265 = vld [vmem:[%s3 + $0x8] sm:$0xf]
        %v3266 = vld [vmem:[%s3 + $0xc] sm:$0xf]
        %v3267 = vld [vmem:[%s3 + $0x10] sm:$0xf]
        %v3268 = vld [vmem:[%s3 + $0x14] sm:$0xf]
        %v3269 = vld [vmem:[%s3 + $0x18] sm:$0xf]
        %v3270 = vld [vmem:[%s3 + $0x1c] sm:$0xf]
        %v3271 = vld [vmem:[%s3 + $0x20] sm:$0xf]
        %v3272 = vld [vmem:[%s3 + $0x24] sm:$0xf]
        %v3273 = vld [vmem:[%s3 + $0x28] sm:$0xf]
        %v3274 = vld [vmem:[%s3 + $0x2c] sm:$0xf]
        %v3275 = vld [vmem:[%s3 + $0x30] sm:$0xf]
        %v3276 = vld [vmem:[%s3 + $0x34] sm:$0xf]
        %v3277 = vld [vmem:[%s3 + $0x38] sm:$0xf]
        %v3278 = vld [vmem:[%s3 + $0x3c] sm:$0xf]
        %v3279 = vld [vmem:[%s3 + $0x40] sm:$0xf]
        %v3280 = vld [vmem:[%s3 + $0x44] sm:$0xf]
        %v3281 = vld [vmem:[%s3 + $0x48] sm:$0xf]
        %v3282 = vld [vmem:[%s3 + $0x4c] sm:$0xf]
        %v3283 = vld [vmem:[%s3 + $0x50] sm:$0xf]
        %v3284 = vld [vmem:[%s3 + $0x54] sm:$0xf]
        %v3285 = vld [vmem:[%s3 + $0x58] sm:$0xf]
        %v3286 = vld [vmem:[%s3 + $0x5c] sm:$0xf]
        %v3287 = vld [vmem:[%s3 + $0x60] sm:$0xf]
        %v3288 = vld [vmem:[%s3 + $0x64] sm:$0xf]
        %v3289 = vld [vmem:[%s3 + $0x68] sm:$0xf]
        %v3290 = vld [vmem:[%s3 + $0x6c] sm:$0xf]
        %v3291 = vld [vmem:[%s3 + $0x70] sm:$0xf]
        %v3292 = vld [vmem:[%s3 + $0x74] sm:$0xf]
        %v3293 = vld [vmem:[%s3 + $0x78] sm:$0xf]
        %v3294 = vld [vmem:[%s3 + $0x7c] sm:$0xf]
        %v3295 = vld [vmem:[%s3 + $0x80] sm:$0xf]
        %v3296 = vld [vmem:[%s3 + $0x84] sm:$0xf]
        %v3297 = vld [vmem:[%s3 + $0x88] sm:$0xf]
        %v3298 = vld [vmem:[%s3 + $0x8c] sm:$0xf]
        %v3299 = vld [vmem:[%s3 + $0x90] sm:$0xf]
        %v3300 = vld [vmem:[%s3 + $0x94] sm:$0xf]
        %v3301 = vld [vmem:[%s3 + $0x98] sm:$0xf]
        %v3302 = vld [vmem:[%s3 + $0x9c] sm:$0xf]
        %v3303 = vld [vmem:[%s3 + $0xa0] sm:$0xf]
        %v3304 = vld [vmem:[%s3 + $0xa4] sm:$0xf]
        %v3305 = vld [vmem:[%s3 + $0xa8] sm:$0xf]
        %v3306 = vld [vmem:[%s3 + $0xac] sm:$0xf]
        %v3307 = vld [vmem:[%s3 + $0xb0] sm:$0xf]
        %v3308 = vld [vmem:[%s3 + $0xb4] sm:$0xf]
        %v3309 = vld [vmem:[%s3 + $0xb8] sm:$0xf]
        %v3310 = vld [vmem:[%s3 + $0xbc] sm:$0xf]
        %v3311 = vld [vmem:[%s3 + $0xc0] sm:$0xf]
        %v3312 = vld [vmem:[%s3 + $0xc4] sm:$0xf]
        %v3313 = vld [vmem:[%s3 + $0xc8] sm:$0xf]
        %v3314 = vld [vmem:[%s3 + $0xcc] sm:$0xf]
        %v3315 = vld [vmem:[%s3 + $0xd0] sm:$0xf]
        %v3316 = vld [vmem:[%s3 + $0xd4] sm:$0xf]
        %v3317 = vld [vmem:[%s3 + $0xd8] sm:$0xf]
        %v3318 = vld [vmem:[%s3 + $0xdc] sm:$0xf]
        %v3319 = vld [vmem:[%s3 + $0xe0] sm:$0xf]
        %v3320 = vld [vmem:[%s3 + $0xe4] sm:$0xf]
        %v3321 = vld [vmem:[%s3 + $0xe8] sm:$0xf]
        %v3322 = vld [vmem:[%s3 + $0xec] sm:$0xf]
        %v3323 = vld [vmem:[%s3 + $0xf0] sm:$0xf]
        %v3324 = vld [vmem:[%s3 + $0xf4] sm:$0xf]
        %v3325 = vld [vmem:[%s3 + $0xf8] sm:$0xf]
        %v3326 = vld [vmem:[%s3 + $0xfc] sm:$0xf]
        %v3327 = vld [vmem:[%s3 + $0x100] sm:$0xf]
        %v3328 = vld [vmem:[%s3 + $0x104] sm:$0xf]
        %v3329 = vld [vmem:[%s3 + $0x108] sm:$0xf]
        %v3330 = vld [vmem:[%s3 + $0x10c] sm:$0xf]
        %v3331 = vld [vmem:[%s3 + $0x110] sm:$0xf]
        %v3332 = vld [vmem:[%s3 + $0x114] sm:$0xf]
        %v3333 = vld [vmem:[%s3 + $0x118] sm:$0xf]
        %v3334 = vld [vmem:[%s3 + $0x11c] sm:$0xf]
        %v3335 = vld [vmem:[%s3 + $0x120] sm:$0xf]
        %v3336 = vld [vmem:[%s3 + $0x124] sm:$0xf]
        %v3337 = vld [vmem:[%s3 + $0x128] sm:$0xf]
        %v3338 = vld [vmem:[%s3 + $0x12c] sm:$0xf]
        %v3339 = vld [vmem:[%s3 + $0x130] sm:$0xf]
        %v3340 = vld [vmem:[%s3 + $0x134] sm:$0xf]
        %v3341 = vld [vmem:[%s3 + $0x138] sm:$0xf]
        %v3342 = vld [vmem:[%s3 + $0x13c] sm:$0xf]
        %v3343 = vld [vmem:[%s3 + $0x140] sm:$0xf]
        %v3344 = vld [vmem:[%s3 + $0x144] sm:$0xf]
        %v3345 = vld [vmem:[%s3 + $0x148] sm:$0xf]
        %v3346 = vld [vmem:[%s3 + $0x14c] sm:$0xf]
        %v3347 = vld [vmem:[%s3 + $0x150] sm:$0xf]
        %v3348 = vld [vmem:[%s3 + $0x154] sm:$0xf]
        %v3349 = vld [vmem:[%s3 + $0x158] sm:$0xf]
        %v3350 = vld [vmem:[%s3 + $0x15c] sm:$0xf]
        %v3351 = vld [vmem:[%s3 + $0x160] sm:$0xf]
        %v3352 = vld [vmem:[%s3 + $0x164] sm:$0xf]
        %v3353 = vld [vmem:[%s3 + $0x168] sm:$0xf]
        %v3354 = vld [vmem:[%s3 + $0x16c] sm:$0xf]
        %v3355 = vld [vmem:[%s3 + $0x170] sm:$0xf]
        %v3356 = vld [vmem:[%s3 + $0x174] sm:$0xf]
        %v3357 = vld [vmem:[%s3 + $0x178] sm:$0xf]
        %v3358 = vld [vmem:[%s3 + $0x17c] sm:$0xf]
        %v3359 = vld [vmem:[%s3 + $0x180] sm:$0xf]
        %v3360 = vld [vmem:[%s3 + $0x184] sm:$0xf]
        %v3361 = vld [vmem:[%s3 + $0x188] sm:$0xf]
        %v3362 = vld [vmem:[%s3 + $0x18c] sm:$0xf]
        %v3363 = vld [vmem:[%s3 + $0x190] sm:$0xf]
        %v3364 = vld [vmem:[%s3 + $0x194] sm:$0xf]
        %v3365 = vld [vmem:[%s3 + $0x198] sm:$0xf]
        %v3366 = vld [vmem:[%s3 + $0x19c] sm:$0xf]
        %v3367 = vld [vmem:[%s3 + $0x1a0] sm:$0xf]
        %v3368 = vld [vmem:[%s3 + $0x1a4] sm:$0xf]
        %v3369 = vld [vmem:[%s3 + $0x1a8] sm:$0xf]
        %v3370 = vld [vmem:[%s3 + $0x1ac] sm:$0xf]
        %v3371 = vld [vmem:[%s3 + $0x1b0] sm:$0xf]
        %v3372 = vld [vmem:[%s3 + $0x1b4] sm:$0xf]
        %v3373 = vld [vmem:[%s3 + $0x1b8] sm:$0xf]
        %v3374 = vld [vmem:[%s3 + $0x1bc] sm:$0xf]
        %v3375 = vld [vmem:[%s3 + $0x1c0] sm:$0xf]
        %v3376 = vld [vmem:[%s3 + $0x1c4] sm:$0xf]
        %v3377 = vld [vmem:[%s3 + $0x1c8] sm:$0xf]
        %v3378 = vld [vmem:[%s3 + $0x1cc] sm:$0xf]
        %v3379 = vld [vmem:[%s3 + $0x1d0] sm:$0xf]
        %v3380 = vld [vmem:[%s3 + $0x1d4] sm:$0xf]
        %v3381 = vld [vmem:[%s3 + $0x1d8] sm:$0xf]
        %v3382 = vld [vmem:[%s3 + $0x1dc] sm:$0xf]
        %v3383 = vld [vmem:[%s3 + $0x1e0] sm:$0xf]
        %v3384 = vld [vmem:[%s3 + $0x1e4] sm:$0xf]
        %v3385 = vld [vmem:[%s3 + $0x1e8] sm:$0xf]
        %v3386 = vld [vmem:[%s3 + $0x1ec] sm:$0xf]
        %v3387 = vld [vmem:[%s3 + $0x1f0] sm:$0xf]
        %v3388 = vld [vmem:[%s3 + $0x1f4] sm:$0xf]
        %v3389 = vld [vmem:[%s3 + $0x1f8] sm:$0xf]
        %v3390 = vld [vmem:[%s3 + $0x1fc] sm:$0xf]
        %v3391 = vld [vmem:[%s3 + $0x200] sm:$0xf]
        %v3392 = vld [vmem:[%s3 + $0x204] sm:$0xf]
        %v3393 = vld [vmem:[%s3 + $0x208] sm:$0xf]
        %v3394 = vld [vmem:[%s3 + $0x20c] sm:$0xf]
        %v3395 = vld [vmem:[%s3 + $0x210] sm:$0xf]
        %v3396 = vld [vmem:[%s3 + $0x214] sm:$0xf]
        %v3397 = vld [vmem:[%s3 + $0x218] sm:$0xf]
        %v3398 = vld [vmem:[%s3 + $0x21c] sm:$0xf]
        %v3399 = vld [vmem:[%s3 + $0x220] sm:$0xf]
        %v3400 = vld [vmem:[%s3 + $0x224] sm:$0xf]
        %v3401 = vld [vmem:[%s3 + $0x228] sm:$0xf]
        %v3402 = vld [vmem:[%s3 + $0x22c] sm:$0xf]
        %v3403 = vld [vmem:[%s3 + $0x230] sm:$0xf]
        %v3404 = vld [vmem:[%s3 + $0x234] sm:$0xf]
        %v3405 = vld [vmem:[%s3 + $0x238] sm:$0xf]
        %v3406 = vld [vmem:[%s3 + $0x23c] sm:$0xf]
        %v3407 = vld [vmem:[%s4] sm:$0x1]
        %v3409 = vlaneseq
        %v3410 = vshrl.u32 %v3409, 7
        %v3411 = vsub.s32 0, %v3410
        %v3412 = vrot.slane %v3407, %v3411
        %v3414 = vpack.c.b16 %v3183, %v3181
        %v3415 = vpack.c.b16 %v3253, %v3251
        %v3416 = vpack.c.b16 %v3254, %v3252
        %v3417 = vpack.c.b16 %v3185, %v3183
        %v3418 = vpack.c.b16 %v3255, %v3253
        %v3419 = vpack.c.b16 %v3256, %v3254
        %v3420 = vpack.c.b16 %v3187, %v3185
        %v3421 = vpack.c.b16 %v3257, %v3255
        %v3422 = vpack.c.b16 %v3258, %v3256
        %v3423 = vpack.c.b16 %v3227, %v3187
        %v3424 = vpack.c.b16 %v3259, %v3257
        %v3425 = vpack.c.b16 %v3260, %v3258
        %v3426 = vpack.c.b16 %v3240, %v3227
        %v3427 = vpack.c.b16 %v3261, %v3259
        %v3428 = vpack.c.b16 %v3262, %v3260
        %v3588 = vunpack.c.l.b16 %v3263
        %v3589 = vunpack.c.l.b16 %v3264
        %v3590 = vunpack.c.l.b16 %v3265
        %v3591 = vunpack.c.l.b16 %v3266
        %v3592 = vunpack.c.l.b16 %v3267
        %v3593 = vunpack.c.l.b16 %v3268
        %v3594 = vunpack.c.l.b16 %v3269
        %v3595 = vunpack.c.l.b16 %v3270
        %v3596 = vunpack.c.l.b16 %v3271
        %v3597 = vunpack.c.l.b16 %v3272
        %v3598 = vunpack.c.l.b16 %v3273
        %v3599 = vunpack.c.l.b16 %v3274
        %v3600 = vunpack.c.l.b16 %v3275
        %v3601 = vunpack.c.l.b16 %v3276
        %v3602 = vunpack.c.l.b16 %v3277
        %v3603 = vunpack.c.l.b16 %v3278
        %v3604 = vunpack.c.l.b16 %v3279
        %v3605 = vunpack.c.l.b16 %v3280
        %v3606 = vunpack.c.l.b16 %v3281
        %v3607 = vunpack.c.l.b16 %v3282
        %v3608 = vunpack.c.l.b16 %v3283
        %v3609 = vunpack.c.l.b16 %v3284
        %v3610 = vunpack.c.l.b16 %v3285
        %v3611 = vunpack.c.l.b16 %v3286
        %v3612 = vunpack.c.l.b16 %v3287
        %v3613 = vunpack.c.l.b16 %v3288
        %v3614 = vunpack.c.l.b16 %v3289
        %v3615 = vunpack.c.l.b16 %v3290
        %v3616 = vunpack.c.l.b16 %v3291
        %v3617 = vunpack.c.l.b16 %v3292
        %v3618 = vunpack.c.l.b16 %v3293
        %v3619 = vunpack.c.l.b16 %v3294
        %v3620 = vunpack.c.l.b16 %v3295
        %v3621 = vunpack.c.l.b16 %v3296
        %v3622 = vunpack.c.l.b16 %v3297
        %v3623 = vunpack.c.l.b16 %v3298
        %v3624 = vunpack.c.l.b16 %v3299
        %v3625 = vunpack.c.l.b16 %v3300
        %v3626 = vunpack.c.l.b16 %v3301
        %v3627 = vunpack.c.l.b16 %v3302
        %v3628 = vunpack.c.l.b16 %v3303
        %v3629 = vunpack.c.l.b16 %v3304
        %v3630 = vunpack.c.l.b16 %v3305
        %v3631 = vunpack.c.l.b16 %v3306
        %v3632 = vunpack.c.l.b16 %v3307
        %v3633 = vunpack.c.l.b16 %v3308
        %v3634 = vunpack.c.l.b16 %v3309
        %v3635 = vunpack.c.l.b16 %v3310
        %v3636 = vunpack.c.l.b16 %v3311
        %v3637 = vunpack.c.l.b16 %v3312
        %v3638 = vunpack.c.l.b16 %v3313
        %v3639 = vunpack.c.l.b16 %v3314
        %v3640 = vunpack.c.l.b16 %v3315
        %v3641 = vunpack.c.l.b16 %v3316
        %v3642 = vunpack.c.l.b16 %v3317
        %v3643 = vunpack.c.l.b16 %v3318
        %v3644 = vunpack.c.l.b16 %v3319
        %v3645 = vunpack.c.l.b16 %v3320
        %v3646 = vunpack.c.l.b16 %v3321
        %v3647 = vunpack.c.l.b16 %v3322
        %v3648 = vunpack.c.l.b16 %v3323
        %v3649 = vunpack.c.l.b16 %v3324
        %v3650 = vunpack.c.l.b16 %v3325
        %v3651 = vunpack.c.l.b16 %v3326
        %v3652 = vunpack.c.l.b16 %v3327
        %v3653 = vunpack.c.l.b16 %v3328
        %v3654 = vunpack.c.l.b16 %v3329
        %v3655 = vunpack.c.l.b16 %v3330
        %v3656 = vunpack.c.l.b16 %v3331
        %v3657 = vunpack.c.l.b16 %v3332
        %v3658 = vunpack.c.l.b16 %v3333
        %v3659 = vunpack.c.l.b16 %v3334
        %v3660 = vunpack.c.l.b16 %v3335
        %v3661 = vunpack.c.l.b16 %v3336
        %v3662 = vunpack.c.l.b16 %v3337
        %v3663 = vunpack.c.l.b16 %v3338
        %v3664 = vunpack.c.l.b16 %v3339
        %v3665 = vunpack.c.l.b16 %v3340
        %v3666 = vunpack.c.l.b16 %v3341
        %v3667 = vunpack.c.l.b16 %v3342
        %v3668 = vunpack.c.l.b16 %v3343
        %v3669 = vunpack.c.l.b16 %v3344
        %v3670 = vunpack.c.l.b16 %v3345
        %v3671 = vunpack.c.l.b16 %v3346
        %v3672 = vunpack.c.l.b16 %v3347
        %v3673 = vunpack.c.l.b16 %v3348
        %v3674 = vunpack.c.l.b16 %v3349
        %v3675 = vunpack.c.l.b16 %v3350
        %v3676 = vunpack.c.l.b16 %v3351
        %v3677 = vunpack.c.l.b16 %v3352
        %v3678 = vunpack.c.l.b16 %v3353
        %v3679 = vunpack.c.l.b16 %v3354
        %v3680 = vunpack.c.l.b16 %v3355
        %v3681 = vunpack.c.l.b16 %v3356
        %v3682 = vunpack.c.l.b16 %v3357
        %v3683 = vunpack.c.l.b16 %v3358
        %v3684 = vunpack.c.l.b16 %v3359
        %v3685 = vunpack.c.l.b16 %v3360
        %v3686 = vunpack.c.l.b16 %v3361
        %v3687 = vunpack.c.l.b16 %v3362
        %v3688 = vunpack.c.l.b16 %v3363
        %v3689 = vunpack.c.l.b16 %v3364
        %v3690 = vunpack.c.l.b16 %v3365
        %v3691 = vunpack.c.l.b16 %v3366
        %v3692 = vunpack.c.l.b16 %v3367
        %v3693 = vunpack.c.l.b16 %v3368
        %v3694 = vunpack.c.l.b16 %v3369
        %v3695 = vunpack.c.l.b16 %v3370
        %v3696 = vunpack.c.l.b16 %v3371
        %v3697 = vunpack.c.l.b16 %v3372
        %v3698 = vunpack.c.l.b16 %v3373
        %v3699 = vunpack.c.l.b16 %v3374
        %v3700 = vunpack.c.l.b16 %v3375
        %v3701 = vunpack.c.l.b16 %v3376
        %v3702 = vunpack.c.l.b16 %v3377
        %v3703 = vunpack.c.l.b16 %v3378
        %v3704 = vunpack.c.l.b16 %v3379
        %v3705 = vunpack.c.l.b16 %v3380
        %v3706 = vunpack.c.l.b16 %v3381
        %v3707 = vunpack.c.l.b16 %v3382
        %v3708 = vunpack.c.l.b16 %v3383
        %v3709 = vunpack.c.l.b16 %v3384
        %v3710 = vunpack.c.l.b16 %v3385
        %v3711 = vunpack.c.l.b16 %v3386
        %v3712 = vunpack.c.l.b16 %v3387
        %v3713 = vunpack.c.l.b16 %v3388
        %v3714 = vunpack.c.l.b16 %v3389
        %v3715 = vunpack.c.l.b16 %v3390
        %v3716 = vunpack.c.l.b16 %v3391
        %v3717 = vunpack.c.l.b16 %v3392
        %v3718 = vunpack.c.l.b16 %v3393
        %v3719 = vunpack.c.l.b16 %v3394
        %v3720 = vunpack.c.l.b16 %v3395
        %v3721 = vunpack.c.l.b16 %v3396
        %v3722 = vunpack.c.l.b16 %v3397
        %v3723 = vunpack.c.l.b16 %v3398
        %v3724 = vunpack.c.l.b16 %v3399
        %v3725 = vunpack.c.l.b16 %v3400
        %v3726 = vunpack.c.l.b16 %v3401
        %v3727 = vunpack.c.l.b16 %v3402
        %v3728 = vunpack.c.l.b16 %v3403
        %v3729 = vunpack.c.l.b16 %v3404
        %v3730 = vunpack.c.l.b16 %v3405
        %v3731 = vunpack.c.l.b16 %v3406
        %v3732 = vpack.c.b16 %v3589, %v3588
        %v3733 = vpack.c.b16 %v3591, %v3590
        %v3734 = vpack.c.b16 %v3593, %v3592
        %v3735 = vpack.c.b16 %v3595, %v3594
        %v3736 = vpack.c.b16 %v3597, %v3596
        %v3737 = vpack.c.b16 %v3599, %v3598
        %v3738 = vpack.c.b16 %v3601, %v3600
        %v3739 = vpack.c.b16 %v3603, %v3602
        %v3740 = vpack.c.b16 %v3605, %v3604
        %v3741 = vpack.c.b16 %v3607, %v3606
        %v3742 = vpack.c.b16 %v3609, %v3608
        %v3743 = vpack.c.b16 %v3611, %v3610
        %v3744 = vpack.c.b16 %v3613, %v3612
        %v3745 = vpack.c.b16 %v3615, %v3614
        %v3746 = vpack.c.b16 %v3617, %v3616
        %v3747 = vpack.c.b16 %v3619, %v3618
        %v3748 = vpack.c.b16 %v3621, %v3620
        %v3749 = vpack.c.b16 %v3623, %v3622
        %v3750 = vpack.c.b16 %v3625, %v3624
        %v3751 = vpack.c.b16 %v3627, %v3626
        %v3752 = vpack.c.b16 %v3629, %v3628
        %v3753 = vpack.c.b16 %v3631, %v3630
        %v3754 = vpack.c.b16 %v3633, %v3632
        %v3755 = vpack.c.b16 %v3635, %v3634
        %v3756 = vpack.c.b16 %v3637, %v3636
        %v3757 = vpack.c.b16 %v3639, %v3638
        %v3758 = vpack.c.b16 %v3641, %v3640
        %v3759 = vpack.c.b16 %v3643, %v3642
        %v3760 = vpack.c.b16 %v3645, %v3644
        %v3761 = vpack.c.b16 %v3647, %v3646
        %v3762 = vpack.c.b16 %v3649, %v3648
        %v3763 = vpack.c.b16 %v3651, %v3650
        %v3764 = vpack.c.b16 %v3653, %v3652
        %v3765 = vpack.c.b16 %v3655, %v3654
        %v3766 = vpack.c.b16 %v3657, %v3656
        %v3767 = vpack.c.b16 %v3659, %v3658
        %v3768 = vpack.c.b16 %v3661, %v3660
        %v3769 = vpack.c.b16 %v3663, %v3662
        %v3770 = vpack.c.b16 %v3665, %v3664
        %v3771 = vpack.c.b16 %v3667, %v3666
        %v3772 = vpack.c.b16 %v3669, %v3668
        %v3773 = vpack.c.b16 %v3671, %v3670
        %v3774 = vpack.c.b16 %v3673, %v3672
        %v3775 = vpack.c.b16 %v3675, %v3674
        %v3776 = vpack.c.b16 %v3677, %v3676
        %v3777 = vpack.c.b16 %v3679, %v3678
        %v3778 = vpack.c.b16 %v3681, %v3680
        %v3779 = vpack.c.b16 %v3683, %v3682
        %v3780 = vpack.c.b16 %v3685, %v3684
        %v3781 = vpack.c.b16 %v3687, %v3686
        %v3782 = vpack.c.b16 %v3689, %v3688
        %v3783 = vpack.c.b16 %v3691, %v3690
        %v3784 = vpack.c.b16 %v3693, %v3692
        %v3785 = vpack.c.b16 %v3695, %v3694
        %v3786 = vpack.c.b16 %v3697, %v3696
        %v3787 = vpack.c.b16 %v3699, %v3698
        %v3788 = vpack.c.b16 %v3701, %v3700
        %v3789 = vpack.c.b16 %v3703, %v3702
        %v3790 = vpack.c.b16 %v3705, %v3704
        %v3791 = vpack.c.b16 %v3707, %v3706
        %v3792 = vpack.c.b16 %v3709, %v3708
        %v3793 = vpack.c.b16 %v3711, %v3710
        %v3794 = vpack.c.b16 %v3713, %v3712
        %v3795 = vpack.c.b16 %v3715, %v3714
        %v3796 = vpack.c.b16 %v3717, %v3716
        %v3797 = vpack.c.b16 %v3719, %v3718
        %v3798 = vpack.c.b16 %v3721, %v3720
        %v3799 = vpack.c.b16 %v3723, %v3722
        %v3800 = vpack.c.b16 %v3725, %v3724
        %v3801 = vpack.c.b16 %v3727, %v3726
        %v3802 = vpack.c.b16 %v3729, %v3728
        %v3803 = vpack.c.b16 %v3731, %v3730
        %3876 = vmatprep.subr.bf16.mxu0 0
        %3877 = vmatpush1.bf16.msra.mxu0 %v3739
        %3878 = vmatprep.subr.bf16.mxu0 0
        %3879 = vmatpush1.bf16.msra.mxu0 %v3738
        %3880 = vmatprep.subr.bf16.mxu0 0
        %3881 = vmatpush1.bf16.msra.mxu0 %v3737
        %3882 = vmatprep.subr.bf16.mxu0 0
        %3883 = vmatpush1.bf16.msra.mxu0 %v3736
        %3884 = vmatprep.subr.bf16.mxu0 0
        %3885 = vmatpush1.bf16.msra.mxu0 %v3735
        %3886 = vmatprep.subr.bf16.mxu0 0
        %3887 = vmatpush1.bf16.msra.mxu0 %v3734
        %3888 = vmatprep.subr.bf16.mxu0 0
        %3889 = vmatpush1.bf16.msra.mxu0 %v3733
        %3890 = vmatprep.subr.bf16.mxu0 0
        %3891 = vmatpush1.bf16.msra.mxu0 %v3732
        %3892 = vmatprep.subr.bf16.mxu0 0
        %3893 = vmatpush2.bf16.msra.mxu0 %v3747
        %3894 = vmatprep.subr.bf16.mxu0 0
        %3895 = vmatpush2.bf16.msra.mxu0 %v3746
        %3896 = vmatprep.subr.bf16.mxu0 0
        %3897 = vmatpush2.bf16.msra.mxu0 %v3745
        %3898 = vmatprep.subr.bf16.mxu0 0
        %3899 = vmatpush2.bf16.msra.mxu0 %v3744
        %3900 = vmatprep.subr.bf16.mxu0 0
        %3901 = vmatpush2.bf16.msra.mxu0 %v3743
        %3902 = vmatprep.subr.bf16.mxu0 0
        %3903 = vmatpush2.bf16.msra.mxu0 %v3742
        %3904 = vmatprep.subr.bf16.mxu0 0
        %3905 = vmatpush2.bf16.msra.mxu0 %v3741
        %3906 = vmatprep.subr.bf16.mxu0 0
        %3907 = vmatpush2.bf16.msra.mxu0 %v3740
        %3908 = vmatprep.mubr.bf16.mxu0 %v3415
        %3909 = vmatmul.mubr.bf16.gmra.mxu0 %v3414
        %v3910 = vpop.f32.mrf.mxu0
        %v3911 = vadd.f32 %v3412, %v3910
        %v3912 = vpop.f32.mrf.mxu0
        %v3913 = vpop.f32.mrf.mxu0
        %v3914 = vadd.f32 %v3412, %v3913
        %v3915 = vpop.f32.mrf.mxu0
        %3916 = vmatprep.mubr.bf16.mxu0 %v3421
        %3917 = vmatmul.mubr.bf16.gmra.mxu0 %v3420
        %v3918 = vpop.f32.mrf.mxu0
        %v3919 = vadd.f32 %v3412, %v3918
        %v3920 = vpop.f32.mrf.mxu0
        %v3921 = vpop.f32.mrf.mxu0
        %v3922 = vadd.f32 %v3412, %v3921
        %v3923 = vpop.f32.mrf.mxu0
        %3924 = vdwg.mxu0
        %3925 = vmatprep.subr.bf16.mxu0 0
        %3926 = vmatpush1.bf16.msra.mxu0 %v3755
        %3927 = vmatprep.subr.bf16.mxu0 0
        %3928 = vmatpush1.bf16.msra.mxu0 %v3754
        %3929 = vmatprep.subr.bf16.mxu0 0
        %3930 = vmatpush1.bf16.msra.mxu0 %v3753
        %3931 = vmatprep.subr.bf16.mxu0 0
        %3932 = vmatpush1.bf16.msra.mxu0 %v3752
        %3933 = vmatprep.subr.bf16.mxu0 0
        %3934 = vmatpush1.bf16.msra.mxu0 %v3751
        %3935 = vmatprep.subr.bf16.mxu0 0
        %3936 = vmatpush1.bf16.msra.mxu0 %v3750
        %3937 = vmatprep.subr.bf16.mxu0 0
        %3938 = vmatpush1.bf16.msra.mxu0 %v3749
        %3939 = vmatprep.subr.bf16.mxu0 0
        %3940 = vmatpush1.bf16.msra.mxu0 %v3748
        %3941 = vmatprep.subr.bf16.mxu0 0
        %3942 = vmatpush2.bf16.msra.mxu0 %v3763
        %3943 = vmatprep.subr.bf16.mxu0 0
        %3944 = vmatpush2.bf16.msra.mxu0 %v3762
        %3945 = vmatprep.subr.bf16.mxu0 0
        %3946 = vmatpush2.bf16.msra.mxu0 %v3761
        %3947 = vmatprep.subr.bf16.mxu0 0
        %3948 = vmatpush2.bf16.msra.mxu0 %v3760
        %3949 = vmatprep.subr.bf16.mxu0 0
        %3950 = vmatpush2.bf16.msra.mxu0 %v3759
        %3951 = vmatprep.subr.bf16.mxu0 0
        %3952 = vmatpush2.bf16.msra.mxu0 %v3758
        %3953 = vmatprep.subr.bf16.mxu0 0
        %3954 = vmatpush2.bf16.msra.mxu0 %v3757
        %3955 = vmatprep.subr.bf16.mxu0 0
        %3956 = vmatpush2.bf16.msra.mxu0 %v3756
        %3957 = vmatprep.mubr.bf16.mxu0 %v3417
        %3958 = vmatmul.mubr.bf16.gmra.mxu0 %v3416
        %v3959 = vpop.f32.mrf.mxu0
        %v3960 = vadd.f32 %v3911, %v3959
        %v3961 = vpop.f32.mrf.mxu0
        %v3962 = vpop.f32.mrf.mxu0
        %v3963 = vadd.f32 %v3914, %v3962
        %v3964 = vpop.f32.mrf.mxu0
        %3965 = vmatprep.mubr.bf16.mxu0 %v3423
        %3966 = vmatmul.mubr.bf16.gmra.mxu0 %v3422
        %v3967 = vpop.f32.mrf.mxu0
        %v3968 = vadd.f32 %v3919, %v3967
        %v3969 = vpop.f32.mrf.mxu0
        %v3970 = vpop.f32.mrf.mxu0
        %v3971 = vadd.f32 %v3922, %v3970
        %v3972 = vpop.f32.mrf.mxu0
        %3973 = vdwg.mxu0
        %3974 = vmatprep.subr.bf16.mxu0 0
        %3975 = vmatpush1.bf16.msra.mxu0 %v3771
        %3976 = vmatprep.subr.bf16.mxu0 0
        %3977 = vmatpush1.bf16.msra.mxu0 %v3770
        %3978 = vmatprep.subr.bf16.mxu0 0
        %3979 = vmatpush1.bf16.msra.mxu0 %v3769
        %3980 = vmatprep.subr.bf16.mxu0 0
        %3981 = vmatpush1.bf16.msra.mxu0 %v3768
        %3982 = vmatprep.subr.bf16.mxu0 0
        %3983 = vmatpush1.bf16.msra.mxu0 %v3767
        %3984 = vmatprep.subr.bf16.mxu0 0
        %3985 = vmatpush1.bf16.msra.mxu0 %v3766
        %3986 = vmatprep.subr.bf16.mxu0 0
        %3987 = vmatpush1.bf16.msra.mxu0 %v3765
        %3988 = vmatprep.subr.bf16.mxu0 0
        %3989 = vmatpush1.bf16.msra.mxu0 %v3764
        %3990 = vmatprep.subr.bf16.mxu0 0
        %3991 = vmatpush2.bf16.msra.mxu0 %v3779
        %3992 = vmatprep.subr.bf16.mxu0 0
        %3993 = vmatpush2.bf16.msra.mxu0 %v3778
        %3994 = vmatprep.subr.bf16.mxu0 0
        %3995 = vmatpush2.bf16.msra.mxu0 %v3777
        %3996 = vmatprep.subr.bf16.mxu0 0
        %3997 = vmatpush2.bf16.msra.mxu0 %v3776
        %3998 = vmatprep.subr.bf16.mxu0 0
        %3999 = vmatpush2.bf16.msra.mxu0 %v3775
        %4000 = vmatprep.subr.bf16.mxu0 0
        %4001 = vmatpush2.bf16.msra.mxu0 %v3774
        %4002 = vmatprep.subr.bf16.mxu0 0
        %4003 = vmatpush2.bf16.msra.mxu0 %v3773
        %4004 = vmatprep.subr.bf16.mxu0 0
        %4005 = vmatpush2.bf16.msra.mxu0 %v3772
        %4006 = vmatprep.mubr.bf16.mxu0 %v3419
        %4007 = vmatmul.mubr.bf16.gmra.mxu0 %v3418
        %v4008 = vpop.f32.mrf.mxu0
        %v4009 = vadd.f32 %v3960, %v4008
        %v4010 = vpop.f32.mrf.mxu0
        %v4011 = vpop.f32.mrf.mxu0
        %v4012 = vadd.f32 %v3963, %v4011
        %v4013 = vpop.f32.mrf.mxu0
        %4014 = vmatprep.mubr.bf16.mxu0 %v3425
        %4015 = vmatmul.mubr.bf16.gmra.mxu0 %v3424
        %v4016 = vpop.f32.mrf.mxu0
        %v4017 = vadd.f32 %v3968, %v4016
        %v4018 = vpop.f32.mrf.mxu0
        %v4019 = vpop.f32.mrf.mxu0
        %v4020 = vadd.f32 %v3971, %v4019
        %v4021 = vpop.f32.mrf.mxu0
        %4022 = vdwg.mxu0
        %4023 = vmatprep.subr.bf16.mxu0 0
        %4024 = vmatpush1.bf16.msra.mxu0 %v3787
        %4025 = vmatprep.subr.bf16.mxu0 0
        %4026 = vmatpush1.bf16.msra.mxu0 %v3786
        %4027 = vmatprep.subr.bf16.mxu0 0
        %4028 = vmatpush1.bf16.msra.mxu0 %v3785
        %4029 = vmatprep.subr.bf16.mxu0 0
        %4030 = vmatpush1.bf16.msra.mxu0 %v3784
        %4031 = vmatprep.subr.bf16.mxu0 0
        %4032 = vmatpush1.bf16.msra.mxu0 %v3783
        %4033 = vmatprep.subr.bf16.mxu0 0
        %4034 = vmatpush1.bf16.msra.mxu0 %v3782
        %4035 = vmatprep.subr.bf16.mxu0 0
        %4036 = vmatpush1.bf16.msra.mxu0 %v3781
        %4037 = vmatprep.subr.bf16.mxu0 0
        %4038 = vmatpush1.bf16.msra.mxu0 %v3780
        %4039 = vmatprep.subr.bf16.mxu0 0
        %4040 = vmatpush2.bf16.msra.mxu0 %v3795
        %4041 = vmatprep.subr.bf16.mxu0 0
        %4042 = vmatpush2.bf16.msra.mxu0 %v3794
        %4043 = vmatprep.subr.bf16.mxu0 0
        %4044 = vmatpush2.bf16.msra.mxu0 %v3793
        %4045 = vmatprep.subr.bf16.mxu0 0
        %4046 = vmatpush2.bf16.msra.mxu0 %v3792
        %4047 = vmatprep.subr.bf16.mxu0 0
        %4048 = vmatpush2.bf16.msra.mxu0 %v3791
        %4049 = vmatprep.subr.bf16.mxu0 0
        %4050 = vmatpush2.bf16.msra.mxu0 %v3790
        %4051 = vmatprep.subr.bf16.mxu0 0
        %4052 = vmatpush2.bf16.msra.mxu0 %v3789
        %4053 = vmatprep.subr.bf16.mxu0 0
        %4054 = vmatpush2.bf16.msra.mxu0 %v3788
        %4055 = vmatprep.mubr.bf16.mxu0 %v3421
        %4056 = vmatmul.mubr.bf16.gmra.mxu0 %v3420
        %v4057 = vpop.f32.mrf.mxu0
        %v4058 = vadd.f32 %v4009, %v4057
        %v4059 = vpop.f32.mrf.mxu0
        %v4060 = vpop.f32.mrf.mxu0
        %v4061 = vadd.f32 %v4012, %v4060
        %v4062 = vpop.f32.mrf.mxu0
        %4063 = vmatprep.mubr.bf16.mxu0 %v3427
        %4064 = vmatmul.mubr.bf16.gmra.mxu0 %v3426
        %v4065 = vpop.f32.mrf.mxu0
        %v4066 = vadd.f32 %v4017, %v4065
        %v4067 = vpop.f32.mrf.mxu0
        %v4068 = vpop.f32.mrf.mxu0
        %v4069 = vadd.f32 %v4020, %v4068
        %v4070 = vpop.f32.mrf.mxu0
        %4071 = vdwg.mxu0
        %4072 = vmatprep.subr.bf16.mxu0 0
        %4073 = vmatpush1.bf16.msra.mxu0 %v3803
        %4074 = vmatprep.subr.bf16.mxu0 0
        %4075 = vmatpush1.bf16.msra.mxu0 %v3802
        %4076 = vmatprep.subr.bf16.mxu0 0
        %4077 = vmatpush1.bf16.msra.mxu0 %v3801
        %4078 = vmatprep.subr.bf16.mxu0 0
        %4079 = vmatpush1.bf16.msra.mxu0 %v3800
        %4080 = vmatprep.subr.bf16.mxu0 0
        %4081 = vmatpush1.bf16.msra.mxu0 %v3799
        %4082 = vmatprep.subr.bf16.mxu0 0
        %4083 = vmatpush1.bf16.msra.mxu0 %v3798
        %4084 = vmatprep.subr.bf16.mxu0 0
        %4085 = vmatpush1.bf16.msra.mxu0 %v3797
        %4086 = vmatprep.subr.bf16.mxu0 0
        %4087 = vmatpush1.bf16.msra.mxu0 %v3796
        %4088 = vmatprep.subr.bf16.mxu0 0
        %4089 = vmatpush2.bf16.msra.mxu0 0
        %4090 = vmatprep.subr.bf16.mxu0 0
        %4091 = vmatpush2.bf16.msra.mxu0 0
        %4092 = vmatprep.subr.bf16.mxu0 0
        %4093 = vmatpush2.bf16.msra.mxu0 0
        %4094 = vmatprep.subr.bf16.mxu0 0
        %4095 = vmatpush2.bf16.msra.mxu0 0
        %4096 = vmatprep.subr.bf16.mxu0 0
        %4097 = vmatpush2.bf16.msra.mxu0 0
        %4098 = vmatprep.subr.bf16.mxu0 0
        %4099 = vmatpush2.bf16.msra.mxu0 0
        %4100 = vmatprep.subr.bf16.mxu0 0
        %4101 = vmatpush2.bf16.msra.mxu0 0
        %4102 = vmatprep.subr.bf16.mxu0 0
        %4103 = vmatpush2.bf16.msra.mxu0 0
        %4104 = vmatprep.mubr.bf16.mxu0 0
        %4105 = vmatmul.mubr.bf16.gmra.mxu0 %v3422
        %v4106 = vpop.f32.mrf.mxu0
        %v4107 = vadd.f32 %v4058, %v4106
        %v4108 = vpop.f32.mrf.mxu0
        %v4109 = vpop.f32.mrf.mxu0
        %v4110 = vadd.f32 %v4061, %v4109
        %v4111 = vpop.f32.mrf.mxu0
        %4112 = vmatprep.mubr.bf16.mxu0 0
        %4113 = vmatmul.mubr.bf16.gmra.mxu0 %v3428
        %v4114 = vpop.f32.mrf.mxu0
        %v4115 = vadd.f32 %v4066, %v4114
        %v4116 = vpop.f32.mrf.mxu0
        %v4117 = vpop.f32.mrf.mxu0
        %v4118 = vadd.f32 %v4069, %v4117
        %v4119 = vpop.f32.mrf.mxu0
        %4120 = vdwg.mxu0
        %v4121 = vld [vmem:[%s266] sm:$0xf]
        %v4122 = vld [vmem:[%s266 + $0x4] sm:$0x1]
        %v4123 = vld [vmem:[%s266 + $0x8] sm:$0xf]
        %v4124 = vld [vmem:[%s266 + $0xc] sm:$0x1]
        %v4125 = vld [vmem:[%s266 + $0x10] sm:$0xf]
        %v4126 = vld [vmem:[%s266 + $0x14] sm:$0x1]
        %v4127 = vld [vmem:[%s266 + $0x18] sm:$0xf]
        %v4128 = vld [vmem:[%s266 + $0x1c] sm:$0x1]
        %vm4129 = vsmask.f32 3328
        %vm4130 = vsmask.f32 7440
        %vm4131 = vmor %vm4129, %vm4130
        %v4133 = vshrl.u32 %v4121, 16
        %v4135 = vrot.slane %v4133, 4
        %v4136 = vshll.u32 %v4121, 16
        %v4138 = vrot.slane %v4136, 5
        %v4139 = vor.u32 %v4135, %v4138
        %v4140 = vrot.slane %v4139, 4
        %v4142 = vshll.u32 %v4122, 16
        %v4144 = vrot.slane %v4142, 5
        %v4145 = vsel %vm4131, %v4140, %v4144
        %v4147 = vshrl.u32 %v4123, 16
        %v4149 = vrot.slane %v4147, 4
        %v4150 = vshll.u32 %v4123, 16
        %v4152 = vrot.slane %v4150, 5
        %v4153 = vor.u32 %v4149, %v4152
        %v4154 = vrot.slane %v4153, 4
        %v4156 = vshll.u32 %v4124, 16
        %v4158 = vrot.slane %v4156, 5
        %v4159 = vsel %vm4131, %v4154, %v4158
        %v4161 = vshrl.u32 %v4125, 16
        %v4163 = vrot.slane %v4161, 4
        %v4164 = vshll.u32 %v4125, 16
        %v4166 = vrot.slane %v4164, 5
        %v4167 = vor.u32 %v4163, %v4166
        %v4168 = vrot.slane %v4167, 4
        %v4170 = vshll.u32 %v4126, 16
        %v4172 = vrot.slane %v4170, 5
        %v4173 = vsel %vm4131, %v4168, %v4172
        %v4175 = vshrl.u32 %v4127, 16
        %v4177 = vrot.slane %v4175, 4
        %v4178 = vshll.u32 %v4127, 16
        %v4180 = vrot.slane %v4178, 5
        %v4181 = vor.u32 %v4177, %v4180
        %v4182 = vrot.slane %v4181, 4
        %v4184 = vshll.u32 %v4128, 16
        %v4186 = vrot.slane %v4184, 5
        %v4187 = vsel %vm4131, %v4182, %v4186
        %v4192 = vunpack.c.l.bf16 %v4145
        %v4193 = vunpack.c.l.bf16 %v4159
        %v4194 = vunpack.c.l.bf16 %v4173
        %v4195 = vunpack.c.l.bf16 %v4187
        %v4196 = vadd.f32 %v4107, %v4192
        %v4197 = vadd.f32 %v4110, %v4193
        %v4198 = vadd.f32 %v4115, %v4194
        %v4199 = vadd.f32 %v4118, %v4195
        %v4200 = vmax.f32 %v4196, 0.0
        %v4201 = vmax.f32 %v4197, 0.0
        %v4202 = vmax.f32 %v4198, 0.0
        %v4203 = vmax.f32 %v4199, 0.0
        %v4204 = vpack.c.bf16 %v4201, %v4200
        %v4205 = vpack.c.bf16 %v4203, %v4202
        %v4208 = vunpack.c.l.b16 %v4204
        %v4209 = vunpack.c.h.b16 %v4204
        %v4210 = vunpack.c.l.b16 %v4205
        %v4211 = vunpack.c.h.b16 %v4205
        %v4212 = vpack.c.b16 %v4208, %v4208
        %v4213 = vpack.c.b16 %v4209, %v4209
        %v4214 = vpack.c.b16 %v4210, %v4210
        %v4215 = vpack.c.b16 %v4211, %v4211
        %4220 = vst [vmem:[%s231] sm:$0xf] %v4212
        %4221 = vst [vmem:[%s231 + $0x4] sm:$0xf] %v4213
        %4222 = vst [vmem:[%s231 + $0x8] sm:$0xf] %v4214
        %4223 = vst [vmem:[%s231 + $0xc] sm:$0xf] %v4215
        %s4224 = sand.u32 %s151, 1
        %s4225 = scalar_lea.sflag [#allocation4], %s4224
        %s4226 = sand.u32 %s151, 1
        %s4227 = smul.addr %s4226, 16
        %s4228 = scalar_lea.vmem [#allocation3], %s4227
        // Predicated region
        $region49: #{fwd.3} parent=39 // pred_check
          %p4229 = pneg %p161
        $region50: #{fwd.3} parent=39 // pred_check_branch
          %4231 = sbr.rel (%p4229) target = $region52
        $region51: #{fwd.3} parent=39 // pred_region
          %s4232 = smul.u32 4, %s24
          %s4234 = ssub.s32 256, 256
          %4235 = vsyncadd %s4225, %s4234
          %s4236 = smul.addr %s23, 8
          %s4237 = sadd.s32 %s4232, %s4236
          %s4238 = smul.addr %s4237, 64
          %s4239 = scalar_lea.hbm %s5, %s4238
          %s4240 = sshll.u32 %s4228, 4
          %s4241 = int_to_ptr.vmem [resolvable:$true] %s4240
          %4246 = dma.vmem_to_hbm [thread:$0]  %s4241, 256, %s4239, %s4225, 64, 64, 4
        $region52: #{fwd.3} parent=39 // pred_fallthru
          _
      $region40: #{fwd.3} parent=5 // pred_fallthru
        _
      %p4247 = scmp.le.s32.totalorder 2, %s14
      // Predicated region
      $region53: #{fwd.3} parent=5 // pred_check
        %p4248 = pneg %p4247
      $region54: #{fwd.3} parent=5 // pred_check_branch
        %4250 = sbr.rel (%p4248) target = $region56
      $region55: #{fwd.3} parent=5 // pred_region
        %s4251 = ssub.s32 %s14, 2
        // Predicated region
        $region57: #{fwd.3} parent=55 // pred_check
          %p4252 = pneg %p167
        $region58: #{fwd.3} parent=55 // pred_check_branch
          %4254 = sbr.rel (%p4252) target = $region60
        $region59: #{fwd.3} parent=55 // pred_region
          %s4255 = sand.u32 %s152, 1
          %s4256 = scalar_lea.sflag [#allocation4], %s4255
          %s4257 = sand.u32 %s152, 1
          %s4258 = smul.addr %s4257, 16
          %s4259 = scalar_lea.vmem [#allocation3], %s4258
          %4260 = dma.done %s4256, 256
        $region60: #{fwd.3} parent=55 // pred_fallthru
          _
      $region56: #{fwd.3} parent=5 // pred_fallthru
        _
    $region6: #{fwd.3} parent=1 // loop_footer
      %s18 = sadd.s32 1, %s14
    $region7: #{fwd.3} parent=1 // loop_footer_branch
      %13 = sbr.rel target = $region3
    $region8: #{fwd.3} parent=1 // loop_exit
      _
    %4261 = vsyncpa [#allocation4], 1
    %s4262 = scalar_lea.sflag [#allocation4], 1
    %4263 = vsyncpa %s4262, 1

</llo_original>
